<compile_context>
chip_gen: v7x
topology: tpu7x:2x2x1
jax: 0.10.0
libtpu: 0.0.40
codegen_flags: <defaults>
</compile_context>

<pallas_src>
import jax
import jax.numpy as jnp
from jax.experimental import pallas as pl
from jax.experimental.pallas import tpu as pltpu

_BN_EPS = 1e-5


# --------------------------------------------------------------------------
# In-kernel helpers.
# --------------------------------------------------------------------------
def _fill_padded(pad_ref, x):
    """Place x (TB, L, C) at rows [8, 8+L) of pad_ref, zeroing only the two
    8-row-aligned halo tiles instead of the whole scratch."""
    TB, rows, C = pad_ref.shape
    L = x.shape[1]
    z8 = jnp.zeros((TB, 8, C), pad_ref.dtype)
    pad_ref[:, 0:8, :] = z8                 # left halo tile (aligned store)
    pad_ref[:, rows - 8:rows, :] = z8       # right halo tile (aligned store)
    pad_ref[:, 8:8 + L, :] = x.astype(pad_ref.dtype)   # body (aligned offset 8)


def _conv_im2col_bn_relu(pad_ref, w_ref, s_ref, t_ref, L):
    """Conv1d('same') + folded (bias+BN) affine + ReLU as ONE MXU matmul.

    pad_ref: (TB, rows, Cin) f32 scratch, activation at rows [8, 8+L), halos 0.
    w_ref:   (K*Cin, Cout) bf16, row index = k*Cin + ci (tap-major).
    s_ref/t_ref: (1, Cout) f32 folded BN scale / (bias+BN) shift.
    """
    TB, _, Cin = pad_ref.shape
    KCin, Cout = w_ref.shape
    K = KCin // Cin
    p = K // 2
    xp = pad_ref[...]
    # im2col: lane-concat the K shifted slices -> single dot, contraction K*Cin.
    cols = jnp.concatenate(
        [xp[:, 8 - p + k: 8 - p + k + L, :] for k in range(K)], axis=-1)
    y = jnp.dot(cols.reshape(TB * L, KCin).astype(jnp.bfloat16), w_ref[...],
                preferred_element_type=jnp.float32)
    y = jnp.maximum(y * s_ref[...] + t_ref[...], 0.0)
    return y.reshape(TB, L, Cout)


def _maxpool_from_ref(ref, pool):
    """MaxPool1d(kernel=stride=pool) via `pool` strided VMEM reads.
    # TODO(synk): audit the strided-sublane loads in the bundle dump; switch to
    # pairwise maxes on a lane-packed layout if they lower to masked selects.
    """
    L = ref.shape[1]
    out = ref[:, pl.ds(0, L // pool, stride=pool), :]
    for k in range(1, pool):
        out = jnp.maximum(out, ref[:, pl.ds(k, L // pool, stride=pool), :])
    return out


def _eca_att(x, band):
    """att_layer: ECA gate (avg-pool -> k=3 channel conv -> sigmoid) + residual."""
    y = jnp.mean(x, axis=1)                                    # (TB, C)
    z = jnp.dot(y, band, preferred_element_type=jnp.float32)   # k=3 channel conv
    return x * jax.nn.sigmoid(z)[:, None, :] + x


# --------------------------------------------------------------------------
# The fused MTAGNp kernel (encoder + attention + task heads).
# --------------------------------------------------------------------------
def _mtagnp_kernel(
    x_ref,
    w10_ref, s10_ref, t10_ref, w20_ref, s20_ref, t20_ref,
    w11_ref, s11_ref, t11_ref, w21_ref, s21_ref, t21_ref,
    w12_ref, s12_ref, t12_ref, w22_ref, s22_ref, t22_ref,
    b16_ref, b32_ref, b64_ref,
    cw0_ref, cs0_ref, ct0_ref,
    cw1_ref, cs1_ref, ct1_ref,
    cw2_ref, cs2_ref, ct2_ref,
    hw_ref, hb_ref,
    out_ref,
    pad0, pad20, pad11, pad21, pad12, pad22,
    g0s, g1s, g2s, buf0, buf1, buf2,
):
    TB, L, _ = x_ref.shape
    L1, L2 = L // 4, L // 16

    # ---------------- encoder ----------------
    # stage 0: conv(1->16, k7) as 7 broadcast VPU FMAs; conv(16->16, k7); pool 4
    _fill_padded(pad0, x_ref[...])
    xp0 = pad0[...]
    w0 = w10_ref[...]                                          # (7, 1, 16) f32
    acc = xp0[:, 5:5 + L, :] * w0[0]
    for k in range(1, 7):
        acc = acc + xp0[:, 5 + k:5 + k + L, :] * w0[k]
    e1 = jnp.maximum(acc * s10_ref[...] + t10_ref[...], 0.0)   # (TB, L, 16)
    _fill_padded(pad20, e1)
    g0s[...] = _conv_im2col_bn_relu(pad20, w20_ref, s20_ref, t20_ref, L)
    p0 = _maxpool_from_ref(g0s, 4)                             # (TB, L/4, 16)

    # stage 1: conv(16->32, k5); conv(32->32, k5); pool 4
    _fill_padded(pad11, p0)
    e1 = _conv_im2col_bn_relu(pad11, w11_ref, s11_ref, t11_ref, L1)
    _fill_padded(pad21, e1)
    g1s[...] = _conv_im2col_bn_relu(pad21, w21_ref, s21_ref, t21_ref, L1)
    p1 = _maxpool_from_ref(g1s, 4)                             # (TB, L/16, 32)

    # stage 2: conv(32->64, k3); conv(64->64, k3)
    _fill_padded(pad12, p1)
    e1 = _conv_im2col_bn_relu(pad12, w12_ref, s12_ref, t12_ref, L2)
    _fill_padded(pad22, e1)
    g2s[...] = _conv_im2col_bn_relu(pad22, w22_ref, s22_ref, t22_ref, L2)

    # ------------- attention branch + task heads (3 tasks, unrolled) -------------
    g0, g1, g2 = g0s[...], g1s[...], g2s[...]
    bands0, bands1, bands2 = b16_ref[...], b32_ref[...], b64_ref[...]
    cw0, cs0, ct0 = cw0_ref[...], cs0_ref[...], ct0_ref[...]
    cw1, cs1, ct1 = cw1_ref[...], cs1_ref[...], ct1_ref[...]
    cw2, cs2, ct2 = cw2_ref[...], cs2_ref[...], ct2_ref[...]

    def conv1x1_pool(x, w, s, t, buf_ref, pool):
        TBx, Lc, Cin = x.shape
        y = jnp.dot(x.reshape(TBx * Lc, Cin).astype(jnp.bfloat16), w,
                    preferred_element_type=jnp.float32)
        y = jnp.maximum(y * s + t, 0.0)
        buf_ref[...] = y.reshape(TBx, Lc, w.shape[1])          # stays in VMEM
        return _maxpool_from_ref(buf_ref, pool)

    logits = []
    for i in range(3):                                         # static task unroll
        a = _eca_att(g0, bands0[i])
        a = conv1x1_pool(a, cw0, cs0, ct0, buf0, 4)            # (TB, L/4, 32)
        a = _eca_att(g1 + a, bands1[i])
        a = conv1x1_pool(a, cw1, cs1, ct1, buf1, 4)            # (TB, L/16, 64)
        a = _eca_att(g2 + a, bands2[i])
        a = conv1x1_pool(a, cw2, cs2, ct2, buf2, 2)            # (TB, L/32, 128)
        m = jnp.mean(a, axis=1)                                # AdaptiveAvgPool1d(1)
        logits.append(
            jnp.dot(m.astype(jnp.bfloat16), hw_ref[i],
                    preferred_element_type=jnp.float32) + hb_ref[i])
    out_ref[:, 0, :] = jnp.concatenate(logits, axis=-1)        # (TB, 384) lane-dense


# --------------------------------------------------------------------------
# Host wrapper: one pallas_call for the whole forward pass.
# --------------------------------------------------------------------------
def _pad_rows(lb):
    # body at row 8 (aligned) + an 8-row-aligned right halo tile
    return 8 + (lb // 8) * 8 + 8


def _padded_bytes(shape, dtype):
    shape = tuple(shape)
    if len(shape) < 2:
        shape = (1,) * (2 - len(shape)) + shape
    lead = 1
    for d in shape[:-2]:
        lead *= d
    sub = -(-shape[-2] // 8) * 8
    lane = -(-shape[-1] // 128) * 128
    return lead * sub * lane * jnp.dtype(dtype).itemsize


def mtagnp_forward(x_ncl, P):
    """x_ncl: (N, 1, L) with L % 32 == 0.  Returns (t1, t2, t3) logits."""
    N, C, L = x_ncl.shape
    assert C == 1 and L % 32 == 0, "MTAGNp pooling chain needs 1 channel, L % 32 == 0"
    L1, L2 = L // 4, L // 16

    TB = 1 if N < 16 else 8          # batch tile; >1 program keeps both v7x TCs busy
    while N % TB:
        TB -= 1
    grid = (N // TB,)

    x = x_ncl.reshape(N, L, 1).astype(jnp.float32)

    weights = [
        P["w10"], P["s10"], P["t10"], P["w20"], P["s20"], P["t20"],
        P["w11"], P["s11"], P["t11"], P["w21"], P["s21"], P["t21"],
        P["w12"], P["s12"], P["t12"], P["w22"], P["s22"], P["t22"],
        P["b16"], P["b32"], P["b64"],
        P["cw0"], P["cs0"], P["ct0"],
        P["cw1"], P["cs1"], P["ct1"],
        P["cw2"], P["cs2"], P["ct2"],
        P["head_w"], P["head_b"],
    ]

    def w_spec(arr):
        nd = arr.ndim
        return pl.BlockSpec(arr.shape, lambda b: (0,) * nd)

    in_specs = [pl.BlockSpec((TB, L, 1), lambda b: (b, 0, 0))]
    in_specs += [w_spec(w) for w in weights]
    out_specs = pl.BlockSpec((TB, 1, 384), lambda b: (b, 0, 0))

    scratch_defs = [
        ((TB, _pad_rows(L), 1), jnp.float32),     # pad0  : stage0 conv1 input
        ((TB, _pad_rows(L), 16), jnp.float32),    # pad20 : stage0 conv2 input
        ((TB, _pad_rows(L1), 16), jnp.float32),   # pad11 : stage1 conv1 input
        ((TB, _pad_rows(L1), 32), jnp.float32),   # pad21 : stage1 conv2 input
        ((TB, _pad_rows(L2), 32), jnp.float32),   # pad12 : stage2 conv1 input
        ((TB, _pad_rows(L2), 64), jnp.float32),   # pad22 : stage2 conv2 input
        ((TB, L, 16), jnp.float32),               # g0 (reused by all 3 tasks)
        ((TB, L1, 32), jnp.float32),              # g1
        ((TB, L2, 64), jnp.float32),              # g2
        ((TB, L, 32), jnp.float32),               # buf0 : att conv output, pool src
        ((TB, L1, 64), jnp.float32),              # buf1
        ((TB, L2, 128), jnp.float32),             # buf2
    ]
    scratch = [pltpu.VMEM(s, d) for s, d in scratch_defs]

    # VMEM budget: scratch + double-buffered inputs/output + margin, clamped to
    # [32 MiB, 56 MiB] (v7x physical VMEM is 64 MiB; v5e/v6e have 128 MiB).
    est = sum(_padded_bytes(s, d) for s, d in scratch_defs)
    est += 2 * sum(_padded_bytes(w.shape, w.dtype) for w in weights)
    est += 2 * _padded_bytes((TB, L, 1), jnp.float32)
    est += 2 * _padded_bytes((TB, 1, 384), jnp.float32)
    vmem_limit = int(min(max(2 * est + (4 << 20), 32 << 20), 56 << 20))

    out = pl.pallas_call(
        _mtagnp_kernel,
        out_shape=jax.ShapeDtypeStruct((N, 1, 384), jnp.float32),
        grid=grid,
        in_specs=in_specs,
        out_specs=out_specs,
        scratch_shapes=scratch,
        compiler_params=pltpu.CompilerParams(
            dimension_semantics=("parallel",),
            vmem_limit_bytes=vmem_limit),
    )(x, *weights)

    return out[:, 0, 0:10], out[:, 0, 128:132], out[:, 0, 256:259]


# --------------------------------------------------------------------------
# Parameters (deterministic, matching MTAGNp.__init__ init schemes).
# --------------------------------------------------------------------------
def init_params(key):
    ks = iter(jax.random.split(key, 32))

    def conv_w(cin, cout, k):
        # kaiming_normal_('fan_out', relu): std = sqrt(2 / (cout * k)); bias = 0.
        w = jax.random.normal(next(ks), (cout, cin, k), jnp.float32)
        w = w * (2.0 / (cout * k)) ** 0.5
        return jnp.transpose(w, (2, 1, 0))                 # (K, Cin, Cout)

    def bn_fold(cout):
        # BN eval with fresh stats (mean 0, var 1, gamma 1, beta 0); bias folds here.
        scale = jnp.full((1, cout), 1.0 / (1.0 + _BN_EPS) ** 0.5, jnp.float32)
        shift = jnp.zeros((1, cout), jnp.float32)
        return scale, shift

    def folded_conv(cin, cout, k):
        w = conv_w(cin, cout, k).reshape(k * cin, cout).astype(jnp.bfloat16)
        s, t = bn_fold(cout)
        return w, s, t

    def band(w3, C):
        # torch conv1d(k=3, pad=1) over channels: z_c = w0*y_{c-1}+w1*y_c+w2*y_{c+1}
        r = jnp.arange(C)[:, None]
        c = jnp.arange(C)[None, :]
        return (w3[0] * (r == c - 1) + w3[1] * (r == c)
                + w3[2] * (r == c + 1)).astype(jnp.float32)

    P = {}
    # encoder_block_1 / encoder_block_2 (first conv kept (K, 1, 16) f32 for VPU FMAs)
    P["w10"] = conv_w(1, 16, 7)
    P["s10"], P["t10"] = bn_fold(16)
    P["w20"], P["s20"], P["t20"] = folded_conv(16, 16, 7)
    P["w11"], P["s11"], P["t11"] = folded_conv(16, 32, 5)
    P["w21"], P["s21"], P["t21"] = folded_conv(32, 32, 5)
    P["w12"], P["s12"], P["t12"] = folded_conv(32, 64, 3)
    P["w22"], P["s22"], P["t22"] = folded_conv(64, 64, 3)

    # encoder_att_conv (1x1 convs, shared across tasks)
    P["cw0"], P["cs0"], P["ct0"] = folded_conv(16, 32, 1)
    P["cw1"], P["cs1"], P["ct1"] = folded_conv(32, 64, 1)
    P["cw2"], P["cs2"], P["ct2"] = folded_conv(64, 128, 1)

    # ECA taps per (task, stage); band matrices precomputed on the host.
    chans = (16, 32, 64)
    bands = []
    for C in chans:
        bands.append(jnp.stack(
            [band(jax.random.normal(next(ks), (3,), jnp.float32) * 0.5, C)
             for _ in range(3)]))                          # stacked over tasks
    P["b16"], P["b32"], P["b64"] = bands

    # FC heads (xavier_normal_, bias 0), zero-padded to 128 output lanes.
    hw, hb = [], []
    for c in (10, 4, 3):
        std = (2.0 / (128 + c)) ** 0.5
        W = jax.random.normal(next(ks), (c, 128), jnp.float32) * std
        hw.append(jnp.zeros((128, 128), jnp.float32).at[:, :c].set(W.T))
        hb.append(jnp.zeros((1, 128), jnp.float32))
    P["head_w"] = jnp.stack(hw).astype(jnp.bfloat16)
    P["head_b"] = jnp.stack(hb)
    return P


if __name__ == "__main__":
    key = jax.random.PRNGKey(0)
    pkey, xkey = jax.random.split(key)
    params = init_params(pkey)
    # batch=2, 1 channel, seq=64 (pooling chain requires L divisible by 32)
    x = jax.random.normal(xkey, (2, 1, 64), jnp.float32)

    t1, t2, t3 = jax.jit(mtagnp_forward)(x, params)
    jax.block_until_ready((t1, t2, t3))
    assert t1.shape == (2, 10) and t2.shape == (2, 4) and t3.shape == (2, 3)
    assert all(bool(jnp.all(jnp.isfinite(t))) for t in (t1, t2, t3))
    print("KERNEL_OK")
</pallas_src>

<mosaic_0001>
module attributes {stable_mosaic.version = 11 : i64} {
  func.func @_mtagnp_kernel(%arg0: i32, %arg1: memref<1x64x1xf32, #tpu.memory_space<vmem>>, %arg2: memref<7x1x16xf32, #tpu.memory_space<vmem>>, %arg3: memref<1x16xf32, #tpu.memory_space<vmem>>, %arg4: memref<1x16xf32, #tpu.memory_space<vmem>>, %arg5: memref<112x16xbf16, #tpu.memory_space<vmem>>, %arg6: memref<1x16xf32, #tpu.memory_space<vmem>>, %arg7: memref<1x16xf32, #tpu.memory_space<vmem>>, %arg8: memref<80x32xbf16, #tpu.memory_space<vmem>>, %arg9: memref<1x32xf32, #tpu.memory_space<vmem>>, %arg10: memref<1x32xf32, #tpu.memory_space<vmem>>, %arg11: memref<160x32xbf16, #tpu.memory_space<vmem>>, %arg12: memref<1x32xf32, #tpu.memory_space<vmem>>, %arg13: memref<1x32xf32, #tpu.memory_space<vmem>>, %arg14: memref<96x64xbf16, #tpu.memory_space<vmem>>, %arg15: memref<1x64xf32, #tpu.memory_space<vmem>>, %arg16: memref<1x64xf32, #tpu.memory_space<vmem>>, %arg17: memref<192x64xbf16, #tpu.memory_space<vmem>>, %arg18: memref<1x64xf32, #tpu.memory_space<vmem>>, %arg19: memref<1x64xf32, #tpu.memory_space<vmem>>, %arg20: memref<3x16x16xf32, #tpu.memory_space<vmem>>, %arg21: memref<3x32x32xf32, #tpu.memory_space<vmem>>, %arg22: memref<3x64x64xf32, #tpu.memory_space<vmem>>, %arg23: memref<16x32xbf16, #tpu.memory_space<vmem>>, %arg24: memref<1x32xf32, #tpu.memory_space<vmem>>, %arg25: memref<1x32xf32, #tpu.memory_space<vmem>>, %arg26: memref<32x64xbf16, #tpu.memory_space<vmem>>, %arg27: memref<1x64xf32, #tpu.memory_space<vmem>>, %arg28: memref<1x64xf32, #tpu.memory_space<vmem>>, %arg29: memref<64x128xbf16, #tpu.memory_space<vmem>>, %arg30: memref<1x128xf32, #tpu.memory_space<vmem>>, %arg31: memref<1x128xf32, #tpu.memory_space<vmem>>, %arg32: memref<3x128x128xbf16, #tpu.memory_space<vmem>>, %arg33: memref<3x1x128xf32, #tpu.memory_space<vmem>>, %arg34: memref<1x1x384xf32, #tpu.memory_space<vmem>>, %arg35: memref<1x80x1xf32, #tpu.memory_space<vmem>>, %arg36: memref<1x80x16xf32, #tpu.memory_space<vmem>>, %arg37: memref<1x32x16xf32, #tpu.memory_space<vmem>>, %arg38: memref<1x32x32xf32, #tpu.memory_space<vmem>>, %arg39: memref<1x16x32xf32, #tpu.memory_space<vmem>>, %arg40: memref<1x16x64xf32, #tpu.memory_space<vmem>>, %arg41: memref<1x64x16xf32, #tpu.memory_space<vmem>>, %arg42: memref<1x16x32xf32, #tpu.memory_space<vmem>>, %arg43: memref<1x4x64xf32, #tpu.memory_space<vmem>>, %arg44: memref<1x64x32xf32, #tpu.memory_space<vmem>>, %arg45: memref<1x16x64xf32, #tpu.memory_space<vmem>>, %arg46: memref<1x4x128xf32, #tpu.memory_space<vmem>>) attributes {dimension_semantics = [#tpu.dimension_semantics<parallel>], iteration_bounds = array<i64: 2>, scalar_prefetch = 0 : i64, scratch_operands = 12 : i64, tpu.core_type = #tpu.core_type<tc>, window_params = [{transform_indices = @transform_0, window_bounds = array<i64: 1, 64, 1>}, {pipeline_mode = #tpu.pipeline_mode<synchronous>, transform_indices = @transform_1, window_bounds = array<i64: 7, 1, 16>}, {pipeline_mode = #tpu.pipeline_mode<synchronous>, transform_indices = @transform_2, window_bounds = array<i64: 1, 16>}, {pipeline_mode = #tpu.pipeline_mode<synchronous>, transform_indices = @transform_3, window_bounds = array<i64: 1, 16>}, {pipeline_mode = #tpu.pipeline_mode<synchronous>, transform_indices = @transform_4, window_bounds = array<i64: 112, 16>}, {pipeline_mode = #tpu.pipeline_mode<synchronous>, transform_indices = @transform_5, window_bounds = array<i64: 1, 16>}, {pipeline_mode = #tpu.pipeline_mode<synchronous>, transform_indices = @transform_6, window_bounds = array<i64: 1, 16>}, {pipeline_mode = #tpu.pipeline_mode<synchronous>, transform_indices = @transform_7, window_bounds = array<i64: 80, 32>}, {pipeline_mode = #tpu.pipeline_mode<synchronous>, transform_indices = @transform_8, window_bounds = array<i64: 1, 32>}, {pipeline_mode = #tpu.pipeline_mode<synchronous>, transform_indices = @transform_9, window_bounds = array<i64: 1, 32>}, {pipeline_mode = #tpu.pipeline_mode<synchronous>, transform_indices = @transform_10, window_bounds = array<i64: 160, 32>}, {pipeline_mode = #tpu.pipeline_mode<synchronous>, transform_indices = @transform_11, window_bounds = array<i64: 1, 32>}, {pipeline_mode = #tpu.pipeline_mode<synchronous>, transform_indices = @transform_12, window_bounds = array<i64: 1, 32>}, {pipeline_mode = #tpu.pipeline_mode<synchronous>, transform_indices = @transform_13, window_bounds = array<i64: 96, 64>}, {pipeline_mode = #tpu.pipeline_mode<synchronous>, transform_indices = @transform_14, window_bounds = array<i64: 1, 64>}, {pipeline_mode = #tpu.pipeline_mode<synchronous>, transform_indices = @transform_15, window_bounds = array<i64: 1, 64>}, {pipeline_mode = #tpu.pipeline_mode<synchronous>, transform_indices = @transform_16, window_bounds = array<i64: 192, 64>}, {pipeline_mode = #tpu.pipeline_mode<synchronous>, transform_indices = @transform_17, window_bounds = array<i64: 1, 64>}, {pipeline_mode = #tpu.pipeline_mode<synchronous>, transform_indices = @transform_18, window_bounds = array<i64: 1, 64>}, {pipeline_mode = #tpu.pipeline_mode<synchronous>, transform_indices = @transform_19, window_bounds = array<i64: 3, 16, 16>}, {pipeline_mode = #tpu.pipeline_mode<synchronous>, transform_indices = @transform_20, window_bounds = array<i64: 3, 32, 32>}, {pipeline_mode = #tpu.pipeline_mode<synchronous>, transform_indices = @transform_21, window_bounds = array<i64: 3, 64, 64>}, {pipeline_mode = #tpu.pipeline_mode<synchronous>, transform_indices = @transform_22, window_bounds = array<i64: 16, 32>}, {pipeline_mode = #tpu.pipeline_mode<synchronous>, transform_indices = @transform_23, window_bounds = array<i64: 1, 32>}, {pipeline_mode = #tpu.pipeline_mode<synchronous>, transform_indices = @transform_24, window_bounds = array<i64: 1, 32>}, {pipeline_mode = #tpu.pipeline_mode<synchronous>, transform_indices = @transform_25, window_bounds = array<i64: 32, 64>}, {pipeline_mode = #tpu.pipeline_mode<synchronous>, transform_indices = @transform_26, window_bounds = array<i64: 1, 64>}, {pipeline_mode = #tpu.pipeline_mode<synchronous>, transform_indices = @transform_27, window_bounds = array<i64: 1, 64>}, {pipeline_mode = #tpu.pipeline_mode<synchronous>, transform_indices = @transform_28, window_bounds = array<i64: 64, 128>}, {pipeline_mode = #tpu.pipeline_mode<synchronous>, transform_indices = @transform_29, window_bounds = array<i64: 1, 128>}, {pipeline_mode = #tpu.pipeline_mode<synchronous>, transform_indices = @transform_30, window_bounds = array<i64: 1, 128>}, {pipeline_mode = #tpu.pipeline_mode<synchronous>, transform_indices = @transform_31, window_bounds = array<i64: 3, 128, 128>}, {pipeline_mode = #tpu.pipeline_mode<synchronous>, transform_indices = @transform_32, window_bounds = array<i64: 3, 1, 128>}, {transform_indices = @transform_33, window_bounds = array<i64: 1, 1, 384>}]} {
    %c0 = arith.constant 0 : index
    %c0_0 = arith.constant 0 : index
    %c0_1 = arith.constant 0 : index
    %0 = vector.load %arg1[%c0, %c0_0, %c0_1] : memref<1x64x1xf32, #tpu.memory_space<vmem>>, vector<1x64x1xf32>
    %cst = arith.constant 0.000000e+00 : f32
    %1 = vector.broadcast %cst : f32 to vector<1x8x1xf32>
    %c0_2 = arith.constant 0 : index
    %c0_3 = arith.constant 0 : index
    %c0_4 = arith.constant 0 : index
    %2 = vector.load %arg35[%c0_2, %c0_3, %c0_4] : memref<1x80x1xf32, #tpu.memory_space<vmem>>, vector<1x8x1xf32>
    tpu.vector_store %arg35[%c0_2, %c0_3, %c0_4], %1 {strides = array<i32>} : memref<1x80x1xf32, #tpu.memory_space<vmem>>, vector<1x8x1xf32>,
    %c0_5 = arith.constant 0 : index
    %c72 = arith.constant 72 : index
    %c0_6 = arith.constant 0 : index
    %3 = vector.load %arg35[%c0_5, %c72, %c0_6] : memref<1x80x1xf32, #tpu.memory_space<vmem>>, vector<1x8x1xf32>
    tpu.vector_store %arg35[%c0_5, %c72, %c0_6], %1 {strides = array<i32>} : memref<1x80x1xf32, #tpu.memory_space<vmem>>, vector<1x8x1xf32>,
    %c0_7 = arith.constant 0 : index
    %c8 = arith.constant 8 : index
    %c0_8 = arith.constant 0 : index
    %4 = vector.load %arg35[%c0_7, %c8, %c0_8] : memref<1x80x1xf32, #tpu.memory_space<vmem>>, vector<1x64x1xf32>
    tpu.vector_store %arg35[%c0_7, %c8, %c0_8], %0 {strides = array<i32>} : memref<1x80x1xf32, #tpu.memory_space<vmem>>, vector<1x64x1xf32>,
    %c0_9 = arith.constant 0 : index
    %c0_10 = arith.constant 0 : index
    %c0_11 = arith.constant 0 : index
    %5 = vector.load %arg35[%c0_9, %c0_10, %c0_11] : memref<1x80x1xf32, #tpu.memory_space<vmem>>, vector<1x80x1xf32>
    %c0_12 = arith.constant 0 : index
    %c0_13 = arith.constant 0 : index
    %c0_14 = arith.constant 0 : index
    %6 = vector.load %arg2[%c0_12, %c0_13, %c0_14] : memref<7x1x16xf32, #tpu.memory_space<vmem>>, vector<7x1x16xf32>
    %7 = vector.extract_strided_slice %5 {offsets = [0, 5, 0], sizes = [1, 64, 1], strides = [1, 1, 1]} : vector<1x80x1xf32> to vector<1x64x1xf32>
    %8 = vector.extract_strided_slice %6 {offsets = [0, 0, 0], sizes = [1, 1, 16], strides = [1, 1, 1]} : vector<7x1x16xf32> to vector<1x1x16xf32>
    %9 = vector.shape_cast %8 : vector<1x1x16xf32> to vector<1x16xf32>
    %10 = vector.shape_cast %9 : vector<1x16xf32> to vector<1x1x16xf32>
    %11 = vector.broadcast %7 : vector<1x64x1xf32> to vector<1x64x16xf32>
    %12 = vector.broadcast %10 : vector<1x1x16xf32> to vector<1x64x16xf32>
    %13 = arith.mulf %11, %12 : vector<1x64x16xf32>
    %14 = vector.extract_strided_slice %5 {offsets = [0, 6, 0], sizes = [1, 64, 1], strides = [1, 1, 1]} : vector<1x80x1xf32> to vector<1x64x1xf32>
    %15 = vector.extract_strided_slice %6 {offsets = [1, 0, 0], sizes = [1, 1, 16], strides = [1, 1, 1]} : vector<7x1x16xf32> to vector<1x1x16xf32>
    %16 = vector.shape_cast %15 : vector<1x1x16xf32> to vector<1x16xf32>
    %17 = vector.shape_cast %16 : vector<1x16xf32> to vector<1x1x16xf32>
    %18 = vector.broadcast %14 : vector<1x64x1xf32> to vector<1x64x16xf32>
    %19 = vector.broadcast %17 : vector<1x1x16xf32> to vector<1x64x16xf32>
    %20 = arith.mulf %18, %19 : vector<1x64x16xf32>
    %21 = arith.addf %13, %20 : vector<1x64x16xf32>
    %22 = vector.extract_strided_slice %5 {offsets = [0, 7, 0], sizes = [1, 64, 1], strides = [1, 1, 1]} : vector<1x80x1xf32> to vector<1x64x1xf32>
    %23 = vector.extract_strided_slice %6 {offsets = [2, 0, 0], sizes = [1, 1, 16], strides = [1, 1, 1]} : vector<7x1x16xf32> to vector<1x1x16xf32>
    %24 = vector.shape_cast %23 : vector<1x1x16xf32> to vector<1x16xf32>
    %25 = vector.shape_cast %24 : vector<1x16xf32> to vector<1x1x16xf32>
    %26 = vector.broadcast %22 : vector<1x64x1xf32> to vector<1x64x16xf32>
    %27 = vector.broadcast %25 : vector<1x1x16xf32> to vector<1x64x16xf32>
    %28 = arith.mulf %26, %27 : vector<1x64x16xf32>
    %29 = arith.addf %21, %28 : vector<1x64x16xf32>
    %30 = vector.extract_strided_slice %5 {offsets = [0, 8, 0], sizes = [1, 64, 1], strides = [1, 1, 1]} : vector<1x80x1xf32> to vector<1x64x1xf32>
    %31 = vector.extract_strided_slice %6 {offsets = [3, 0, 0], sizes = [1, 1, 16], strides = [1, 1, 1]} : vector<7x1x16xf32> to vector<1x1x16xf32>
    %32 = vector.shape_cast %31 : vector<1x1x16xf32> to vector<1x16xf32>
    %33 = vector.shape_cast %32 : vector<1x16xf32> to vector<1x1x16xf32>
    %34 = vector.broadcast %30 : vector<1x64x1xf32> to vector<1x64x16xf32>
    %35 = vector.broadcast %33 : vector<1x1x16xf32> to vector<1x64x16xf32>
    %36 = arith.mulf %34, %35 : vector<1x64x16xf32>
    %37 = arith.addf %29, %36 : vector<1x64x16xf32>
    %38 = vector.extract_strided_slice %5 {offsets = [0, 9, 0], sizes = [1, 64, 1], strides = [1, 1, 1]} : vector<1x80x1xf32> to vector<1x64x1xf32>
    %39 = vector.extract_strided_slice %6 {offsets = [4, 0, 0], sizes = [1, 1, 16], strides = [1, 1, 1]} : vector<7x1x16xf32> to vector<1x1x16xf32>
    %40 = vector.shape_cast %39 : vector<1x1x16xf32> to vector<1x16xf32>
    %41 = vector.shape_cast %40 : vector<1x16xf32> to vector<1x1x16xf32>
    %42 = vector.broadcast %38 : vector<1x64x1xf32> to vector<1x64x16xf32>
    %43 = vector.broadcast %41 : vector<1x1x16xf32> to vector<1x64x16xf32>
    %44 = arith.mulf %42, %43 : vector<1x64x16xf32>
    %45 = arith.addf %37, %44 : vector<1x64x16xf32>
    %46 = vector.extract_strided_slice %5 {offsets = [0, 10, 0], sizes = [1, 64, 1], strides = [1, 1, 1]} : vector<1x80x1xf32> to vector<1x64x1xf32>
    %47 = vector.extract_strided_slice %6 {offsets = [5, 0, 0], sizes = [1, 1, 16], strides = [1, 1, 1]} : vector<7x1x16xf32> to vector<1x1x16xf32>
    %48 = vector.shape_cast %47 : vector<1x1x16xf32> to vector<1x16xf32>
    %49 = vector.shape_cast %48 : vector<1x16xf32> to vector<1x1x16xf32>
    %50 = vector.broadcast %46 : vector<1x64x1xf32> to vector<1x64x16xf32>
    %51 = vector.broadcast %49 : vector<1x1x16xf32> to vector<1x64x16xf32>
    %52 = arith.mulf %50, %51 : vector<1x64x16xf32>
    %53 = arith.addf %45, %52 : vector<1x64x16xf32>
    %54 = vector.extract_strided_slice %5 {offsets = [0, 11, 0], sizes = [1, 64, 1], strides = [1, 1, 1]} : vector<1x80x1xf32> to vector<1x64x1xf32>
    %55 = vector.extract_strided_slice %6 {offsets = [6, 0, 0], sizes = [1, 1, 16], strides = [1, 1, 1]} : vector<7x1x16xf32> to vector<1x1x16xf32>
    %56 = vector.shape_cast %55 : vector<1x1x16xf32> to vector<1x16xf32>
    %57 = vector.shape_cast %56 : vector<1x16xf32> to vector<1x1x16xf32>
    %58 = vector.broadcast %54 : vector<1x64x1xf32> to vector<1x64x16xf32>
    %59 = vector.broadcast %57 : vector<1x1x16xf32> to vector<1x64x16xf32>
    %60 = arith.mulf %58, %59 : vector<1x64x16xf32>
    %61 = arith.addf %53, %60 : vector<1x64x16xf32>
    %c0_15 = arith.constant 0 : index
    %c0_16 = arith.constant 0 : index
    %62 = vector.load %arg3[%c0_15, %c0_16] : memref<1x16xf32, #tpu.memory_space<vmem>>, vector<1x16xf32>
    %63 = vector.shape_cast %62 : vector<1x16xf32> to vector<1x1x16xf32>
    %64 = vector.broadcast %63 : vector<1x1x16xf32> to vector<1x64x16xf32>
    %65 = arith.mulf %61, %64 : vector<1x64x16xf32>
    %c0_17 = arith.constant 0 : index
    %c0_18 = arith.constant 0 : index
    %66 = vector.load %arg4[%c0_17, %c0_18] : memref<1x16xf32, #tpu.memory_space<vmem>>, vector<1x16xf32>
    %67 = vector.shape_cast %66 : vector<1x16xf32> to vector<1x1x16xf32>
    %68 = vector.broadcast %67 : vector<1x1x16xf32> to vector<1x64x16xf32>
    %69 = arith.addf %65, %68 : vector<1x64x16xf32>
    %cst_19 = arith.constant 0.000000e+00 : f32
    %70 = vector.broadcast %cst_19 : f32 to vector<1x64x16xf32>
    %71 = arith.maximumf %69, %70 : vector<1x64x16xf32>
    %cst_20 = arith.constant 0.000000e+00 : f32
    %72 = vector.broadcast %cst_20 : f32 to vector<1x8x16xf32>
    %c0_21 = arith.constant 0 : index
    %c0_22 = arith.constant 0 : index
    %c0_23 = arith.constant 0 : index
    %73 = vector.load %arg36[%c0_21, %c0_22, %c0_23] : memref<1x80x16xf32, #tpu.memory_space<vmem>>, vector<1x8x16xf32>
    tpu.vector_store %arg36[%c0_21, %c0_22, %c0_23], %72 {strides = array<i32>} : memref<1x80x16xf32, #tpu.memory_space<vmem>>, vector<1x8x16xf32>,
    %c0_24 = arith.constant 0 : index
    %c72_25 = arith.constant 72 : index
    %c0_26 = arith.constant 0 : index
    %74 = vector.load %arg36[%c0_24, %c72_25, %c0_26] : memref<1x80x16xf32, #tpu.memory_space<vmem>>, vector<1x8x16xf32>
    tpu.vector_store %arg36[%c0_24, %c72_25, %c0_26], %72 {strides = array<i32>} : memref<1x80x16xf32, #tpu.memory_space<vmem>>, vector<1x8x16xf32>,
    %c0_27 = arith.constant 0 : index
    %c8_28 = arith.constant 8 : index
    %c0_29 = arith.constant 0 : index
    %75 = vector.load %arg36[%c0_27, %c8_28, %c0_29] : memref<1x80x16xf32, #tpu.memory_space<vmem>>, vector<1x64x16xf32>
    tpu.vector_store %arg36[%c0_27, %c8_28, %c0_29], %71 {strides = array<i32>} : memref<1x80x16xf32, #tpu.memory_space<vmem>>, vector<1x64x16xf32>,
    %c0_30 = arith.constant 0 : index
    %c0_31 = arith.constant 0 : index
    %c0_32 = arith.constant 0 : index
    %76 = vector.load %arg36[%c0_30, %c0_31, %c0_32] : memref<1x80x16xf32, #tpu.memory_space<vmem>>, vector<1x80x16xf32>
    %77 = vector.extract_strided_slice %76 {offsets = [0, 5, 0], sizes = [1, 64, 16], strides = [1, 1, 1]} : vector<1x80x16xf32> to vector<1x64x16xf32>
    %78 = vector.extract_strided_slice %76 {offsets = [0, 6, 0], sizes = [1, 64, 16], strides = [1, 1, 1]} : vector<1x80x16xf32> to vector<1x64x16xf32>
    %79 = vector.extract_strided_slice %76 {offsets = [0, 7, 0], sizes = [1, 64, 16], strides = [1, 1, 1]} : vector<1x80x16xf32> to vector<1x64x16xf32>
    %80 = vector.extract_strided_slice %76 {offsets = [0, 8, 0], sizes = [1, 64, 16], strides = [1, 1, 1]} : vector<1x80x16xf32> to vector<1x64x16xf32>
    %81 = vector.extract_strided_slice %76 {offsets = [0, 9, 0], sizes = [1, 64, 16], strides = [1, 1, 1]} : vector<1x80x16xf32> to vector<1x64x16xf32>
    %82 = vector.extract_strided_slice %76 {offsets = [0, 10, 0], sizes = [1, 64, 16], strides = [1, 1, 1]} : vector<1x80x16xf32> to vector<1x64x16xf32>
    %83 = vector.extract_strided_slice %76 {offsets = [0, 11, 0], sizes = [1, 64, 16], strides = [1, 1, 1]} : vector<1x80x16xf32> to vector<1x64x16xf32>
    %84 = tpu.concatenate %77, %78, %79, %80, %81, %82, %83 in 2 : vector<1x64x16xf32>, vector<1x64x16xf32>, vector<1x64x16xf32>, vector<1x64x16xf32>, vector<1x64x16xf32>, vector<1x64x16xf32>, vector<1x64x16xf32> -> vector<1x64x112xf32>
    %85 = vector.shape_cast %84 : vector<1x64x112xf32> to vector<64x112xf32>
    %86 = arith.truncf %85 : vector<64x112xf32> to vector<64x112xbf16>
    %c0_33 = arith.constant 0 : index
    %c0_34 = arith.constant 0 : index
    %87 = vector.load %arg5[%c0_33, %c0_34] : memref<112x16xbf16, #tpu.memory_space<vmem>>, vector<112x16xbf16>
    %cst_35 = arith.constant dense<0.000000e+00> : vector<64x16xf32>
    %88 = tpu.matmul %86, %87, %cst_35 {dimension_numbers = #tpu.dot_dimension_numbers<[1], [0], [0], [1], [0, 0, 1, 1], [], []>} : vector<64x112xbf16>, vector<112x16xbf16>, vector<64x16xf32> -> vector<64x16xf32>
    %c0_36 = arith.constant 0 : index
    %c0_37 = arith.constant 0 : index
    %89 = vector.load %arg6[%c0_36, %c0_37] : memref<1x16xf32, #tpu.memory_space<vmem>>, vector<1x16xf32>
    %90 = vector.broadcast %89 : vector<1x16xf32> to vector<64x16xf32>
    %91 = arith.mulf %88, %90 : vector<64x16xf32>
    %c0_38 = arith.constant 0 : index
    %c0_39 = arith.constant 0 : index
    %92 = vector.load %arg7[%c0_38, %c0_39] : memref<1x16xf32, #tpu.memory_space<vmem>>, vector<1x16xf32>
    %93 = vector.broadcast %92 : vector<1x16xf32> to vector<64x16xf32>
    %94 = arith.addf %91, %93 : vector<64x16xf32>
    %cst_40 = arith.constant 0.000000e+00 : f32
    %95 = vector.broadcast %cst_40 : f32 to vector<64x16xf32>
    %96 = arith.maximumf %94, %95 : vector<64x16xf32>
    %97 = vector.shape_cast %96 : vector<64x16xf32> to vector<1x64x16xf32>
    %c0_41 = arith.constant 0 : index
    %c0_42 = arith.constant 0 : index
    %c0_43 = arith.constant 0 : index
    %98 = vector.load %arg41[%c0_41, %c0_42, %c0_43] : memref<1x64x16xf32, #tpu.memory_space<vmem>>, vector<1x64x16xf32>
    tpu.vector_store %arg41[%c0_41, %c0_42, %c0_43], %97 {strides = array<i32>} : memref<1x64x16xf32, #tpu.memory_space<vmem>>, vector<1x64x16xf32>,
    %c0_44 = arith.constant 0 : index
    %c0_45 = arith.constant 0 : index
    %c0_46 = arith.constant 0 : index
    %99 = tpu.strided_load %arg41[%c0_44, %c0_45, %c0_46] {strides = array<i32: 1, 4, 1>} : memref<1x64x16xf32, #tpu.memory_space<vmem>>, vector<1x16x16xf32>
    %c0_47 = arith.constant 0 : index
    %c1 = arith.constant 1 : index
    %c0_48 = arith.constant 0 : index
    %100 = tpu.strided_load %arg41[%c0_47, %c1, %c0_48] {strides = array<i32: 1, 4, 1>} : memref<1x64x16xf32, #tpu.memory_space<vmem>>, vector<1x16x16xf32>
    %101 = arith.maximumf %99, %100 : vector<1x16x16xf32>
    %c0_49 = arith.constant 0 : index
    %c2 = arith.constant 2 : index
    %c0_50 = arith.constant 0 : index
    %102 = tpu.strided_load %arg41[%c0_49, %c2, %c0_50] {strides = array<i32: 1, 4, 1>} : memref<1x64x16xf32, #tpu.memory_space<vmem>>, vector<1x16x16xf32>
    %103 = arith.maximumf %101, %102 : vector<1x16x16xf32>
    %c0_51 = arith.constant 0 : index
    %c3 = arith.constant 3 : index
    %c0_52 = arith.constant 0 : index
    %104 = tpu.strided_load %arg41[%c0_51, %c3, %c0_52] {strides = array<i32: 1, 4, 1>} : memref<1x64x16xf32, #tpu.memory_space<vmem>>, vector<1x16x16xf32>
    %105 = arith.maximumf %103, %104 : vector<1x16x16xf32>
    %cst_53 = arith.constant 0.000000e+00 : f32
    %106 = vector.broadcast %cst_53 : f32 to vector<1x8x16xf32>
    %c0_54 = arith.constant 0 : index
    %c0_55 = arith.constant 0 : index
    %c0_56 = arith.constant 0 : index
    %107 = vector.load %arg37[%c0_54, %c0_55, %c0_56] : memref<1x32x16xf32, #tpu.memory_space<vmem>>, vector<1x8x16xf32>
    tpu.vector_store %arg37[%c0_54, %c0_55, %c0_56], %106 {strides = array<i32>} : memref<1x32x16xf32, #tpu.memory_space<vmem>>, vector<1x8x16xf32>,
    %c0_57 = arith.constant 0 : index
    %c24 = arith.constant 24 : index
    %c0_58 = arith.constant 0 : index
    %108 = vector.load %arg37[%c0_57, %c24, %c0_58] : memref<1x32x16xf32, #tpu.memory_space<vmem>>, vector<1x8x16xf32>
    tpu.vector_store %arg37[%c0_57, %c24, %c0_58], %106 {strides = array<i32>} : memref<1x32x16xf32, #tpu.memory_space<vmem>>, vector<1x8x16xf32>,
    %c0_59 = arith.constant 0 : index
    %c8_60 = arith.constant 8 : index
    %c0_61 = arith.constant 0 : index
    %109 = vector.load %arg37[%c0_59, %c8_60, %c0_61] : memref<1x32x16xf32, #tpu.memory_space<vmem>>, vector<1x16x16xf32>
    tpu.vector_store %arg37[%c0_59, %c8_60, %c0_61], %105 {strides = array<i32>} : memref<1x32x16xf32, #tpu.memory_space<vmem>>, vector<1x16x16xf32>,
    %c0_62 = arith.constant 0 : index
    %c0_63 = arith.constant 0 : index
    %c0_64 = arith.constant 0 : index
    %110 = vector.load %arg37[%c0_62, %c0_63, %c0_64] : memref<1x32x16xf32, #tpu.memory_space<vmem>>, vector<1x32x16xf32>
    %111 = vector.extract_strided_slice %110 {offsets = [0, 6, 0], sizes = [1, 16, 16], strides = [1, 1, 1]} : vector<1x32x16xf32> to vector<1x16x16xf32>
    %112 = vector.extract_strided_slice %110 {offsets = [0, 7, 0], sizes = [1, 16, 16], strides = [1, 1, 1]} : vector<1x32x16xf32> to vector<1x16x16xf32>
    %113 = vector.extract_strided_slice %110 {offsets = [0, 8, 0], sizes = [1, 16, 16], strides = [1, 1, 1]} : vector<1x32x16xf32> to vector<1x16x16xf32>
    %114 = vector.extract_strided_slice %110 {offsets = [0, 9, 0], sizes = [1, 16, 16], strides = [1, 1, 1]} : vector<1x32x16xf32> to vector<1x16x16xf32>
    %115 = vector.extract_strided_slice %110 {offsets = [0, 10, 0], sizes = [1, 16, 16], strides = [1, 1, 1]} : vector<1x32x16xf32> to vector<1x16x16xf32>
    %116 = tpu.concatenate %111, %112, %113, %114, %115 in 2 : vector<1x16x16xf32>, vector<1x16x16xf32>, vector<1x16x16xf32>, vector<1x16x16xf32>, vector<1x16x16xf32> -> vector<1x16x80xf32>
    %117 = vector.shape_cast %116 : vector<1x16x80xf32> to vector<16x80xf32>
    %118 = arith.truncf %117 : vector<16x80xf32> to vector<16x80xbf16>
    %c0_65 = arith.constant 0 : index
    %c0_66 = arith.constant 0 : index
    %119 = vector.load %arg8[%c0_65, %c0_66] : memref<80x32xbf16, #tpu.memory_space<vmem>>, vector<80x32xbf16>
    %cst_67 = arith.constant dense<0.000000e+00> : vector<16x32xf32>
    %120 = tpu.matmul %118, %119, %cst_67 {dimension_numbers = #tpu.dot_dimension_numbers<[1], [0], [0], [1], [0, 0, 1, 1], [], []>} : vector<16x80xbf16>, vector<80x32xbf16>, vector<16x32xf32> -> vector<16x32xf32>
    %c0_68 = arith.constant 0 : index
    %c0_69 = arith.constant 0 : index
    %121 = vector.load %arg9[%c0_68, %c0_69] : memref<1x32xf32, #tpu.memory_space<vmem>>, vector<1x32xf32>
    %122 = vector.broadcast %121 : vector<1x32xf32> to vector<16x32xf32>
    %123 = arith.mulf %120, %122 : vector<16x32xf32>
    %c0_70 = arith.constant 0 : index
    %c0_71 = arith.constant 0 : index
    %124 = vector.load %arg10[%c0_70, %c0_71] : memref<1x32xf32, #tpu.memory_space<vmem>>, vector<1x32xf32>
    %125 = vector.broadcast %124 : vector<1x32xf32> to vector<16x32xf32>
    %126 = arith.addf %123, %125 : vector<16x32xf32>
    %cst_72 = arith.constant 0.000000e+00 : f32
    %127 = vector.broadcast %cst_72 : f32 to vector<16x32xf32>
    %128 = arith.maximumf %126, %127 : vector<16x32xf32>
    %129 = vector.shape_cast %128 : vector<16x32xf32> to vector<1x16x32xf32>
    %cst_73 = arith.constant 0.000000e+00 : f32
    %130 = vector.broadcast %cst_73 : f32 to vector<1x8x32xf32>
    %c0_74 = arith.constant 0 : index
    %c0_75 = arith.constant 0 : index
    %c0_76 = arith.constant 0 : index
    %131 = vector.load %arg38[%c0_74, %c0_75, %c0_76] : memref<1x32x32xf32, #tpu.memory_space<vmem>>, vector<1x8x32xf32>
    tpu.vector_store %arg38[%c0_74, %c0_75, %c0_76], %130 {strides = array<i32>} : memref<1x32x32xf32, #tpu.memory_space<vmem>>, vector<1x8x32xf32>,
    %c0_77 = arith.constant 0 : index
    %c24_78 = arith.constant 24 : index
    %c0_79 = arith.constant 0 : index
    %132 = vector.load %arg38[%c0_77, %c24_78, %c0_79] : memref<1x32x32xf32, #tpu.memory_space<vmem>>, vector<1x8x32xf32>
    tpu.vector_store %arg38[%c0_77, %c24_78, %c0_79], %130 {strides = array<i32>} : memref<1x32x32xf32, #tpu.memory_space<vmem>>, vector<1x8x32xf32>,
    %c0_80 = arith.constant 0 : index
    %c8_81 = arith.constant 8 : index
    %c0_82 = arith.constant 0 : index
    %133 = vector.load %arg38[%c0_80, %c8_81, %c0_82] : memref<1x32x32xf32, #tpu.memory_space<vmem>>, vector<1x16x32xf32>
    tpu.vector_store %arg38[%c0_80, %c8_81, %c0_82], %129 {strides = array<i32>} : memref<1x32x32xf32, #tpu.memory_space<vmem>>, vector<1x16x32xf32>,
    %c0_83 = arith.constant 0 : index
    %c0_84 = arith.constant 0 : index
    %c0_85 = arith.constant 0 : index
    %134 = vector.load %arg38[%c0_83, %c0_84, %c0_85] : memref<1x32x32xf32, #tpu.memory_space<vmem>>, vector<1x32x32xf32>
    %135 = vector.extract_strided_slice %134 {offsets = [0, 6, 0], sizes = [1, 16, 32], strides = [1, 1, 1]} : vector<1x32x32xf32> to vector<1x16x32xf32>
    %136 = vector.extract_strided_slice %134 {offsets = [0, 7, 0], sizes = [1, 16, 32], strides = [1, 1, 1]} : vector<1x32x32xf32> to vector<1x16x32xf32>
    %137 = vector.extract_strided_slice %134 {offsets = [0, 8, 0], sizes = [1, 16, 32], strides = [1, 1, 1]} : vector<1x32x32xf32> to vector<1x16x32xf32>
    %138 = vector.extract_strided_slice %134 {offsets = [0, 9, 0], sizes = [1, 16, 32], strides = [1, 1, 1]} : vector<1x32x32xf32> to vector<1x16x32xf32>
    %139 = vector.extract_strided_slice %134 {offsets = [0, 10, 0], sizes = [1, 16, 32], strides = [1, 1, 1]} : vector<1x32x32xf32> to vector<1x16x32xf32>
    %140 = tpu.concatenate %135, %136, %137, %138, %139 in 2 : vector<1x16x32xf32>, vector<1x16x32xf32>, vector<1x16x32xf32>, vector<1x16x32xf32>, vector<1x16x32xf32> -> vector<1x16x160xf32>
    %141 = vector.shape_cast %140 : vector<1x16x160xf32> to vector<16x160xf32>
    %142 = arith.truncf %141 : vector<16x160xf32> to vector<16x160xbf16>
    %c0_86 = arith.constant 0 : index
    %c0_87 = arith.constant 0 : index
    %143 = vector.load %arg11[%c0_86, %c0_87] : memref<160x32xbf16, #tpu.memory_space<vmem>>, vector<160x32xbf16>
    %cst_88 = arith.constant dense<0.000000e+00> : vector<16x32xf32>
    %144 = tpu.matmul %142, %143, %cst_88 {dimension_numbers = #tpu.dot_dimension_numbers<[1], [0], [0], [1], [0, 0, 1, 1], [], []>} : vector<16x160xbf16>, vector<160x32xbf16>, vector<16x32xf32> -> vector<16x32xf32>
    %c0_89 = arith.constant 0 : index
    %c0_90 = arith.constant 0 : index
    %145 = vector.load %arg12[%c0_89, %c0_90] : memref<1x32xf32, #tpu.memory_space<vmem>>, vector<1x32xf32>
    %146 = vector.broadcast %145 : vector<1x32xf32> to vector<16x32xf32>
    %147 = arith.mulf %144, %146 : vector<16x32xf32>
    %c0_91 = arith.constant 0 : index
    %c0_92 = arith.constant 0 : index
    %148 = vector.load %arg13[%c0_91, %c0_92] : memref<1x32xf32, #tpu.memory_space<vmem>>, vector<1x32xf32>
    %149 = vector.broadcast %148 : vector<1x32xf32> to vector<16x32xf32>
    %150 = arith.addf %147, %149 : vector<16x32xf32>
    %cst_93 = arith.constant 0.000000e+00 : f32
    %151 = vector.broadcast %cst_93 : f32 to vector<16x32xf32>
    %152 = arith.maximumf %150, %151 : vector<16x32xf32>
    %153 = vector.shape_cast %152 : vector<16x32xf32> to vector<1x16x32xf32>
    %c0_94 = arith.constant 0 : index
    %c0_95 = arith.constant 0 : index
    %c0_96 = arith.constant 0 : index
    %154 = vector.load %arg42[%c0_94, %c0_95, %c0_96] : memref<1x16x32xf32, #tpu.memory_space<vmem>>, vector<1x16x32xf32>
    tpu.vector_store %arg42[%c0_94, %c0_95, %c0_96], %153 {strides = array<i32>} : memref<1x16x32xf32, #tpu.memory_space<vmem>>, vector<1x16x32xf32>,
    %c0_97 = arith.constant 0 : index
    %c0_98 = arith.constant 0 : index
    %c0_99 = arith.constant 0 : index
    %155 = tpu.strided_load %arg42[%c0_97, %c0_98, %c0_99] {strides = array<i32: 1, 4, 1>} : memref<1x16x32xf32, #tpu.memory_space<vmem>>, vector<1x4x32xf32>
    %c0_100 = arith.constant 0 : index
    %c1_101 = arith.constant 1 : index
    %c0_102 = arith.constant 0 : index
    %156 = tpu.strided_load %arg42[%c0_100, %c1_101, %c0_102] {strides = array<i32: 1, 4, 1>} : memref<1x16x32xf32, #tpu.memory_space<vmem>>, vector<1x4x32xf32>
    %157 = arith.maximumf %155, %156 : vector<1x4x32xf32>
    %c0_103 = arith.constant 0 : index
    %c2_104 = arith.constant 2 : index
    %c0_105 = arith.constant 0 : index
    %158 = tpu.strided_load %arg42[%c0_103, %c2_104, %c0_105] {strides = array<i32: 1, 4, 1>} : memref<1x16x32xf32, #tpu.memory_space<vmem>>, vector<1x4x32xf32>
    %159 = arith.maximumf %157, %158 : vector<1x4x32xf32>
    %c0_106 = arith.constant 0 : index
    %c3_107 = arith.constant 3 : index
    %c0_108 = arith.constant 0 : index
    %160 = tpu.strided_load %arg42[%c0_106, %c3_107, %c0_108] {strides = array<i32: 1, 4, 1>} : memref<1x16x32xf32, #tpu.memory_space<vmem>>, vector<1x4x32xf32>
    %161 = arith.maximumf %159, %160 : vector<1x4x32xf32>
    %cst_109 = arith.constant 0.000000e+00 : f32
    %162 = vector.broadcast %cst_109 : f32 to vector<1x8x32xf32>
    %c0_110 = arith.constant 0 : index
    %c0_111 = arith.constant 0 : index
    %c0_112 = arith.constant 0 : index
    %163 = vector.load %arg39[%c0_110, %c0_111, %c0_112] : memref<1x16x32xf32, #tpu.memory_space<vmem>>, vector<1x8x32xf32>
    tpu.vector_store %arg39[%c0_110, %c0_111, %c0_112], %162 {strides = array<i32>} : memref<1x16x32xf32, #tpu.memory_space<vmem>>, vector<1x8x32xf32>,
    %c0_113 = arith.constant 0 : index
    %c8_114 = arith.constant 8 : index
    %c0_115 = arith.constant 0 : index
    %164 = vector.load %arg39[%c0_113, %c8_114, %c0_115] : memref<1x16x32xf32, #tpu.memory_space<vmem>>, vector<1x8x32xf32>
    tpu.vector_store %arg39[%c0_113, %c8_114, %c0_115], %162 {strides = array<i32>} : memref<1x16x32xf32, #tpu.memory_space<vmem>>, vector<1x8x32xf32>,
    %c0_116 = arith.constant 0 : index
    %c8_117 = arith.constant 8 : index
    %c0_118 = arith.constant 0 : index
    %165 = vector.load %arg39[%c0_116, %c8_117, %c0_118] : memref<1x16x32xf32, #tpu.memory_space<vmem>>, vector<1x4x32xf32>
    tpu.vector_store %arg39[%c0_116, %c8_117, %c0_118], %161 {strides = array<i32>} : memref<1x16x32xf32, #tpu.memory_space<vmem>>, vector<1x4x32xf32>,
    %c0_119 = arith.constant 0 : index
    %c0_120 = arith.constant 0 : index
    %c0_121 = arith.constant 0 : index
    %166 = vector.load %arg39[%c0_119, %c0_120, %c0_121] : memref<1x16x32xf32, #tpu.memory_space<vmem>>, vector<1x16x32xf32>
    %167 = vector.extract_strided_slice %166 {offsets = [0, 7, 0], sizes = [1, 4, 32], strides = [1, 1, 1]} : vector<1x16x32xf32> to vector<1x4x32xf32>
    %168 = vector.extract_strided_slice %166 {offsets = [0, 8, 0], sizes = [1, 4, 32], strides = [1, 1, 1]} : vector<1x16x32xf32> to vector<1x4x32xf32>
    %169 = vector.extract_strided_slice %166 {offsets = [0, 9, 0], sizes = [1, 4, 32], strides = [1, 1, 1]} : vector<1x16x32xf32> to vector<1x4x32xf32>
    %170 = tpu.concatenate %167, %168, %169 in 2 : vector<1x4x32xf32>, vector<1x4x32xf32>, vector<1x4x32xf32> -> vector<1x4x96xf32>
    %171 = vector.shape_cast %170 : vector<1x4x96xf32> to vector<4x96xf32>
    %172 = arith.truncf %171 : vector<4x96xf32> to vector<4x96xbf16>
    %c0_122 = arith.constant 0 : index
    %c0_123 = arith.constant 0 : index
    %173 = vector.load %arg14[%c0_122, %c0_123] : memref<96x64xbf16, #tpu.memory_space<vmem>>, vector<96x64xbf16>
    %cst_124 = arith.constant dense<0.000000e+00> : vector<4x64xf32>
    %174 = tpu.matmul %172, %173, %cst_124 {dimension_numbers = #tpu.dot_dimension_numbers<[1], [0], [0], [1], [0, 0, 1, 1], [], []>} : vector<4x96xbf16>, vector<96x64xbf16>, vector<4x64xf32> -> vector<4x64xf32>
    %c0_125 = arith.constant 0 : index
    %c0_126 = arith.constant 0 : index
    %175 = vector.load %arg15[%c0_125, %c0_126] : memref<1x64xf32, #tpu.memory_space<vmem>>, vector<1x64xf32>
    %176 = vector.broadcast %175 : vector<1x64xf32> to vector<4x64xf32>
    %177 = arith.mulf %174, %176 : vector<4x64xf32>
    %c0_127 = arith.constant 0 : index
    %c0_128 = arith.constant 0 : index
    %178 = vector.load %arg16[%c0_127, %c0_128] : memref<1x64xf32, #tpu.memory_space<vmem>>, vector<1x64xf32>
    %179 = vector.broadcast %178 : vector<1x64xf32> to vector<4x64xf32>
    %180 = arith.addf %177, %179 : vector<4x64xf32>
    %cst_129 = arith.constant 0.000000e+00 : f32
    %181 = vector.broadcast %cst_129 : f32 to vector<4x64xf32>
    %182 = arith.maximumf %180, %181 : vector<4x64xf32>
    %183 = vector.shape_cast %182 : vector<4x64xf32> to vector<1x4x64xf32>
    %cst_130 = arith.constant 0.000000e+00 : f32
    %184 = vector.broadcast %cst_130 : f32 to vector<1x8x64xf32>
    %c0_131 = arith.constant 0 : index
    %c0_132 = arith.constant 0 : index
    %c0_133 = arith.constant 0 : index
    %185 = vector.load %arg40[%c0_131, %c0_132, %c0_133] : memref<1x16x64xf32, #tpu.memory_space<vmem>>, vector<1x8x64xf32>
    tpu.vector_store %arg40[%c0_131, %c0_132, %c0_133], %184 {strides = array<i32>} : memref<1x16x64xf32, #tpu.memory_space<vmem>>, vector<1x8x64xf32>,
    %c0_134 = arith.constant 0 : index
    %c8_135 = arith.constant 8 : index
    %c0_136 = arith.constant 0 : index
    %186 = vector.load %arg40[%c0_134, %c8_135, %c0_136] : memref<1x16x64xf32, #tpu.memory_space<vmem>>, vector<1x8x64xf32>
    tpu.vector_store %arg40[%c0_134, %c8_135, %c0_136], %184 {strides = array<i32>} : memref<1x16x64xf32, #tpu.memory_space<vmem>>, vector<1x8x64xf32>,
    %c0_137 = arith.constant 0 : index
    %c8_138 = arith.constant 8 : index
    %c0_139 = arith.constant 0 : index
    %187 = vector.load %arg40[%c0_137, %c8_138, %c0_139] : memref<1x16x64xf32, #tpu.memory_space<vmem>>, vector<1x4x64xf32>
    tpu.vector_store %arg40[%c0_137, %c8_138, %c0_139], %183 {strides = array<i32>} : memref<1x16x64xf32, #tpu.memory_space<vmem>>, vector<1x4x64xf32>,
    %c0_140 = arith.constant 0 : index
    %c0_141 = arith.constant 0 : index
    %c0_142 = arith.constant 0 : index
    %188 = vector.load %arg40[%c0_140, %c0_141, %c0_142] : memref<1x16x64xf32, #tpu.memory_space<vmem>>, vector<1x16x64xf32>
    %189 = vector.extract_strided_slice %188 {offsets = [0, 7, 0], sizes = [1, 4, 64], strides = [1, 1, 1]} : vector<1x16x64xf32> to vector<1x4x64xf32>
    %190 = vector.extract_strided_slice %188 {offsets = [0, 8, 0], sizes = [1, 4, 64], strides = [1, 1, 1]} : vector<1x16x64xf32> to vector<1x4x64xf32>
    %191 = vector.extract_strided_slice %188 {offsets = [0, 9, 0], sizes = [1, 4, 64], strides = [1, 1, 1]} : vector<1x16x64xf32> to vector<1x4x64xf32>
    %192 = tpu.concatenate %189, %190, %191 in 2 : vector<1x4x64xf32>, vector<1x4x64xf32>, vector<1x4x64xf32> -> vector<1x4x192xf32>
    %193 = vector.shape_cast %192 : vector<1x4x192xf32> to vector<4x192xf32>
    %194 = arith.truncf %193 : vector<4x192xf32> to vector<4x192xbf16>
    %c0_143 = arith.constant 0 : index
    %c0_144 = arith.constant 0 : index
    %195 = vector.load %arg17[%c0_143, %c0_144] : memref<192x64xbf16, #tpu.memory_space<vmem>>, vector<192x64xbf16>
    %cst_145 = arith.constant dense<0.000000e+00> : vector<4x64xf32>
    %196 = tpu.matmul %194, %195, %cst_145 {dimension_numbers = #tpu.dot_dimension_numbers<[1], [0], [0], [1], [0, 0, 1, 1], [], []>} : vector<4x192xbf16>, vector<192x64xbf16>, vector<4x64xf32> -> vector<4x64xf32>
    %c0_146 = arith.constant 0 : index
    %c0_147 = arith.constant 0 : index
    %197 = vector.load %arg18[%c0_146, %c0_147] : memref<1x64xf32, #tpu.memory_space<vmem>>, vector<1x64xf32>
    %198 = vector.broadcast %197 : vector<1x64xf32> to vector<4x64xf32>
    %199 = arith.mulf %196, %198 : vector<4x64xf32>
    %c0_148 = arith.constant 0 : index
    %c0_149 = arith.constant 0 : index
    %200 = vector.load %arg19[%c0_148, %c0_149] : memref<1x64xf32, #tpu.memory_space<vmem>>, vector<1x64xf32>
    %201 = vector.broadcast %200 : vector<1x64xf32> to vector<4x64xf32>
    %202 = arith.addf %199, %201 : vector<4x64xf32>
    %cst_150 = arith.constant 0.000000e+00 : f32
    %203 = vector.broadcast %cst_150 : f32 to vector<4x64xf32>
    %204 = arith.maximumf %202, %203 : vector<4x64xf32>
    %205 = vector.shape_cast %204 : vector<4x64xf32> to vector<1x4x64xf32>
    %c0_151 = arith.constant 0 : index
    %c0_152 = arith.constant 0 : index
    %c0_153 = arith.constant 0 : index
    %206 = vector.load %arg43[%c0_151, %c0_152, %c0_153] : memref<1x4x64xf32, #tpu.memory_space<vmem>>, vector<1x4x64xf32>
    tpu.vector_store %arg43[%c0_151, %c0_152, %c0_153], %205 {strides = array<i32>} : memref<1x4x64xf32, #tpu.memory_space<vmem>>, vector<1x4x64xf32>,
    %c0_154 = arith.constant 0 : index
    %c0_155 = arith.constant 0 : index
    %c0_156 = arith.constant 0 : index
    %207 = vector.load %arg41[%c0_154, %c0_155, %c0_156] : memref<1x64x16xf32, #tpu.memory_space<vmem>>, vector<1x64x16xf32>
    %c0_157 = arith.constant 0 : index
    %c0_158 = arith.constant 0 : index
    %c0_159 = arith.constant 0 : index
    %208 = vector.load %arg42[%c0_157, %c0_158, %c0_159] : memref<1x16x32xf32, #tpu.memory_space<vmem>>, vector<1x16x32xf32>
    %c0_160 = arith.constant 0 : index
    %c0_161 = arith.constant 0 : index
    %c0_162 = arith.constant 0 : index
    %209 = vector.load %arg43[%c0_160, %c0_161, %c0_162] : memref<1x4x64xf32, #tpu.memory_space<vmem>>, vector<1x4x64xf32>
    %c0_163 = arith.constant 0 : index
    %c0_164 = arith.constant 0 : index
    %c0_165 = arith.constant 0 : index
    %210 = vector.load %arg20[%c0_163, %c0_164, %c0_165] : memref<3x16x16xf32, #tpu.memory_space<vmem>>, vector<3x16x16xf32>
    %c0_166 = arith.constant 0 : index
    %c0_167 = arith.constant 0 : index
    %c0_168 = arith.constant 0 : index
    %211 = vector.load %arg21[%c0_166, %c0_167, %c0_168] : memref<3x32x32xf32, #tpu.memory_space<vmem>>, vector<3x32x32xf32>
    %c0_169 = arith.constant 0 : index
    %c0_170 = arith.constant 0 : index
    %c0_171 = arith.constant 0 : index
    %212 = vector.load %arg22[%c0_169, %c0_170, %c0_171] : memref<3x64x64xf32, #tpu.memory_space<vmem>>, vector<3x64x64xf32>
    %c0_172 = arith.constant 0 : index
    %c0_173 = arith.constant 0 : index
    %213 = vector.load %arg23[%c0_172, %c0_173] : memref<16x32xbf16, #tpu.memory_space<vmem>>, vector<16x32xbf16>
    %c0_174 = arith.constant 0 : index
    %c0_175 = arith.constant 0 : index
    %214 = vector.load %arg24[%c0_174, %c0_175] : memref<1x32xf32, #tpu.memory_space<vmem>>, vector<1x32xf32>
    %c0_176 = arith.constant 0 : index
    %c0_177 = arith.constant 0 : index
    %215 = vector.load %arg25[%c0_176, %c0_177] : memref<1x32xf32, #tpu.memory_space<vmem>>, vector<1x32xf32>
    %c0_178 = arith.constant 0 : index
    %c0_179 = arith.constant 0 : index
    %216 = vector.load %arg26[%c0_178, %c0_179] : memref<32x64xbf16, #tpu.memory_space<vmem>>, vector<32x64xbf16>
    %c0_180 = arith.constant 0 : index
    %c0_181 = arith.constant 0 : index
    %217 = vector.load %arg27[%c0_180, %c0_181] : memref<1x64xf32, #tpu.memory_space<vmem>>, vector<1x64xf32>
    %c0_182 = arith.constant 0 : index
    %c0_183 = arith.constant 0 : index
    %218 = vector.load %arg28[%c0_182, %c0_183] : memref<1x64xf32, #tpu.memory_space<vmem>>, vector<1x64xf32>
    %c0_184 = arith.constant 0 : index
    %c0_185 = arith.constant 0 : index
    %219 = vector.load %arg29[%c0_184, %c0_185] : memref<64x128xbf16, #tpu.memory_space<vmem>>, vector<64x128xbf16>
    %c0_186 = arith.constant 0 : index
    %c0_187 = arith.constant 0 : index
    %220 = vector.load %arg30[%c0_186, %c0_187] : memref<1x128xf32, #tpu.memory_space<vmem>>, vector<1x128xf32>
    %c0_188 = arith.constant 0 : index
    %c0_189 = arith.constant 0 : index
    %221 = vector.load %arg31[%c0_188, %c0_189] : memref<1x128xf32, #tpu.memory_space<vmem>>, vector<1x128xf32>
    %222 = vector.extract_strided_slice %210 {offsets = [0, 0, 0], sizes = [1, 16, 16], strides = [1, 1, 1]} : vector<3x16x16xf32> to vector<1x16x16xf32>
    %223 = vector.shape_cast %222 : vector<1x16x16xf32> to vector<16x16xf32>
    %cst_190 = arith.constant dense<0.000000e+00> : vector<1x16xf32>
    %224 = vector.multi_reduction <add>, %207, %cst_190 [1] : vector<1x64x16xf32> to vector<1x16xf32>
    %cst_191 = arith.constant 6.400000e+01 : f32
    %225 = vector.broadcast %cst_191 : f32 to vector<1x16xf32>
    %226 = arith.divf %224, %225 : vector<1x16xf32>
    %cst_192 = arith.constant dense<0.000000e+00> : vector<1x16xf32>
    %227 = tpu.matmul %226, %223, %cst_192 {dimension_numbers = #tpu.dot_dimension_numbers<[1], [0], [0], [1], [0, 0, 1, 1], [], []>} : vector<1x16xf32>, vector<16x16xf32>, vector<1x16xf32> -> vector<1x16xf32>
    %228 = arith.negf %227 : vector<1x16xf32>
    %229 = math.exp %228 : vector<1x16xf32>
    %cst_193 = arith.constant 1.000000e+00 : f32
    %230 = vector.broadcast %cst_193 : f32 to vector<1x16xf32>
    %231 = arith.addf %230, %229 : vector<1x16xf32>
    %232 = arith.divf %230, %231 : vector<1x16xf32>
    %233 = vector.shape_cast %232 : vector<1x16xf32> to vector<1x1x16xf32>
    %234 = vector.broadcast %233 : vector<1x1x16xf32> to vector<1x64x16xf32>
    %235 = arith.mulf %207, %234 : vector<1x64x16xf32>
    %236 = arith.addf %235, %207 : vector<1x64x16xf32>
    %237 = vector.shape_cast %236 : vector<1x64x16xf32> to vector<64x16xf32>
    %238 = arith.truncf %237 : vector<64x16xf32> to vector<64x16xbf16>
    %cst_194 = arith.constant dense<0.000000e+00> : vector<64x32xf32>
    %239 = tpu.matmul %238, %213, %cst_194 {dimension_numbers = #tpu.dot_dimension_numbers<[1], [0], [0], [1], [0, 0, 1, 1], [], []>} : vector<64x16xbf16>, vector<16x32xbf16>, vector<64x32xf32> -> vector<64x32xf32>
    %240 = vector.broadcast %214 : vector<1x32xf32> to vector<64x32xf32>
    %241 = arith.mulf %239, %240 : vector<64x32xf32>
    %242 = vector.broadcast %215 : vector<1x32xf32> to vector<64x32xf32>
    %243 = arith.addf %241, %242 : vector<64x32xf32>
    %cst_195 = arith.constant 0.000000e+00 : f32
    %244 = vector.broadcast %cst_195 : f32 to vector<64x32xf32>
    %245 = arith.maximumf %243, %244 : vector<64x32xf32>
    %246 = vector.shape_cast %245 : vector<64x32xf32> to vector<1x64x32xf32>
    %c0_196 = arith.constant 0 : index
    %c0_197 = arith.constant 0 : index
    %c0_198 = arith.constant 0 : index
    %247 = vector.load %arg44[%c0_196, %c0_197, %c0_198] : memref<1x64x32xf32, #tpu.memory_space<vmem>>, vector<1x64x32xf32>
    tpu.vector_store %arg44[%c0_196, %c0_197, %c0_198], %246 {strides = array<i32>} : memref<1x64x32xf32, #tpu.memory_space<vmem>>, vector<1x64x32xf32>,
    %c0_199 = arith.constant 0 : index
    %c0_200 = arith.constant 0 : index
    %c0_201 = arith.constant 0 : index
    %248 = tpu.strided_load %arg44[%c0_199, %c0_200, %c0_201] {strides = array<i32: 1, 4, 1>} : memref<1x64x32xf32, #tpu.memory_space<vmem>>, vector<1x16x32xf32>
    %c0_202 = arith.constant 0 : index
    %c1_203 = arith.constant 1 : index
    %c0_204 = arith.constant 0 : index
    %249 = tpu.strided_load %arg44[%c0_202, %c1_203, %c0_204] {strides = array<i32: 1, 4, 1>} : memref<1x64x32xf32, #tpu.memory_space<vmem>>, vector<1x16x32xf32>
    %250 = arith.maximumf %248, %249 : vector<1x16x32xf32>
    %c0_205 = arith.constant 0 : index
    %c2_206 = arith.constant 2 : index
    %c0_207 = arith.constant 0 : index
    %251 = tpu.strided_load %arg44[%c0_205, %c2_206, %c0_207] {strides = array<i32: 1, 4, 1>} : memref<1x64x32xf32, #tpu.memory_space<vmem>>, vector<1x16x32xf32>
    %252 = arith.maximumf %250, %251 : vector<1x16x32xf32>
    %c0_208 = arith.constant 0 : index
    %c3_209 = arith.constant 3 : index
    %c0_210 = arith.constant 0 : index
    %253 = tpu.strided_load %arg44[%c0_208, %c3_209, %c0_210] {strides = array<i32: 1, 4, 1>} : memref<1x64x32xf32, #tpu.memory_space<vmem>>, vector<1x16x32xf32>
    %254 = arith.maximumf %252, %253 : vector<1x16x32xf32>
    %255 = arith.addf %208, %254 : vector<1x16x32xf32>
    %256 = vector.extract_strided_slice %211 {offsets = [0, 0, 0], sizes = [1, 32, 32], strides = [1, 1, 1]} : vector<3x32x32xf32> to vector<1x32x32xf32>
    %257 = vector.shape_cast %256 : vector<1x32x32xf32> to vector<32x32xf32>
    %cst_211 = arith.constant dense<0.000000e+00> : vector<1x32xf32>
    %258 = vector.multi_reduction <add>, %255, %cst_211 [1] : vector<1x16x32xf32> to vector<1x32xf32>
    %cst_212 = arith.constant 1.600000e+01 : f32
    %259 = vector.broadcast %cst_212 : f32 to vector<1x32xf32>
    %260 = arith.divf %258, %259 : vector<1x32xf32>
    %cst_213 = arith.constant dense<0.000000e+00> : vector<1x32xf32>
    %261 = tpu.matmul %260, %257, %cst_213 {dimension_numbers = #tpu.dot_dimension_numbers<[1], [0], [0], [1], [0, 0, 1, 1], [], []>} : vector<1x32xf32>, vector<32x32xf32>, vector<1x32xf32> -> vector<1x32xf32>
    %262 = arith.negf %261 : vector<1x32xf32>
    %263 = math.exp %262 : vector<1x32xf32>
    %cst_214 = arith.constant 1.000000e+00 : f32
    %264 = vector.broadcast %cst_214 : f32 to vector<1x32xf32>
    %265 = arith.addf %264, %263 : vector<1x32xf32>
    %266 = arith.divf %264, %265 : vector<1x32xf32>
    %267 = vector.shape_cast %266 : vector<1x32xf32> to vector<1x1x32xf32>
    %268 = vector.broadcast %267 : vector<1x1x32xf32> to vector<1x16x32xf32>
    %269 = arith.mulf %255, %268 : vector<1x16x32xf32>
    %270 = arith.addf %269, %255 : vector<1x16x32xf32>
    %271 = vector.shape_cast %270 : vector<1x16x32xf32> to vector<16x32xf32>
    %272 = arith.truncf %271 : vector<16x32xf32> to vector<16x32xbf16>
    %cst_215 = arith.constant dense<0.000000e+00> : vector<16x64xf32>
    %273 = tpu.matmul %272, %216, %cst_215 {dimension_numbers = #tpu.dot_dimension_numbers<[1], [0], [0], [1], [0, 0, 1, 1], [], []>} : vector<16x32xbf16>, vector<32x64xbf16>, vector<16x64xf32> -> vector<16x64xf32>
    %274 = vector.broadcast %217 : vector<1x64xf32> to vector<16x64xf32>
    %275 = arith.mulf %273, %274 : vector<16x64xf32>
    %276 = vector.broadcast %218 : vector<1x64xf32> to vector<16x64xf32>
    %277 = arith.addf %275, %276 : vector<16x64xf32>
    %cst_216 = arith.constant 0.000000e+00 : f32
    %278 = vector.broadcast %cst_216 : f32 to vector<16x64xf32>
    %279 = arith.maximumf %277, %278 : vector<16x64xf32>
    %280 = vector.shape_cast %279 : vector<16x64xf32> to vector<1x16x64xf32>
    %c0_217 = arith.constant 0 : index
    %c0_218 = arith.constant 0 : index
    %c0_219 = arith.constant 0 : index
    %281 = vector.load %arg45[%c0_217, %c0_218, %c0_219] : memref<1x16x64xf32, #tpu.memory_space<vmem>>, vector<1x16x64xf32>
    tpu.vector_store %arg45[%c0_217, %c0_218, %c0_219], %280 {strides = array<i32>} : memref<1x16x64xf32, #tpu.memory_space<vmem>>, vector<1x16x64xf32>,
    %c0_220 = arith.constant 0 : index
    %c0_221 = arith.constant 0 : index
    %c0_222 = arith.constant 0 : index
    %282 = tpu.strided_load %arg45[%c0_220, %c0_221, %c0_222] {strides = array<i32: 1, 4, 1>} : memref<1x16x64xf32, #tpu.memory_space<vmem>>, vector<1x4x64xf32>
    %c0_223 = arith.constant 0 : index
    %c1_224 = arith.constant 1 : index
    %c0_225 = arith.constant 0 : index
    %283 = tpu.strided_load %arg45[%c0_223, %c1_224, %c0_225] {strides = array<i32: 1, 4, 1>} : memref<1x16x64xf32, #tpu.memory_space<vmem>>, vector<1x4x64xf32>
    %284 = arith.maximumf %282, %283 : vector<1x4x64xf32>
    %c0_226 = arith.constant 0 : index
    %c2_227 = arith.constant 2 : index
    %c0_228 = arith.constant 0 : index
    %285 = tpu.strided_load %arg45[%c0_226, %c2_227, %c0_228] {strides = array<i32: 1, 4, 1>} : memref<1x16x64xf32, #tpu.memory_space<vmem>>, vector<1x4x64xf32>
    %286 = arith.maximumf %284, %285 : vector<1x4x64xf32>
    %c0_229 = arith.constant 0 : index
    %c3_230 = arith.constant 3 : index
    %c0_231 = arith.constant 0 : index
    %287 = tpu.strided_load %arg45[%c0_229, %c3_230, %c0_231] {strides = array<i32: 1, 4, 1>} : memref<1x16x64xf32, #tpu.memory_space<vmem>>, vector<1x4x64xf32>
    %288 = arith.maximumf %286, %287 : vector<1x4x64xf32>
    %289 = arith.addf %209, %288 : vector<1x4x64xf32>
    %290 = vector.extract_strided_slice %212 {offsets = [0, 0, 0], sizes = [1, 64, 64], strides = [1, 1, 1]} : vector<3x64x64xf32> to vector<1x64x64xf32>
    %291 = vector.shape_cast %290 : vector<1x64x64xf32> to vector<64x64xf32>
    %cst_232 = arith.constant dense<0.000000e+00> : vector<1x64xf32>
    %292 = vector.multi_reduction <add>, %289, %cst_232 [1] : vector<1x4x64xf32> to vector<1x64xf32>
    %cst_233 = arith.constant 4.000000e+00 : f32
    %293 = vector.broadcast %cst_233 : f32 to vector<1x64xf32>
    %294 = arith.divf %292, %293 : vector<1x64xf32>
    %cst_234 = arith.constant dense<0.000000e+00> : vector<1x64xf32>
    %295 = tpu.matmul %294, %291, %cst_234 {dimension_numbers = #tpu.dot_dimension_numbers<[1], [0], [0], [1], [0, 0, 1, 1], [], []>} : vector<1x64xf32>, vector<64x64xf32>, vector<1x64xf32> -> vector<1x64xf32>
    %296 = arith.negf %295 : vector<1x64xf32>
    %297 = math.exp %296 : vector<1x64xf32>
    %cst_235 = arith.constant 1.000000e+00 : f32
    %298 = vector.broadcast %cst_235 : f32 to vector<1x64xf32>
    %299 = arith.addf %298, %297 : vector<1x64xf32>
    %300 = arith.divf %298, %299 : vector<1x64xf32>
    %301 = vector.shape_cast %300 : vector<1x64xf32> to vector<1x1x64xf32>
    %302 = vector.broadcast %301 : vector<1x1x64xf32> to vector<1x4x64xf32>
    %303 = arith.mulf %289, %302 : vector<1x4x64xf32>
    %304 = arith.addf %303, %289 : vector<1x4x64xf32>
    %305 = vector.shape_cast %304 : vector<1x4x64xf32> to vector<4x64xf32>
    %306 = arith.truncf %305 : vector<4x64xf32> to vector<4x64xbf16>
    %cst_236 = arith.constant dense<0.000000e+00> : vector<4x128xf32>
    %307 = tpu.matmul %306, %219, %cst_236 {dimension_numbers = #tpu.dot_dimension_numbers<[1], [0], [0], [1], [0, 0, 1, 1], [], []>} : vector<4x64xbf16>, vector<64x128xbf16>, vector<4x128xf32> -> vector<4x128xf32>
    %308 = vector.broadcast %220 : vector<1x128xf32> to vector<4x128xf32>
    %309 = arith.mulf %307, %308 : vector<4x128xf32>
    %310 = vector.broadcast %221 : vector<1x128xf32> to vector<4x128xf32>
    %311 = arith.addf %309, %310 : vector<4x128xf32>
    %cst_237 = arith.constant 0.000000e+00 : f32
    %312 = vector.broadcast %cst_237 : f32 to vector<4x128xf32>
    %313 = arith.maximumf %311, %312 : vector<4x128xf32>
    %314 = vector.shape_cast %313 : vector<4x128xf32> to vector<1x4x128xf32>
    %c0_238 = arith.constant 0 : index
    %c0_239 = arith.constant 0 : index
    %c0_240 = arith.constant 0 : index
    %315 = vector.load %arg46[%c0_238, %c0_239, %c0_240] : memref<1x4x128xf32, #tpu.memory_space<vmem>>, vector<1x4x128xf32>
    tpu.vector_store %arg46[%c0_238, %c0_239, %c0_240], %314 {strides = array<i32>} : memref<1x4x128xf32, #tpu.memory_space<vmem>>, vector<1x4x128xf32>,
    %c0_241 = arith.constant 0 : index
    %c0_242 = arith.constant 0 : index
    %c0_243 = arith.constant 0 : index
    %316 = tpu.strided_load %arg46[%c0_241, %c0_242, %c0_243] {strides = array<i32: 1, 2, 1>} : memref<1x4x128xf32, #tpu.memory_space<vmem>>, vector<1x2x128xf32>
    %c0_244 = arith.constant 0 : index
    %c1_245 = arith.constant 1 : index
    %c0_246 = arith.constant 0 : index
    %317 = tpu.strided_load %arg46[%c0_244, %c1_245, %c0_246] {strides = array<i32: 1, 2, 1>} : memref<1x4x128xf32, #tpu.memory_space<vmem>>, vector<1x2x128xf32>
    %318 = arith.maximumf %316, %317 : vector<1x2x128xf32>
    %cst_247 = arith.constant dense<0.000000e+00> : vector<1x128xf32>
    %319 = vector.multi_reduction <add>, %318, %cst_247 [1] : vector<1x2x128xf32> to vector<1x128xf32>
    %cst_248 = arith.constant 2.000000e+00 : f32
    %320 = vector.broadcast %cst_248 : f32 to vector<1x128xf32>
    %321 = arith.divf %319, %320 : vector<1x128xf32>
    %322 = arith.truncf %321 : vector<1x128xf32> to vector<1x128xbf16>
    %c0_249 = arith.constant 0 : index
    %c0_250 = arith.constant 0 : index
    %c0_251 = arith.constant 0 : index
    %323 = vector.load %arg32[%c0_249, %c0_250, %c0_251] : memref<3x128x128xbf16, #tpu.memory_space<vmem>>, vector<1x128x128xbf16>
    %324 = vector.shape_cast %323 : vector<1x128x128xbf16> to vector<128x128xbf16>
    %cst_252 = arith.constant dense<0.000000e+00> : vector<1x128xf32>
    %325 = tpu.matmul %322, %324, %cst_252 {dimension_numbers = #tpu.dot_dimension_numbers<[1], [0], [0], [1], [0, 0, 1, 1], [], []>} : vector<1x128xbf16>, vector<128x128xbf16>, vector<1x128xf32> -> vector<1x128xf32>
    %c0_253 = arith.constant 0 : index
    %c0_254 = arith.constant 0 : index
    %c0_255 = arith.constant 0 : index
    %326 = vector.load %arg33[%c0_253, %c0_254, %c0_255] : memref<3x1x128xf32, #tpu.memory_space<vmem>>, vector<1x1x128xf32>
    %327 = vector.shape_cast %326 : vector<1x1x128xf32> to vector<1x128xf32>
    %328 = arith.addf %325, %327 : vector<1x128xf32>
    %329 = vector.extract_strided_slice %210 {offsets = [1, 0, 0], sizes = [1, 16, 16], strides = [1, 1, 1]} : vector<3x16x16xf32> to vector<1x16x16xf32>
    %330 = vector.shape_cast %329 : vector<1x16x16xf32> to vector<16x16xf32>
    %cst_256 = arith.constant dense<0.000000e+00> : vector<1x16xf32>
    %331 = vector.multi_reduction <add>, %207, %cst_256 [1] : vector<1x64x16xf32> to vector<1x16xf32>
    %cst_257 = arith.constant 6.400000e+01 : f32
    %332 = vector.broadcast %cst_257 : f32 to vector<1x16xf32>
    %333 = arith.divf %331, %332 : vector<1x16xf32>
    %cst_258 = arith.constant dense<0.000000e+00> : vector<1x16xf32>
    %334 = tpu.matmul %333, %330, %cst_258 {dimension_numbers = #tpu.dot_dimension_numbers<[1], [0], [0], [1], [0, 0, 1, 1], [], []>} : vector<1x16xf32>, vector<16x16xf32>, vector<1x16xf32> -> vector<1x16xf32>
    %335 = arith.negf %334 : vector<1x16xf32>
    %336 = math.exp %335 : vector<1x16xf32>
    %cst_259 = arith.constant 1.000000e+00 : f32
    %337 = vector.broadcast %cst_259 : f32 to vector<1x16xf32>
    %338 = arith.addf %337, %336 : vector<1x16xf32>
    %339 = arith.divf %337, %338 : vector<1x16xf32>
    %340 = vector.shape_cast %339 : vector<1x16xf32> to vector<1x1x16xf32>
    %341 = vector.broadcast %340 : vector<1x1x16xf32> to vector<1x64x16xf32>
    %342 = arith.mulf %207, %341 : vector<1x64x16xf32>
    %343 = arith.addf %342, %207 : vector<1x64x16xf32>
    %344 = vector.shape_cast %343 : vector<1x64x16xf32> to vector<64x16xf32>
    %345 = arith.truncf %344 : vector<64x16xf32> to vector<64x16xbf16>
    %cst_260 = arith.constant dense<0.000000e+00> : vector<64x32xf32>
    %346 = tpu.matmul %345, %213, %cst_260 {dimension_numbers = #tpu.dot_dimension_numbers<[1], [0], [0], [1], [0, 0, 1, 1], [], []>} : vector<64x16xbf16>, vector<16x32xbf16>, vector<64x32xf32> -> vector<64x32xf32>
    %347 = vector.broadcast %214 : vector<1x32xf32> to vector<64x32xf32>
    %348 = arith.mulf %346, %347 : vector<64x32xf32>
    %349 = vector.broadcast %215 : vector<1x32xf32> to vector<64x32xf32>
    %350 = arith.addf %348, %349 : vector<64x32xf32>
    %cst_261 = arith.constant 0.000000e+00 : f32
    %351 = vector.broadcast %cst_261 : f32 to vector<64x32xf32>
    %352 = arith.maximumf %350, %351 : vector<64x32xf32>
    %353 = vector.shape_cast %352 : vector<64x32xf32> to vector<1x64x32xf32>
    %c0_262 = arith.constant 0 : index
    %c0_263 = arith.constant 0 : index
    %c0_264 = arith.constant 0 : index
    %354 = vector.load %arg44[%c0_262, %c0_263, %c0_264] : memref<1x64x32xf32, #tpu.memory_space<vmem>>, vector<1x64x32xf32>
    tpu.vector_store %arg44[%c0_262, %c0_263, %c0_264], %353 {strides = array<i32>} : memref<1x64x32xf32, #tpu.memory_space<vmem>>, vector<1x64x32xf32>,
    %c0_265 = arith.constant 0 : index
    %c0_266 = arith.constant 0 : index
    %c0_267 = arith.constant 0 : index
    %355 = tpu.strided_load %arg44[%c0_265, %c0_266, %c0_267] {strides = array<i32: 1, 4, 1>} : memref<1x64x32xf32, #tpu.memory_space<vmem>>, vector<1x16x32xf32>
    %c0_268 = arith.constant 0 : index
    %c1_269 = arith.constant 1 : index
    %c0_270 = arith.constant 0 : index
    %356 = tpu.strided_load %arg44[%c0_268, %c1_269, %c0_270] {strides = array<i32: 1, 4, 1>} : memref<1x64x32xf32, #tpu.memory_space<vmem>>, vector<1x16x32xf32>
    %357 = arith.maximumf %355, %356 : vector<1x16x32xf32>
    %c0_271 = arith.constant 0 : index
    %c2_272 = arith.constant 2 : index
    %c0_273 = arith.constant 0 : index
    %358 = tpu.strided_load %arg44[%c0_271, %c2_272, %c0_273] {strides = array<i32: 1, 4, 1>} : memref<1x64x32xf32, #tpu.memory_space<vmem>>, vector<1x16x32xf32>
    %359 = arith.maximumf %357, %358 : vector<1x16x32xf32>
    %c0_274 = arith.constant 0 : index
    %c3_275 = arith.constant 3 : index
    %c0_276 = arith.constant 0 : index
    %360 = tpu.strided_load %arg44[%c0_274, %c3_275, %c0_276] {strides = array<i32: 1, 4, 1>} : memref<1x64x32xf32, #tpu.memory_space<vmem>>, vector<1x16x32xf32>
    %361 = arith.maximumf %359, %360 : vector<1x16x32xf32>
    %362 = arith.addf %208, %361 : vector<1x16x32xf32>
    %363 = vector.extract_strided_slice %211 {offsets = [1, 0, 0], sizes = [1, 32, 32], strides = [1, 1, 1]} : vector<3x32x32xf32> to vector<1x32x32xf32>
    %364 = vector.shape_cast %363 : vector<1x32x32xf32> to vector<32x32xf32>
    %cst_277 = arith.constant dense<0.000000e+00> : vector<1x32xf32>
    %365 = vector.multi_reduction <add>, %362, %cst_277 [1] : vector<1x16x32xf32> to vector<1x32xf32>
    %cst_278 = arith.constant 1.600000e+01 : f32
    %366 = vector.broadcast %cst_278 : f32 to vector<1x32xf32>
    %367 = arith.divf %365, %366 : vector<1x32xf32>
    %cst_279 = arith.constant dense<0.000000e+00> : vector<1x32xf32>
    %368 = tpu.matmul %367, %364, %cst_279 {dimension_numbers = #tpu.dot_dimension_numbers<[1], [0], [0], [1], [0, 0, 1, 1], [], []>} : vector<1x32xf32>, vector<32x32xf32>, vector<1x32xf32> -> vector<1x32xf32>
    %369 = arith.negf %368 : vector<1x32xf32>
    %370 = math.exp %369 : vector<1x32xf32>
    %cst_280 = arith.constant 1.000000e+00 : f32
    %371 = vector.broadcast %cst_280 : f32 to vector<1x32xf32>
    %372 = arith.addf %371, %370 : vector<1x32xf32>
    %373 = arith.divf %371, %372 : vector<1x32xf32>
    %374 = vector.shape_cast %373 : vector<1x32xf32> to vector<1x1x32xf32>
    %375 = vector.broadcast %374 : vector<1x1x32xf32> to vector<1x16x32xf32>
    %376 = arith.mulf %362, %375 : vector<1x16x32xf32>
    %377 = arith.addf %376, %362 : vector<1x16x32xf32>
    %378 = vector.shape_cast %377 : vector<1x16x32xf32> to vector<16x32xf32>
    %379 = arith.truncf %378 : vector<16x32xf32> to vector<16x32xbf16>
    %cst_281 = arith.constant dense<0.000000e+00> : vector<16x64xf32>
    %380 = tpu.matmul %379, %216, %cst_281 {dimension_numbers = #tpu.dot_dimension_numbers<[1], [0], [0], [1], [0, 0, 1, 1], [], []>} : vector<16x32xbf16>, vector<32x64xbf16>, vector<16x64xf32> -> vector<16x64xf32>
    %381 = vector.broadcast %217 : vector<1x64xf32> to vector<16x64xf32>
    %382 = arith.mulf %380, %381 : vector<16x64xf32>
    %383 = vector.broadcast %218 : vector<1x64xf32> to vector<16x64xf32>
    %384 = arith.addf %382, %383 : vector<16x64xf32>
    %cst_282 = arith.constant 0.000000e+00 : f32
    %385 = vector.broadcast %cst_282 : f32 to vector<16x64xf32>
    %386 = arith.maximumf %384, %385 : vector<16x64xf32>
    %387 = vector.shape_cast %386 : vector<16x64xf32> to vector<1x16x64xf32>
    %c0_283 = arith.constant 0 : index
    %c0_284 = arith.constant 0 : index
    %c0_285 = arith.constant 0 : index
    %388 = vector.load %arg45[%c0_283, %c0_284, %c0_285] : memref<1x16x64xf32, #tpu.memory_space<vmem>>, vector<1x16x64xf32>
    tpu.vector_store %arg45[%c0_283, %c0_284, %c0_285], %387 {strides = array<i32>} : memref<1x16x64xf32, #tpu.memory_space<vmem>>, vector<1x16x64xf32>,
    %c0_286 = arith.constant 0 : index
    %c0_287 = arith.constant 0 : index
    %c0_288 = arith.constant 0 : index
    %389 = tpu.strided_load %arg45[%c0_286, %c0_287, %c0_288] {strides = array<i32: 1, 4, 1>} : memref<1x16x64xf32, #tpu.memory_space<vmem>>, vector<1x4x64xf32>
    %c0_289 = arith.constant 0 : index
    %c1_290 = arith.constant 1 : index
    %c0_291 = arith.constant 0 : index
    %390 = tpu.strided_load %arg45[%c0_289, %c1_290, %c0_291] {strides = array<i32: 1, 4, 1>} : memref<1x16x64xf32, #tpu.memory_space<vmem>>, vector<1x4x64xf32>
    %391 = arith.maximumf %389, %390 : vector<1x4x64xf32>
    %c0_292 = arith.constant 0 : index
    %c2_293 = arith.constant 2 : index
    %c0_294 = arith.constant 0 : index
    %392 = tpu.strided_load %arg45[%c0_292, %c2_293, %c0_294] {strides = array<i32: 1, 4, 1>} : memref<1x16x64xf32, #tpu.memory_space<vmem>>, vector<1x4x64xf32>
    %393 = arith.maximumf %391, %392 : vector<1x4x64xf32>
    %c0_295 = arith.constant 0 : index
    %c3_296 = arith.constant 3 : index
    %c0_297 = arith.constant 0 : index
    %394 = tpu.strided_load %arg45[%c0_295, %c3_296, %c0_297] {strides = array<i32: 1, 4, 1>} : memref<1x16x64xf32, #tpu.memory_space<vmem>>, vector<1x4x64xf32>
    %395 = arith.maximumf %393, %394 : vector<1x4x64xf32>
    %396 = arith.addf %209, %395 : vector<1x4x64xf32>
    %397 = vector.extract_strided_slice %212 {offsets = [1, 0, 0], sizes = [1, 64, 64], strides = [1, 1, 1]} : vector<3x64x64xf32> to vector<1x64x64xf32>
    %398 = vector.shape_cast %397 : vector<1x64x64xf32> to vector<64x64xf32>
    %cst_298 = arith.constant dense<0.000000e+00> : vector<1x64xf32>
    %399 = vector.multi_reduction <add>, %396, %cst_298 [1] : vector<1x4x64xf32> to vector<1x64xf32>
    %cst_299 = arith.constant 4.000000e+00 : f32
    %400 = vector.broadcast %cst_299 : f32 to vector<1x64xf32>
    %401 = arith.divf %399, %400 : vector<1x64xf32>
    %cst_300 = arith.constant dense<0.000000e+00> : vector<1x64xf32>
    %402 = tpu.matmul %401, %398, %cst_300 {dimension_numbers = #tpu.dot_dimension_numbers<[1], [0], [0], [1], [0, 0, 1, 1], [], []>} : vector<1x64xf32>, vector<64x64xf32>, vector<1x64xf32> -> vector<1x64xf32>
    %403 = arith.negf %402 : vector<1x64xf32>
    %404 = math.exp %403 : vector<1x64xf32>
    %cst_301 = arith.constant 1.000000e+00 : f32
    %405 = vector.broadcast %cst_301 : f32 to vector<1x64xf32>
    %406 = arith.addf %405, %404 : vector<1x64xf32>
    %407 = arith.divf %405, %406 : vector<1x64xf32>
    %408 = vector.shape_cast %407 : vector<1x64xf32> to vector<1x1x64xf32>
    %409 = vector.broadcast %408 : vector<1x1x64xf32> to vector<1x4x64xf32>
    %410 = arith.mulf %396, %409 : vector<1x4x64xf32>
    %411 = arith.addf %410, %396 : vector<1x4x64xf32>
    %412 = vector.shape_cast %411 : vector<1x4x64xf32> to vector<4x64xf32>
    %413 = arith.truncf %412 : vector<4x64xf32> to vector<4x64xbf16>
    %cst_302 = arith.constant dense<0.000000e+00> : vector<4x128xf32>
    %414 = tpu.matmul %413, %219, %cst_302 {dimension_numbers = #tpu.dot_dimension_numbers<[1], [0], [0], [1], [0, 0, 1, 1], [], []>} : vector<4x64xbf16>, vector<64x128xbf16>, vector<4x128xf32> -> vector<4x128xf32>
    %415 = vector.broadcast %220 : vector<1x128xf32> to vector<4x128xf32>
    %416 = arith.mulf %414, %415 : vector<4x128xf32>
    %417 = vector.broadcast %221 : vector<1x128xf32> to vector<4x128xf32>
    %418 = arith.addf %416, %417 : vector<4x128xf32>
    %cst_303 = arith.constant 0.000000e+00 : f32
    %419 = vector.broadcast %cst_303 : f32 to vector<4x128xf32>
    %420 = arith.maximumf %418, %419 : vector<4x128xf32>
    %421 = vector.shape_cast %420 : vector<4x128xf32> to vector<1x4x128xf32>
    %c0_304 = arith.constant 0 : index
    %c0_305 = arith.constant 0 : index
    %c0_306 = arith.constant 0 : index
    %422 = vector.load %arg46[%c0_304, %c0_305, %c0_306] : memref<1x4x128xf32, #tpu.memory_space<vmem>>, vector<1x4x128xf32>
    tpu.vector_store %arg46[%c0_304, %c0_305, %c0_306], %421 {strides = array<i32>} : memref<1x4x128xf32, #tpu.memory_space<vmem>>, vector<1x4x128xf32>,
    %c0_307 = arith.constant 0 : index
    %c0_308 = arith.constant 0 : index
    %c0_309 = arith.constant 0 : index
    %423 = tpu.strided_load %arg46[%c0_307, %c0_308, %c0_309] {strides = array<i32: 1, 2, 1>} : memref<1x4x128xf32, #tpu.memory_space<vmem>>, vector<1x2x128xf32>
    %c0_310 = arith.constant 0 : index
    %c1_311 = arith.constant 1 : index
    %c0_312 = arith.constant 0 : index
    %424 = tpu.strided_load %arg46[%c0_310, %c1_311, %c0_312] {strides = array<i32: 1, 2, 1>} : memref<1x4x128xf32, #tpu.memory_space<vmem>>, vector<1x2x128xf32>
    %425 = arith.maximumf %423, %424 : vector<1x2x128xf32>
    %cst_313 = arith.constant dense<0.000000e+00> : vector<1x128xf32>
    %426 = vector.multi_reduction <add>, %425, %cst_313 [1] : vector<1x2x128xf32> to vector<1x128xf32>
    %cst_314 = arith.constant 2.000000e+00 : f32
    %427 = vector.broadcast %cst_314 : f32 to vector<1x128xf32>
    %428 = arith.divf %426, %427 : vector<1x128xf32>
    %429 = arith.truncf %428 : vector<1x128xf32> to vector<1x128xbf16>
    %c1_315 = arith.constant 1 : index
    %c0_316 = arith.constant 0 : index
    %c0_317 = arith.constant 0 : index
    %430 = vector.load %arg32[%c1_315, %c0_316, %c0_317] : memref<3x128x128xbf16, #tpu.memory_space<vmem>>, vector<1x128x128xbf16>
    %431 = vector.shape_cast %430 : vector<1x128x128xbf16> to vector<128x128xbf16>
    %cst_318 = arith.constant dense<0.000000e+00> : vector<1x128xf32>
    %432 = tpu.matmul %429, %431, %cst_318 {dimension_numbers = #tpu.dot_dimension_numbers<[1], [0], [0], [1], [0, 0, 1, 1], [], []>} : vector<1x128xbf16>, vector<128x128xbf16>, vector<1x128xf32> -> vector<1x128xf32>
    %c1_319 = arith.constant 1 : index
    %c0_320 = arith.constant 0 : index
    %c0_321 = arith.constant 0 : index
    %433 = vector.load %arg33[%c1_319, %c0_320, %c0_321] : memref<3x1x128xf32, #tpu.memory_space<vmem>>, vector<1x1x128xf32>
    %434 = vector.shape_cast %433 : vector<1x1x128xf32> to vector<1x128xf32>
    %435 = arith.addf %432, %434 : vector<1x128xf32>
    %436 = vector.extract_strided_slice %210 {offsets = [2, 0, 0], sizes = [1, 16, 16], strides = [1, 1, 1]} : vector<3x16x16xf32> to vector<1x16x16xf32>
    %437 = vector.shape_cast %436 : vector<1x16x16xf32> to vector<16x16xf32>
    %cst_322 = arith.constant dense<0.000000e+00> : vector<1x16xf32>
    %438 = vector.multi_reduction <add>, %207, %cst_322 [1] : vector<1x64x16xf32> to vector<1x16xf32>
    %cst_323 = arith.constant 6.400000e+01 : f32
    %439 = vector.broadcast %cst_323 : f32 to vector<1x16xf32>
    %440 = arith.divf %438, %439 : vector<1x16xf32>
    %cst_324 = arith.constant dense<0.000000e+00> : vector<1x16xf32>
    %441 = tpu.matmul %440, %437, %cst_324 {dimension_numbers = #tpu.dot_dimension_numbers<[1], [0], [0], [1], [0, 0, 1, 1], [], []>} : vector<1x16xf32>, vector<16x16xf32>, vector<1x16xf32> -> vector<1x16xf32>
    %442 = arith.negf %441 : vector<1x16xf32>
    %443 = math.exp %442 : vector<1x16xf32>
    %cst_325 = arith.constant 1.000000e+00 : f32
    %444 = vector.broadcast %cst_325 : f32 to vector<1x16xf32>
    %445 = arith.addf %444, %443 : vector<1x16xf32>
    %446 = arith.divf %444, %445 : vector<1x16xf32>
    %447 = vector.shape_cast %446 : vector<1x16xf32> to vector<1x1x16xf32>
    %448 = vector.broadcast %447 : vector<1x1x16xf32> to vector<1x64x16xf32>
    %449 = arith.mulf %207, %448 : vector<1x64x16xf32>
    %450 = arith.addf %449, %207 : vector<1x64x16xf32>
    %451 = vector.shape_cast %450 : vector<1x64x16xf32> to vector<64x16xf32>
    %452 = arith.truncf %451 : vector<64x16xf32> to vector<64x16xbf16>
    %cst_326 = arith.constant dense<0.000000e+00> : vector<64x32xf32>
    %453 = tpu.matmul %452, %213, %cst_326 {dimension_numbers = #tpu.dot_dimension_numbers<[1], [0], [0], [1], [0, 0, 1, 1], [], []>} : vector<64x16xbf16>, vector<16x32xbf16>, vector<64x32xf32> -> vector<64x32xf32>
    %454 = vector.broadcast %214 : vector<1x32xf32> to vector<64x32xf32>
    %455 = arith.mulf %453, %454 : vector<64x32xf32>
    %456 = vector.broadcast %215 : vector<1x32xf32> to vector<64x32xf32>
    %457 = arith.addf %455, %456 : vector<64x32xf32>
    %cst_327 = arith.constant 0.000000e+00 : f32
    %458 = vector.broadcast %cst_327 : f32 to vector<64x32xf32>
    %459 = arith.maximumf %457, %458 : vector<64x32xf32>
    %460 = vector.shape_cast %459 : vector<64x32xf32> to vector<1x64x32xf32>
    %c0_328 = arith.constant 0 : index
    %c0_329 = arith.constant 0 : index
    %c0_330 = arith.constant 0 : index
    %461 = vector.load %arg44[%c0_328, %c0_329, %c0_330] : memref<1x64x32xf32, #tpu.memory_space<vmem>>, vector<1x64x32xf32>
    tpu.vector_store %arg44[%c0_328, %c0_329, %c0_330], %460 {strides = array<i32>} : memref<1x64x32xf32, #tpu.memory_space<vmem>>, vector<1x64x32xf32>,
    %c0_331 = arith.constant 0 : index
    %c0_332 = arith.constant 0 : index
    %c0_333 = arith.constant 0 : index
    %462 = tpu.strided_load %arg44[%c0_331, %c0_332, %c0_333] {strides = array<i32: 1, 4, 1>} : memref<1x64x32xf32, #tpu.memory_space<vmem>>, vector<1x16x32xf32>
    %c0_334 = arith.constant 0 : index
    %c1_335 = arith.constant 1 : index
    %c0_336 = arith.constant 0 : index
    %463 = tpu.strided_load %arg44[%c0_334, %c1_335, %c0_336] {strides = array<i32: 1, 4, 1>} : memref<1x64x32xf32, #tpu.memory_space<vmem>>, vector<1x16x32xf32>
    %464 = arith.maximumf %462, %463 : vector<1x16x32xf32>
    %c0_337 = arith.constant 0 : index
    %c2_338 = arith.constant 2 : index
    %c0_339 = arith.constant 0 : index
    %465 = tpu.strided_load %arg44[%c0_337, %c2_338, %c0_339] {strides = array<i32: 1, 4, 1>} : memref<1x64x32xf32, #tpu.memory_space<vmem>>, vector<1x16x32xf32>
    %466 = arith.maximumf %464, %465 : vector<1x16x32xf32>
    %c0_340 = arith.constant 0 : index
    %c3_341 = arith.constant 3 : index
    %c0_342 = arith.constant 0 : index
    %467 = tpu.strided_load %arg44[%c0_340, %c3_341, %c0_342] {strides = array<i32: 1, 4, 1>} : memref<1x64x32xf32, #tpu.memory_space<vmem>>, vector<1x16x32xf32>
    %468 = arith.maximumf %466, %467 : vector<1x16x32xf32>
    %469 = arith.addf %208, %468 : vector<1x16x32xf32>
    %470 = vector.extract_strided_slice %211 {offsets = [2, 0, 0], sizes = [1, 32, 32], strides = [1, 1, 1]} : vector<3x32x32xf32> to vector<1x32x32xf32>
    %471 = vector.shape_cast %470 : vector<1x32x32xf32> to vector<32x32xf32>
    %cst_343 = arith.constant dense<0.000000e+00> : vector<1x32xf32>
    %472 = vector.multi_reduction <add>, %469, %cst_343 [1] : vector<1x16x32xf32> to vector<1x32xf32>
    %cst_344 = arith.constant 1.600000e+01 : f32
    %473 = vector.broadcast %cst_344 : f32 to vector<1x32xf32>
    %474 = arith.divf %472, %473 : vector<1x32xf32>
    %cst_345 = arith.constant dense<0.000000e+00> : vector<1x32xf32>
    %475 = tpu.matmul %474, %471, %cst_345 {dimension_numbers = #tpu.dot_dimension_numbers<[1], [0], [0], [1], [0, 0, 1, 1], [], []>} : vector<1x32xf32>, vector<32x32xf32>, vector<1x32xf32> -> vector<1x32xf32>
    %476 = arith.negf %475 : vector<1x32xf32>
    %477 = math.exp %476 : vector<1x32xf32>
    %cst_346 = arith.constant 1.000000e+00 : f32
    %478 = vector.broadcast %cst_346 : f32 to vector<1x32xf32>
    %479 = arith.addf %478, %477 : vector<1x32xf32>
    %480 = arith.divf %478, %479 : vector<1x32xf32>
    %481 = vector.shape_cast %480 : vector<1x32xf32> to vector<1x1x32xf32>
    %482 = vector.broadcast %481 : vector<1x1x32xf32> to vector<1x16x32xf32>
    %483 = arith.mulf %469, %482 : vector<1x16x32xf32>
    %484 = arith.addf %483, %469 : vector<1x16x32xf32>
    %485 = vector.shape_cast %484 : vector<1x16x32xf32> to vector<16x32xf32>
    %486 = arith.truncf %485 : vector<16x32xf32> to vector<16x32xbf16>
    %cst_347 = arith.constant dense<0.000000e+00> : vector<16x64xf32>
    %487 = tpu.matmul %486, %216, %cst_347 {dimension_numbers = #tpu.dot_dimension_numbers<[1], [0], [0], [1], [0, 0, 1, 1], [], []>} : vector<16x32xbf16>, vector<32x64xbf16>, vector<16x64xf32> -> vector<16x64xf32>
    %488 = vector.broadcast %217 : vector<1x64xf32> to vector<16x64xf32>
    %489 = arith.mulf %487, %488 : vector<16x64xf32>
    %490 = vector.broadcast %218 : vector<1x64xf32> to vector<16x64xf32>
    %491 = arith.addf %489, %490 : vector<16x64xf32>
    %cst_348 = arith.constant 0.000000e+00 : f32
    %492 = vector.broadcast %cst_348 : f32 to vector<16x64xf32>
    %493 = arith.maximumf %491, %492 : vector<16x64xf32>
    %494 = vector.shape_cast %493 : vector<16x64xf32> to vector<1x16x64xf32>
    %c0_349 = arith.constant 0 : index
    %c0_350 = arith.constant 0 : index
    %c0_351 = arith.constant 0 : index
    %495 = vector.load %arg45[%c0_349, %c0_350, %c0_351] : memref<1x16x64xf32, #tpu.memory_space<vmem>>, vector<1x16x64xf32>
    tpu.vector_store %arg45[%c0_349, %c0_350, %c0_351], %494 {strides = array<i32>} : memref<1x16x64xf32, #tpu.memory_space<vmem>>, vector<1x16x64xf32>,
    %c0_352 = arith.constant 0 : index
    %c0_353 = arith.constant 0 : index
    %c0_354 = arith.constant 0 : index
    %496 = tpu.strided_load %arg45[%c0_352, %c0_353, %c0_354] {strides = array<i32: 1, 4, 1>} : memref<1x16x64xf32, #tpu.memory_space<vmem>>, vector<1x4x64xf32>
    %c0_355 = arith.constant 0 : index
    %c1_356 = arith.constant 1 : index
    %c0_357 = arith.constant 0 : index
    %497 = tpu.strided_load %arg45[%c0_355, %c1_356, %c0_357] {strides = array<i32: 1, 4, 1>} : memref<1x16x64xf32, #tpu.memory_space<vmem>>, vector<1x4x64xf32>
    %498 = arith.maximumf %496, %497 : vector<1x4x64xf32>
    %c0_358 = arith.constant 0 : index
    %c2_359 = arith.constant 2 : index
    %c0_360 = arith.constant 0 : index
    %499 = tpu.strided_load %arg45[%c0_358, %c2_359, %c0_360] {strides = array<i32: 1, 4, 1>} : memref<1x16x64xf32, #tpu.memory_space<vmem>>, vector<1x4x64xf32>
    %500 = arith.maximumf %498, %499 : vector<1x4x64xf32>
    %c0_361 = arith.constant 0 : index
    %c3_362 = arith.constant 3 : index
    %c0_363 = arith.constant 0 : index
    %501 = tpu.strided_load %arg45[%c0_361, %c3_362, %c0_363] {strides = array<i32: 1, 4, 1>} : memref<1x16x64xf32, #tpu.memory_space<vmem>>, vector<1x4x64xf32>
    %502 = arith.maximumf %500, %501 : vector<1x4x64xf32>
    %503 = arith.addf %209, %502 : vector<1x4x64xf32>
    %504 = vector.extract_strided_slice %212 {offsets = [2, 0, 0], sizes = [1, 64, 64], strides = [1, 1, 1]} : vector<3x64x64xf32> to vector<1x64x64xf32>
    %505 = vector.shape_cast %504 : vector<1x64x64xf32> to vector<64x64xf32>
    %cst_364 = arith.constant dense<0.000000e+00> : vector<1x64xf32>
    %506 = vector.multi_reduction <add>, %503, %cst_364 [1] : vector<1x4x64xf32> to vector<1x64xf32>
    %cst_365 = arith.constant 4.000000e+00 : f32
    %507 = vector.broadcast %cst_365 : f32 to vector<1x64xf32>
    %508 = arith.divf %506, %507 : vector<1x64xf32>
    %cst_366 = arith.constant dense<0.000000e+00> : vector<1x64xf32>
    %509 = tpu.matmul %508, %505, %cst_366 {dimension_numbers = #tpu.dot_dimension_numbers<[1], [0], [0], [1], [0, 0, 1, 1], [], []>} : vector<1x64xf32>, vector<64x64xf32>, vector<1x64xf32> -> vector<1x64xf32>
    %510 = arith.negf %509 : vector<1x64xf32>
    %511 = math.exp %510 : vector<1x64xf32>
    %cst_367 = arith.constant 1.000000e+00 : f32
    %512 = vector.broadcast %cst_367 : f32 to vector<1x64xf32>
    %513 = arith.addf %512, %511 : vector<1x64xf32>
    %514 = arith.divf %512, %513 : vector<1x64xf32>
    %515 = vector.shape_cast %514 : vector<1x64xf32> to vector<1x1x64xf32>
    %516 = vector.broadcast %515 : vector<1x1x64xf32> to vector<1x4x64xf32>
    %517 = arith.mulf %503, %516 : vector<1x4x64xf32>
    %518 = arith.addf %517, %503 : vector<1x4x64xf32>
    %519 = vector.shape_cast %518 : vector<1x4x64xf32> to vector<4x64xf32>
    %520 = arith.truncf %519 : vector<4x64xf32> to vector<4x64xbf16>
    %cst_368 = arith.constant dense<0.000000e+00> : vector<4x128xf32>
    %521 = tpu.matmul %520, %219, %cst_368 {dimension_numbers = #tpu.dot_dimension_numbers<[1], [0], [0], [1], [0, 0, 1, 1], [], []>} : vector<4x64xbf16>, vector<64x128xbf16>, vector<4x128xf32> -> vector<4x128xf32>
    %522 = vector.broadcast %220 : vector<1x128xf32> to vector<4x128xf32>
    %523 = arith.mulf %521, %522 : vector<4x128xf32>
    %524 = vector.broadcast %221 : vector<1x128xf32> to vector<4x128xf32>
    %525 = arith.addf %523, %524 : vector<4x128xf32>
    %cst_369 = arith.constant 0.000000e+00 : f32
    %526 = vector.broadcast %cst_369 : f32 to vector<4x128xf32>
    %527 = arith.maximumf %525, %526 : vector<4x128xf32>
    %528 = vector.shape_cast %527 : vector<4x128xf32> to vector<1x4x128xf32>
    %c0_370 = arith.constant 0 : index
    %c0_371 = arith.constant 0 : index
    %c0_372 = arith.constant 0 : index
    %529 = vector.load %arg46[%c0_370, %c0_371, %c0_372] : memref<1x4x128xf32, #tpu.memory_space<vmem>>, vector<1x4x128xf32>
    tpu.vector_store %arg46[%c0_370, %c0_371, %c0_372], %528 {strides = array<i32>} : memref<1x4x128xf32, #tpu.memory_space<vmem>>, vector<1x4x128xf32>,
    %c0_373 = arith.constant 0 : index
    %c0_374 = arith.constant 0 : index
    %c0_375 = arith.constant 0 : index
    %530 = tpu.strided_load %arg46[%c0_373, %c0_374, %c0_375] {strides = array<i32: 1, 2, 1>} : memref<1x4x128xf32, #tpu.memory_space<vmem>>, vector<1x2x128xf32>
    %c0_376 = arith.constant 0 : index
    %c1_377 = arith.constant 1 : index
    %c0_378 = arith.constant 0 : index
    %531 = tpu.strided_load %arg46[%c0_376, %c1_377, %c0_378] {strides = array<i32: 1, 2, 1>} : memref<1x4x128xf32, #tpu.memory_space<vmem>>, vector<1x2x128xf32>
    %532 = arith.maximumf %530, %531 : vector<1x2x128xf32>
    %cst_379 = arith.constant dense<0.000000e+00> : vector<1x128xf32>
    %533 = vector.multi_reduction <add>, %532, %cst_379 [1] : vector<1x2x128xf32> to vector<1x128xf32>
    %cst_380 = arith.constant 2.000000e+00 : f32
    %534 = vector.broadcast %cst_380 : f32 to vector<1x128xf32>
    %535 = arith.divf %533, %534 : vector<1x128xf32>
    %536 = arith.truncf %535 : vector<1x128xf32> to vector<1x128xbf16>
    %c2_381 = arith.constant 2 : index
    %c0_382 = arith.constant 0 : index
    %c0_383 = arith.constant 0 : index
    %537 = vector.load %arg32[%c2_381, %c0_382, %c0_383] : memref<3x128x128xbf16, #tpu.memory_space<vmem>>, vector<1x128x128xbf16>
    %538 = vector.shape_cast %537 : vector<1x128x128xbf16> to vector<128x128xbf16>
    %cst_384 = arith.constant dense<0.000000e+00> : vector<1x128xf32>
    %539 = tpu.matmul %536, %538, %cst_384 {dimension_numbers = #tpu.dot_dimension_numbers<[1], [0], [0], [1], [0, 0, 1, 1], [], []>} : vector<1x128xbf16>, vector<128x128xbf16>, vector<1x128xf32> -> vector<1x128xf32>
    %c2_385 = arith.constant 2 : index
    %c0_386 = arith.constant 0 : index
    %c0_387 = arith.constant 0 : index
    %540 = vector.load %arg33[%c2_385, %c0_386, %c0_387] : memref<3x1x128xf32, #tpu.memory_space<vmem>>, vector<1x1x128xf32>
    %541 = vector.shape_cast %540 : vector<1x1x128xf32> to vector<1x128xf32>
    %542 = arith.addf %539, %541 : vector<1x128xf32>
    %543 = tpu.concatenate %328, %435, %542 in 1 : vector<1x128xf32>, vector<1x128xf32>, vector<1x128xf32> -> vector<1x384xf32>
    %c0_388 = arith.constant 0 : index
    %c0_389 = arith.constant 0 : index
    %c0_390 = arith.constant 0 : index
    %544 = vector.load %arg34[%c0_388, %c0_389, %c0_390] : memref<1x1x384xf32, #tpu.memory_space<vmem>>, vector<1x1x384xf32>
    %545 = vector.shape_cast %544 : vector<1x1x384xf32> to vector<1x384xf32>
    %546 = vector.shape_cast %543 : vector<1x384xf32> to vector<1x1x384xf32>
    tpu.vector_store %arg34[%c0_388, %c0_389, %c0_390], %546 {strides = array<i32>} : memref<1x1x384xf32, #tpu.memory_space<vmem>>, vector<1x1x384xf32>,
    return
  }
  func.func @transform_0(%arg0: i32) -> (i32, i32, i32) {
    %c0_i32 = arith.constant 0 : i32
    %c0_i32_0 = arith.constant 0 : i32
    %c0_i32_1 = arith.constant 0 : i32
    return %arg0, %c0_i32, %c0_i32_0 : i32, i32, i32
  }
  func.func @transform_1(%arg0: i32) -> (i32, i32, i32) {
    %c0_i32 = arith.constant 0 : i32
    %c0_i32_0 = arith.constant 0 : i32
    %c0_i32_1 = arith.constant 0 : i32
    %c0_i32_2 = arith.constant 0 : i32
    return %c0_i32, %c0_i32_0, %c0_i32_1 : i32, i32, i32
  }
  func.func @transform_2(%arg0: i32) -> (i32, i32) {
    %c0_i32 = arith.constant 0 : i32
    %c0_i32_0 = arith.constant 0 : i32
    %c0_i32_1 = arith.constant 0 : i32
    return %c0_i32, %c0_i32_0 : i32, i32
  }
  func.func @transform_3(%arg0: i32) -> (i32, i32) {
    %c0_i32 = arith.constant 0 : i32
    %c0_i32_0 = arith.constant 0 : i32
    %c0_i32_1 = arith.constant 0 : i32
    return %c0_i32, %c0_i32_0 : i32, i32
  }
  func.func @transform_4(%arg0: i32) -> (i32, i32) {
    %c0_i32 = arith.constant 0 : i32
    %c0_i32_0 = arith.constant 0 : i32
    %c0_i32_1 = arith.constant 0 : i32
    return %c0_i32, %c0_i32_0 : i32, i32
  }
  func.func @transform_5(%arg0: i32) -> (i32, i32) {
    %c0_i32 = arith.constant 0 : i32
    %c0_i32_0 = arith.constant 0 : i32
    %c0_i32_1 = arith.constant 0 : i32
    return %c0_i32, %c0_i32_0 : i32, i32
  }
  func.func @transform_6(%arg0: i32) -> (i32, i32) {
    %c0_i32 = arith.constant 0 : i32
    %c0_i32_0 = arith.constant 0 : i32
    %c0_i32_1 = arith.constant 0 : i32
    return %c0_i32, %c0_i32_0 : i32, i32
  }
  func.func @transform_7(%arg0: i32) -> (i32, i32) {
    %c0_i32 = arith.constant 0 : i32
    %c0_i32_0 = arith.constant 0 : i32
    %c0_i32_1 = arith.constant 0 : i32
    return %c0_i32, %c0_i32_0 : i32, i32
  }
  func.func @transform_8(%arg0: i32) -> (i32, i32) {
    %c0_i32 = arith.constant 0 : i32
    %c0_i32_0 = arith.constant 0 : i32
    %c0_i32_1 = arith.constant 0 : i32
    return %c0_i32, %c0_i32_0 : i32, i32
  }
  func.func @transform_9(%arg0: i32) -> (i32, i32) {
    %c0_i32 = arith.constant 0 : i32
    %c0_i32_0 = arith.constant 0 : i32
    %c0_i32_1 = arith.constant 0 : i32
    return %c0_i32, %c0_i32_0 : i32, i32
  }
  func.func @transform_10(%arg0: i32) -> (i32, i32) {
    %c0_i32 = arith.constant 0 : i32
    %c0_i32_0 = arith.constant 0 : i32
    %c0_i32_1 = arith.constant 0 : i32
    return %c0_i32, %c0_i32_0 : i32, i32
  }
  func.func @transform_11(%arg0: i32) -> (i32, i32) {
    %c0_i32 = arith.constant 0 : i32
    %c0_i32_0 = arith.constant 0 : i32
    %c0_i32_1 = arith.constant 0 : i32
    return %c0_i32, %c0_i32_0 : i32, i32
  }
  func.func @transform_12(%arg0: i32) -> (i32, i32) {
    %c0_i32 = arith.constant 0 : i32
    %c0_i32_0 = arith.constant 0 : i32
    %c0_i32_1 = arith.constant 0 : i32
    return %c0_i32, %c0_i32_0 : i32, i32
  }
  func.func @transform_13(%arg0: i32) -> (i32, i32) {
    %c0_i32 = arith.constant 0 : i32
    %c0_i32_0 = arith.constant 0 : i32
    %c0_i32_1 = arith.constant 0 : i32
    return %c0_i32, %c0_i32_0 : i32, i32
  }
  func.func @transform_14(%arg0: i32) -> (i32, i32) {
    %c0_i32 = arith.constant 0 : i32
    %c0_i32_0 = arith.constant 0 : i32
    %c0_i32_1 = arith.constant 0 : i32
    return %c0_i32, %c0_i32_0 : i32, i32
  }
  func.func @transform_15(%arg0: i32) -> (i32, i32) {
    %c0_i32 = arith.constant 0 : i32
    %c0_i32_0 = arith.constant 0 : i32
    %c0_i32_1 = arith.constant 0 : i32
    return %c0_i32, %c0_i32_0 : i32, i32
  }
  func.func @transform_16(%arg0: i32) -> (i32, i32) {
    %c0_i32 = arith.constant 0 : i32
    %c0_i32_0 = arith.constant 0 : i32
    %c0_i32_1 = arith.constant 0 : i32
    return %c0_i32, %c0_i32_0 : i32, i32
  }
  func.func @transform_17(%arg0: i32) -> (i32, i32) {
    %c0_i32 = arith.constant 0 : i32
    %c0_i32_0 = arith.constant 0 : i32
    %c0_i32_1 = arith.constant 0 : i32
    return %c0_i32, %c0_i32_0 : i32, i32
  }
  func.func @transform_18(%arg0: i32) -> (i32, i32) {
    %c0_i32 = arith.constant 0 : i32
    %c0_i32_0 = arith.constant 0 : i32
    %c0_i32_1 = arith.constant 0 : i32
    return %c0_i32, %c0_i32_0 : i32, i32
  }
  func.func @transform_19(%arg0: i32) -> (i32, i32, i32) {
    %c0_i32 = arith.constant 0 : i32
    %c0_i32_0 = arith.constant 0 : i32
    %c0_i32_1 = arith.constant 0 : i32
    %c0_i32_2 = arith.constant 0 : i32
    return %c0_i32, %c0_i32_0, %c0_i32_1 : i32, i32, i32
  }
  func.func @transform_20(%arg0: i32) -> (i32, i32, i32) {
    %c0_i32 = arith.constant 0 : i32
    %c0_i32_0 = arith.constant 0 : i32
    %c0_i32_1 = arith.constant 0 : i32
    %c0_i32_2 = arith.constant 0 : i32
    return %c0_i32, %c0_i32_0, %c0_i32_1 : i32, i32, i32
  }
  func.func @transform_21(%arg0: i32) -> (i32, i32, i32) {
    %c0_i32 = arith.constant 0 : i32
    %c0_i32_0 = arith.constant 0 : i32
    %c0_i32_1 = arith.constant 0 : i32
    %c0_i32_2 = arith.constant 0 : i32
    return %c0_i32, %c0_i32_0, %c0_i32_1 : i32, i32, i32
  }
  func.func @transform_22(%arg0: i32) -> (i32, i32) {
    %c0_i32 = arith.constant 0 : i32
    %c0_i32_0 = arith.constant 0 : i32
    %c0_i32_1 = arith.constant 0 : i32
    return %c0_i32, %c0_i32_0 : i32, i32
  }
  func.func @transform_23(%arg0: i32) -> (i32, i32) {
    %c0_i32 = arith.constant 0 : i32
    %c0_i32_0 = arith.constant 0 : i32
    %c0_i32_1 = arith.constant 0 : i32
    return %c0_i32, %c0_i32_0 : i32, i32
  }
  func.func @transform_24(%arg0: i32) -> (i32, i32) {
    %c0_i32 = arith.constant 0 : i32
    %c0_i32_0 = arith.constant 0 : i32
    %c0_i32_1 = arith.constant 0 : i32
    return %c0_i32, %c0_i32_0 : i32, i32
  }
  func.func @transform_25(%arg0: i32) -> (i32, i32) {
    %c0_i32 = arith.constant 0 : i32
    %c0_i32_0 = arith.constant 0 : i32
    %c0_i32_1 = arith.constant 0 : i32
    return %c0_i32, %c0_i32_0 : i32, i32
  }
  func.func @transform_26(%arg0: i32) -> (i32, i32) {
    %c0_i32 = arith.constant 0 : i32
    %c0_i32_0 = arith.constant 0 : i32
    %c0_i32_1 = arith.constant 0 : i32
    return %c0_i32, %c0_i32_0 : i32, i32
  }
  func.func @transform_27(%arg0: i32) -> (i32, i32) {
    %c0_i32 = arith.constant 0 : i32
    %c0_i32_0 = arith.constant 0 : i32
    %c0_i32_1 = arith.constant 0 : i32
    return %c0_i32, %c0_i32_0 : i32, i32
  }
  func.func @transform_28(%arg0: i32) -> (i32, i32) {
    %c0_i32 = arith.constant 0 : i32
    %c0_i32_0 = arith.constant 0 : i32
    %c0_i32_1 = arith.constant 0 : i32
    return %c0_i32, %c0_i32_0 : i32, i32
  }
  func.func @transform_29(%arg0: i32) -> (i32, i32) {
    %c0_i32 = arith.constant 0 : i32
    %c0_i32_0 = arith.constant 0 : i32
    %c0_i32_1 = arith.constant 0 : i32
    return %c0_i32, %c0_i32_0 : i32, i32
  }
  func.func @transform_30(%arg0: i32) -> (i32, i32) {
    %c0_i32 = arith.constant 0 : i32
    %c0_i32_0 = arith.constant 0 : i32
    %c0_i32_1 = arith.constant 0 : i32
    return %c0_i32, %c0_i32_0 : i32, i32
  }
  func.func @transform_31(%arg0: i32) -> (i32, i32, i32) {
    %c0_i32 = arith.constant 0 : i32
    %c0_i32_0 = arith.constant 0 : i32
    %c0_i32_1 = arith.constant 0 : i32
    %c0_i32_2 = arith.constant 0 : i32
    return %c0_i32, %c0_i32_0, %c0_i32_1 : i32, i32, i32
  }
  func.func @transform_32(%arg0: i32) -> (i32, i32, i32) {
    %c0_i32 = arith.constant 0 : i32
    %c0_i32_0 = arith.constant 0 : i32
    %c0_i32_1 = arith.constant 0 : i32
    %c0_i32_2 = arith.constant 0 : i32
    return %c0_i32, %c0_i32_0, %c0_i32_1 : i32, i32, i32
  }
  func.func @transform_33(%arg0: i32) -> (i32, i32, i32) {
    %c0_i32 = arith.constant 0 : i32
    %c0_i32_0 = arith.constant 0 : i32
    %c0_i32_1 = arith.constant 0 : i32
    return %arg0, %c0_i32, %c0_i32_0 : i32, i32, i32
  }
}

</mosaic_0001>

<llo_original>
// kernel: mtagnp_forward.1
$region0: #{mtagnp_forward.1}
  #allocation0 [shape = 'u32[]', space=smem, size = 0x4, offset = 0x4, fixed_abs, tag = 'smem constant byte address 0x4 - core index']
  #allocation1 [shape = 'u32[144,128]{1,0:T(1,128)}', space=vmem, size = 0x12000, scoped, tag = 'internal scratch']
  #allocation2 [shape = 'f32[1,80,1]{2,1,0:T(8,128)}', space=vmem, size = 0xa000, scoped, tag = 'scratch operand']
  #allocation3 [shape = 'f32[1,80,16]{2,1,0:T(8,128)}', space=vmem, size = 0xa000, scoped, tag = 'scratch operand']
  #allocation4 [shape = 'f32[1,32,16]{2,1,0:T(8,128)}', space=vmem, size = 0x4000, scoped, tag = 'scratch operand']
  #allocation5 [shape = 'f32[1,32,32]{2,1,0:T(8,128)}', space=vmem, size = 0x4000, scoped, tag = 'scratch operand']
  #allocation6 [shape = 'f32[1,16,32]{2,1,0:T(8,128)}', space=vmem, size = 0x2000, scoped, tag = 'scratch operand']
  #allocation7 [shape = 'f32[1,16,64]{2,1,0:T(8,128)}', space=vmem, size = 0x2000, scoped, tag = 'scratch operand']
  #allocation8 [shape = 'f32[1,64,16]{2,1,0:T(8,128)}', space=vmem, size = 0x8000, scoped, tag = 'scratch operand']
  #allocation9 [shape = 'f32[1,16,32]{2,1,0:T(8,128)}', space=vmem, size = 0x2000, scoped, tag = 'scratch operand']
  #allocation10 [shape = 'f32[1,4,64]{2,1,0:T(4,128)}', space=vmem, size = 0x800, scoped, tag = 'scratch operand']
  #allocation11 [shape = 'f32[1,64,32]{2,1,0:T(8,128)}', space=vmem, size = 0x8000, scoped, tag = 'scratch operand']
  #allocation12 [shape = 'f32[1,16,64]{2,1,0:T(8,128)}', space=vmem, size = 0x2000, scoped, tag = 'scratch operand']
  #allocation13 [shape = 'f32[1,4,128]{2,1,0:T(4,128)}', space=vmem, size = 0x800, scoped, tag = 'scratch operand']
  %s0 = inlined_call_operand.smem [shape: u32[34], index: -1, kind: input, shape index: {}]
  %s1 = sld [smem:[%s0]]
  %s2 = scalar_lea.smem %s0, 1
  %s3 = sld [smem:[%s2]]
  %s4 = scalar_lea.smem %s0, 2
  %s5 = sld [smem:[%s4]]
  %s6 = scalar_lea.smem %s0, 3
  %s7 = sld [smem:[%s6]]
  %s8 = scalar_lea.smem %s0, 4
  %s9 = sld [smem:[%s8]]
  %s10 = scalar_lea.smem %s0, 5
  %s11 = sld [smem:[%s10]]
  %s12 = scalar_lea.smem %s0, 6
  %s13 = sld [smem:[%s12]]
  %s14 = scalar_lea.smem %s0, 7
  %s15 = sld [smem:[%s14]]
  %s16 = scalar_lea.smem %s0, 8
  %s17 = sld [smem:[%s16]]
  %s18 = scalar_lea.smem %s0, 9
  %s19 = sld [smem:[%s18]]
  %s20 = scalar_lea.smem %s0, 10
  %s21 = sld [smem:[%s20]]
  %s22 = scalar_lea.smem %s0, 11
  %s23 = sld [smem:[%s22]]
  %s24 = scalar_lea.smem %s0, 12
  %s25 = sld [smem:[%s24]]
  %s26 = scalar_lea.smem %s0, 13
  %s27 = sld [smem:[%s26]]
  %s28 = scalar_lea.smem %s0, 14
  %s29 = sld [smem:[%s28]]
  %s30 = scalar_lea.smem %s0, 15
  %s31 = sld [smem:[%s30]]
  %s32 = scalar_lea.smem %s0, 16
  %s33 = sld [smem:[%s32]]
  %s34 = scalar_lea.smem %s0, 17
  %s35 = sld [smem:[%s34]]
  %s36 = scalar_lea.smem %s0, 18
  %s37 = sld [smem:[%s36]]
  %s38 = scalar_lea.smem %s0, 19
  %s39 = sld [smem:[%s38]]
  %s40 = scalar_lea.smem %s0, 20
  %s41 = sld [smem:[%s40]]
  %s42 = scalar_lea.smem %s0, 21
  %s43 = sld [smem:[%s42]]
  %s44 = scalar_lea.smem %s0, 22
  %s45 = sld [smem:[%s44]]
  %s46 = scalar_lea.smem %s0, 23
  %s47 = sld [smem:[%s46]]
  %s48 = scalar_lea.smem %s0, 24
  %s49 = sld [smem:[%s48]]
  %s50 = scalar_lea.smem %s0, 25
  %s51 = sld [smem:[%s50]]
  %s52 = scalar_lea.smem %s0, 26
  %s53 = sld [smem:[%s52]]
  %s54 = scalar_lea.smem %s0, 27
  %s55 = sld [smem:[%s54]]
  %s56 = scalar_lea.smem %s0, 28
  %s57 = sld [smem:[%s56]]
  %s58 = scalar_lea.smem %s0, 29
  %s59 = sld [smem:[%s58]]
  %s60 = scalar_lea.smem %s0, 30
  %s61 = sld [smem:[%s60]]
  %s62 = scalar_lea.smem %s0, 31
  %s63 = sld [smem:[%s62]]
  %s64 = scalar_lea.smem %s0, 32
  %s65 = sld [smem:[%s64]]
  %s66 = scalar_lea.smem %s0, 33
  %s67 = sld [smem:[%s66]]
  %s68 = sld [smem:[#allocation0]]
  $region229: #{mtagnp_forward.1} parent=0
    _
  %s70 = ssub.s32 1, %s68
  %s71 = scalar_select 0, %s70, %s68
  $region1: #{mtagnp_forward.1} parent=0
    #allocation14 [shape = 'u8[512]{0}', space=vmem, size = 0x400, scoped, tag = 'input window, operand 5, single buffered']
    #allocation15 [shape = 's32[2]{0}', space=sflag, size = 0x8, scoped, tag = 'scoped memory for mtagnp_forward.1']
    #allocation16 [shape = 'u8[512]{0}', space=vmem, size = 0x400, scoped, tag = 'input window, operand 8, single buffered']
    #allocation17 [shape = 's32[1]{0}', space=sflag, size = 0x4, scoped, tag = 'scoped memory for mtagnp_forward.1']
    #allocation18 [shape = 'u8[512]{0}', space=vmem, size = 0x400, scoped, tag = 'input window, operand 11, single buffered']
    #allocation19 [shape = 'u8[512]{0}', space=vmem, size = 0x400, scoped, tag = 'input window, operand 14, single buffered']
    #allocation20 [shape = 's32[1]{0}', space=sflag, size = 0x4, scoped, tag = 'scoped memory for mtagnp_forward.1']
    #allocation21 [shape = 'u8[512]{0}', space=vmem, size = 0x400, scoped, tag = 'input window, operand 15, single buffered']
    #allocation22 [shape = 'u8[512]{0}', space=vmem, size = 0x400, scoped, tag = 'input window, operand 17, single buffered']
    #allocation23 [shape = 's32[1]{0}', space=sflag, size = 0x4, scoped, tag = 'scoped memory for mtagnp_forward.1']
    #allocation24 [shape = 'u8[4096]{0}', space=vmem, size = 0x1000, scoped, tag = 'input window, operand 22, single buffered']
    #allocation25 [shape = 'u8[512]{0}', space=vmem, size = 0x400, scoped, tag = 'input window, operand 23, single buffered']
    #allocation26 [shape = 's32[1]{0}', space=sflag, size = 0x4, scoped, tag = 'scoped memory for mtagnp_forward.1']
    #allocation27 [shape = 'u8[512]{0}', space=vmem, size = 0x400, scoped, tag = 'input window, operand 24, single buffered']
    #allocation28 [shape = 'u8[8192]{0}', space=vmem, size = 0x2000, scoped, tag = 'input window, operand 25, single buffered']
    #allocation29 [shape = 's32[1]{0}', space=sflag, size = 0x4, scoped, tag = 'scoped memory for mtagnp_forward.1']
    #allocation30 [shape = 'u8[512]{0}', space=vmem, size = 0x400, scoped, tag = 'input window, operand 26, single buffered']
    #allocation31 [shape = 'u8[512]{0}', space=vmem, size = 0x400, scoped, tag = 'input window, operand 27, single buffered']
    #allocation32 [shape = 's32[1]{0}', space=sflag, size = 0x4, scoped, tag = 'scoped memory for mtagnp_forward.1']
    #allocation33 [shape = 'u8[16384]{0}', space=vmem, size = 0x4000, scoped, tag = 'input window, operand 28, single buffered']
    #allocation34 [shape = 'u8[512]{0}', space=vmem, size = 0x400, scoped, tag = 'input window, operand 29, single buffered']
    #allocation35 [shape = 's32[1]{0}', space=sflag, size = 0x4, scoped, tag = 'scoped memory for mtagnp_forward.1']
    #allocation36 [shape = 'u8[512]{0}', space=vmem, size = 0x400, scoped, tag = 'input window, operand 30, single buffered']
    #allocation37 [shape = 'u8[1536]{0}', space=vmem, size = 0x800, scoped, tag = 'input window, operand 32, single buffered']
    #allocation38 [shape = 's32[1]{0}', space=sflag, size = 0x4, scoped, tag = 'scoped memory for mtagnp_forward.1']
    %72 = vsyncpa [#allocation15], 0
    %73 = vsyncpa [#allocation17], 0
    %74 = vsyncpa [#allocation20], 0
    %75 = vsyncpa [#allocation23], 0
    %76 = vsyncpa [#allocation26], 0
    %77 = vsyncpa [#allocation29], 0
    %78 = vsyncpa [#allocation32], 0
    %79 = vsyncpa [#allocation35], 0
    %80 = vsyncpa [#allocation38], 0
    loop: start=0, step=1, limit=4
    $region2: #{mtagnp_forward.1} parent=1 // loop_pre_header
      _
    $region3: #{mtagnp_forward.1} parent=1 // loop_header
      %s82 = sphi 0, %s86
      %p83 = scmp.ge.s32.totalorder %s82, 4
      %s92 = sphi 0, %s94
      %s95 = sphi 0, %s92
      %s96 = sphi 0, %s95
      %s112 = sphi 0, %s96
      %s116 = sphi 0, %s116
      %s118 = sphi 0, %s116
      %s119 = sphi 0, %s118
      %s133 = sphi 0, %s119
      %s137 = sphi 0, %s137
      %s139 = sphi 0, %s137
      %s140 = sphi 0, %s139
      %s154 = sphi 0, %s140
      %s158 = sphi 0, %s158
      %s160 = sphi 0, %s158
      %s161 = sphi 0, %s160
      %s175 = sphi 0, %s161
      %s179 = sphi 0, %s179
      %s181 = sphi 0, %s179
      %s182 = sphi 0, %s181
      %s196 = sphi 0, %s182
      %s200 = sphi 0, %s200
      %s202 = sphi 0, %s200
      %s203 = sphi 0, %s202
      %s217 = sphi 0, %s203
      %s221 = sphi 0, %s221
      %s223 = sphi 0, %s221
      %s224 = sphi 0, %s223
      %s238 = sphi 0, %s224
      %s242 = sphi 0, %s242
      %s244 = sphi 0, %s242
      %s245 = sphi 0, %s244
      %s259 = sphi 0, %s245
      %s263 = sphi 0, %s263
      %s265 = sphi 0, %s263
      %s266 = sphi 0, %s265
      %s280 = sphi 0, %s266
      %s284 = sphi 0, %s284
      %s286 = sphi 0, %s284
      %s287 = sphi 0, %s286
      %s301 = sphi 0, %s287
      %s305 = sphi 0, %s305
      %s307 = sphi 0, %s305
      %s308 = sphi 0, %s307
      %s322 = sphi 0, %s308
      %s326 = sphi 0, %s326
      %s328 = sphi 0, %s326
      %s329 = sphi 0, %s328
      %s343 = sphi 0, %s329
      %s347 = sphi 0, %s347
      %s349 = sphi 0, %s347
      %s350 = sphi 0, %s349
      %s364 = sphi 0, %s350
      %s368 = sphi 0, %s368
      %s370 = sphi 0, %s368
      %s371 = sphi 0, %s370
      %s385 = sphi 0, %s371
      %s389 = sphi 0, %s389
      %s391 = sphi 0, %s389
      %s392 = sphi 0, %s391
      %s406 = sphi 0, %s392
      %s410 = sphi 0, %s410
      %s412 = sphi 0, %s410
      %s413 = sphi 0, %s412
      %s427 = sphi 0, %s413
      %s431 = sphi 0, %s431
      %s433 = sphi 0, %s431
      %s434 = sphi 0, %s433
      %s448 = sphi 0, %s434
      %s452 = sphi 0, %s452
      %s454 = sphi 0, %s452
      %s455 = sphi 0, %s454
      %s469 = sphi 0, %s455
      %s473 = sphi 0, %s473
      %s475 = sphi 0, %s473
      %s476 = sphi 0, %s475
      %s490 = sphi 0, %s476
      %s494 = sphi 0, %s494
      %s496 = sphi 0, %s494
      %s497 = sphi 0, %s496
      %s511 = sphi 0, %s497
      %s515 = sphi 0, %s515
      %s517 = sphi 0, %s515
      %s518 = sphi 0, %s517
      %s532 = sphi 0, %s518
      %s536 = sphi 0, %s536
      %s538 = sphi 0, %s536
      %s539 = sphi 0, %s538
      %s553 = sphi 0, %s539
      %s557 = sphi 0, %s557
      %s559 = sphi 0, %s557
      %s560 = sphi 0, %s559
      %s574 = sphi 0, %s560
      %s578 = sphi 0, %s578
      %s580 = sphi 0, %s578
      %s581 = sphi 0, %s580
      %s595 = sphi 0, %s581
      %s599 = sphi 0, %s599
      %s601 = sphi 0, %s599
      %s602 = sphi 0, %s601
      %s616 = sphi 0, %s602
      %s620 = sphi 0, %s620
      %s622 = sphi 0, %s620
      %s623 = sphi 0, %s622
      %s637 = sphi 0, %s623
      %s641 = sphi 0, %s641
      %s643 = sphi 0, %s641
      %s644 = sphi 0, %s643
      %s658 = sphi 0, %s644
      %s662 = sphi 0, %s662
      %s664 = sphi 0, %s662
      %s665 = sphi 0, %s664
      %s679 = sphi 0, %s665
      %s683 = sphi 0, %s683
      %s685 = sphi 0, %s683
      %s686 = sphi 0, %s685
      %s700 = sphi 0, %s686
      %s704 = sphi 0, %s704
      %s706 = sphi 0, %s704
      %s707 = sphi 0, %s706
      %s721 = sphi 0, %s707
      %s725 = sphi 0, %s725
      %s727 = sphi 0, %s725
      %s728 = sphi 0, %s727
      %s742 = sphi 0, %s728
      %s746 = sphi 0, %s746
      %s748 = sphi 0, %s746
      %s749 = sphi 0, %s748
      %s763 = sphi 0, %s749
      %s767 = sphi 0, %s767
      %s769 = sphi 0, %s767
      %s770 = sphi 0, %s769
      %s784 = sphi 0, %s770
      %s790 = sphi 0, %s792
      %s793 = sphi 0, %s790
      %s794 = sphi 0, %s793
      %s810 = sphi 0, %s794
    $region4: #{mtagnp_forward.1} parent=1 // loop_header_branch
      %85 = sbr.rel (%p83) target = $region8
    $region5: #{mtagnp_forward.1} parent=1 // loop_body
      %s87 = ssub.s32 %s82, 1
      %s88 = ssub.s32 %s82, 2
      %s89 = sadd.s32 %s82, 1
      %s90 = ssub.s32 %s82, %s89
      %p91 = scmp.eq.s32.totalorder %s90, 0
      %s93 = sadd.s32 %s92, 1
      %s94 = scalar_select %p91, %s92, %s93
      %p97 = pneg %p91
      %p98 = scmp.eq.s32.totalorder %s82, 1
      %p99 = por %p97, %p98
      %p100 = scmp.ne.s32.totalorder %s92, %s95
      %p101 = scmp.eq.s32.totalorder %s82, 0
      %p102 = por %p100, %p101
      %p103 = scmp.ne.s32.totalorder %s92, %s95
      %p104 = scmp.eq.s32.totalorder %s87, 1
      %p105 = por %p103, %p104
      %p106 = scmp.ne.s32.totalorder %s95, %s96
      %p107 = scmp.eq.s32.totalorder %s87, 0
      %p108 = por %p106, %p107
      %p109 = scmp.ne.s32.totalorder %s95, %s96
      %p110 = scmp.eq.s32.totalorder %s88, 1
      %p111 = por %p109, %p110
      %p113 = scmp.ne.s32.totalorder %s96, %s112
      %p114 = scmp.eq.s32.totalorder %s88, 0
      %p115 = por %p113, %p114
      %s117 = sadd.s32 %s116, 1
      %p120 = scmp.eq.s32.totalorder %s82, 1
      %p121 = scmp.ne.s32.totalorder %s116, %s118
      %p122 = scmp.eq.s32.totalorder %s82, 0
      %p123 = por %p121, %p122
      %p124 = scmp.ne.s32.totalorder %s116, %s118
      %p125 = scmp.eq.s32.totalorder %s87, 1
      %p126 = por %p124, %p125
      %p127 = scmp.ne.s32.totalorder %s118, %s119
      %p128 = scmp.eq.s32.totalorder %s87, 0
      %p129 = por %p127, %p128
      %p130 = scmp.ne.s32.totalorder %s118, %s119
      %p131 = scmp.eq.s32.totalorder %s88, 1
      %p132 = por %p130, %p131
      %p134 = scmp.ne.s32.totalorder %s119, %s133
      %p135 = scmp.eq.s32.totalorder %s88, 0
      %p136 = por %p134, %p135
      %s138 = sadd.s32 %s137, 1
      %p141 = scmp.eq.s32.totalorder %s82, 1
      %p142 = scmp.ne.s32.totalorder %s137, %s139
      %p143 = scmp.eq.s32.totalorder %s82, 0
      %p144 = por %p142, %p143
      %p145 = scmp.ne.s32.totalorder %s137, %s139
      %p146 = scmp.eq.s32.totalorder %s87, 1
      %p147 = por %p145, %p146
      %p148 = scmp.ne.s32.totalorder %s139, %s140
      %p149 = scmp.eq.s32.totalorder %s87, 0
      %p150 = por %p148, %p149
      %p151 = scmp.ne.s32.totalorder %s139, %s140
      %p152 = scmp.eq.s32.totalorder %s88, 1
      %p153 = por %p151, %p152
      %p155 = scmp.ne.s32.totalorder %s140, %s154
      %p156 = scmp.eq.s32.totalorder %s88, 0
      %p157 = por %p155, %p156
      %s159 = sadd.s32 %s158, 1
      %p162 = scmp.eq.s32.totalorder %s82, 1
      %p163 = scmp.ne.s32.totalorder %s158, %s160
      %p164 = scmp.eq.s32.totalorder %s82, 0
      %p165 = por %p163, %p164
      %p166 = scmp.ne.s32.totalorder %s158, %s160
      %p167 = scmp.eq.s32.totalorder %s87, 1
      %p168 = por %p166, %p167
      %p169 = scmp.ne.s32.totalorder %s160, %s161
      %p170 = scmp.eq.s32.totalorder %s87, 0
      %p171 = por %p169, %p170
      %p172 = scmp.ne.s32.totalorder %s160, %s161
      %p173 = scmp.eq.s32.totalorder %s88, 1
      %p174 = por %p172, %p173
      %p176 = scmp.ne.s32.totalorder %s161, %s175
      %p177 = scmp.eq.s32.totalorder %s88, 0
      %p178 = por %p176, %p177
      %s180 = sadd.s32 %s179, 1
      %p183 = scmp.eq.s32.totalorder %s82, 1
      %p184 = scmp.ne.s32.totalorder %s179, %s181
      %p185 = scmp.eq.s32.totalorder %s82, 0
      %p186 = por %p184, %p185
      %p187 = scmp.ne.s32.totalorder %s179, %s181
      %p188 = scmp.eq.s32.totalorder %s87, 1
      %p189 = por %p187, %p188
      %p190 = scmp.ne.s32.totalorder %s181, %s182
      %p191 = scmp.eq.s32.totalorder %s87, 0
      %p192 = por %p190, %p191
      %p193 = scmp.ne.s32.totalorder %s181, %s182
      %p194 = scmp.eq.s32.totalorder %s88, 1
      %p195 = por %p193, %p194
      %p197 = scmp.ne.s32.totalorder %s182, %s196
      %p198 = scmp.eq.s32.totalorder %s88, 0
      %p199 = por %p197, %p198
      %s201 = sadd.s32 %s200, 1
      %p204 = scmp.eq.s32.totalorder %s82, 1
      %p205 = scmp.ne.s32.totalorder %s200, %s202
      %p206 = scmp.eq.s32.totalorder %s82, 0
      %p207 = por %p205, %p206
      %p208 = scmp.ne.s32.totalorder %s200, %s202
      %p209 = scmp.eq.s32.totalorder %s87, 1
      %p210 = por %p208, %p209
      %p211 = scmp.ne.s32.totalorder %s202, %s203
      %p212 = scmp.eq.s32.totalorder %s87, 0
      %p213 = por %p211, %p212
      %p214 = scmp.ne.s32.totalorder %s202, %s203
      %p215 = scmp.eq.s32.totalorder %s88, 1
      %p216 = por %p214, %p215
      %p218 = scmp.ne.s32.totalorder %s203, %s217
      %p219 = scmp.eq.s32.totalorder %s88, 0
      %p220 = por %p218, %p219
      %s222 = sadd.s32 %s221, 1
      %p225 = scmp.eq.s32.totalorder %s82, 1
      %p226 = scmp.ne.s32.totalorder %s221, %s223
      %p227 = scmp.eq.s32.totalorder %s82, 0
      %p228 = por %p226, %p227
      %p229 = scmp.ne.s32.totalorder %s221, %s223
      %p230 = scmp.eq.s32.totalorder %s87, 1
      %p231 = por %p229, %p230
      %p232 = scmp.ne.s32.totalorder %s223, %s224
      %p233 = scmp.eq.s32.totalorder %s87, 0
      %p234 = por %p232, %p233
      %p235 = scmp.ne.s32.totalorder %s223, %s224
      %p236 = scmp.eq.s32.totalorder %s88, 1
      %p237 = por %p235, %p236
      %p239 = scmp.ne.s32.totalorder %s224, %s238
      %p240 = scmp.eq.s32.totalorder %s88, 0
      %p241 = por %p239, %p240
      %s243 = sadd.s32 %s242, 1
      %p246 = scmp.eq.s32.totalorder %s82, 1
      %p247 = scmp.ne.s32.totalorder %s242, %s244
      %p248 = scmp.eq.s32.totalorder %s82, 0
      %p249 = por %p247, %p248
      %p250 = scmp.ne.s32.totalorder %s242, %s244
      %p251 = scmp.eq.s32.totalorder %s87, 1
      %p252 = por %p250, %p251
      %p253 = scmp.ne.s32.totalorder %s244, %s245
      %p254 = scmp.eq.s32.totalorder %s87, 0
      %p255 = por %p253, %p254
      %p256 = scmp.ne.s32.totalorder %s244, %s245
      %p257 = scmp.eq.s32.totalorder %s88, 1
      %p258 = por %p256, %p257
      %p260 = scmp.ne.s32.totalorder %s245, %s259
      %p261 = scmp.eq.s32.totalorder %s88, 0
      %p262 = por %p260, %p261
      %s264 = sadd.s32 %s263, 1
      %p267 = scmp.eq.s32.totalorder %s82, 1
      %p268 = scmp.ne.s32.totalorder %s263, %s265
      %p269 = scmp.eq.s32.totalorder %s82, 0
      %p270 = por %p268, %p269
      %p271 = scmp.ne.s32.totalorder %s263, %s265
      %p272 = scmp.eq.s32.totalorder %s87, 1
      %p273 = por %p271, %p272
      %p274 = scmp.ne.s32.totalorder %s265, %s266
      %p275 = scmp.eq.s32.totalorder %s87, 0
      %p276 = por %p274, %p275
      %p277 = scmp.ne.s32.totalorder %s265, %s266
      %p278 = scmp.eq.s32.totalorder %s88, 1
      %p279 = por %p277, %p278
      %p281 = scmp.ne.s32.totalorder %s266, %s280
      %p282 = scmp.eq.s32.totalorder %s88, 0
      %p283 = por %p281, %p282
      %s285 = sadd.s32 %s284, 1
      %p288 = scmp.eq.s32.totalorder %s82, 1
      %p289 = scmp.ne.s32.totalorder %s284, %s286
      %p290 = scmp.eq.s32.totalorder %s82, 0
      %p291 = por %p289, %p290
      %p292 = scmp.ne.s32.totalorder %s284, %s286
      %p293 = scmp.eq.s32.totalorder %s87, 1
      %p294 = por %p292, %p293
      %p295 = scmp.ne.s32.totalorder %s286, %s287
      %p296 = scmp.eq.s32.totalorder %s87, 0
      %p297 = por %p295, %p296
      %p298 = scmp.ne.s32.totalorder %s286, %s287
      %p299 = scmp.eq.s32.totalorder %s88, 1
      %p300 = por %p298, %p299
      %p302 = scmp.ne.s32.totalorder %s287, %s301
      %p303 = scmp.eq.s32.totalorder %s88, 0
      %p304 = por %p302, %p303
      %s306 = sadd.s32 %s305, 1
      %p309 = scmp.eq.s32.totalorder %s82, 1
      %p310 = scmp.ne.s32.totalorder %s305, %s307
      %p311 = scmp.eq.s32.totalorder %s82, 0
      %p312 = por %p310, %p311
      %p313 = scmp.ne.s32.totalorder %s305, %s307
      %p314 = scmp.eq.s32.totalorder %s87, 1
      %p315 = por %p313, %p314
      %p316 = scmp.ne.s32.totalorder %s307, %s308
      %p317 = scmp.eq.s32.totalorder %s87, 0
      %p318 = por %p316, %p317
      %p319 = scmp.ne.s32.totalorder %s307, %s308
      %p320 = scmp.eq.s32.totalorder %s88, 1
      %p321 = por %p319, %p320
      %p323 = scmp.ne.s32.totalorder %s308, %s322
      %p324 = scmp.eq.s32.totalorder %s88, 0
      %p325 = por %p323, %p324
      %s327 = sadd.s32 %s326, 1
      %p330 = scmp.eq.s32.totalorder %s82, 1
      %p331 = scmp.ne.s32.totalorder %s326, %s328
      %p332 = scmp.eq.s32.totalorder %s82, 0
      %p333 = por %p331, %p332
      %p334 = scmp.ne.s32.totalorder %s326, %s328
      %p335 = scmp.eq.s32.totalorder %s87, 1
      %p336 = por %p334, %p335
      %p337 = scmp.ne.s32.totalorder %s328, %s329
      %p338 = scmp.eq.s32.totalorder %s87, 0
      %p339 = por %p337, %p338
      %p340 = scmp.ne.s32.totalorder %s328, %s329
      %p341 = scmp.eq.s32.totalorder %s88, 1
      %p342 = por %p340, %p341
      %p344 = scmp.ne.s32.totalorder %s329, %s343
      %p345 = scmp.eq.s32.totalorder %s88, 0
      %p346 = por %p344, %p345
      %s348 = sadd.s32 %s347, 1
      %p351 = scmp.eq.s32.totalorder %s82, 1
      %p352 = scmp.ne.s32.totalorder %s347, %s349
      %p353 = scmp.eq.s32.totalorder %s82, 0
      %p354 = por %p352, %p353
      %p355 = scmp.ne.s32.totalorder %s347, %s349
      %p356 = scmp.eq.s32.totalorder %s87, 1
      %p357 = por %p355, %p356
      %p358 = scmp.ne.s32.totalorder %s349, %s350
      %p359 = scmp.eq.s32.totalorder %s87, 0
      %p360 = por %p358, %p359
      %p361 = scmp.ne.s32.totalorder %s349, %s350
      %p362 = scmp.eq.s32.totalorder %s88, 1
      %p363 = por %p361, %p362
      %p365 = scmp.ne.s32.totalorder %s350, %s364
      %p366 = scmp.eq.s32.totalorder %s88, 0
      %p367 = por %p365, %p366
      %s369 = sadd.s32 %s368, 1
      %p372 = scmp.eq.s32.totalorder %s82, 1
      %p373 = scmp.ne.s32.totalorder %s368, %s370
      %p374 = scmp.eq.s32.totalorder %s82, 0
      %p375 = por %p373, %p374
      %p376 = scmp.ne.s32.totalorder %s368, %s370
      %p377 = scmp.eq.s32.totalorder %s87, 1
      %p378 = por %p376, %p377
      %p379 = scmp.ne.s32.totalorder %s370, %s371
      %p380 = scmp.eq.s32.totalorder %s87, 0
      %p381 = por %p379, %p380
      %p382 = scmp.ne.s32.totalorder %s370, %s371
      %p383 = scmp.eq.s32.totalorder %s88, 1
      %p384 = por %p382, %p383
      %p386 = scmp.ne.s32.totalorder %s371, %s385
      %p387 = scmp.eq.s32.totalorder %s88, 0
      %p388 = por %p386, %p387
      %s390 = sadd.s32 %s389, 1
      %p393 = scmp.eq.s32.totalorder %s82, 1
      %p394 = scmp.ne.s32.totalorder %s389, %s391
      %p395 = scmp.eq.s32.totalorder %s82, 0
      %p396 = por %p394, %p395
      %p397 = scmp.ne.s32.totalorder %s389, %s391
      %p398 = scmp.eq.s32.totalorder %s87, 1
      %p399 = por %p397, %p398
      %p400 = scmp.ne.s32.totalorder %s391, %s392
      %p401 = scmp.eq.s32.totalorder %s87, 0
      %p402 = por %p400, %p401
      %p403 = scmp.ne.s32.totalorder %s391, %s392
      %p404 = scmp.eq.s32.totalorder %s88, 1
      %p405 = por %p403, %p404
      %p407 = scmp.ne.s32.totalorder %s392, %s406
      %p408 = scmp.eq.s32.totalorder %s88, 0
      %p409 = por %p407, %p408
      %s411 = sadd.s32 %s410, 1
      %p414 = scmp.eq.s32.totalorder %s82, 1
      %p415 = scmp.ne.s32.totalorder %s410, %s412
      %p416 = scmp.eq.s32.totalorder %s82, 0
      %p417 = por %p415, %p416
      %p418 = scmp.ne.s32.totalorder %s410, %s412
      %p419 = scmp.eq.s32.totalorder %s87, 1
      %p420 = por %p418, %p419
      %p421 = scmp.ne.s32.totalorder %s412, %s413
      %p422 = scmp.eq.s32.totalorder %s87, 0
      %p423 = por %p421, %p422
      %p424 = scmp.ne.s32.totalorder %s412, %s413
      %p425 = scmp.eq.s32.totalorder %s88, 1
      %p426 = por %p424, %p425
      %p428 = scmp.ne.s32.totalorder %s413, %s427
      %p429 = scmp.eq.s32.totalorder %s88, 0
      %p430 = por %p428, %p429
      %s432 = sadd.s32 %s431, 1
      %p435 = scmp.eq.s32.totalorder %s82, 1
      %p436 = scmp.ne.s32.totalorder %s431, %s433
      %p437 = scmp.eq.s32.totalorder %s82, 0
      %p438 = por %p436, %p437
      %p439 = scmp.ne.s32.totalorder %s431, %s433
      %p440 = scmp.eq.s32.totalorder %s87, 1
      %p441 = por %p439, %p440
      %p442 = scmp.ne.s32.totalorder %s433, %s434
      %p443 = scmp.eq.s32.totalorder %s87, 0
      %p444 = por %p442, %p443
      %p445 = scmp.ne.s32.totalorder %s433, %s434
      %p446 = scmp.eq.s32.totalorder %s88, 1
      %p447 = por %p445, %p446
      %p449 = scmp.ne.s32.totalorder %s434, %s448
      %p450 = scmp.eq.s32.totalorder %s88, 0
      %p451 = por %p449, %p450
      %s453 = sadd.s32 %s452, 1
      %p456 = scmp.eq.s32.totalorder %s82, 1
      %p457 = scmp.ne.s32.totalorder %s452, %s454
      %p458 = scmp.eq.s32.totalorder %s82, 0
      %p459 = por %p457, %p458
      %p460 = scmp.ne.s32.totalorder %s452, %s454
      %p461 = scmp.eq.s32.totalorder %s87, 1
      %p462 = por %p460, %p461
      %p463 = scmp.ne.s32.totalorder %s454, %s455
      %p464 = scmp.eq.s32.totalorder %s87, 0
      %p465 = por %p463, %p464
      %p466 = scmp.ne.s32.totalorder %s454, %s455
      %p467 = scmp.eq.s32.totalorder %s88, 1
      %p468 = por %p466, %p467
      %p470 = scmp.ne.s32.totalorder %s455, %s469
      %p471 = scmp.eq.s32.totalorder %s88, 0
      %p472 = por %p470, %p471
      %s474 = sadd.s32 %s473, 1
      %p477 = scmp.eq.s32.totalorder %s82, 1
      %p478 = scmp.ne.s32.totalorder %s473, %s475
      %p479 = scmp.eq.s32.totalorder %s82, 0
      %p480 = por %p478, %p479
      %p481 = scmp.ne.s32.totalorder %s473, %s475
      %p482 = scmp.eq.s32.totalorder %s87, 1
      %p483 = por %p481, %p482
      %p484 = scmp.ne.s32.totalorder %s475, %s476
      %p485 = scmp.eq.s32.totalorder %s87, 0
      %p486 = por %p484, %p485
      %p487 = scmp.ne.s32.totalorder %s475, %s476
      %p488 = scmp.eq.s32.totalorder %s88, 1
      %p489 = por %p487, %p488
      %p491 = scmp.ne.s32.totalorder %s476, %s490
      %p492 = scmp.eq.s32.totalorder %s88, 0
      %p493 = por %p491, %p492
      %s495 = sadd.s32 %s494, 1
      %p498 = scmp.eq.s32.totalorder %s82, 1
      %p499 = scmp.ne.s32.totalorder %s494, %s496
      %p500 = scmp.eq.s32.totalorder %s82, 0
      %p501 = por %p499, %p500
      %p502 = scmp.ne.s32.totalorder %s494, %s496
      %p503 = scmp.eq.s32.totalorder %s87, 1
      %p504 = por %p502, %p503
      %p505 = scmp.ne.s32.totalorder %s496, %s497
      %p506 = scmp.eq.s32.totalorder %s87, 0
      %p507 = por %p505, %p506
      %p508 = scmp.ne.s32.totalorder %s496, %s497
      %p509 = scmp.eq.s32.totalorder %s88, 1
      %p510 = por %p508, %p509
      %p512 = scmp.ne.s32.totalorder %s497, %s511
      %p513 = scmp.eq.s32.totalorder %s88, 0
      %p514 = por %p512, %p513
      %s516 = sadd.s32 %s515, 1
      %p519 = scmp.eq.s32.totalorder %s82, 1
      %p520 = scmp.ne.s32.totalorder %s515, %s517
      %p521 = scmp.eq.s32.totalorder %s82, 0
      %p522 = por %p520, %p521
      %p523 = scmp.ne.s32.totalorder %s515, %s517
      %p524 = scmp.eq.s32.totalorder %s87, 1
      %p525 = por %p523, %p524
      %p526 = scmp.ne.s32.totalorder %s517, %s518
      %p527 = scmp.eq.s32.totalorder %s87, 0
      %p528 = por %p526, %p527
      %p529 = scmp.ne.s32.totalorder %s517, %s518
      %p530 = scmp.eq.s32.totalorder %s88, 1
      %p531 = por %p529, %p530
      %p533 = scmp.ne.s32.totalorder %s518, %s532
      %p534 = scmp.eq.s32.totalorder %s88, 0
      %p535 = por %p533, %p534
      %s537 = sadd.s32 %s536, 1
      %p540 = scmp.eq.s32.totalorder %s82, 1
      %p541 = scmp.ne.s32.totalorder %s536, %s538
      %p542 = scmp.eq.s32.totalorder %s82, 0
      %p543 = por %p541, %p542
      %p544 = scmp.ne.s32.totalorder %s536, %s538
      %p545 = scmp.eq.s32.totalorder %s87, 1
      %p546 = por %p544, %p545
      %p547 = scmp.ne.s32.totalorder %s538, %s539
      %p548 = scmp.eq.s32.totalorder %s87, 0
      %p549 = por %p547, %p548
      %p550 = scmp.ne.s32.totalorder %s538, %s539
      %p551 = scmp.eq.s32.totalorder %s88, 1
      %p552 = por %p550, %p551
      %p554 = scmp.ne.s32.totalorder %s539, %s553
      %p555 = scmp.eq.s32.totalorder %s88, 0
      %p556 = por %p554, %p555
      %s558 = sadd.s32 %s557, 1
      %p561 = scmp.eq.s32.totalorder %s82, 1
      %p562 = scmp.ne.s32.totalorder %s557, %s559
      %p563 = scmp.eq.s32.totalorder %s82, 0
      %p564 = por %p562, %p563
      %p565 = scmp.ne.s32.totalorder %s557, %s559
      %p566 = scmp.eq.s32.totalorder %s87, 1
      %p567 = por %p565, %p566
      %p568 = scmp.ne.s32.totalorder %s559, %s560
      %p569 = scmp.eq.s32.totalorder %s87, 0
      %p570 = por %p568, %p569
      %p571 = scmp.ne.s32.totalorder %s559, %s560
      %p572 = scmp.eq.s32.totalorder %s88, 1
      %p573 = por %p571, %p572
      %p575 = scmp.ne.s32.totalorder %s560, %s574
      %p576 = scmp.eq.s32.totalorder %s88, 0
      %p577 = por %p575, %p576
      %s579 = sadd.s32 %s578, 1
      %p582 = scmp.eq.s32.totalorder %s82, 1
      %p583 = scmp.ne.s32.totalorder %s578, %s580
      %p584 = scmp.eq.s32.totalorder %s82, 0
      %p585 = por %p583, %p584
      %p586 = scmp.ne.s32.totalorder %s578, %s580
      %p587 = scmp.eq.s32.totalorder %s87, 1
      %p588 = por %p586, %p587
      %p589 = scmp.ne.s32.totalorder %s580, %s581
      %p590 = scmp.eq.s32.totalorder %s87, 0
      %p591 = por %p589, %p590
      %p592 = scmp.ne.s32.totalorder %s580, %s581
      %p593 = scmp.eq.s32.totalorder %s88, 1
      %p594 = por %p592, %p593
      %p596 = scmp.ne.s32.totalorder %s581, %s595
      %p597 = scmp.eq.s32.totalorder %s88, 0
      %p598 = por %p596, %p597
      %s600 = sadd.s32 %s599, 1
      %p603 = scmp.eq.s32.totalorder %s82, 1
      %p604 = scmp.ne.s32.totalorder %s599, %s601
      %p605 = scmp.eq.s32.totalorder %s82, 0
      %p606 = por %p604, %p605
      %p607 = scmp.ne.s32.totalorder %s599, %s601
      %p608 = scmp.eq.s32.totalorder %s87, 1
      %p609 = por %p607, %p608
      %p610 = scmp.ne.s32.totalorder %s601, %s602
      %p611 = scmp.eq.s32.totalorder %s87, 0
      %p612 = por %p610, %p611
      %p613 = scmp.ne.s32.totalorder %s601, %s602
      %p614 = scmp.eq.s32.totalorder %s88, 1
      %p615 = por %p613, %p614
      %p617 = scmp.ne.s32.totalorder %s602, %s616
      %p618 = scmp.eq.s32.totalorder %s88, 0
      %p619 = por %p617, %p618
      %s621 = sadd.s32 %s620, 1
      %p624 = scmp.eq.s32.totalorder %s82, 1
      %p625 = scmp.ne.s32.totalorder %s620, %s622
      %p626 = scmp.eq.s32.totalorder %s82, 0
      %p627 = por %p625, %p626
      %p628 = scmp.ne.s32.totalorder %s620, %s622
      %p629 = scmp.eq.s32.totalorder %s87, 1
      %p630 = por %p628, %p629
      %p631 = scmp.ne.s32.totalorder %s622, %s623
      %p632 = scmp.eq.s32.totalorder %s87, 0
      %p633 = por %p631, %p632
      %p634 = scmp.ne.s32.totalorder %s622, %s623
      %p635 = scmp.eq.s32.totalorder %s88, 1
      %p636 = por %p634, %p635
      %p638 = scmp.ne.s32.totalorder %s623, %s637
      %p639 = scmp.eq.s32.totalorder %s88, 0
      %p640 = por %p638, %p639
      %s642 = sadd.s32 %s641, 1
      %p645 = scmp.eq.s32.totalorder %s82, 1
      %p646 = scmp.ne.s32.totalorder %s641, %s643
      %p647 = scmp.eq.s32.totalorder %s82, 0
      %p648 = por %p646, %p647
      %p649 = scmp.ne.s32.totalorder %s641, %s643
      %p650 = scmp.eq.s32.totalorder %s87, 1
      %p651 = por %p649, %p650
      %p652 = scmp.ne.s32.totalorder %s643, %s644
      %p653 = scmp.eq.s32.totalorder %s87, 0
      %p654 = por %p652, %p653
      %p655 = scmp.ne.s32.totalorder %s643, %s644
      %p656 = scmp.eq.s32.totalorder %s88, 1
      %p657 = por %p655, %p656
      %p659 = scmp.ne.s32.totalorder %s644, %s658
      %p660 = scmp.eq.s32.totalorder %s88, 0
      %p661 = por %p659, %p660
      %s663 = sadd.s32 %s662, 1
      %p666 = scmp.eq.s32.totalorder %s82, 1
      %p667 = scmp.ne.s32.totalorder %s662, %s664
      %p668 = scmp.eq.s32.totalorder %s82, 0
      %p669 = por %p667, %p668
      %p670 = scmp.ne.s32.totalorder %s662, %s664
      %p671 = scmp.eq.s32.totalorder %s87, 1
      %p672 = por %p670, %p671
      %p673 = scmp.ne.s32.totalorder %s664, %s665
      %p674 = scmp.eq.s32.totalorder %s87, 0
      %p675 = por %p673, %p674
      %p676 = scmp.ne.s32.totalorder %s664, %s665
      %p677 = scmp.eq.s32.totalorder %s88, 1
      %p678 = por %p676, %p677
      %p680 = scmp.ne.s32.totalorder %s665, %s679
      %p681 = scmp.eq.s32.totalorder %s88, 0
      %p682 = por %p680, %p681
      %s684 = sadd.s32 %s683, 1
      %p687 = scmp.eq.s32.totalorder %s82, 1
      %p688 = scmp.ne.s32.totalorder %s683, %s685
      %p689 = scmp.eq.s32.totalorder %s82, 0
      %p690 = por %p688, %p689
      %p691 = scmp.ne.s32.totalorder %s683, %s685
      %p692 = scmp.eq.s32.totalorder %s87, 1
      %p693 = por %p691, %p692
      %p694 = scmp.ne.s32.totalorder %s685, %s686
      %p695 = scmp.eq.s32.totalorder %s87, 0
      %p696 = por %p694, %p695
      %p697 = scmp.ne.s32.totalorder %s685, %s686
      %p698 = scmp.eq.s32.totalorder %s88, 1
      %p699 = por %p697, %p698
      %p701 = scmp.ne.s32.totalorder %s686, %s700
      %p702 = scmp.eq.s32.totalorder %s88, 0
      %p703 = por %p701, %p702
      %s705 = sadd.s32 %s704, 1
      %p708 = scmp.eq.s32.totalorder %s82, 1
      %p709 = scmp.ne.s32.totalorder %s704, %s706
      %p710 = scmp.eq.s32.totalorder %s82, 0
      %p711 = por %p709, %p710
      %p712 = scmp.ne.s32.totalorder %s704, %s706
      %p713 = scmp.eq.s32.totalorder %s87, 1
      %p714 = por %p712, %p713
      %p715 = scmp.ne.s32.totalorder %s706, %s707
      %p716 = scmp.eq.s32.totalorder %s87, 0
      %p717 = por %p715, %p716
      %p718 = scmp.ne.s32.totalorder %s706, %s707
      %p719 = scmp.eq.s32.totalorder %s88, 1
      %p720 = por %p718, %p719
      %p722 = scmp.ne.s32.totalorder %s707, %s721
      %p723 = scmp.eq.s32.totalorder %s88, 0
      %p724 = por %p722, %p723
      %s726 = sadd.s32 %s725, 1
      %p729 = scmp.eq.s32.totalorder %s82, 1
      %p730 = scmp.ne.s32.totalorder %s725, %s727
      %p731 = scmp.eq.s32.totalorder %s82, 0
      %p732 = por %p730, %p731
      %p733 = scmp.ne.s32.totalorder %s725, %s727
      %p734 = scmp.eq.s32.totalorder %s87, 1
      %p735 = por %p733, %p734
      %p736 = scmp.ne.s32.totalorder %s727, %s728
      %p737 = scmp.eq.s32.totalorder %s87, 0
      %p738 = por %p736, %p737
      %p739 = scmp.ne.s32.totalorder %s727, %s728
      %p740 = scmp.eq.s32.totalorder %s88, 1
      %p741 = por %p739, %p740
      %p743 = scmp.ne.s32.totalorder %s728, %s742
      %p744 = scmp.eq.s32.totalorder %s88, 0
      %p745 = por %p743, %p744
      %s747 = sadd.s32 %s746, 1
      %p750 = scmp.eq.s32.totalorder %s82, 1
      %p751 = scmp.ne.s32.totalorder %s746, %s748
      %p752 = scmp.eq.s32.totalorder %s82, 0
      %p753 = por %p751, %p752
      %p754 = scmp.ne.s32.totalorder %s746, %s748
      %p755 = scmp.eq.s32.totalorder %s87, 1
      %p756 = por %p754, %p755
      %p757 = scmp.ne.s32.totalorder %s748, %s749
      %p758 = scmp.eq.s32.totalorder %s87, 0
      %p759 = por %p757, %p758
      %p760 = scmp.ne.s32.totalorder %s748, %s749
      %p761 = scmp.eq.s32.totalorder %s88, 1
      %p762 = por %p760, %p761
      %p764 = scmp.ne.s32.totalorder %s749, %s763
      %p765 = scmp.eq.s32.totalorder %s88, 0
      %p766 = por %p764, %p765
      %s768 = sadd.s32 %s767, 1
      %p771 = scmp.eq.s32.totalorder %s82, 1
      %p772 = scmp.ne.s32.totalorder %s767, %s769
      %p773 = scmp.eq.s32.totalorder %s82, 0
      %p774 = por %p772, %p773
      %p775 = scmp.ne.s32.totalorder %s767, %s769
      %p776 = scmp.eq.s32.totalorder %s87, 1
      %p777 = por %p775, %p776
      %p778 = scmp.ne.s32.totalorder %s769, %s770
      %p779 = scmp.eq.s32.totalorder %s87, 0
      %p780 = por %p778, %p779
      %p781 = scmp.ne.s32.totalorder %s769, %s770
      %p782 = scmp.eq.s32.totalorder %s88, 1
      %p783 = por %p781, %p782
      %p785 = scmp.ne.s32.totalorder %s770, %s784
      %p786 = scmp.eq.s32.totalorder %s88, 0
      %p787 = por %p785, %p786
      %s788 = ssub.s32 %s82, %s89
      %p789 = scmp.eq.s32.totalorder %s788, 0
      %s791 = sadd.s32 %s790, 1
      %s792 = scalar_select %p789, %s790, %s791
      %p795 = pneg %p789
      %p796 = scmp.eq.s32.totalorder %s82, 1
      %p797 = por %p795, %p796
      %p798 = scmp.ne.s32.totalorder %s790, %s793
      %p799 = scmp.eq.s32.totalorder %s82, 0
      %p800 = por %p798, %p799
      %p801 = scmp.ne.s32.totalorder %s790, %s793
      %p802 = scmp.eq.s32.totalorder %s87, 1
      %p803 = por %p801, %p802
      %p804 = scmp.ne.s32.totalorder %s793, %s794
      %p805 = scmp.eq.s32.totalorder %s87, 0
      %p806 = por %p804, %p805
      %p807 = scmp.ne.s32.totalorder %s793, %s794
      %p808 = scmp.eq.s32.totalorder %s88, 1
      %p809 = por %p807, %p808
      %p811 = scmp.ne.s32.totalorder %s794, %s810
      %p812 = scmp.eq.s32.totalorder %s88, 0
      %p813 = por %p811, %p812
      %p814 = scmp.le.s32.totalorder 1, %s82
      %p815 = scmp.lt.s32.totalorder %s82, 3
      %p816 = pnand %p814, %p815
      %p817 = pneg %p816
      // Predicated region
      $region9: #{mtagnp_forward.1} parent=5 // pred_check
        _
      $region10: #{mtagnp_forward.1} parent=5 // pred_check_branch
        %819 = sbr.rel (%p816) target = $region12
      $region11: #{mtagnp_forward.1} parent=5 // pred_region
        %s820 = ssub.s32 %s82, 1
        // Predicated region
        $region13: #{mtagnp_forward.1} parent=11 // pred_check
          %p821 = pneg %p129
        $region14: #{mtagnp_forward.1} parent=11 // pred_check_branch
          %823 = sbr.rel (%p821) target = $region16
        $region15: #{mtagnp_forward.1} parent=11 // pred_region
          _
        $region16: #{mtagnp_forward.1} parent=11 // pred_fallthru
          _
        // Predicated region
        $region17: #{mtagnp_forward.1} parent=11 // pred_check
          %p824 = pneg %p150
        $region18: #{mtagnp_forward.1} parent=11 // pred_check_branch
          %826 = sbr.rel (%p824) target = $region20
        $region19: #{mtagnp_forward.1} parent=11 // pred_region
          _
        $region20: #{mtagnp_forward.1} parent=11 // pred_fallthru
          _
        // Predicated region
        $region21: #{mtagnp_forward.1} parent=11 // pred_check
          %p827 = pneg %p171
        $region22: #{mtagnp_forward.1} parent=11 // pred_check_branch
          %829 = sbr.rel (%p827) target = $region24
        $region23: #{mtagnp_forward.1} parent=11 // pred_region
          _
        $region24: #{mtagnp_forward.1} parent=11 // pred_fallthru
          _
        // Predicated region
        $region25: #{mtagnp_forward.1} parent=11 // pred_check
          %p830 = pneg %p192
        $region26: #{mtagnp_forward.1} parent=11 // pred_check_branch
          %832 = sbr.rel (%p830) target = $region28
        $region27: #{mtagnp_forward.1} parent=11 // pred_region
          _
        $region28: #{mtagnp_forward.1} parent=11 // pred_fallthru
          _
        // Predicated region
        $region29: #{mtagnp_forward.1} parent=11 // pred_check
          %p833 = pneg %p213
        $region30: #{mtagnp_forward.1} parent=11 // pred_check_branch
          %835 = sbr.rel (%p833) target = $region32
        $region31: #{mtagnp_forward.1} parent=11 // pred_region
          %s837 = ssub.s32 16, 16
          %838 = vsyncadd [#allocation15], %s837
          %s840 = sshll.u32 [#allocation14], 4
          %s841 = int_to_ptr.vmem [resolvable:$true] %s840
          %843 = dma.hbm_to_vmem [thread:$0]  %s11, 16, %s841, [#allocation15]
        $region32: #{mtagnp_forward.1} parent=11 // pred_fallthru
          _
        // Predicated region
        $region33: #{mtagnp_forward.1} parent=11 // pred_check
          %p844 = pneg %p234
        $region34: #{mtagnp_forward.1} parent=11 // pred_check_branch
          %846 = sbr.rel (%p844) target = $region36
        $region35: #{mtagnp_forward.1} parent=11 // pred_region
          _
        $region36: #{mtagnp_forward.1} parent=11 // pred_fallthru
          _
        // Predicated region
        $region37: #{mtagnp_forward.1} parent=11 // pred_check
          %p847 = pneg %p255
        $region38: #{mtagnp_forward.1} parent=11 // pred_check_branch
          %849 = sbr.rel (%p847) target = $region40
        $region39: #{mtagnp_forward.1} parent=11 // pred_region
          _
        $region40: #{mtagnp_forward.1} parent=11 // pred_fallthru
          _
        // Predicated region
        $region41: #{mtagnp_forward.1} parent=11 // pred_check
          %p850 = pneg %p276
        $region42: #{mtagnp_forward.1} parent=11 // pred_check_branch
          %852 = sbr.rel (%p850) target = $region44
        $region43: #{mtagnp_forward.1} parent=11 // pred_region
          %s854 = ssub.s32 16, 16
          %855 = vsyncadd [#allocation17], %s854
          %s857 = sshll.u32 [#allocation16], 4
          %s858 = int_to_ptr.vmem [resolvable:$true] %s857
          %860 = dma.hbm_to_vmem [thread:$0]  %s17, 16, %s858, [#allocation17]
        $region44: #{mtagnp_forward.1} parent=11 // pred_fallthru
          _
        // Predicated region
        $region45: #{mtagnp_forward.1} parent=11 // pred_check
          %p861 = pneg %p297
        $region46: #{mtagnp_forward.1} parent=11 // pred_check_branch
          %863 = sbr.rel (%p861) target = $region48
        $region47: #{mtagnp_forward.1} parent=11 // pred_region
          _
        $region48: #{mtagnp_forward.1} parent=11 // pred_fallthru
          _
        // Predicated region
        $region49: #{mtagnp_forward.1} parent=11 // pred_check
          %p864 = pneg %p318
        $region50: #{mtagnp_forward.1} parent=11 // pred_check_branch
          %866 = sbr.rel (%p864) target = $region52
        $region51: #{mtagnp_forward.1} parent=11 // pred_region
          _
        $region52: #{mtagnp_forward.1} parent=11 // pred_fallthru
          _
        // Predicated region
        $region53: #{mtagnp_forward.1} parent=11 // pred_check
          %p867 = pneg %p339
        $region54: #{mtagnp_forward.1} parent=11 // pred_check_branch
          %869 = sbr.rel (%p867) target = $region56
        $region55: #{mtagnp_forward.1} parent=11 // pred_region
          %s871 = ssub.s32 16, 16
          %872 = vsyncadd [#allocation17], %s871
          %s874 = sshll.u32 [#allocation18], 4
          %s875 = int_to_ptr.vmem [resolvable:$true] %s874
          %877 = dma.hbm_to_vmem [thread:$0]  %s23, 16, %s875, [#allocation17]
        $region56: #{mtagnp_forward.1} parent=11 // pred_fallthru
          _
        // Predicated region
        $region57: #{mtagnp_forward.1} parent=11 // pred_check
          %p878 = pneg %p360
        $region58: #{mtagnp_forward.1} parent=11 // pred_check_branch
          %880 = sbr.rel (%p878) target = $region60
        $region59: #{mtagnp_forward.1} parent=11 // pred_region
          _
        $region60: #{mtagnp_forward.1} parent=11 // pred_fallthru
          _
        // Predicated region
        $region61: #{mtagnp_forward.1} parent=11 // pred_check
          %p881 = pneg %p381
        $region62: #{mtagnp_forward.1} parent=11 // pred_check_branch
          %883 = sbr.rel (%p881) target = $region64
        $region63: #{mtagnp_forward.1} parent=11 // pred_region
          _
        $region64: #{mtagnp_forward.1} parent=11 // pred_fallthru
          _
        // Predicated region
        $region65: #{mtagnp_forward.1} parent=11 // pred_check
          %p884 = pneg %p402
        $region66: #{mtagnp_forward.1} parent=11 // pred_check_branch
          %886 = sbr.rel (%p884) target = $region68
        $region67: #{mtagnp_forward.1} parent=11 // pred_region
          %s888 = ssub.s32 16, 16
          %889 = vsyncadd [#allocation20], %s888
          %s891 = sshll.u32 [#allocation19], 4
          %s892 = int_to_ptr.vmem [resolvable:$true] %s891
          %894 = dma.hbm_to_vmem [thread:$0]  %s29, 16, %s892, [#allocation20]
        $region68: #{mtagnp_forward.1} parent=11 // pred_fallthru
          _
        // Predicated region
        $region69: #{mtagnp_forward.1} parent=11 // pred_check
          %p895 = pneg %p423
        $region70: #{mtagnp_forward.1} parent=11 // pred_check_branch
          %897 = sbr.rel (%p895) target = $region72
        $region71: #{mtagnp_forward.1} parent=11 // pred_region
          %s899 = ssub.s32 16, 16
          %900 = vsyncadd [#allocation20], %s899
          %s902 = sshll.u32 [#allocation21], 4
          %s903 = int_to_ptr.vmem [resolvable:$true] %s902
          %905 = dma.hbm_to_vmem [thread:$0]  %s31, 16, %s903, [#allocation20]
        $region72: #{mtagnp_forward.1} parent=11 // pred_fallthru
          _
        // Predicated region
        $region73: #{mtagnp_forward.1} parent=11 // pred_check
          %p906 = pneg %p444
        $region74: #{mtagnp_forward.1} parent=11 // pred_check_branch
          %908 = sbr.rel (%p906) target = $region76
        $region75: #{mtagnp_forward.1} parent=11 // pred_region
          _
        $region76: #{mtagnp_forward.1} parent=11 // pred_fallthru
          _
        // Predicated region
        $region77: #{mtagnp_forward.1} parent=11 // pred_check
          %p909 = pneg %p465
        $region78: #{mtagnp_forward.1} parent=11 // pred_check_branch
          %911 = sbr.rel (%p909) target = $region80
        $region79: #{mtagnp_forward.1} parent=11 // pred_region
          %s913 = ssub.s32 16, 16
          %914 = vsyncadd [#allocation23], %s913
          %s916 = sshll.u32 [#allocation22], 4
          %s917 = int_to_ptr.vmem [resolvable:$true] %s916
          %919 = dma.hbm_to_vmem [thread:$0]  %s35, 16, %s917, [#allocation23]
        $region80: #{mtagnp_forward.1} parent=11 // pred_fallthru
          _
        // Predicated region
        $region81: #{mtagnp_forward.1} parent=11 // pred_check
          %p920 = pneg %p486
        $region82: #{mtagnp_forward.1} parent=11 // pred_check_branch
          %922 = sbr.rel (%p920) target = $region84
        $region83: #{mtagnp_forward.1} parent=11 // pred_region
          _
        $region84: #{mtagnp_forward.1} parent=11 // pred_fallthru
          _
        // Predicated region
        $region85: #{mtagnp_forward.1} parent=11 // pred_check
          %p923 = pneg %p507
        $region86: #{mtagnp_forward.1} parent=11 // pred_check_branch
          %925 = sbr.rel (%p923) target = $region88
        $region87: #{mtagnp_forward.1} parent=11 // pred_region
          _
        $region88: #{mtagnp_forward.1} parent=11 // pred_fallthru
          _
        // Predicated region
        $region89: #{mtagnp_forward.1} parent=11 // pred_check
          %p926 = pneg %p528
        $region90: #{mtagnp_forward.1} parent=11 // pred_check_branch
          %928 = sbr.rel (%p926) target = $region92
        $region91: #{mtagnp_forward.1} parent=11 // pred_region
          _
        $region92: #{mtagnp_forward.1} parent=11 // pred_fallthru
          _
        // Predicated region
        $region93: #{mtagnp_forward.1} parent=11 // pred_check
          %p929 = pneg %p549
        $region94: #{mtagnp_forward.1} parent=11 // pred_check_branch
          %931 = sbr.rel (%p929) target = $region96
        $region95: #{mtagnp_forward.1} parent=11 // pred_region
          _
        $region96: #{mtagnp_forward.1} parent=11 // pred_fallthru
          _
        // Predicated region
        $region97: #{mtagnp_forward.1} parent=11 // pred_check
          %p932 = pneg %p570
        $region98: #{mtagnp_forward.1} parent=11 // pred_check_branch
          %934 = sbr.rel (%p932) target = $region100
        $region99: #{mtagnp_forward.1} parent=11 // pred_region
          %s936 = ssub.s32 128, 128
          %937 = vsyncadd [#allocation23], %s936
          %s938 = sshll.u32 [#allocation24], 4
          %s939 = int_to_ptr.vmem [resolvable:$true] %s938
          %944 = dma.hbm_to_vmem [thread:$0]  %s45, 128, %s939, [#allocation23], 64, 64, 4
        $region100: #{mtagnp_forward.1} parent=11 // pred_fallthru
          _
        // Predicated region
        $region101: #{mtagnp_forward.1} parent=11 // pred_check
          %p945 = pneg %p591
        $region102: #{mtagnp_forward.1} parent=11 // pred_check_branch
          %947 = sbr.rel (%p945) target = $region104
        $region103: #{mtagnp_forward.1} parent=11 // pred_region
          %s949 = ssub.s32 16, 16
          %950 = vsyncadd [#allocation26], %s949
          %s952 = sshll.u32 [#allocation25], 4
          %s953 = int_to_ptr.vmem [resolvable:$true] %s952
          %955 = dma.hbm_to_vmem [thread:$0]  %s47, 16, %s953, [#allocation26]
        $region104: #{mtagnp_forward.1} parent=11 // pred_fallthru
          _
        // Predicated region
        $region105: #{mtagnp_forward.1} parent=11 // pred_check
          %p956 = pneg %p612
        $region106: #{mtagnp_forward.1} parent=11 // pred_check_branch
          %958 = sbr.rel (%p956) target = $region108
        $region107: #{mtagnp_forward.1} parent=11 // pred_region
          %s960 = ssub.s32 16, 16
          %961 = vsyncadd [#allocation26], %s960
          %s963 = sshll.u32 [#allocation27], 4
          %s964 = int_to_ptr.vmem [resolvable:$true] %s963
          %966 = dma.hbm_to_vmem [thread:$0]  %s49, 16, %s964, [#allocation26]
        $region108: #{mtagnp_forward.1} parent=11 // pred_fallthru
          _
        // Predicated region
        $region109: #{mtagnp_forward.1} parent=11 // pred_check
          %p967 = pneg %p633
        $region110: #{mtagnp_forward.1} parent=11 // pred_check_branch
          %969 = sbr.rel (%p967) target = $region112
        $region111: #{mtagnp_forward.1} parent=11 // pred_region
          %s971 = ssub.s32 256, 256
          %972 = vsyncadd [#allocation29], %s971
          %s973 = sshll.u32 [#allocation28], 4
          %s974 = int_to_ptr.vmem [resolvable:$true] %s973
          %979 = dma.hbm_to_vmem [thread:$0]  %s51, 256, %s974, [#allocation29], 64, 64, 4
        $region112: #{mtagnp_forward.1} parent=11 // pred_fallthru
          _
        // Predicated region
        $region113: #{mtagnp_forward.1} parent=11 // pred_check
          %p980 = pneg %p654
        $region114: #{mtagnp_forward.1} parent=11 // pred_check_branch
          %982 = sbr.rel (%p980) target = $region116
        $region115: #{mtagnp_forward.1} parent=11 // pred_region
          %s984 = ssub.s32 16, 16
          %985 = vsyncadd [#allocation29], %s984
          %s987 = sshll.u32 [#allocation30], 4
          %s988 = int_to_ptr.vmem [resolvable:$true] %s987
          %990 = dma.hbm_to_vmem [thread:$0]  %s53, 16, %s988, [#allocation29]
        $region116: #{mtagnp_forward.1} parent=11 // pred_fallthru
          _
        // Predicated region
        $region117: #{mtagnp_forward.1} parent=11 // pred_check
          %p991 = pneg %p675
        $region118: #{mtagnp_forward.1} parent=11 // pred_check_branch
          %993 = sbr.rel (%p991) target = $region120
        $region119: #{mtagnp_forward.1} parent=11 // pred_region
          %s995 = ssub.s32 16, 16
          %996 = vsyncadd [#allocation32], %s995
          %s998 = sshll.u32 [#allocation31], 4
          %s999 = int_to_ptr.vmem [resolvable:$true] %s998
          %1001 = dma.hbm_to_vmem [thread:$0]  %s55, 16, %s999, [#allocation32]
        $region120: #{mtagnp_forward.1} parent=11 // pred_fallthru
          _
        // Predicated region
        $region121: #{mtagnp_forward.1} parent=11 // pred_check
          %p1002 = pneg %p696
        $region122: #{mtagnp_forward.1} parent=11 // pred_check_branch
          %1004 = sbr.rel (%p1002) target = $region124
        $region123: #{mtagnp_forward.1} parent=11 // pred_region
          %s1006 = ssub.s32 512, 512
          %1007 = vsyncadd [#allocation32], %s1006
          %s1008 = sshll.u32 [#allocation33], 4
          %s1009 = int_to_ptr.vmem [resolvable:$true] %s1008
          %1014 = dma.hbm_to_vmem [thread:$0]  %s57, 512, %s1009, [#allocation32], 64, 64, 4
        $region124: #{mtagnp_forward.1} parent=11 // pred_fallthru
          _
        // Predicated region
        $region125: #{mtagnp_forward.1} parent=11 // pred_check
          %p1015 = pneg %p717
        $region126: #{mtagnp_forward.1} parent=11 // pred_check_branch
          %1017 = sbr.rel (%p1015) target = $region128
        $region127: #{mtagnp_forward.1} parent=11 // pred_region
          %s1019 = ssub.s32 16, 16
          %1020 = vsyncadd [#allocation35], %s1019
          %s1022 = sshll.u32 [#allocation34], 4
          %s1023 = int_to_ptr.vmem [resolvable:$true] %s1022
          %1025 = dma.hbm_to_vmem [thread:$0]  %s59, 16, %s1023, [#allocation35]
        $region128: #{mtagnp_forward.1} parent=11 // pred_fallthru
          _
        // Predicated region
        $region129: #{mtagnp_forward.1} parent=11 // pred_check
          %p1026 = pneg %p738
        $region130: #{mtagnp_forward.1} parent=11 // pred_check_branch
          %1028 = sbr.rel (%p1026) target = $region132
        $region131: #{mtagnp_forward.1} parent=11 // pred_region
          %s1030 = ssub.s32 16, 16
          %1031 = vsyncadd [#allocation35], %s1030
          %s1033 = sshll.u32 [#allocation36], 4
          %s1034 = int_to_ptr.vmem [resolvable:$true] %s1033
          %1036 = dma.hbm_to_vmem [thread:$0]  %s61, 16, %s1034, [#allocation35]
        $region132: #{mtagnp_forward.1} parent=11 // pred_fallthru
          _
        // Predicated region
        $region133: #{mtagnp_forward.1} parent=11 // pred_check
          %p1037 = pneg %p759
        $region134: #{mtagnp_forward.1} parent=11 // pred_check_branch
          %1039 = sbr.rel (%p1037) target = $region136
        $region135: #{mtagnp_forward.1} parent=11 // pred_region
          _
        $region136: #{mtagnp_forward.1} parent=11 // pred_fallthru
          _
        // Predicated region
        $region137: #{mtagnp_forward.1} parent=11 // pred_check
          %p1040 = pneg %p780
        $region138: #{mtagnp_forward.1} parent=11 // pred_check_branch
          %1042 = sbr.rel (%p1040) target = $region140
        $region139: #{mtagnp_forward.1} parent=11 // pred_region
          %s1044 = ssub.s32 48, 48
          %1045 = vsyncadd [#allocation38], %s1044
          %s1046 = sshll.u32 [#allocation37], 4
          %s1047 = int_to_ptr.vmem [resolvable:$true] %s1046
          %1052 = dma.hbm_to_vmem [thread:$0]  %s65, 48, %s1047, [#allocation38], 16, 16, 1
        $region140: #{mtagnp_forward.1} parent=11 // pred_fallthru
          _
      $region12: #{mtagnp_forward.1} parent=5 // pred_fallthru
        _
      %p1053 = scmp.lt.s32.totalorder %s82, 2
      // Predicated region
      $region141: #{mtagnp_forward.1} parent=5 // pred_check
        %p1054 = pneg %p1053
      $region142: #{mtagnp_forward.1} parent=5 // pred_check_branch
        %1056 = sbr.rel (%p1054) target = $region144
      $region143: #{mtagnp_forward.1} parent=5 // pred_region
        // Predicated region
        $region145: #{mtagnp_forward.1} parent=143 // pred_check
          %p1057 = pneg %p102
        $region146: #{mtagnp_forward.1} parent=143 // pred_check_branch
          %1059 = sbr.rel (%p1057) target = $region148
        $region147: #{mtagnp_forward.1} parent=143 // pred_region
          %p1060 = scmp.lt.s32.totalorder %s82, 1
          %s1061 = scalar_select %p1060, %s82, 1
          %s1062 = smul.addr %s1061, 8
          %s1063 = smul.addr %s1062, 8
          %s1064 = scalar_lea.vmem %s1, %s1063
        $region148: #{mtagnp_forward.1} parent=143 // pred_fallthru
          _
      $region144: #{mtagnp_forward.1} parent=5 // pred_fallthru
        _
      %p1065 = scmp.le.s32.totalorder 1, %s82
      %p1066 = scmp.lt.s32.totalorder %s82, 3
      %p1067 = pnand %p1065, %p1066
      %p1068 = pneg %p1067
      // Predicated region
      $region149: #{mtagnp_forward.1} parent=5 // pred_check
        _
      $region150: #{mtagnp_forward.1} parent=5 // pred_check_branch
        %1070 = sbr.rel (%p1067) target = $region152
      $region151: #{mtagnp_forward.1} parent=5 // pred_region
        %s1071 = ssub.s32 %s82, 1
        // Predicated region
        $region153: #{mtagnp_forward.1} parent=151 // pred_check
          %p1072 = pneg %p213
        $region154: #{mtagnp_forward.1} parent=151 // pred_check_branch
          %1074 = sbr.rel (%p1072) target = $region156
        $region155: #{mtagnp_forward.1} parent=151 // pred_region
          %1075 = dma.done [#allocation15], 16
        $region156: #{mtagnp_forward.1} parent=151 // pred_fallthru
          _
        // Predicated region
        $region157: #{mtagnp_forward.1} parent=151 // pred_check
          %p1076 = pneg %p276
        $region158: #{mtagnp_forward.1} parent=151 // pred_check_branch
          %1078 = sbr.rel (%p1076) target = $region160
        $region159: #{mtagnp_forward.1} parent=151 // pred_region
          %1079 = dma.done [#allocation17], 16
        $region160: #{mtagnp_forward.1} parent=151 // pred_fallthru
          _
        // Predicated region
        $region161: #{mtagnp_forward.1} parent=151 // pred_check
          %p1080 = pneg %p339
        $region162: #{mtagnp_forward.1} parent=151 // pred_check_branch
          %1082 = sbr.rel (%p1080) target = $region164
        $region163: #{mtagnp_forward.1} parent=151 // pred_region
          %1083 = dma.done [#allocation17], 16
        $region164: #{mtagnp_forward.1} parent=151 // pred_fallthru
          _
        // Predicated region
        $region165: #{mtagnp_forward.1} parent=151 // pred_check
          %p1084 = pneg %p402
        $region166: #{mtagnp_forward.1} parent=151 // pred_check_branch
          %1086 = sbr.rel (%p1084) target = $region168
        $region167: #{mtagnp_forward.1} parent=151 // pred_region
          %1087 = dma.done [#allocation20], 16
        $region168: #{mtagnp_forward.1} parent=151 // pred_fallthru
          _
        // Predicated region
        $region169: #{mtagnp_forward.1} parent=151 // pred_check
          %p1088 = pneg %p423
        $region170: #{mtagnp_forward.1} parent=151 // pred_check_branch
          %1090 = sbr.rel (%p1088) target = $region172
        $region171: #{mtagnp_forward.1} parent=151 // pred_region
          %1091 = dma.done [#allocation20], 16
        $region172: #{mtagnp_forward.1} parent=151 // pred_fallthru
          _
        // Predicated region
        $region173: #{mtagnp_forward.1} parent=151 // pred_check
          %p1092 = pneg %p465
        $region174: #{mtagnp_forward.1} parent=151 // pred_check_branch
          %1094 = sbr.rel (%p1092) target = $region176
        $region175: #{mtagnp_forward.1} parent=151 // pred_region
          %1095 = dma.done [#allocation23], 16
        $region176: #{mtagnp_forward.1} parent=151 // pred_fallthru
          _
        // Predicated region
        $region177: #{mtagnp_forward.1} parent=151 // pred_check
          %p1096 = pneg %p570
        $region178: #{mtagnp_forward.1} parent=151 // pred_check_branch
          %1098 = sbr.rel (%p1096) target = $region180
        $region179: #{mtagnp_forward.1} parent=151 // pred_region
          %1099 = dma.done [#allocation23], 128
        $region180: #{mtagnp_forward.1} parent=151 // pred_fallthru
          _
        // Predicated region
        $region181: #{mtagnp_forward.1} parent=151 // pred_check
          %p1100 = pneg %p591
        $region182: #{mtagnp_forward.1} parent=151 // pred_check_branch
          %1102 = sbr.rel (%p1100) target = $region184
        $region183: #{mtagnp_forward.1} parent=151 // pred_region
          %1103 = dma.done [#allocation26], 16
        $region184: #{mtagnp_forward.1} parent=151 // pred_fallthru
          _
        // Predicated region
        $region185: #{mtagnp_forward.1} parent=151 // pred_check
          %p1104 = pneg %p612
        $region186: #{mtagnp_forward.1} parent=151 // pred_check_branch
          %1106 = sbr.rel (%p1104) target = $region188
        $region187: #{mtagnp_forward.1} parent=151 // pred_region
          %1107 = dma.done [#allocation26], 16
        $region188: #{mtagnp_forward.1} parent=151 // pred_fallthru
          _
        // Predicated region
        $region189: #{mtagnp_forward.1} parent=151 // pred_check
          %p1108 = pneg %p633
        $region190: #{mtagnp_forward.1} parent=151 // pred_check_branch
          %1110 = sbr.rel (%p1108) target = $region192
        $region191: #{mtagnp_forward.1} parent=151 // pred_region
          %1111 = dma.done [#allocation29], 256
        $region192: #{mtagnp_forward.1} parent=151 // pred_fallthru
          _
        // Predicated region
        $region193: #{mtagnp_forward.1} parent=151 // pred_check
          %p1112 = pneg %p654
        $region194: #{mtagnp_forward.1} parent=151 // pred_check_branch
          %1114 = sbr.rel (%p1112) target = $region196
        $region195: #{mtagnp_forward.1} parent=151 // pred_region
          %1115 = dma.done [#allocation29], 16
        $region196: #{mtagnp_forward.1} parent=151 // pred_fallthru
          _
        // Predicated region
        $region197: #{mtagnp_forward.1} parent=151 // pred_check
          %p1116 = pneg %p675
        $region198: #{mtagnp_forward.1} parent=151 // pred_check_branch
          %1118 = sbr.rel (%p1116) target = $region200
        $region199: #{mtagnp_forward.1} parent=151 // pred_region
          %1119 = dma.done [#allocation32], 16
        $region200: #{mtagnp_forward.1} parent=151 // pred_fallthru
          _
        // Predicated region
        $region201: #{mtagnp_forward.1} parent=151 // pred_check
          %p1120 = pneg %p696
        $region202: #{mtagnp_forward.1} parent=151 // pred_check_branch
          %1122 = sbr.rel (%p1120) target = $region204
        $region203: #{mtagnp_forward.1} parent=151 // pred_region
          %1123 = dma.done [#allocation32], 512
        $region204: #{mtagnp_forward.1} parent=151 // pred_fallthru
          _
        // Predicated region
        $region205: #{mtagnp_forward.1} parent=151 // pred_check
          %p1124 = pneg %p717
        $region206: #{mtagnp_forward.1} parent=151 // pred_check_branch
          %1126 = sbr.rel (%p1124) target = $region208
        $region207: #{mtagnp_forward.1} parent=151 // pred_region
          %1127 = dma.done [#allocation35], 16
        $region208: #{mtagnp_forward.1} parent=151 // pred_fallthru
          _
        // Predicated region
        $region209: #{mtagnp_forward.1} parent=151 // pred_check
          %p1128 = pneg %p738
        $region210: #{mtagnp_forward.1} parent=151 // pred_check_branch
          %1130 = sbr.rel (%p1128) target = $region212
        $region211: #{mtagnp_forward.1} parent=151 // pred_region
          %1131 = dma.done [#allocation35], 16
        $region212: #{mtagnp_forward.1} parent=151 // pred_fallthru
          _
        // Predicated region
        $region213: #{mtagnp_forward.1} parent=151 // pred_check
          %p1132 = pneg %p780
        $region214: #{mtagnp_forward.1} parent=151 // pred_check_branch
          %1134 = sbr.rel (%p1132) target = $region216
        $region215: #{mtagnp_forward.1} parent=151 // pred_region
          %1135 = dma.done [#allocation38], 48
        $region216: #{mtagnp_forward.1} parent=151 // pred_fallthru
          _
        %p1136 = scmp.lt.s32.totalorder %s87, 1
        %s1137 = scalar_select %p1136, %s87, 1
        %s1138 = smul.addr %s1137, 8
        %s1139 = smul.addr %s1138, 8
        %s1140 = scalar_lea.vmem %s1, %s1139
        %p1141 = pneg %p108
        %p1142 = pneg %p105
        %p1143 = pneg %p129
        %p1144 = pneg %p126
        %p1145 = pneg %p150
        %p1146 = pneg %p147
        %p1147 = pneg %p171
        %p1148 = pneg %p168
        %p1149 = pneg %p192
        %p1150 = pneg %p189
        %p1151 = pneg %p213
        %p1152 = pneg %p210
        %p1153 = pneg %p234
        %p1154 = pneg %p231
        %p1155 = pneg %p255
        %p1156 = pneg %p252
        %p1157 = pneg %p276
        %p1158 = pneg %p273
        %p1159 = pneg %p297
        %p1160 = pneg %p294
        %p1161 = pneg %p318
        %p1162 = pneg %p315
        %p1163 = pneg %p339
        %p1164 = pneg %p336
        %p1165 = pneg %p360
        %p1166 = pneg %p357
        %p1167 = pneg %p381
        %p1168 = pneg %p378
        %p1169 = pneg %p402
        %p1170 = pneg %p399
        %p1171 = pneg %p423
        %p1172 = pneg %p420
        %p1173 = pneg %p444
        %p1174 = pneg %p441
        %p1175 = pneg %p465
        %p1176 = pneg %p462
        %p1177 = pneg %p486
        %p1178 = pneg %p483
        %p1179 = pneg %p507
        %p1180 = pneg %p504
        %p1181 = pneg %p528
        %p1182 = pneg %p525
        %p1183 = pneg %p549
        %p1184 = pneg %p546
        %p1185 = pneg %p570
        %p1186 = pneg %p567
        %p1187 = pneg %p591
        %p1188 = pneg %p588
        %p1189 = pneg %p612
        %p1190 = pneg %p609
        %p1191 = pneg %p633
        %p1192 = pneg %p630
        %p1193 = pneg %p654
        %p1194 = pneg %p651
        %p1195 = pneg %p675
        %p1196 = pneg %p672
        %p1197 = pneg %p696
        %p1198 = pneg %p693
        %p1199 = pneg %p717
        %p1200 = pneg %p714
        %p1201 = pneg %p738
        %p1202 = pneg %p735
        %p1203 = pneg %p759
        %p1204 = pneg %p756
        %p1205 = pneg %p780
        %p1206 = pneg %p777
        %p1207 = pneg %p806
        %p1208 = pneg %p803
        %p1209 = scmp.lt.s32.totalorder %s87, 1
        %s1210 = scalar_select %p1209, %s87, 1
        %s1211 = smul.addr %s1210, 3
        %s1212 = scalar_lea.vmem %s67, %s1211
        %p1213 = scmp.lt.s32.totalorder %s87, 1
        %s1214 = scalar_select %p1213, %s87, 1
        %s1215 = smul.addr %s1214, 8
        %s1216 = smul.addr %s1215, 8
        %s1217 = scalar_lea.vmem %s1, %s1216
        %p1218 = scmp.lt.s32.totalorder %s87, 1
        %s1219 = scalar_select %p1218, %s87, 1
        %s1220 = smul.addr %s1219, 3
        %s1221 = scalar_lea.vmem %s67, %s1220
        %v1223 = vld [vmem:[%s1217] sm:$0xff]
        %v1224 = vld [vmem:[%s1217 + $0x8] sm:$0xff]
        %v1225 = vld [vmem:[%s1217 + $0x10] sm:$0xff]
        %v1226 = vld [vmem:[%s1217 + $0x18] sm:$0xff]
        %v1227 = vld [vmem:[%s1217 + $0x20] sm:$0xff]
        %v1228 = vld [vmem:[%s1217 + $0x28] sm:$0xff]
        %v1229 = vld [vmem:[%s1217 + $0x30] sm:$0xff]
        %v1230 = vld [vmem:[%s1217 + $0x38] sm:$0xff]
        %vm1231 = vcmask 7168
        %1232 = vst.msk [vmem:[#allocation2] sm:$0xff] %vm1231, 0.0
        %1233 = vst.msk [vmem:[#allocation2 + $0x48] sm:$0xff] %vm1231, 0.0
        %1234 = vst.msk [vmem:[#allocation2 + $0x8] sm:$0xff] %vm1231, %v1223
        %1235 = vst.msk [vmem:[#allocation2 + $0x10] sm:$0xff] %vm1231, %v1224
        %1236 = vst.msk [vmem:[#allocation2 + $0x18] sm:$0xff] %vm1231, %v1225
        %1237 = vst.msk [vmem:[#allocation2 + $0x20] sm:$0xff] %vm1231, %v1226
        %1238 = vst.msk [vmem:[#allocation2 + $0x28] sm:$0xff] %vm1231, %v1227
        %1239 = vst.msk [vmem:[#allocation2 + $0x30] sm:$0xff] %vm1231, %v1228
        %1240 = vst.msk [vmem:[#allocation2 + $0x38] sm:$0xff] %vm1231, %v1229
        %1241 = vst.msk [vmem:[#allocation2 + $0x40] sm:$0xff] %vm1231, %v1230
        %v1242 = vld [vmem:[#allocation2] sm:$0xff]
        %v1243 = vld [vmem:[#allocation2 + $0x8] sm:$0xff]
        %v1244 = vld [vmem:[#allocation2 + $0x10] sm:$0xff]
        %v1245 = vld [vmem:[#allocation2 + $0x18] sm:$0xff]
        %v1246 = vld [vmem:[#allocation2 + $0x20] sm:$0xff]
        %v1247 = vld [vmem:[#allocation2 + $0x28] sm:$0xff]
        %v1248 = vld [vmem:[#allocation2 + $0x30] sm:$0xff]
        %v1249 = vld [vmem:[#allocation2 + $0x38] sm:$0xff]
        %v1250 = vld [vmem:[#allocation2 + $0x40] sm:$0xff]
        %v1251 = vld [vmem:[#allocation2 + $0x48] sm:$0xff]
        %v1252 = vld [vmem:[%s3] sm:$0x1]
        %v1253 = vld [vmem:[%s3 + $0x1] sm:$0x1]
        %v1254 = vld [vmem:[%s3 + $0x2] sm:$0x1]
        %v1255 = vld [vmem:[%s3 + $0x3] sm:$0x1]
        %v1256 = vld [vmem:[%s3 + $0x4] sm:$0x1]
        %v1257 = vld [vmem:[%s3 + $0x5] sm:$0x1]
        %v1258 = vld [vmem:[%s3 + $0x6] sm:$0x1]
        %1260 = vset.pattern.permute.xlu0 0
        %1261 = vperm.xlu0 %1260, %v1242
        %v1262 = vpop.permute.xlu0 %1261
        %1265 = vset.pattern.permute.xlu0 0
        %1266 = vperm.xlu0 %1265, %v1243
        %v1267 = vpop.permute.xlu0 %1266
        %1270 = vset.pattern.permute.xlu0 0
        %1271 = vperm.xlu0 %1270, %v1244
        %v1272 = vpop.permute.xlu0 %1271
        %1275 = vset.pattern.permute.xlu0 0
        %1276 = vperm.xlu0 %1275, %v1245
        %v1277 = vpop.permute.xlu0 %1276
        %1280 = vset.pattern.permute.xlu0 0
        %1281 = vperm.xlu0 %1280, %v1246
        %v1282 = vpop.permute.xlu0 %1281
        %1285 = vset.pattern.permute.xlu0 0
        %1286 = vperm.xlu0 %1285, %v1247
        %v1287 = vpop.permute.xlu0 %1286
        %1290 = vset.pattern.permute.xlu0 0
        %1291 = vperm.xlu0 %1290, %v1248
        %v1292 = vpop.permute.xlu0 %1291
        %1295 = vset.pattern.permute.xlu0 0
        %1296 = vperm.xlu0 %1295, %v1249
        %v1297 = vpop.permute.xlu0 %1296
        %1300 = vset.pattern.permute.xlu0 0
        %1301 = vperm.xlu0 %1300, %v1250
        %v1302 = vpop.permute.xlu0 %1301
        %v1305 = vlaneseq
        %v1306 = vshrl.u32 %v1305, 7
        %v1307 = vsub.s32 0, %v1306
        %v1308 = vrot.slane %v1252, %v1307
        %v1310 = vmul.f32 %v1262, %v1308
        %v1311 = vmul.f32 %v1267, %v1308
        %v1312 = vmul.f32 %v1272, %v1308
        %v1313 = vmul.f32 %v1277, %v1308
        %v1314 = vmul.f32 %v1282, %v1308
        %v1315 = vmul.f32 %v1287, %v1308
        %v1316 = vmul.f32 %v1292, %v1308
        %v1317 = vmul.f32 %v1297, %v1308
        %v1318 = vmul.f32 %v1302, %v1308
        %v1320 = vlaneseq
        %v1321 = vshrl.u32 %v1320, 7
        %v1322 = vsub.s32 0, %v1321
        %v1323 = vrot.slane %v1253, %v1322
        %v1325 = vmul.f32 %v1262, %v1323
        %v1326 = vmul.f32 %v1267, %v1323
        %v1327 = vmul.f32 %v1272, %v1323
        %v1328 = vmul.f32 %v1277, %v1323
        %v1329 = vmul.f32 %v1282, %v1323
        %v1330 = vmul.f32 %v1287, %v1323
        %v1331 = vmul.f32 %v1292, %v1323
        %v1332 = vmul.f32 %v1297, %v1323
        %v1333 = vmul.f32 %v1302, %v1323
        %vm1343 = vcmask 1046528
        %v1344 = vrot.slane %v1325, 1
        %v1345 = vrot.slane %v1326, 1
        %v1346 = vsel %vm1343, %v1344, %v1345
        %v1347 = vrot.slane %v1327, 1
        %v1348 = vsel %vm1343, %v1345, %v1347
        %v1349 = vrot.slane %v1328, 1
        %v1350 = vsel %vm1343, %v1347, %v1349
        %v1351 = vrot.slane %v1329, 1
        %v1352 = vsel %vm1343, %v1349, %v1351
        %v1353 = vrot.slane %v1330, 1
        %v1354 = vsel %vm1343, %v1351, %v1353
        %v1355 = vrot.slane %v1331, 1
        %v1356 = vsel %vm1343, %v1353, %v1355
        %v1357 = vrot.slane %v1332, 1
        %v1358 = vsel %vm1343, %v1355, %v1357
        %v1359 = vrot.slane %v1333, 1
        %v1360 = vsel %vm1343, %v1357, %v1359
        %v1370 = vadd.f32 %v1310, %v1346
        %v1371 = vadd.f32 %v1311, %v1348
        %v1372 = vadd.f32 %v1312, %v1350
        %v1373 = vadd.f32 %v1313, %v1352
        %v1374 = vadd.f32 %v1314, %v1354
        %v1375 = vadd.f32 %v1315, %v1356
        %v1376 = vadd.f32 %v1316, %v1358
        %v1377 = vadd.f32 %v1317, %v1360
        %v1378 = vadd.f32 %v1318, %v1359
        %v1380 = vlaneseq
        %v1381 = vshrl.u32 %v1380, 7
        %v1382 = vsub.s32 0, %v1381
        %v1383 = vrot.slane %v1254, %v1382
        %v1385 = vmul.f32 %v1262, %v1383
        %v1386 = vmul.f32 %v1267, %v1383
        %v1387 = vmul.f32 %v1272, %v1383
        %v1388 = vmul.f32 %v1277, %v1383
        %v1389 = vmul.f32 %v1282, %v1383
        %v1390 = vmul.f32 %v1287, %v1383
        %v1391 = vmul.f32 %v1292, %v1383
        %v1392 = vmul.f32 %v1297, %v1383
        %v1393 = vmul.f32 %v1302, %v1383
        %vm1403 = vcmask 1045504
        %v1404 = vrot.slane %v1385, 2
        %v1405 = vrot.slane %v1386, 2
        %v1406 = vsel %vm1403, %v1404, %v1405
        %v1407 = vrot.slane %v1387, 2
        %v1408 = vsel %vm1403, %v1405, %v1407
        %v1409 = vrot.slane %v1388, 2
        %v1410 = vsel %vm1403, %v1407, %v1409
        %v1411 = vrot.slane %v1389, 2
        %v1412 = vsel %vm1403, %v1409, %v1411
        %v1413 = vrot.slane %v1390, 2
        %v1414 = vsel %vm1403, %v1411, %v1413
        %v1415 = vrot.slane %v1391, 2
        %v1416 = vsel %vm1403, %v1413, %v1415
        %v1417 = vrot.slane %v1392, 2
        %v1418 = vsel %vm1403, %v1415, %v1417
        %v1419 = vrot.slane %v1393, 2
        %v1420 = vsel %vm1403, %v1417, %v1419
        %v1430 = vadd.f32 %v1370, %v1406
        %v1431 = vadd.f32 %v1371, %v1408
        %v1432 = vadd.f32 %v1372, %v1410
        %v1433 = vadd.f32 %v1373, %v1412
        %v1434 = vadd.f32 %v1374, %v1414
        %v1435 = vadd.f32 %v1375, %v1416
        %v1436 = vadd.f32 %v1376, %v1418
        %v1437 = vadd.f32 %v1377, %v1420
        %v1438 = vadd.f32 %v1378, %v1419
        %v1440 = vlaneseq
        %v1441 = vshrl.u32 %v1440, 7
        %v1442 = vsub.s32 0, %v1441
        %v1443 = vrot.slane %v1255, %v1442
        %v1445 = vmul.f32 %v1267, %v1443
        %v1446 = vmul.f32 %v1272, %v1443
        %v1447 = vmul.f32 %v1277, %v1443
        %v1448 = vmul.f32 %v1282, %v1443
        %v1449 = vmul.f32 %v1287, %v1443
        %v1450 = vmul.f32 %v1292, %v1443
        %v1451 = vmul.f32 %v1297, %v1443
        %v1452 = vmul.f32 %v1302, %v1443
        %vm1461 = vcmask 1044480
        %v1462 = vrot.slane %v1445, 3
        %v1463 = vrot.slane %v1446, 3
        %v1464 = vsel %vm1461, %v1462, %v1463
        %v1465 = vrot.slane %v1447, 3
        %v1466 = vsel %vm1461, %v1463, %v1465
        %v1467 = vrot.slane %v1448, 3
        %v1468 = vsel %vm1461, %v1465, %v1467
        %v1469 = vrot.slane %v1449, 3
        %v1470 = vsel %vm1461, %v1467, %v1469
        %v1471 = vrot.slane %v1450, 3
        %v1472 = vsel %vm1461, %v1469, %v1471
        %v1473 = vrot.slane %v1451, 3
        %v1474 = vsel %vm1461, %v1471, %v1473
        %v1475 = vrot.slane %v1452, 3
        %v1476 = vsel %vm1461, %v1473, %v1475
        %v1486 = vadd.f32 %v1430, %v1462
        %v1487 = vadd.f32 %v1431, %v1464
        %v1488 = vadd.f32 %v1432, %v1466
        %v1489 = vadd.f32 %v1433, %v1468
        %v1490 = vadd.f32 %v1434, %v1470
        %v1491 = vadd.f32 %v1435, %v1472
        %v1492 = vadd.f32 %v1436, %v1474
        %v1493 = vadd.f32 %v1437, %v1476
        %v1494 = vadd.f32 %v1438, %v1475
        %1496 = vset.pattern.permute.xlu0 0
        %1497 = vperm.xlu0 %1496, %v1251
        %v1498 = vpop.permute.xlu0 %1497
        %v1501 = vlaneseq
        %v1502 = vshrl.u32 %v1501, 7
        %v1503 = vsub.s32 0, %v1502
        %v1504 = vrot.slane %v1256, %v1503
        %v1506 = vmul.f32 %v1267, %v1504
        %v1507 = vmul.f32 %v1272, %v1504
        %v1508 = vmul.f32 %v1277, %v1504
        %v1509 = vmul.f32 %v1282, %v1504
        %v1510 = vmul.f32 %v1287, %v1504
        %v1511 = vmul.f32 %v1292, %v1504
        %v1512 = vmul.f32 %v1297, %v1504
        %v1513 = vmul.f32 %v1302, %v1504
        %v1514 = vmul.f32 %v1498, %v1504
        %vm1524 = vcmask 1043456
        %v1525 = vrot.slane %v1506, 4
        %v1526 = vrot.slane %v1507, 4
        %v1527 = vsel %vm1524, %v1525, %v1526
        %v1528 = vrot.slane %v1508, 4
        %v1529 = vsel %vm1524, %v1526, %v1528
        %v1530 = vrot.slane %v1509, 4
        %v1531 = vsel %vm1524, %v1528, %v1530
        %v1532 = vrot.slane %v1510, 4
        %v1533 = vsel %vm1524, %v1530, %v1532
        %v1534 = vrot.slane %v1511, 4
        %v1535 = vsel %vm1524, %v1532, %v1534
        %v1536 = vrot.slane %v1512, 4
        %v1537 = vsel %vm1524, %v1534, %v1536
        %v1538 = vrot.slane %v1513, 4
        %v1539 = vsel %vm1524, %v1536, %v1538
        %v1540 = vrot.slane %v1514, 4
        %v1541 = vsel %vm1524, %v1538, %v1540
        %v1551 = vadd.f32 %v1486, %v1525
        %v1552 = vadd.f32 %v1487, %v1527
        %v1553 = vadd.f32 %v1488, %v1529
        %v1554 = vadd.f32 %v1489, %v1531
        %v1555 = vadd.f32 %v1490, %v1533
        %v1556 = vadd.f32 %v1491, %v1535
        %v1557 = vadd.f32 %v1492, %v1537
        %v1558 = vadd.f32 %v1493, %v1539
        %v1559 = vadd.f32 %v1494, %v1541
        %v1561 = vlaneseq
        %v1562 = vshrl.u32 %v1561, 7
        %v1563 = vsub.s32 0, %v1562
        %v1564 = vrot.slane %v1257, %v1563
        %v1566 = vmul.f32 %v1267, %v1564
        %v1567 = vmul.f32 %v1272, %v1564
        %v1568 = vmul.f32 %v1277, %v1564
        %v1569 = vmul.f32 %v1282, %v1564
        %v1570 = vmul.f32 %v1287, %v1564
        %v1571 = vmul.f32 %v1292, %v1564
        %v1572 = vmul.f32 %v1297, %v1564
        %v1573 = vmul.f32 %v1302, %v1564
        %v1574 = vmul.f32 %v1498, %v1564
        %vm1584 = vcmask 1042432
        %v1585 = vrot.slane %v1566, 5
        %v1586 = vrot.slane %v1567, 5
        %v1587 = vsel %vm1584, %v1585, %v1586
        %v1588 = vrot.slane %v1568, 5
        %v1589 = vsel %vm1584, %v1586, %v1588
        %v1590 = vrot.slane %v1569, 5
        %v1591 = vsel %vm1584, %v1588, %v1590
        %v1592 = vrot.slane %v1570, 5
        %v1593 = vsel %vm1584, %v1590, %v1592
        %v1594 = vrot.slane %v1571, 5
        %v1595 = vsel %vm1584, %v1592, %v1594
        %v1596 = vrot.slane %v1572, 5
        %v1597 = vsel %vm1584, %v1594, %v1596
        %v1598 = vrot.slane %v1573, 5
        %v1599 = vsel %vm1584, %v1596, %v1598
        %v1600 = vrot.slane %v1574, 5
        %v1601 = vsel %vm1584, %v1598, %v1600
        %v1611 = vadd.f32 %v1551, %v1585
        %v1612 = vadd.f32 %v1552, %v1587
        %v1613 = vadd.f32 %v1553, %v1589
        %v1614 = vadd.f32 %v1554, %v1591
        %v1615 = vadd.f32 %v1555, %v1593
        %v1616 = vadd.f32 %v1556, %v1595
        %v1617 = vadd.f32 %v1557, %v1597
        %v1618 = vadd.f32 %v1558, %v1599
        %v1619 = vadd.f32 %v1559, %v1601
        %v1621 = vlaneseq
        %v1622 = vshrl.u32 %v1621, 7
        %v1623 = vsub.s32 0, %v1622
        %v1624 = vrot.slane %v1258, %v1623
        %v1626 = vmul.f32 %v1267, %v1624
        %v1627 = vmul.f32 %v1272, %v1624
        %v1628 = vmul.f32 %v1277, %v1624
        %v1629 = vmul.f32 %v1282, %v1624
        %v1630 = vmul.f32 %v1287, %v1624
        %v1631 = vmul.f32 %v1292, %v1624
        %v1632 = vmul.f32 %v1297, %v1624
        %v1633 = vmul.f32 %v1302, %v1624
        %v1634 = vmul.f32 %v1498, %v1624
        %vm1644 = vcmask 1041408
        %v1645 = vrot.slane %v1626, 6
        %v1646 = vrot.slane %v1627, 6
        %v1647 = vsel %vm1644, %v1645, %v1646
        %v1648 = vrot.slane %v1628, 6
        %v1649 = vsel %vm1644, %v1646, %v1648
        %v1650 = vrot.slane %v1629, 6
        %v1651 = vsel %vm1644, %v1648, %v1650
        %v1652 = vrot.slane %v1630, 6
        %v1653 = vsel %vm1644, %v1650, %v1652
        %v1654 = vrot.slane %v1631, 6
        %v1655 = vsel %vm1644, %v1652, %v1654
        %v1656 = vrot.slane %v1632, 6
        %v1657 = vsel %vm1644, %v1654, %v1656
        %v1658 = vrot.slane %v1633, 6
        %v1659 = vsel %vm1644, %v1656, %v1658
        %v1660 = vrot.slane %v1634, 6
        %v1661 = vsel %vm1644, %v1658, %v1660
        %v1671 = vadd.f32 %v1611, %v1645
        %v1672 = vadd.f32 %v1612, %v1647
        %v1673 = vadd.f32 %v1613, %v1649
        %v1674 = vadd.f32 %v1614, %v1651
        %v1675 = vadd.f32 %v1615, %v1653
        %v1676 = vadd.f32 %v1616, %v1655
        %v1677 = vadd.f32 %v1617, %v1657
        %v1678 = vadd.f32 %v1618, %v1659
        %v1679 = vadd.f32 %v1619, %v1661
        %v1680 = vld [vmem:[%s5] sm:$0x1]
        %v1682 = vlaneseq
        %v1683 = vshrl.u32 %v1682, 7
        %v1684 = vsub.s32 0, %v1683
        %v1685 = vrot.slane %v1680, %v1684
        %v1687 = vmul.f32 %v1671, %v1685
        %v1688 = vmul.f32 %v1672, %v1685
        %v1689 = vmul.f32 %v1673, %v1685
        %v1690 = vmul.f32 %v1674, %v1685
        %v1691 = vmul.f32 %v1675, %v1685
        %v1692 = vmul.f32 %v1676, %v1685
        %v1693 = vmul.f32 %v1677, %v1685
        %v1694 = vmul.f32 %v1678, %v1685
        %v1695 = vmul.f32 %v1679, %v1685
        %v1696 = vld [vmem:[%s7] sm:$0x1]
        %v1698 = vlaneseq
        %v1699 = vshrl.u32 %v1698, 7
        %v1700 = vsub.s32 0, %v1699
        %v1701 = vrot.slane %v1696, %v1700
        %v1703 = vadd.f32 %v1687, %v1701
        %v1704 = vadd.f32 %v1688, %v1701
        %v1705 = vadd.f32 %v1689, %v1701
        %v1706 = vadd.f32 %v1690, %v1701
        %v1707 = vadd.f32 %v1691, %v1701
        %v1708 = vadd.f32 %v1692, %v1701
        %v1709 = vadd.f32 %v1693, %v1701
        %v1710 = vadd.f32 %v1694, %v1701
        %v1711 = vadd.f32 %v1695, %v1701
        %v1712 = vmax.f32 %v1703, 0.0
        %v1713 = vmax.f32 %v1704, 0.0
        %v1714 = vmax.f32 %v1705, 0.0
        %v1715 = vmax.f32 %v1706, 0.0
        %v1716 = vmax.f32 %v1707, 0.0
        %v1717 = vmax.f32 %v1708, 0.0
        %v1718 = vmax.f32 %v1709, 0.0
        %v1719 = vmax.f32 %v1710, 0.0
        %v1720 = vmax.f32 %v1711, 0.0
        %vm1721 = vcmask 130048
        %1722 = vst.msk [vmem:[#allocation3] sm:$0xff] %vm1721, 0.0
        %1723 = vst.msk [vmem:[#allocation3 + $0x48] sm:$0xff] %vm1721, 0.0
        %vm1724 = vcmask 130053
        %1725 = vst.msk [vmem:[#allocation3 + $0x3] sm:$0xe0] %vm1724, %v1712
        %1726 = vst.msk [vmem:[#allocation3 + $0xb] sm:$0xff] %vm1721, %v1713
        %1727 = vst.msk [vmem:[#allocation3 + $0x13] sm:$0xff] %vm1721, %v1714
        %1728 = vst.msk [vmem:[#allocation3 + $0x1b] sm:$0xff] %vm1721, %v1715
        %1729 = vst.msk [vmem:[#allocation3 + $0x23] sm:$0xff] %vm1721, %v1716
        %1730 = vst.msk [vmem:[#allocation3 + $0x2b] sm:$0xff] %vm1721, %v1717
        %1731 = vst.msk [vmem:[#allocation3 + $0x33] sm:$0xff] %vm1721, %v1718
        %1732 = vst.msk [vmem:[#allocation3 + $0x3b] sm:$0xff] %vm1721, %v1719
        %vm1733 = vcmask 126976
        %1734 = vst.msk [vmem:[#allocation3 + $0x43] sm:$0x1f] %vm1733, %v1720
        %v1735 = vld [vmem:[#allocation3] sm:$0xff]
        %v1736 = vld [vmem:[#allocation3 + $0x8] sm:$0xff]
        %v1737 = vld [vmem:[#allocation3 + $0x10] sm:$0xff]
        %v1738 = vld [vmem:[#allocation3 + $0x18] sm:$0xff]
        %v1739 = vld [vmem:[#allocation3 + $0x20] sm:$0xff]
        %v1740 = vld [vmem:[#allocation3 + $0x28] sm:$0xff]
        %v1741 = vld [vmem:[#allocation3 + $0x30] sm:$0xff]
        %v1742 = vld [vmem:[#allocation3 + $0x38] sm:$0xff]
        %v1743 = vld [vmem:[#allocation3 + $0x40] sm:$0xff]
        %v1744 = vld [vmem:[#allocation3 + $0x48] sm:$0xff]
        %v1754 = vrot.slane %v1735, 1
        %v1755 = vrot.slane %v1736, 1
        %v1756 = vsel %vm1343, %v1754, %v1755
        %v1757 = vrot.slane %v1737, 1
        %v1758 = vsel %vm1343, %v1755, %v1757
        %v1759 = vrot.slane %v1738, 1
        %v1760 = vsel %vm1343, %v1757, %v1759
        %v1761 = vrot.slane %v1739, 1
        %v1762 = vsel %vm1343, %v1759, %v1761
        %v1763 = vrot.slane %v1740, 1
        %v1764 = vsel %vm1343, %v1761, %v1763
        %v1765 = vrot.slane %v1741, 1
        %v1766 = vsel %vm1343, %v1763, %v1765
        %v1767 = vrot.slane %v1742, 1
        %v1768 = vsel %vm1343, %v1765, %v1767
        %v1769 = vrot.slane %v1743, 1
        %v1770 = vsel %vm1343, %v1767, %v1769
        %1771 = vrot.lane.b32.xlu0 %v1756, 16
        %v1772 = vpop.permute.xlu0 %1771
        %1773 = vrot.lane.b32.xlu0 %v1758, 16
        %v1774 = vpop.permute.xlu0 %1773
        %1775 = vrot.lane.b32.xlu0 %v1760, 16
        %v1776 = vpop.permute.xlu0 %1775
        %1777 = vrot.lane.b32.xlu0 %v1762, 16
        %v1778 = vpop.permute.xlu0 %1777
        %1779 = vrot.lane.b32.xlu0 %v1764, 16
        %v1780 = vpop.permute.xlu0 %1779
        %1781 = vrot.lane.b32.xlu0 %v1766, 16
        %v1782 = vpop.permute.xlu0 %1781
        %1783 = vrot.lane.b32.xlu0 %v1768, 16
        %v1784 = vpop.permute.xlu0 %1783
        %1785 = vrot.lane.b32.xlu0 %v1770, 16
        %v1786 = vpop.permute.xlu0 %1785
        %1787 = vrot.lane.b32.xlu0 %v1769, 16
        %v1788 = vpop.permute.xlu0 %1787
        %v1798 = vrot.slane %v1735, 2
        %v1799 = vrot.slane %v1736, 2
        %v1800 = vsel %vm1403, %v1798, %v1799
        %v1801 = vrot.slane %v1737, 2
        %v1802 = vsel %vm1403, %v1799, %v1801
        %v1803 = vrot.slane %v1738, 2
        %v1804 = vsel %vm1403, %v1801, %v1803
        %v1805 = vrot.slane %v1739, 2
        %v1806 = vsel %vm1403, %v1803, %v1805
        %v1807 = vrot.slane %v1740, 2
        %v1808 = vsel %vm1403, %v1805, %v1807
        %v1809 = vrot.slane %v1741, 2
        %v1810 = vsel %vm1403, %v1807, %v1809
        %v1811 = vrot.slane %v1742, 2
        %v1812 = vsel %vm1403, %v1809, %v1811
        %v1813 = vrot.slane %v1743, 2
        %v1814 = vsel %vm1403, %v1811, %v1813
        %1815 = vrot.lane.b32.xlu0 %v1800, 32
        %v1816 = vpop.permute.xlu0 %1815
        %1817 = vrot.lane.b32.xlu0 %v1802, 32
        %v1818 = vpop.permute.xlu0 %1817
        %1819 = vrot.lane.b32.xlu0 %v1804, 32
        %v1820 = vpop.permute.xlu0 %1819
        %1821 = vrot.lane.b32.xlu0 %v1806, 32
        %v1822 = vpop.permute.xlu0 %1821
        %1823 = vrot.lane.b32.xlu0 %v1808, 32
        %v1824 = vpop.permute.xlu0 %1823
        %1825 = vrot.lane.b32.xlu0 %v1810, 32
        %v1826 = vpop.permute.xlu0 %1825
        %1827 = vrot.lane.b32.xlu0 %v1812, 32
        %v1828 = vpop.permute.xlu0 %1827
        %1829 = vrot.lane.b32.xlu0 %v1814, 32
        %v1830 = vpop.permute.xlu0 %1829
        %1831 = vrot.lane.b32.xlu0 %v1813, 32
        %v1832 = vpop.permute.xlu0 %1831
        %v1842 = vrot.slane %v1736, 3
        %v1843 = vrot.slane %v1737, 3
        %v1844 = vsel %vm1461, %v1842, %v1843
        %v1845 = vrot.slane %v1738, 3
        %v1846 = vsel %vm1461, %v1843, %v1845
        %v1847 = vrot.slane %v1739, 3
        %v1848 = vsel %vm1461, %v1845, %v1847
        %v1849 = vrot.slane %v1740, 3
        %v1850 = vsel %vm1461, %v1847, %v1849
        %v1851 = vrot.slane %v1741, 3
        %v1852 = vsel %vm1461, %v1849, %v1851
        %v1853 = vrot.slane %v1742, 3
        %v1854 = vsel %vm1461, %v1851, %v1853
        %v1855 = vrot.slane %v1743, 3
        %v1856 = vsel %vm1461, %v1853, %v1855
        %1857 = vrot.lane.b32.xlu0 %v1842, 48
        %v1858 = vpop.permute.xlu0 %1857
        %1859 = vrot.lane.b32.xlu0 %v1844, 48
        %v1860 = vpop.permute.xlu0 %1859
        %1861 = vrot.lane.b32.xlu0 %v1846, 48
        %v1862 = vpop.permute.xlu0 %1861
        %1863 = vrot.lane.b32.xlu0 %v1848, 48
        %v1864 = vpop.permute.xlu0 %1863
        %1865 = vrot.lane.b32.xlu0 %v1850, 48
        %v1866 = vpop.permute.xlu0 %1865
        %1867 = vrot.lane.b32.xlu0 %v1852, 48
        %v1868 = vpop.permute.xlu0 %1867
        %1869 = vrot.lane.b32.xlu0 %v1854, 48
        %v1870 = vpop.permute.xlu0 %1869
        %1871 = vrot.lane.b32.xlu0 %v1856, 48
        %v1872 = vpop.permute.xlu0 %1871
        %1873 = vrot.lane.b32.xlu0 %v1855, 48
        %v1874 = vpop.permute.xlu0 %1873
        %v1885 = vrot.slane %v1736, 4
        %v1886 = vrot.slane %v1737, 4
        %v1887 = vsel %vm1524, %v1885, %v1886
        %v1888 = vrot.slane %v1738, 4
        %v1889 = vsel %vm1524, %v1886, %v1888
        %v1890 = vrot.slane %v1739, 4
        %v1891 = vsel %vm1524, %v1888, %v1890
        %v1892 = vrot.slane %v1740, 4
        %v1893 = vsel %vm1524, %v1890, %v1892
        %v1894 = vrot.slane %v1741, 4
        %v1895 = vsel %vm1524, %v1892, %v1894
        %v1896 = vrot.slane %v1742, 4
        %v1897 = vsel %vm1524, %v1894, %v1896
        %v1898 = vrot.slane %v1743, 4
        %v1899 = vsel %vm1524, %v1896, %v1898
        %v1900 = vrot.slane %v1744, 4
        %v1901 = vsel %vm1524, %v1898, %v1900
        %1902 = vrot.lane.b32.xlu0 %v1885, 64
        %v1903 = vpop.permute.xlu0 %1902
        %1904 = vrot.lane.b32.xlu0 %v1887, 64
        %v1905 = vpop.permute.xlu0 %1904
        %1906 = vrot.lane.b32.xlu0 %v1889, 64
        %v1907 = vpop.permute.xlu0 %1906
        %1908 = vrot.lane.b32.xlu0 %v1891, 64
        %v1909 = vpop.permute.xlu0 %1908
        %1910 = vrot.lane.b32.xlu0 %v1893, 64
        %v1911 = vpop.permute.xlu0 %1910
        %1912 = vrot.lane.b32.xlu0 %v1895, 64
        %v1913 = vpop.permute.xlu0 %1912
        %1914 = vrot.lane.b32.xlu0 %v1897, 64
        %v1915 = vpop.permute.xlu0 %1914
        %1916 = vrot.lane.b32.xlu0 %v1899, 64
        %v1917 = vpop.permute.xlu0 %1916
        %1918 = vrot.lane.b32.xlu0 %v1901, 64
        %v1919 = vpop.permute.xlu0 %1918
        %v1929 = vrot.slane %v1736, 5
        %v1930 = vrot.slane %v1737, 5
        %v1931 = vsel %vm1584, %v1929, %v1930
        %v1932 = vrot.slane %v1738, 5
        %v1933 = vsel %vm1584, %v1930, %v1932
        %v1934 = vrot.slane %v1739, 5
        %v1935 = vsel %vm1584, %v1932, %v1934
        %v1936 = vrot.slane %v1740, 5
        %v1937 = vsel %vm1584, %v1934, %v1936
        %v1938 = vrot.slane %v1741, 5
        %v1939 = vsel %vm1584, %v1936, %v1938
        %v1940 = vrot.slane %v1742, 5
        %v1941 = vsel %vm1584, %v1938, %v1940
        %v1942 = vrot.slane %v1743, 5
        %v1943 = vsel %vm1584, %v1940, %v1942
        %v1944 = vrot.slane %v1744, 5
        %v1945 = vsel %vm1584, %v1942, %v1944
        %1946 = vrot.lane.b32.xlu0 %v1929, 80
        %v1947 = vpop.permute.xlu0 %1946
        %1948 = vrot.lane.b32.xlu0 %v1931, 80
        %v1949 = vpop.permute.xlu0 %1948
        %1950 = vrot.lane.b32.xlu0 %v1933, 80
        %v1951 = vpop.permute.xlu0 %1950
        %1952 = vrot.lane.b32.xlu0 %v1935, 80
        %v1953 = vpop.permute.xlu0 %1952
        %1954 = vrot.lane.b32.xlu0 %v1937, 80
        %v1955 = vpop.permute.xlu0 %1954
        %1956 = vrot.lane.b32.xlu0 %v1939, 80
        %v1957 = vpop.permute.xlu0 %1956
        %1958 = vrot.lane.b32.xlu0 %v1941, 80
        %v1959 = vpop.permute.xlu0 %1958
        %1960 = vrot.lane.b32.xlu0 %v1943, 80
        %v1961 = vpop.permute.xlu0 %1960
        %1962 = vrot.lane.b32.xlu0 %v1945, 80
        %v1963 = vpop.permute.xlu0 %1962
        %v1973 = vrot.slane %v1736, 6
        %v1974 = vrot.slane %v1737, 6
        %v1975 = vsel %vm1644, %v1973, %v1974
        %v1976 = vrot.slane %v1738, 6
        %v1977 = vsel %vm1644, %v1974, %v1976
        %v1978 = vrot.slane %v1739, 6
        %v1979 = vsel %vm1644, %v1976, %v1978
        %v1980 = vrot.slane %v1740, 6
        %v1981 = vsel %vm1644, %v1978, %v1980
        %v1982 = vrot.slane %v1741, 6
        %v1983 = vsel %vm1644, %v1980, %v1982
        %v1984 = vrot.slane %v1742, 6
        %v1985 = vsel %vm1644, %v1982, %v1984
        %v1986 = vrot.slane %v1743, 6
        %v1987 = vsel %vm1644, %v1984, %v1986
        %v1988 = vrot.slane %v1744, 6
        %v1989 = vsel %vm1644, %v1986, %v1988
        %1990 = vrot.lane.b32.xlu0 %v1973, 96
        %v1991 = vpop.permute.xlu0 %1990
        %1992 = vrot.lane.b32.xlu0 %v1975, 96
        %v1993 = vpop.permute.xlu0 %1992
        %1994 = vrot.lane.b32.xlu0 %v1977, 96
        %v1995 = vpop.permute.xlu0 %1994
        %1996 = vrot.lane.b32.xlu0 %v1979, 96
        %v1997 = vpop.permute.xlu0 %1996
        %1998 = vrot.lane.b32.xlu0 %v1981, 96
        %v1999 = vpop.permute.xlu0 %1998
        %2000 = vrot.lane.b32.xlu0 %v1983, 96
        %v2001 = vpop.permute.xlu0 %2000
        %2002 = vrot.lane.b32.xlu0 %v1985, 96
        %v2003 = vpop.permute.xlu0 %2002
        %2004 = vrot.lane.b32.xlu0 %v1987, 96
        %v2005 = vpop.permute.xlu0 %2004
        %2006 = vrot.lane.b32.xlu0 %v1989, 96
        %v2007 = vpop.permute.xlu0 %2006
        %v2017 = vsel %vm1721, %v1735, %v1772
        %v2018 = vsel %vm1721, %v1736, %v1774
        %v2019 = vsel %vm1721, %v1737, %v1776
        %v2020 = vsel %vm1721, %v1738, %v1778
        %v2021 = vsel %vm1721, %v1739, %v1780
        %v2022 = vsel %vm1721, %v1740, %v1782
        %v2023 = vsel %vm1721, %v1741, %v1784
        %v2024 = vsel %vm1721, %v1742, %v1786
        %v2025 = vsel %vm1721, %v1743, %v1788
        %vm2026 = vcmask 261120
        %v2027 = vsel %vm2026, %v2017, %v1816
        %v2028 = vsel %vm2026, %v2018, %v1818
        %v2029 = vsel %vm2026, %v2019, %v1820
        %v2030 = vsel %vm2026, %v2020, %v1822
        %v2031 = vsel %vm2026, %v2021, %v1824
        %v2032 = vsel %vm2026, %v2022, %v1826
        %v2033 = vsel %vm2026, %v2023, %v1828
        %v2034 = vsel %vm2026, %v2024, %v1830
        %v2035 = vsel %vm2026, %v2025, %v1832
        %vm2036 = vcmask 392192
        %v2037 = vsel %vm2036, %v2027, %v1858
        %v2038 = vsel %vm2036, %v2028, %v1860
        %v2039 = vsel %vm2036, %v2029, %v1862
        %v2040 = vsel %vm2036, %v2030, %v1864
        %v2041 = vsel %vm2036, %v2031, %v1866
        %v2042 = vsel %vm2036, %v2032, %v1868
        %v2043 = vsel %vm2036, %v2033, %v1870
        %v2044 = vsel %vm2036, %v2034, %v1872
        %v2045 = vsel %vm2036, %v2035, %v1874
        %vm2046 = vcmask 523264
        %v2047 = vsel %vm2046, %v2037, %v1903
        %v2048 = vsel %vm2046, %v2038, %v1905
        %v2049 = vsel %vm2046, %v2039, %v1907
        %v2050 = vsel %vm2046, %v2040, %v1909
        %v2051 = vsel %vm2046, %v2041, %v1911
        %v2052 = vsel %vm2046, %v2042, %v1913
        %v2053 = vsel %vm2046, %v2043, %v1915
        %v2054 = vsel %vm2046, %v2044, %v1917
        %v2055 = vsel %vm2046, %v2045, %v1919
        %vm2056 = vcmask 654336
        %v2057 = vsel %vm2056, %v2047, %v1947
        %v2058 = vsel %vm2056, %v2048, %v1949
        %v2059 = vsel %vm2056, %v2049, %v1951
        %v2060 = vsel %vm2056, %v2050, %v1953
        %v2061 = vsel %vm2056, %v2051, %v1955
        %v2062 = vsel %vm2056, %v2052, %v1957
        %v2063 = vsel %vm2056, %v2053, %v1959
        %v2064 = vsel %vm2056, %v2054, %v1961
        %v2065 = vsel %vm2056, %v2055, %v1963
        %vm2066 = vcmask 785408
        %v2067 = vsel %vm2066, %v2057, %v1991
        %v2068 = vsel %vm2066, %v2058, %v1993
        %v2069 = vsel %vm2066, %v2059, %v1995
        %v2070 = vsel %vm2066, %v2060, %v1997
        %v2071 = vsel %vm2066, %v2061, %v1999
        %v2072 = vsel %vm2066, %v2062, %v2001
        %v2073 = vsel %vm2066, %v2063, %v2003
        %v2074 = vsel %vm2066, %v2064, %v2005
        %v2075 = vsel %vm2066, %v2065, %v2007
        %v2076 = vpack.c.bf16 %v2068, %v2067
        %v2077 = vpack.c.bf16 %v2070, %v2069
        %v2078 = vpack.c.bf16 %v2072, %v2071
        %v2079 = vpack.c.bf16 %v2074, %v2073
        %v2080 = vpack.c.bf16 %v2075, %v2075
        %v2081 = vld [vmem:[%s9] sm:$0xf]
        %v2082 = vld [vmem:[%s9 + $0x4] sm:$0xf]
        %v2083 = vld [vmem:[%s9 + $0x8] sm:$0xf]
        %v2084 = vld [vmem:[%s9 + $0xc] sm:$0xf]
        %v2085 = vld [vmem:[%s9 + $0x10] sm:$0xf]
        %v2086 = vld [vmem:[%s9 + $0x14] sm:$0xf]
        %v2087 = vld [vmem:[%s9 + $0x18] sm:$0xf]
        %v2088 = vld [vmem:[%s9 + $0x1c] sm:$0xf]
        %v2089 = vld [vmem:[%s9 + $0x20] sm:$0xf]
        %v2090 = vld [vmem:[%s9 + $0x24] sm:$0xf]
        %v2091 = vld [vmem:[%s9 + $0x28] sm:$0xf]
        %v2092 = vld [vmem:[%s9 + $0x2c] sm:$0xf]
        %v2093 = vld [vmem:[%s9 + $0x30] sm:$0xf]
        %v2094 = vld [vmem:[%s9 + $0x34] sm:$0xf]
        %vm2095 = vsmask.f32 5376
        %v2097 = vshrl.u32 %v2076, 16
        %v2099 = vrot.slane %v2097, 2
        %v2100 = vshll.u32 %v2076, 16
        %v2102 = vrot.slane %v2100, 3
        %v2103 = vor.u32 %v2099, %v2102
        %v2105 = vshrl.u32 %v2077, 16
        %v2107 = vrot.slane %v2105, 2
        %v2108 = vshll.u32 %v2077, 16
        %v2110 = vrot.slane %v2108, 3
        %v2111 = vor.u32 %v2107, %v2110
        %v2112 = vsel %vm2095, %v2103, %v2111
        %v2114 = vshrl.u32 %v2078, 16
        %v2116 = vrot.slane %v2114, 2
        %v2117 = vshll.u32 %v2078, 16
        %v2119 = vrot.slane %v2117, 3
        %v2120 = vor.u32 %v2116, %v2119
        %v2121 = vsel %vm2095, %v2111, %v2120
        %v2123 = vshrl.u32 %v2079, 16
        %v2125 = vrot.slane %v2123, 2
        %v2126 = vshll.u32 %v2079, 16
        %v2128 = vrot.slane %v2126, 3
        %v2129 = vor.u32 %v2125, %v2128
        %v2130 = vsel %vm2095, %v2120, %v2129
        %v2132 = vshrl.u32 %v2080, 16
        %v2134 = vrot.slane %v2132, 2
        %v2135 = vshll.u32 %v2080, 16
        %v2137 = vrot.slane %v2135, 3
        %v2138 = vor.u32 %v2134, %v2137
        %v2139 = vsel %vm2095, %v2129, %v2138
        %v2154 = vunpack.c.l.b16 %v2081
        %v2155 = vunpack.c.l.b16 %v2082
        %v2156 = vunpack.c.l.b16 %v2083
        %v2157 = vunpack.c.l.b16 %v2084
        %v2158 = vunpack.c.l.b16 %v2085
        %v2159 = vunpack.c.l.b16 %v2086
        %v2160 = vunpack.c.l.b16 %v2087
        %v2161 = vunpack.c.l.b16 %v2088
        %v2162 = vunpack.c.l.b16 %v2089
        %v2163 = vunpack.c.l.b16 %v2090
        %v2164 = vunpack.c.l.b16 %v2091
        %v2165 = vunpack.c.l.b16 %v2092
        %v2166 = vunpack.c.l.b16 %v2093
        %v2167 = vunpack.c.l.b16 %v2094
        %v2168 = vpack.c.b16 %v2155, %v2154
        %v2169 = vpack.c.b16 %v2157, %v2156
        %v2170 = vpack.c.b16 %v2159, %v2158
        %v2171 = vpack.c.b16 %v2161, %v2160
        %v2172 = vpack.c.b16 %v2163, %v2162
        %v2173 = vpack.c.b16 %v2165, %v2164
        %v2174 = vpack.c.b16 %v2167, %v2166
        %vm2182 = vcmask 916480
        %v2184 = vsel %vm2182, %v2112, 0
        %v2187 = vsel %vm2182, %v2121, 0
        %v2190 = vsel %vm2182, %v2130, 0
        %v2193 = vsel %vm2182, %v2139, 0
        %2195 = vmatprep.subr.bf16.mxu0 0
        %2196 = vmatpush1.bf16.msra.mxu0 %v2168
        %2197 = vmatprep.subr.bf16.mxu0 0
        %2198 = vmatpush1.bf16.msra.mxu0 %v2169
        %2199 = vmatprep.subr.bf16.mxu0 0
        %2200 = vmatpush1.bf16.msra.mxu0 %v2170
        %2201 = vmatprep.subr.bf16.mxu0 0
        %2202 = vmatpush1.bf16.msra.mxu0 %v2171
        %2203 = vmatprep.subr.bf16.mxu0 0
        %2204 = vmatpush1.bf16.msra.mxu0 %v2172
        %2205 = vmatprep.subr.bf16.mxu0 0
        %2206 = vmatpush1.bf16.msra.mxu0 %v2173
        %2207 = vmatprep.subr.bf16.mxu0 0
        %2208 = vmatpush1.bf16.msra.mxu0 %v2174
        %2209 = vmatprep.subr.bf16.mxu0 0
        %2210 = vmatpush1.bf16.msra.mxu0 0
        %2211 = vmatprep.subr.bf16.mxu0 0
        %2212 = vmatpush1.bf16.msra.mxu0 0
        %2213 = vmatprep.subr.bf16.mxu0 0
        %2214 = vmatpush1.bf16.msra.mxu0 0
        %2215 = vmatprep.subr.bf16.mxu0 0
        %2216 = vmatpush1.bf16.msra.mxu0 0
        %2217 = vmatprep.subr.bf16.mxu0 0
        %2218 = vmatpush1.bf16.msra.mxu0 0
        %2219 = vmatprep.subr.bf16.mxu0 0
        %2220 = vmatpush1.bf16.msra.mxu0 0
        %2221 = vmatprep.subr.bf16.mxu0 0
        %2222 = vmatpush1.bf16.msra.mxu0 0
        %2223 = vmatprep.subr.bf16.mxu0 0
        %2224 = vmatpush1.bf16.msra.mxu0 0
        %2225 = vmatprep.subr.bf16.mxu0 0
        %2226 = vmatpush1.bf16.msra.mxu0 0
        %2227 = vmatprep.mubr.bf16.mxu0 0
        %2228 = vmatmul.mubr.bf16.gmra.mrb[0].mxu0 %v2184
        %v2229 = vpop.f32.mrb[0].mxu0
        %v2230 = vadd.f32 0.0, %v2229
        %v2231 = vpop.f32.mrb[0].mxu0
        %v2232 = vpop.f32.mrb[0].mxu0
        %v2233 = vadd.f32 0.0, %v2232
        %v2234 = vpop.f32.mrb[0].mxu0
        %2235 = vmatprep.mubr.bf16.mxu0 0
        %2236 = vmatmul.mubr.bf16.gmra.mrb[0].mxu0 %v2187
        %v2237 = vpop.f32.mrb[0].mxu0
        %v2238 = vadd.f32 0.0, %v2237
        %v2239 = vpop.f32.mrb[0].mxu0
        %v2240 = vpop.f32.mrb[0].mxu0
        %v2241 = vadd.f32 0.0, %v2240
        %v2242 = vpop.f32.mrb[0].mxu0
        %2243 = vmatprep.mubr.bf16.mxu0 0
        %2244 = vmatmul.mubr.bf16.gmra.mrb[0].mxu0 %v2190
        %v2245 = vpop.f32.mrb[0].mxu0
        %v2246 = vadd.f32 0.0, %v2245
        %v2247 = vpop.f32.mrb[0].mxu0
        %v2248 = vpop.f32.mrb[0].mxu0
        %v2249 = vadd.f32 0.0, %v2248
        %v2250 = vpop.f32.mrb[0].mxu0
        %2251 = vmatprep.mubr.bf16.mxu0 0
        %2252 = vmatmul.mubr.bf16.gmra.mrb[0].mxu0 %v2193
        %v2253 = vpop.f32.mrb[0].mxu0
        %v2254 = vadd.f32 0.0, %v2253
        %v2255 = vpop.f32.mrb[0].mxu0
        %v2256 = vpop.f32.mrb[0].mxu0
        %v2257 = vadd.f32 0.0, %v2256
        %v2258 = vpop.f32.mrb[0].mxu0
        %2259 = vdwg.mxu0
        %v2260 = vld [vmem:[#allocation14] sm:$0x1]
        %v2262 = vlaneseq
        %v2263 = vshrl.u32 %v2262, 7
        %v2264 = vsub.s32 0, %v2263
        %v2265 = vrot.slane %v2260, %v2264
        %v2267 = vmul.f32 %v2230, %v2265
        %v2268 = vmul.f32 %v2233, %v2265
        %v2269 = vmul.f32 %v2238, %v2265
        %v2270 = vmul.f32 %v2241, %v2265
        %v2271 = vmul.f32 %v2246, %v2265
        %v2272 = vmul.f32 %v2249, %v2265
        %v2273 = vmul.f32 %v2254, %v2265
        %v2274 = vmul.f32 %v2257, %v2265
        %v2275 = vld [vmem:[%s13] sm:$0x1]
        %v2277 = vlaneseq
        %v2278 = vshrl.u32 %v2277, 7
        %v2279 = vsub.s32 0, %v2278
        %v2280 = vrot.slane %v2275, %v2279
        %v2282 = vadd.f32 %v2267, %v2280
        %v2283 = vadd.f32 %v2268, %v2280
        %v2284 = vadd.f32 %v2269, %v2280
        %v2285 = vadd.f32 %v2270, %v2280
        %v2286 = vadd.f32 %v2271, %v2280
        %v2287 = vadd.f32 %v2272, %v2280
        %v2288 = vadd.f32 %v2273, %v2280
        %v2289 = vadd.f32 %v2274, %v2280
        %v2290 = vmax.f32 %v2282, 0.0
        %v2291 = vmax.f32 %v2283, 0.0
        %v2292 = vmax.f32 %v2284, 0.0
        %v2293 = vmax.f32 %v2285, 0.0
        %v2294 = vmax.f32 %v2286, 0.0
        %v2295 = vmax.f32 %v2287, 0.0
        %v2296 = vmax.f32 %v2288, 0.0
        %v2297 = vmax.f32 %v2289, 0.0
        %2298 = vst.msk [vmem:[#allocation8] sm:$0xff] %vm1721, %v2290
        %2299 = vst.msk [vmem:[#allocation8 + $0x8] sm:$0xff] %vm1721, %v2291
        %2300 = vst.msk [vmem:[#allocation8 + $0x10] sm:$0xff] %vm1721, %v2292
        %2301 = vst.msk [vmem:[#allocation8 + $0x18] sm:$0xff] %vm1721, %v2293
        %2302 = vst.msk [vmem:[#allocation8 + $0x20] sm:$0xff] %vm1721, %v2294
        %2303 = vst.msk [vmem:[#allocation8 + $0x28] sm:$0xff] %vm1721, %v2295
        %2304 = vst.msk [vmem:[#allocation8 + $0x30] sm:$0xff] %vm1721, %v2296
        %2305 = vst.msk [vmem:[#allocation8 + $0x38] sm:$0xff] %vm1721, %v2297
        %v2306 = vld [vmem:[#allocation8] ss:$4 sm:$0xff]
        %s2307 = scalar_lea.vmem [#allocation8], 32
        %v2308 = vld [vmem:[%s2307] ss:$4 sm:$0xff]
        %s2309 = scalar_lea.vmem [#allocation8], 1
        %v2310 = vld [vmem:[%s2309] ss:$4 sm:$0xff]
        %s2311 = scalar_lea.vmem [#allocation8], 33
        %v2312 = vld [vmem:[%s2311] ss:$4 sm:$0xff]
        %v2313 = vmax.f32 %v2306, %v2310
        %v2314 = vmax.f32 %v2308, %v2312
        %s2315 = scalar_lea.vmem [#allocation8], 2
        %v2316 = vld [vmem:[%s2315] ss:$4 sm:$0xff]
        %s2317 = scalar_lea.vmem [#allocation8], 34
        %v2318 = vld [vmem:[%s2317] ss:$4 sm:$0xff]
        %v2319 = vmax.f32 %v2313, %v2316
        %v2320 = vmax.f32 %v2314, %v2318
        %s2321 = scalar_lea.vmem [#allocation8], 3
        %v2322 = vld [vmem:[%s2321] ss:$4 sm:$0xff]
        %s2323 = scalar_lea.vmem [#allocation8], 35
        %v2324 = vld [vmem:[%s2323] ss:$4 sm:$0xff]
        %v2325 = vmax.f32 %v2319, %v2322
        %v2326 = vmax.f32 %v2320, %v2324
        %2327 = vst.msk [vmem:[#allocation4] sm:$0xff] %vm1721, 0.0
        %2328 = vst.msk [vmem:[#allocation4 + $0x18] sm:$0xff] %vm1721, 0.0
        %2329 = vst.msk [vmem:[#allocation4 + $0x8] sm:$0xff] %vm1721, %v2325
        %2330 = vst.msk [vmem:[#allocation4 + $0x10] sm:$0xff] %vm1721, %v2326
        %v2331 = vld [vmem:[#allocation4] sm:$0xff]
        %v2332 = vld [vmem:[#allocation4 + $0x8] sm:$0xff]
        %v2333 = vld [vmem:[#allocation4 + $0x10] sm:$0xff]
        %v2334 = vld [vmem:[#allocation4 + $0x18] sm:$0xff]
        %v2338 = vrot.slane %v2331, 1
        %v2339 = vrot.slane %v2332, 1
        %v2340 = vsel %vm1343, %v2338, %v2339
        %v2341 = vrot.slane %v2333, 1
        %v2342 = vsel %vm1343, %v2339, %v2341
        %2343 = vrot.lane.b32.xlu0 %v2340, 16
        %v2344 = vpop.permute.xlu0 %2343
        %2345 = vrot.lane.b32.xlu0 %v2342, 16
        %v2346 = vpop.permute.xlu0 %2345
        %2347 = vrot.lane.b32.xlu0 %v2341, 16
        %v2348 = vpop.permute.xlu0 %2347
        %v2352 = vrot.slane %v2332, 2
        %v2353 = vrot.slane %v2333, 2
        %v2354 = vsel %vm1403, %v2352, %v2353
        %2355 = vrot.lane.b32.xlu0 %v2352, 32
        %v2356 = vpop.permute.xlu0 %2355
        %2357 = vrot.lane.b32.xlu0 %v2354, 32
        %v2358 = vpop.permute.xlu0 %2357
        %2359 = vrot.lane.b32.xlu0 %v2353, 32
        %v2360 = vpop.permute.xlu0 %2359
        %v2365 = vrot.slane %v2332, 3
        %v2366 = vrot.slane %v2333, 3
        %v2367 = vsel %vm1461, %v2365, %v2366
        %v2368 = vrot.slane %v2334, 3
        %v2369 = vsel %vm1461, %v2366, %v2368
        %2370 = vrot.lane.b32.xlu0 %v2365, 48
        %v2371 = vpop.permute.xlu0 %2370
        %2372 = vrot.lane.b32.xlu0 %v2367, 48
        %v2373 = vpop.permute.xlu0 %2372
        %2374 = vrot.lane.b32.xlu0 %v2369, 48
        %v2375 = vpop.permute.xlu0 %2374
        %v2379 = vrot.slane %v2332, 4
        %v2380 = vrot.slane %v2333, 4
        %v2381 = vsel %vm1524, %v2379, %v2380
        %v2382 = vrot.slane %v2334, 4
        %v2383 = vsel %vm1524, %v2380, %v2382
        %2384 = vrot.lane.b32.xlu0 %v2379, 64
        %v2385 = vpop.permute.xlu0 %2384
        %2386 = vrot.lane.b32.xlu0 %v2381, 64
        %v2387 = vpop.permute.xlu0 %2386
        %2388 = vrot.lane.b32.xlu0 %v2383, 64
        %v2389 = vpop.permute.xlu0 %2388
        %v2393 = vsel %vm1721, %v2331, %v2344
        %v2394 = vsel %vm1721, %v2332, %v2346
        %v2395 = vsel %vm1721, %v2333, %v2348
        %v2396 = vsel %vm2026, %v2393, %v2356
        %v2397 = vsel %vm2026, %v2394, %v2358
        %v2398 = vsel %vm2026, %v2395, %v2360
        %v2399 = vsel %vm2036, %v2396, %v2371
        %v2400 = vsel %vm2036, %v2397, %v2373
        %v2401 = vsel %vm2036, %v2398, %v2375
        %v2402 = vsel %vm2046, %v2399, %v2385
        %v2403 = vsel %vm2046, %v2400, %v2387
        %v2404 = vsel %vm2046, %v2401, %v2389
        %v2405 = vpack.c.bf16 %v2403, %v2402
        %v2406 = vpack.c.bf16 %v2404, %v2404
        %v2407 = vld [vmem:[%s15] sm:$0xf]
        %v2408 = vld [vmem:[%s15 + $0x4] sm:$0xf]
        %v2409 = vld [vmem:[%s15 + $0x8] sm:$0xf]
        %v2410 = vld [vmem:[%s15 + $0xc] sm:$0xf]
        %v2411 = vld [vmem:[%s15 + $0x10] sm:$0xf]
        %v2412 = vld [vmem:[%s15 + $0x14] sm:$0xf]
        %v2413 = vld [vmem:[%s15 + $0x18] sm:$0xf]
        %v2414 = vld [vmem:[%s15 + $0x1c] sm:$0xf]
        %v2415 = vld [vmem:[%s15 + $0x20] sm:$0xf]
        %v2416 = vld [vmem:[%s15 + $0x24] sm:$0xf]
        %vm2419 = vcmask 1044480
        %v2420 = vrot.slane %v2405, 3
        %v2421 = vrot.slane %v2406, 3
        %v2422 = vsel %vm2419, %v2420, %v2421
        %v2433 = vunpack.c.l.b16 %v2407
        %v2434 = vunpack.c.l.b16 %v2408
        %v2435 = vunpack.c.l.b16 %v2409
        %v2436 = vunpack.c.l.b16 %v2410
        %v2437 = vunpack.c.l.b16 %v2411
        %v2438 = vunpack.c.l.b16 %v2412
        %v2439 = vunpack.c.l.b16 %v2413
        %v2440 = vunpack.c.l.b16 %v2414
        %v2441 = vunpack.c.l.b16 %v2415
        %v2442 = vunpack.c.l.b16 %v2416
        %v2443 = vpack.c.b16 %v2434, %v2433
        %v2444 = vpack.c.b16 %v2436, %v2435
        %v2445 = vpack.c.b16 %v2438, %v2437
        %v2446 = vpack.c.b16 %v2440, %v2439
        %v2447 = vpack.c.b16 %v2442, %v2441
        %v2454 = vsel %vm2056, %v2422, 0
        %2456 = vmatprep.subr.bf16.mxu0 0
        %2457 = vmatpush1.bf16.msra.mxu0 %v2443
        %2458 = vmatprep.subr.bf16.mxu0 0
        %2459 = vmatpush1.bf16.msra.mxu0 %v2444
        %2460 = vmatprep.subr.bf16.mxu0 0
        %2461 = vmatpush1.bf16.msra.mxu0 %v2445
        %2462 = vmatprep.subr.bf16.mxu0 0
        %2463 = vmatpush1.bf16.msra.mxu0 %v2446
        %2464 = vmatprep.subr.bf16.mxu0 0
        %2465 = vmatpush1.bf16.msra.mxu0 %v2447
        %2466 = vmatprep.subr.bf16.mxu0 0
        %2467 = vmatpush1.bf16.msra.mxu0 0
        %2468 = vmatprep.subr.bf16.mxu0 0
        %2469 = vmatpush1.bf16.msra.mxu0 0
        %2470 = vmatprep.subr.bf16.mxu0 0
        %2471 = vmatpush1.bf16.msra.mxu0 0
        %2472 = vmatprep.subr.bf16.mxu0 0
        %2473 = vmatpush1.bf16.msra.mxu0 0
        %2474 = vmatprep.subr.bf16.mxu0 0
        %2475 = vmatpush1.bf16.msra.mxu0 0
        %2476 = vmatprep.subr.bf16.mxu0 0
        %2477 = vmatpush1.bf16.msra.mxu0 0
        %2478 = vmatprep.subr.bf16.mxu0 0
        %2479 = vmatpush1.bf16.msra.mxu0 0
        %2480 = vmatprep.subr.bf16.mxu0 0
        %2481 = vmatpush1.bf16.msra.mxu0 0
        %2482 = vmatprep.subr.bf16.mxu0 0
        %2483 = vmatpush1.bf16.msra.mxu0 0
        %2484 = vmatprep.subr.bf16.mxu0 0
        %2485 = vmatpush1.bf16.msra.mxu0 0
        %2486 = vmatprep.subr.bf16.mxu0 0
        %2487 = vmatpush1.bf16.msra.mxu0 0
        %2488 = vmatprep.mubr.bf16.mxu0 0
        %2489 = vmatmul.mubr.bf16.gmra.mrb[0].mxu0 %v2454
        %v2490 = vpop.f32.mrb[0].mxu0
        %v2491 = vadd.f32 0.0, %v2490
        %v2492 = vpop.f32.mrb[0].mxu0
        %v2493 = vpop.f32.mrb[0].mxu0
        %v2494 = vadd.f32 0.0, %v2493
        %v2495 = vpop.f32.mrb[0].mxu0
        %2496 = vdwg.mxu0
        %v2497 = vld [vmem:[#allocation16] sm:$0x1]
        %v2499 = vlaneseq
        %v2500 = vshrl.u32 %v2499, 7
        %v2501 = vsub.s32 0, %v2500
        %v2502 = vrot.slane %v2497, %v2501
        %v2504 = vmul.f32 %v2491, %v2502
        %v2505 = vmul.f32 %v2494, %v2502
        %v2506 = vld [vmem:[%s19] sm:$0x1]
        %v2508 = vlaneseq
        %v2509 = vshrl.u32 %v2508, 7
        %v2510 = vsub.s32 0, %v2509
        %v2511 = vrot.slane %v2506, %v2510
        %v2513 = vadd.f32 %v2504, %v2511
        %v2514 = vadd.f32 %v2505, %v2511
        %v2515 = vmax.f32 %v2513, 0.0
        %v2516 = vmax.f32 %v2514, 0.0
        %2517 = vst.msk [vmem:[#allocation5] sm:$0xff] %vm2026, 0.0
        %2518 = vst.msk [vmem:[#allocation5 + $0x18] sm:$0xff] %vm2026, 0.0
        %2519 = vst.msk [vmem:[#allocation5 + $0x8] sm:$0xff] %vm2026, %v2515
        %2520 = vst.msk [vmem:[#allocation5 + $0x10] sm:$0xff] %vm2026, %v2516
        %v2521 = vld [vmem:[#allocation5] sm:$0xff]
        %v2522 = vld [vmem:[#allocation5 + $0x8] sm:$0xff]
        %v2523 = vld [vmem:[#allocation5 + $0x10] sm:$0xff]
        %v2524 = vld [vmem:[#allocation5 + $0x18] sm:$0xff]
        %v2528 = vrot.slane %v2521, 1
        %v2529 = vrot.slane %v2522, 1
        %v2530 = vsel %vm1343, %v2528, %v2529
        %v2531 = vrot.slane %v2523, 1
        %v2532 = vsel %vm1343, %v2529, %v2531
        %2533 = vrot.lane.b32.xlu0 %v2530, 32
        %v2534 = vpop.permute.xlu0 %2533
        %2535 = vrot.lane.b32.xlu0 %v2532, 32
        %v2536 = vpop.permute.xlu0 %2535
        %2537 = vrot.lane.b32.xlu0 %v2531, 32
        %v2538 = vpop.permute.xlu0 %2537
        %v2542 = vrot.slane %v2522, 2
        %v2543 = vrot.slane %v2523, 2
        %v2544 = vsel %vm1403, %v2542, %v2543
        %2545 = vrot.lane.b32.xlu0 %v2542, 64
        %v2546 = vpop.permute.xlu0 %2545
        %2547 = vrot.lane.b32.xlu0 %v2544, 64
        %v2548 = vpop.permute.xlu0 %2547
        %2549 = vrot.lane.b32.xlu0 %v2543, 64
        %v2550 = vpop.permute.xlu0 %2549
        %v2555 = vrot.slane %v2522, 3
        %v2556 = vrot.slane %v2523, 3
        %v2557 = vsel %vm1461, %v2555, %v2556
        %v2558 = vrot.slane %v2524, 3
        %v2559 = vsel %vm1461, %v2556, %v2558
        %2560 = vrot.lane.b32.xlu0 %v2555, 96
        %v2561 = vpop.permute.xlu0 %2560
        %2562 = vrot.lane.b32.xlu0 %v2557, 96
        %v2563 = vpop.permute.xlu0 %2562
        %2564 = vrot.lane.b32.xlu0 %v2559, 96
        %v2565 = vpop.permute.xlu0 %2564
        %v2569 = vrot.slane %v2522, 4
        %v2570 = vrot.slane %v2523, 4
        %v2571 = vsel %vm1524, %v2569, %v2570
        %v2572 = vrot.slane %v2524, 4
        %v2573 = vsel %vm1524, %v2570, %v2572
        %v2577 = vsel %vm2026, %v2521, %v2534
        %v2578 = vsel %vm2026, %v2522, %v2536
        %v2579 = vsel %vm2026, %v2523, %v2538
        %v2580 = vsel %vm2046, %v2577, %v2546
        %v2581 = vsel %vm2046, %v2578, %v2548
        %v2582 = vsel %vm2046, %v2579, %v2550
        %v2583 = vsel %vm2066, %v2580, %v2561
        %v2584 = vsel %vm2066, %v2581, %v2563
        %v2585 = vsel %vm2066, %v2582, %v2565
        %v2586 = vpack.c.bf16 %v2584, %v2583
        %v2587 = vpack.c.bf16 %v2571, %v2569
        %v2588 = vpack.c.bf16 %v2585, %v2585
        %v2589 = vpack.c.bf16 %v2573, %v2573
        %v2590 = vld [vmem:[%s21] sm:$0xf]
        %v2591 = vld [vmem:[%s21 + $0x4] sm:$0xf]
        %v2592 = vld [vmem:[%s21 + $0x8] sm:$0xf]
        %v2593 = vld [vmem:[%s21 + $0xc] sm:$0xf]
        %v2594 = vld [vmem:[%s21 + $0x10] sm:$0xf]
        %v2595 = vld [vmem:[%s21 + $0x14] sm:$0xf]
        %v2596 = vld [vmem:[%s21 + $0x18] sm:$0xf]
        %v2597 = vld [vmem:[%s21 + $0x1c] sm:$0xf]
        %v2598 = vld [vmem:[%s21 + $0x20] sm:$0xf]
        %v2599 = vld [vmem:[%s21 + $0x24] sm:$0xf]
        %v2600 = vld [vmem:[%s21 + $0x28] sm:$0xf]
        %v2601 = vld [vmem:[%s21 + $0x2c] sm:$0xf]
        %v2602 = vld [vmem:[%s21 + $0x30] sm:$0xf]
        %v2603 = vld [vmem:[%s21 + $0x34] sm:$0xf]
        %v2604 = vld [vmem:[%s21 + $0x38] sm:$0xf]
        %v2605 = vld [vmem:[%s21 + $0x3c] sm:$0xf]
        %v2606 = vld [vmem:[%s21 + $0x40] sm:$0xf]
        %v2607 = vld [vmem:[%s21 + $0x44] sm:$0xf]
        %v2608 = vld [vmem:[%s21 + $0x48] sm:$0xf]
        %v2609 = vld [vmem:[%s21 + $0x4c] sm:$0xf]
        %v2614 = vrot.slane %v2586, 3
        %v2615 = vrot.slane %v2588, 3
        %v2616 = vsel %vm2419, %v2614, %v2615
        %v2617 = vrot.slane %v2587, 3
        %v2618 = vrot.slane %v2589, 3
        %v2619 = vsel %vm2419, %v2617, %v2618
        %v2641 = vunpack.c.l.b16 %v2590
        %v2642 = vunpack.c.l.b16 %v2591
        %v2643 = vunpack.c.l.b16 %v2592
        %v2644 = vunpack.c.l.b16 %v2593
        %v2645 = vunpack.c.l.b16 %v2594
        %v2646 = vunpack.c.l.b16 %v2595
        %v2647 = vunpack.c.l.b16 %v2596
        %v2648 = vunpack.c.l.b16 %v2597
        %v2649 = vunpack.c.l.b16 %v2598
        %v2650 = vunpack.c.l.b16 %v2599
        %v2651 = vunpack.c.l.b16 %v2600
        %v2652 = vunpack.c.l.b16 %v2601
        %v2653 = vunpack.c.l.b16 %v2602
        %v2654 = vunpack.c.l.b16 %v2603
        %v2655 = vunpack.c.l.b16 %v2604
        %v2656 = vunpack.c.l.b16 %v2605
        %v2657 = vunpack.c.l.b16 %v2606
        %v2658 = vunpack.c.l.b16 %v2607
        %v2659 = vunpack.c.l.b16 %v2608
        %v2660 = vunpack.c.l.b16 %v2609
        %v2661 = vpack.c.b16 %v2642, %v2641
        %v2662 = vpack.c.b16 %v2644, %v2643
        %v2663 = vpack.c.b16 %v2646, %v2645
        %v2664 = vpack.c.b16 %v2648, %v2647
        %v2665 = vpack.c.b16 %v2650, %v2649
        %v2666 = vpack.c.b16 %v2652, %v2651
        %v2667 = vpack.c.b16 %v2654, %v2653
        %v2668 = vpack.c.b16 %v2656, %v2655
        %v2669 = vpack.c.b16 %v2658, %v2657
        %v2670 = vpack.c.b16 %v2660, %v2659
        %v2682 = vsel %vm2026, %v2619, 0
        %2684 = vmatprep.subr.bf16.mxu0 0
        %2685 = vmatpush1.bf16.msra.mxu0 %v2661
        %2686 = vmatprep.subr.bf16.mxu0 0
        %2687 = vmatpush1.bf16.msra.mxu0 %v2662
        %2688 = vmatprep.subr.bf16.mxu0 0
        %2689 = vmatpush1.bf16.msra.mxu0 %v2663
        %2690 = vmatprep.subr.bf16.mxu0 0
        %2691 = vmatpush1.bf16.msra.mxu0 %v2664
        %2692 = vmatprep.subr.bf16.mxu0 0
        %2693 = vmatpush1.bf16.msra.mxu0 %v2665
        %2694 = vmatprep.subr.bf16.mxu0 0
        %2695 = vmatpush1.bf16.msra.mxu0 %v2666
        %2696 = vmatprep.subr.bf16.mxu0 0
        %2697 = vmatpush1.bf16.msra.mxu0 %v2667
        %2698 = vmatprep.subr.bf16.mxu0 0
        %2699 = vmatpush1.bf16.msra.mxu0 %v2668
        %2700 = vmatprep.subr.bf16.mxu0 0
        %2701 = vmatpush1.bf16.msra.mxu0 %v2669
        %2702 = vmatprep.subr.bf16.mxu0 0
        %2703 = vmatpush1.bf16.msra.mxu0 %v2670
        %2704 = vmatprep.subr.bf16.mxu0 0
        %2705 = vmatpush1.bf16.msra.mxu0 0
        %2706 = vmatprep.subr.bf16.mxu0 0
        %2707 = vmatpush1.bf16.msra.mxu0 0
        %2708 = vmatprep.subr.bf16.mxu0 0
        %2709 = vmatpush1.bf16.msra.mxu0 0
        %2710 = vmatprep.subr.bf16.mxu0 0
        %2711 = vmatpush1.bf16.msra.mxu0 0
        %2712 = vmatprep.subr.bf16.mxu0 0
        %2713 = vmatpush1.bf16.msra.mxu0 0
        %2714 = vmatprep.subr.bf16.mxu0 0
        %2715 = vmatpush1.bf16.msra.mxu0 0
        %2716 = vmatprep.mubr.bf16.mxu0 %v2682
        %2717 = vmatmul.mubr.bf16.gmra.mrb[0].mxu0 %v2616
        %v2718 = vpop.f32.mrb[0].mxu0
        %v2719 = vadd.f32 0.0, %v2718
        %v2720 = vpop.f32.mrb[0].mxu0
        %v2721 = vpop.f32.mrb[0].mxu0
        %v2722 = vadd.f32 0.0, %v2721
        %v2723 = vpop.f32.mrb[0].mxu0
        %2724 = vdwg.mxu0
        %v2725 = vld [vmem:[#allocation18] sm:$0x1]
        %v2727 = vlaneseq
        %v2728 = vshrl.u32 %v2727, 7
        %v2729 = vsub.s32 0, %v2728
        %v2730 = vrot.slane %v2725, %v2729
        %v2732 = vmul.f32 %v2719, %v2730
        %v2733 = vmul.f32 %v2722, %v2730
        %v2734 = vld [vmem:[%s25] sm:$0x1]
        %v2736 = vlaneseq
        %v2737 = vshrl.u32 %v2736, 7
        %v2738 = vsub.s32 0, %v2737
        %v2739 = vrot.slane %v2734, %v2738
        %v2741 = vadd.f32 %v2732, %v2739
        %v2742 = vadd.f32 %v2733, %v2739
        %v2743 = vmax.f32 %v2741, 0.0
        %v2744 = vmax.f32 %v2742, 0.0
        %2745 = vst.msk [vmem:[#allocation9] sm:$0xff] %vm2026, %v2743
        %2746 = vst.msk [vmem:[#allocation9 + $0x8] sm:$0xff] %vm2026, %v2744
        %v2747 = vld [vmem:[#allocation9] ss:$4 sm:$0xf]
        %s2748 = scalar_lea.vmem [#allocation9], 1
        %v2749 = vld [vmem:[%s2748] ss:$4 sm:$0xf]
        %v2750 = vmax.f32 %v2747, %v2749
        %s2751 = scalar_lea.vmem [#allocation9], 2
        %v2752 = vld [vmem:[%s2751] ss:$4 sm:$0xf]
        %v2753 = vmax.f32 %v2750, %v2752
        %s2754 = scalar_lea.vmem [#allocation9], 3
        %v2755 = vld [vmem:[%s2754] ss:$4 sm:$0xf]
        %v2756 = vmax.f32 %v2753, %v2755
        %2757 = vst.msk [vmem:[#allocation6] sm:$0xff] %vm2026, 0.0
        %2758 = vst.msk [vmem:[#allocation6 + $0x8] sm:$0xff] %vm2026, 0.0
        %vm2759 = vcmask 257024
        %2760 = vst.msk [vmem:[#allocation6 + $0x8] sm:$0xf] %vm2759, %v2756
        %v2761 = vld [vmem:[#allocation6] sm:$0xff]
        %v2762 = vld [vmem:[#allocation6 + $0x8] sm:$0xff]
        %v2764 = vrot.slane %v2762, 1
        %2765 = vrot.lane.b32.xlu0 %v2764, 32
        %v2766 = vpop.permute.xlu0 %2765
        %v2768 = vrot.slane %v2762, 2
        %2769 = vrot.lane.b32.xlu0 %v2768, 64
        %v2770 = vpop.permute.xlu0 %2769
        %v2772 = vsel %vm2026, %v2761, %v2766
        %v2773 = vsel %vm2026, %v2762, %v2766
        %v2774 = vsel %vm2046, %v2772, %v2770
        %v2775 = vsel %vm2046, %v2773, %v2770
        %v2776 = vpack.c.bf16 %v2775, %v2774
        %v2777 = vld [vmem:[%s27] sm:$0xf]
        %v2778 = vld [vmem:[%s27 + $0x4] sm:$0xf]
        %v2779 = vld [vmem:[%s27 + $0x8] sm:$0xf]
        %v2780 = vld [vmem:[%s27 + $0xc] sm:$0xf]
        %v2781 = vld [vmem:[%s27 + $0x10] sm:$0xf]
        %v2782 = vld [vmem:[%s27 + $0x14] sm:$0xf]
        %v2783 = vld [vmem:[%s27 + $0x18] sm:$0xf]
        %v2784 = vld [vmem:[%s27 + $0x1c] sm:$0xf]
        %v2785 = vld [vmem:[%s27 + $0x20] sm:$0xf]
        %v2786 = vld [vmem:[%s27 + $0x24] sm:$0xf]
        %v2787 = vld [vmem:[%s27 + $0x28] sm:$0xf]
        %v2788 = vld [vmem:[%s27 + $0x2c] sm:$0xf]
        %v2790 = vshrl.u32 %v2776, 16
        %v2792 = vrot.slane %v2790, 3
        %v2793 = vshll.u32 %v2776, 16
        %v2795 = vrot.slane %v2793, 4
        %v2796 = vor.u32 %v2792, %v2795
        %v2809 = vunpack.c.l.b16 %v2777
        %v2810 = vunpack.c.l.b16 %v2778
        %v2811 = vunpack.c.l.b16 %v2779
        %v2812 = vunpack.c.l.b16 %v2780
        %v2813 = vunpack.c.l.b16 %v2781
        %v2814 = vunpack.c.l.b16 %v2782
        %v2815 = vunpack.c.l.b16 %v2783
        %v2816 = vunpack.c.l.b16 %v2784
        %v2817 = vunpack.c.l.b16 %v2785
        %v2818 = vunpack.c.l.b16 %v2786
        %v2819 = vunpack.c.l.b16 %v2787
        %v2820 = vunpack.c.l.b16 %v2788
        %v2821 = vpack.c.b16 %v2810, %v2809
        %v2822 = vpack.c.b16 %v2812, %v2811
        %v2823 = vpack.c.b16 %v2814, %v2813
        %v2824 = vpack.c.b16 %v2816, %v2815
        %v2825 = vpack.c.b16 %v2818, %v2817
        %v2826 = vpack.c.b16 %v2820, %v2819
        %v2834 = vsel %vm2066, %v2796, 0
        %2836 = vmatprep.subr.bf16.mxu0 0
        %2837 = vmatpush1.bf16.msra.mxu0 %v2821
        %2838 = vmatprep.subr.bf16.mxu0 0
        %2839 = vmatpush1.bf16.msra.mxu0 %v2822
        %2840 = vmatprep.subr.bf16.mxu0 0
        %2841 = vmatpush1.bf16.msra.mxu0 %v2823
        %2842 = vmatprep.subr.bf16.mxu0 0
        %2843 = vmatpush1.bf16.msra.mxu0 %v2824
        %2844 = vmatprep.subr.bf16.mxu0 0
        %2845 = vmatpush1.bf16.msra.mxu0 %v2825
        %2846 = vmatprep.subr.bf16.mxu0 0
        %2847 = vmatpush1.bf16.msra.mxu0 %v2826
        %2848 = vmatprep.subr.bf16.mxu0 0
        %2849 = vmatpush1.bf16.msra.mxu0 0
        %2850 = vmatprep.subr.bf16.mxu0 0
        %2851 = vmatpush1.bf16.msra.mxu0 0
        %2852 = vmatprep.subr.bf16.mxu0 0
        %2853 = vmatpush1.bf16.msra.mxu0 0
        %2854 = vmatprep.subr.bf16.mxu0 0
        %2855 = vmatpush1.bf16.msra.mxu0 0
        %2856 = vmatprep.subr.bf16.mxu0 0
        %2857 = vmatpush1.bf16.msra.mxu0 0
        %2858 = vmatprep.subr.bf16.mxu0 0
        %2859 = vmatpush1.bf16.msra.mxu0 0
        %2860 = vmatprep.subr.bf16.mxu0 0
        %2861 = vmatpush1.bf16.msra.mxu0 0
        %2862 = vmatprep.subr.bf16.mxu0 0
        %2863 = vmatpush1.bf16.msra.mxu0 0
        %2864 = vmatprep.subr.bf16.mxu0 0
        %2865 = vmatpush1.bf16.msra.mxu0 0
        %2866 = vmatprep.subr.bf16.mxu0 0
        %2867 = vmatpush1.bf16.msra.mxu0 0
        %2868 = vmatprep.mubr.bf16.mxu0 0
        %2869 = vmatmul.mubr.bf16.gmra.mrb[0].mxu0 %v2834
        %v2870 = vpop.f32.mrb[0].mxu0
        %v2871 = vadd.f32 0.0, %v2870
        %v2872 = vpop.f32.mrb[0].mxu0
        %v2873 = vpop.f32.mrb[0].mxu0
        %v2874 = vpop.f32.mrb[0].mxu0
        %2875 = vdwg.mxu0
        %v2876 = vld [vmem:[#allocation19] sm:$0x1]
        %v2878 = vlaneseq
        %v2879 = vshrl.u32 %v2878, 7
        %v2880 = vsub.s32 0, %v2879
        %v2881 = vrot.slane %v2876, %v2880
        %v2883 = vmul.f32 %v2871, %v2881
        %v2884 = vld [vmem:[#allocation21] sm:$0x1]
        %v2886 = vlaneseq
        %v2887 = vshrl.u32 %v2886, 7
        %v2888 = vsub.s32 0, %v2887
        %v2889 = vrot.slane %v2884, %v2888
        %v2891 = vadd.f32 %v2883, %v2889
        %v2892 = vmax.f32 %v2891, 0.0
        %2893 = vst.msk [vmem:[#allocation7] sm:$0xff] %vm2046, 0.0
        %2894 = vst.msk [vmem:[#allocation7 + $0x8] sm:$0xff] %vm2046, 0.0
        %vm2895 = vcmask 519168
        %2896 = vst.msk [vmem:[#allocation7 + $0x8] sm:$0xf] %vm2895, %v2892
        %v2897 = vld [vmem:[#allocation7] sm:$0xff]
        %v2898 = vld [vmem:[#allocation7 + $0x8] sm:$0xff]
        %v2900 = vrot.slane %v2898, 1
        %2901 = vrot.lane.b32.xlu0 %v2900, 64
        %v2902 = vpop.permute.xlu0 %2901
        %v2904 = vrot.slane %v2898, 2
        %v2906 = vsel %vm2046, %v2897, %v2902
        %v2907 = vsel %vm2046, %v2898, %v2902
        %v2908 = vpack.c.bf16 %v2907, %v2906
        %v2909 = vpack.c.bf16 %v2904, %v2904
        %v2910 = vld [vmem:[%s33] sm:$0xf]
        %v2911 = vld [vmem:[%s33 + $0x4] sm:$0xf]
        %v2912 = vld [vmem:[%s33 + $0x8] sm:$0xf]
        %v2913 = vld [vmem:[%s33 + $0xc] sm:$0xf]
        %v2914 = vld [vmem:[%s33 + $0x10] sm:$0xf]
        %v2915 = vld [vmem:[%s33 + $0x14] sm:$0xf]
        %v2916 = vld [vmem:[%s33 + $0x18] sm:$0xf]
        %v2917 = vld [vmem:[%s33 + $0x1c] sm:$0xf]
        %v2918 = vld [vmem:[%s33 + $0x20] sm:$0xf]
        %v2919 = vld [vmem:[%s33 + $0x24] sm:$0xf]
        %v2920 = vld [vmem:[%s33 + $0x28] sm:$0xf]
        %v2921 = vld [vmem:[%s33 + $0x2c] sm:$0xf]
        %v2922 = vld [vmem:[%s33 + $0x30] sm:$0xf]
        %v2923 = vld [vmem:[%s33 + $0x34] sm:$0xf]
        %v2924 = vld [vmem:[%s33 + $0x38] sm:$0xf]
        %v2925 = vld [vmem:[%s33 + $0x3c] sm:$0xf]
        %v2926 = vld [vmem:[%s33 + $0x40] sm:$0xf]
        %v2927 = vld [vmem:[%s33 + $0x44] sm:$0xf]
        %v2928 = vld [vmem:[%s33 + $0x48] sm:$0xf]
        %v2929 = vld [vmem:[%s33 + $0x4c] sm:$0xf]
        %v2930 = vld [vmem:[%s33 + $0x50] sm:$0xf]
        %v2931 = vld [vmem:[%s33 + $0x54] sm:$0xf]
        %v2932 = vld [vmem:[%s33 + $0x58] sm:$0xf]
        %v2933 = vld [vmem:[%s33 + $0x5c] sm:$0xf]
        %v2935 = vshrl.u32 %v2908, 16
        %v2937 = vrot.slane %v2935, 3
        %v2938 = vshll.u32 %v2908, 16
        %v2940 = vrot.slane %v2938, 4
        %v2941 = vor.u32 %v2937, %v2940
        %v2943 = vshrl.u32 %v2909, 16
        %v2945 = vrot.slane %v2943, 3
        %v2946 = vshll.u32 %v2909, 16
        %v2948 = vrot.slane %v2946, 4
        %v2949 = vor.u32 %v2945, %v2948
        %v2975 = vunpack.c.l.b16 %v2910
        %v2976 = vunpack.c.l.b16 %v2911
        %v2977 = vunpack.c.l.b16 %v2912
        %v2978 = vunpack.c.l.b16 %v2913
        %v2979 = vunpack.c.l.b16 %v2914
        %v2980 = vunpack.c.l.b16 %v2915
        %v2981 = vunpack.c.l.b16 %v2916
        %v2982 = vunpack.c.l.b16 %v2917
        %v2983 = vunpack.c.l.b16 %v2918
        %v2984 = vunpack.c.l.b16 %v2919
        %v2985 = vunpack.c.l.b16 %v2920
        %v2986 = vunpack.c.l.b16 %v2921
        %v2987 = vunpack.c.l.b16 %v2922
        %v2988 = vunpack.c.l.b16 %v2923
        %v2989 = vunpack.c.l.b16 %v2924
        %v2990 = vunpack.c.l.b16 %v2925
        %v2991 = vunpack.c.l.b16 %v2926
        %v2992 = vunpack.c.l.b16 %v2927
        %v2993 = vunpack.c.l.b16 %v2928
        %v2994 = vunpack.c.l.b16 %v2929
        %v2995 = vunpack.c.l.b16 %v2930
        %v2996 = vunpack.c.l.b16 %v2931
        %v2997 = vunpack.c.l.b16 %v2932
        %v2998 = vunpack.c.l.b16 %v2933
        %v2999 = vpack.c.b16 %v2976, %v2975
        %v3000 = vpack.c.b16 %v2978, %v2977
        %v3001 = vpack.c.b16 %v2980, %v2979
        %v3002 = vpack.c.b16 %v2982, %v2981
        %v3003 = vpack.c.b16 %v2984, %v2983
        %v3004 = vpack.c.b16 %v2986, %v2985
        %v3005 = vpack.c.b16 %v2988, %v2987
        %v3006 = vpack.c.b16 %v2990, %v2989
        %v3007 = vpack.c.b16 %v2992, %v2991
        %v3008 = vpack.c.b16 %v2994, %v2993
        %v3009 = vpack.c.b16 %v2996, %v2995
        %v3010 = vpack.c.b16 %v2998, %v2997
        %v3024 = vsel %vm2046, %v2949, 0
        %3026 = vmatprep.subr.bf16.mxu0 0
        %3027 = vmatpush1.bf16.msra.mxu0 %v2999
        %3028 = vmatprep.subr.bf16.mxu0 0
        %3029 = vmatpush1.bf16.msra.mxu0 %v3000
        %3030 = vmatprep.subr.bf16.mxu0 0
        %3031 = vmatpush1.bf16.msra.mxu0 %v3001
        %3032 = vmatprep.subr.bf16.mxu0 0
        %3033 = vmatpush1.bf16.msra.mxu0 %v3002
        %3034 = vmatprep.subr.bf16.mxu0 0
        %3035 = vmatpush1.bf16.msra.mxu0 %v3003
        %3036 = vmatprep.subr.bf16.mxu0 0
        %3037 = vmatpush1.bf16.msra.mxu0 %v3004
        %3038 = vmatprep.subr.bf16.mxu0 0
        %3039 = vmatpush1.bf16.msra.mxu0 %v3005
        %3040 = vmatprep.subr.bf16.mxu0 0
        %3041 = vmatpush1.bf16.msra.mxu0 %v3006
        %3042 = vmatprep.subr.bf16.mxu0 0
        %3043 = vmatpush1.bf16.msra.mxu0 %v3007
        %3044 = vmatprep.subr.bf16.mxu0 0
        %3045 = vmatpush1.bf16.msra.mxu0 %v3008
        %3046 = vmatprep.subr.bf16.mxu0 0
        %3047 = vmatpush1.bf16.msra.mxu0 %v3009
        %3048 = vmatprep.subr.bf16.mxu0 0
        %3049 = vmatpush1.bf16.msra.mxu0 %v3010
        %3050 = vmatprep.subr.bf16.mxu0 0
        %3051 = vmatpush1.bf16.msra.mxu0 0
        %3052 = vmatprep.subr.bf16.mxu0 0
        %3053 = vmatpush1.bf16.msra.mxu0 0
        %3054 = vmatprep.subr.bf16.mxu0 0
        %3055 = vmatpush1.bf16.msra.mxu0 0
        %3056 = vmatprep.subr.bf16.mxu0 0
        %3057 = vmatpush1.bf16.msra.mxu0 0
        %3058 = vmatprep.mubr.bf16.mxu0 %v3024
        %3059 = vmatmul.mubr.bf16.gmra.mrb[0].mxu0 %v2941
        %v3060 = vpop.f32.mrb[0].mxu0
        %v3061 = vadd.f32 0.0, %v3060
        %v3062 = vpop.f32.mrb[0].mxu0
        %v3063 = vpop.f32.mrb[0].mxu0
        %v3064 = vpop.f32.mrb[0].mxu0
        %3065 = vdwg.mxu0
        %v3066 = vld [vmem:[#allocation22] sm:$0x1]
        %v3068 = vlaneseq
        %v3069 = vshrl.u32 %v3068, 7
        %v3070 = vsub.s32 0, %v3069
        %v3071 = vrot.slane %v3066, %v3070
        %v3073 = vmul.f32 %v3061, %v3071
        %v3074 = vld [vmem:[%s37] sm:$0x1]
        %v3076 = vlaneseq
        %v3077 = vshrl.u32 %v3076, 7
        %v3078 = vsub.s32 0, %v3077
        %v3079 = vrot.slane %v3074, %v3078
        %v3081 = vadd.f32 %v3073, %v3079
        %v3082 = vmax.f32 %v3081, 0.0
        %3083 = vst.msk [vmem:[#allocation10] sm:$0xf] %vm2895, %v3082
        %v3084 = vld [vmem:[#allocation8] sm:$0xff]
        %v3085 = vld [vmem:[#allocation8 + $0x8] sm:$0xff]
        %v3086 = vld [vmem:[#allocation8 + $0x10] sm:$0xff]
        %v3087 = vld [vmem:[#allocation8 + $0x18] sm:$0xff]
        %v3088 = vld [vmem:[#allocation8 + $0x20] sm:$0xff]
        %v3089 = vld [vmem:[#allocation8 + $0x28] sm:$0xff]
        %v3090 = vld [vmem:[#allocation8 + $0x30] sm:$0xff]
        %v3091 = vld [vmem:[#allocation8 + $0x38] sm:$0xff]
        %v3092 = vld [vmem:[#allocation9] sm:$0xff]
        %v3093 = vld [vmem:[#allocation9 + $0x8] sm:$0xff]
        %v3094 = vld [vmem:[#allocation10] sm:$0xf]
        %v3095 = vld [vmem:[%s39] sm:$0xff]
        %v3096 = vld [vmem:[%s39 + $0x8] sm:$0xff]
        %v3097 = vld [vmem:[%s39 + $0x10] sm:$0xff]
        %v3098 = vld [vmem:[%s39 + $0x18] sm:$0xff]
        %v3099 = vld [vmem:[%s39 + $0x20] sm:$0xff]
        %v3100 = vld [vmem:[%s39 + $0x28] sm:$0xff]
        %v3101 = vld [vmem:[%s41] sm:$0xff]
        %v3102 = vld [vmem:[%s41 + $0x8] sm:$0xff]
        %v3103 = vld [vmem:[%s41 + $0x10] sm:$0xff]
        %v3104 = vld [vmem:[%s41 + $0x18] sm:$0xff]
        %v3105 = vld [vmem:[%s41 + $0x20] sm:$0xff]
        %v3106 = vld [vmem:[%s41 + $0x28] sm:$0xff]
        %v3107 = vld [vmem:[%s41 + $0x30] sm:$0xff]
        %v3108 = vld [vmem:[%s41 + $0x38] sm:$0xff]
        %v3109 = vld [vmem:[%s41 + $0x40] sm:$0xff]
        %v3110 = vld [vmem:[%s41 + $0x48] sm:$0xff]
        %v3111 = vld [vmem:[%s41 + $0x50] sm:$0xff]
        %v3112 = vld [vmem:[%s41 + $0x58] sm:$0xff]
        %v3113 = vld [vmem:[%s43] sm:$0xff]
        %v3114 = vld [vmem:[%s43 + $0x8] sm:$0xff]
        %v3115 = vld [vmem:[%s43 + $0x10] sm:$0xff]
        %v3116 = vld [vmem:[%s43 + $0x18] sm:$0xff]
        %v3117 = vld [vmem:[%s43 + $0x20] sm:$0xff]
        %v3118 = vld [vmem:[%s43 + $0x28] sm:$0xff]
        %v3119 = vld [vmem:[%s43 + $0x30] sm:$0xff]
        %v3120 = vld [vmem:[%s43 + $0x38] sm:$0xff]
        %v3121 = vld [vmem:[%s43 + $0x40] sm:$0xff]
        %v3122 = vld [vmem:[%s43 + $0x48] sm:$0xff]
        %v3123 = vld [vmem:[%s43 + $0x50] sm:$0xff]
        %v3124 = vld [vmem:[%s43 + $0x58] sm:$0xff]
        %v3125 = vld [vmem:[%s43 + $0x60] sm:$0xff]
        %v3126 = vld [vmem:[%s43 + $0x68] sm:$0xff]
        %v3127 = vld [vmem:[%s43 + $0x70] sm:$0xff]
        %v3128 = vld [vmem:[%s43 + $0x78] sm:$0xff]
        %v3129 = vld [vmem:[%s43 + $0x80] sm:$0xff]
        %v3130 = vld [vmem:[%s43 + $0x88] sm:$0xff]
        %v3131 = vld [vmem:[%s43 + $0x90] sm:$0xff]
        %v3132 = vld [vmem:[%s43 + $0x98] sm:$0xff]
        %v3133 = vld [vmem:[%s43 + $0xa0] sm:$0xff]
        %v3134 = vld [vmem:[%s43 + $0xa8] sm:$0xff]
        %v3135 = vld [vmem:[%s43 + $0xb0] sm:$0xff]
        %v3136 = vld [vmem:[%s43 + $0xb8] sm:$0xff]
        %v3137 = vld [vmem:[#allocation24] sm:$0xf]
        %v3138 = vld [vmem:[#allocation24 + $0x4] sm:$0xf]
        %v3139 = vld [vmem:[#allocation25] sm:$0x1]
        %v3140 = vld [vmem:[#allocation27] sm:$0x1]
        %v3141 = vld [vmem:[#allocation28] sm:$0xf]
        %v3142 = vld [vmem:[#allocation28 + $0x4] sm:$0xf]
        %v3143 = vld [vmem:[#allocation28 + $0x8] sm:$0xf]
        %v3144 = vld [vmem:[#allocation28 + $0xc] sm:$0xf]
        %v3145 = vld [vmem:[#allocation30] sm:$0x1]
        %v3146 = vld [vmem:[#allocation31] sm:$0x1]
        %v3147 = vld [vmem:[#allocation33] sm:$0xf]
        %v3148 = vld [vmem:[#allocation33 + $0x4] sm:$0xf]
        %v3149 = vld [vmem:[#allocation33 + $0x8] sm:$0xf]
        %v3150 = vld [vmem:[#allocation33 + $0xc] sm:$0xf]
        %v3151 = vld [vmem:[#allocation33 + $0x10] sm:$0xf]
        %v3152 = vld [vmem:[#allocation33 + $0x14] sm:$0xf]
        %v3153 = vld [vmem:[#allocation33 + $0x18] sm:$0xf]
        %v3154 = vld [vmem:[#allocation33 + $0x1c] sm:$0xf]
        %v3155 = vld [vmem:[#allocation34] sm:$0x1]
        %v3156 = vld [vmem:[#allocation36] sm:$0x1]
        %v3157 = vsel %vm1721, %v3084, 0.0
        %v3158 = vsel %vm1721, %v3085, 0.0
        %v3159 = vadd.f32 %v3157, %v3158
        %v3160 = vsel %vm1721, %v3086, 0.0
        %v3161 = vadd.f32 %v3159, %v3160
        %v3162 = vsel %vm1721, %v3087, 0.0
        %v3163 = vadd.f32 %v3161, %v3162
        %v3164 = vsel %vm1721, %v3088, 0.0
        %v3165 = vadd.f32 %v3163, %v3164
        %v3166 = vsel %vm1721, %v3089, 0.0
        %v3167 = vadd.f32 %v3165, %v3166
        %v3168 = vsel %vm1721, %v3090, 0.0
        %v3169 = vadd.f32 %v3167, %v3168
        %v3170 = vsel %vm1721, %v3091, 0.0
        %v3171 = vadd.f32 %v3169, %v3170
        %v3172 = vrot.slane %v3171, 4
        %v3173 = vadd.f32 %v3171, %v3172
        %v3174 = vrot.slane %v3173, 2
        %v3175 = vadd.f32 %v3173, %v3174
        %v3176 = vrot.slane %v3175, 1
        %v3177 = vadd.f32 %v3175, %v3176
        %v3178 = vrcp.pop 64.0
        %v3179 = vmul.f32 %v3177, %v3178
        %v3181 = vsel %vm1721, %v3179, 0
        %3183 = vmatprep.subr.mxu0 0.0
        %3184 = vmatpush1.msra.mxu0 %v3095
        %3185 = vmatprep.subr.mxu0 0.0
        %3186 = vmatpush1.msra.mxu0 %v3096
        %3187 = vmatprep.subr.mxu0 0.0
        %3188 = vmatpush1.msra.mxu0 0.0
        %3189 = vmatprep.subr.mxu0 0.0
        %3190 = vmatpush1.msra.mxu0 0.0
        %3191 = vmatprep.subr.mxu0 0.0
        %3192 = vmatpush1.msra.mxu0 0.0
        %3193 = vmatprep.subr.mxu0 0.0
        %3194 = vmatpush1.msra.mxu0 0.0
        %3195 = vmatprep.subr.mxu0 0.0
        %3196 = vmatpush1.msra.mxu0 0.0
        %3197 = vmatprep.subr.mxu0 0.0
        %3198 = vmatpush1.msra.mxu0 0.0
        %3199 = vmatprep.subr.mxu0 0.0
        %3200 = vmatpush1.msra.mxu0 0.0
        %3201 = vmatprep.subr.mxu0 0.0
        %3202 = vmatpush1.msra.mxu0 0.0
        %3203 = vmatprep.subr.mxu0 0.0
        %3204 = vmatpush1.msra.mxu0 0.0
        %3205 = vmatprep.subr.mxu0 0.0
        %3206 = vmatpush1.msra.mxu0 0.0
        %3207 = vmatprep.subr.mxu0 0.0
        %3208 = vmatpush1.msra.mxu0 0.0
        %3209 = vmatprep.subr.mxu0 0.0
        %3210 = vmatpush1.msra.mxu0 0.0
        %3211 = vmatprep.subr.mxu0 0.0
        %3212 = vmatpush1.msra.mxu0 0.0
        %3213 = vmatprep.subr.mxu0 0.0
        %3214 = vmatpush1.msra.mxu0 0.0
        %3215 = vmatprep.subr.mxu0 0.0
        %3216 = vmatpush1.msra.mxu0 0.0
        %3217 = vmatprep.subr.mxu0 0.0
        %3218 = vmatpush1.msra.mxu0 0.0
        %3219 = vmatprep.subr.mxu0 0.0
        %3220 = vmatpush1.msra.mxu0 0.0
        %3221 = vmatprep.subr.mxu0 0.0
        %3222 = vmatpush1.msra.mxu0 0.0
        %3223 = vmatprep.subr.mxu0 0.0
        %3224 = vmatpush1.msra.mxu0 0.0
        %3225 = vmatprep.subr.mxu0 0.0
        %3226 = vmatpush1.msra.mxu0 0.0
        %3227 = vmatprep.subr.mxu0 0.0
        %3228 = vmatpush1.msra.mxu0 0.0
        %3229 = vmatprep.subr.mxu0 0.0
        %3230 = vmatpush1.msra.mxu0 0.0
        %3231 = vmatprep.subr.mxu0 0.0
        %3232 = vmatpush1.msra.mxu0 0.0
        %3233 = vmatprep.subr.mxu0 0.0
        %3234 = vmatpush1.msra.mxu0 0.0
        %3235 = vmatprep.subr.mxu0 0.0
        %3236 = vmatpush1.msra.mxu0 0.0
        %3237 = vmatprep.subr.mxu0 0.0
        %3238 = vmatpush1.msra.mxu0 0.0
        %3239 = vmatprep.subr.mxu0 0.0
        %3240 = vmatpush1.msra.mxu0 0.0
        %3241 = vmatprep.subr.mxu0 0.0
        %3242 = vmatpush1.msra.mxu0 0.0
        %3243 = vmatprep.subr.mxu0 0.0
        %3244 = vmatpush1.msra.mxu0 0.0
        %3245 = vmatprep.subr.mxu0 0.0
        %3246 = vmatpush1.msra.mxu0 0.0
        %3247 = vmatprep.mubr.f32.mxu0 0.0
        %3248 = vmatmul.mubr.f32.gmra.mrb[0].mxu0 %v3181
        %v3249 = vpop.f32.mrb[0].mxu0
        %v3250 = vadd.f32 0.0, %v3249
        %v3251 = vpop.f32.mrb[0].mxu0
        %3252 = vdwg.mxu0
        %v3253 = vxor.u32 %v3250, 2147483648
        %v3254 = vmul.f32 %v3253, 1.442695
        %v3255 = vpow.pop %v3254
        %v3256 = vadd.f32 %v3255, 1.0
        %v3257 = vrcp.pop %v3256
        %v3258 = vmul.f32 1.0, %v3257
        %v3259 = vlaneseq
        %v3260 = vshrl.u32 %v3259, 7
        %v3261 = vsub.s32 0, %v3260
        %v3262 = vrot.slane %v3258, %v3261
        %v3263 = vmul.f32 %v3084, %v3262
        %v3264 = vmul.f32 %v3085, %v3262
        %v3265 = vmul.f32 %v3086, %v3262
        %v3266 = vmul.f32 %v3087, %v3262
        %v3267 = vmul.f32 %v3088, %v3262
        %v3268 = vmul.f32 %v3089, %v3262
        %v3269 = vmul.f32 %v3090, %v3262
        %v3270 = vmul.f32 %v3091, %v3262
        %v3271 = vadd.f32 %v3263, %v3084
        %v3272 = vadd.f32 %v3264, %v3085
        %v3273 = vadd.f32 %v3265, %v3086
        %v3274 = vadd.f32 %v3266, %v3087
        %v3275 = vadd.f32 %v3267, %v3088
        %v3276 = vadd.f32 %v3268, %v3089
        %v3277 = vadd.f32 %v3269, %v3090
        %v3278 = vadd.f32 %v3270, %v3091
        %v3279 = vpack.c.bf16 %v3272, %v3271
        %v3280 = vpack.c.bf16 %v3274, %v3273
        %v3281 = vpack.c.bf16 %v3276, %v3275
        %v3282 = vpack.c.bf16 %v3278, %v3277
        %v3285 = vunpack.c.l.b16 %v3137
        %v3286 = vunpack.c.l.b16 %v3138
        %v3287 = vpack.c.b16 %v3286, %v3285
        %v3290 = vsel %vm1721, %v3279, 0
        %v3293 = vsel %vm1721, %v3280, 0
        %v3296 = vsel %vm1721, %v3281, 0
        %v3299 = vsel %vm1721, %v3282, 0
        %3301 = vmatprep.subr.bf16.mxu0 0
        %3302 = vmatpush1.bf16.msra.mxu0 %v3287
        %3303 = vmatprep.subr.bf16.mxu0 0
        %3304 = vmatpush1.bf16.msra.mxu0 0
        %3305 = vmatprep.subr.bf16.mxu0 0
        %3306 = vmatpush1.bf16.msra.mxu0 0
        %3307 = vmatprep.subr.bf16.mxu0 0
        %3308 = vmatpush1.bf16.msra.mxu0 0
        %3309 = vmatprep.subr.bf16.mxu0 0
        %3310 = vmatpush1.bf16.msra.mxu0 0
        %3311 = vmatprep.subr.bf16.mxu0 0
        %3312 = vmatpush1.bf16.msra.mxu0 0
        %3313 = vmatprep.subr.bf16.mxu0 0
        %3314 = vmatpush1.bf16.msra.mxu0 0
        %3315 = vmatprep.subr.bf16.mxu0 0
        %3316 = vmatpush1.bf16.msra.mxu0 0
        %3317 = vmatprep.subr.bf16.mxu0 0
        %3318 = vmatpush1.bf16.msra.mxu0 0
        %3319 = vmatprep.subr.bf16.mxu0 0
        %3320 = vmatpush1.bf16.msra.mxu0 0
        %3321 = vmatprep.subr.bf16.mxu0 0
        %3322 = vmatpush1.bf16.msra.mxu0 0
        %3323 = vmatprep.subr.bf16.mxu0 0
        %3324 = vmatpush1.bf16.msra.mxu0 0
        %3325 = vmatprep.subr.bf16.mxu0 0
        %3326 = vmatpush1.bf16.msra.mxu0 0
        %3327 = vmatprep.subr.bf16.mxu0 0
        %3328 = vmatpush1.bf16.msra.mxu0 0
        %3329 = vmatprep.subr.bf16.mxu0 0
        %3330 = vmatpush1.bf16.msra.mxu0 0
        %3331 = vmatprep.subr.bf16.mxu0 0
        %3332 = vmatpush1.bf16.msra.mxu0 0
        %3333 = vmatprep.mubr.bf16.mxu0 0
        %3334 = vmatmul.mubr.bf16.gmra.mrb[0].mxu0 %v3290
        %v3335 = vpop.f32.mrb[0].mxu0
        %v3336 = vadd.f32 0.0, %v3335
        %v3337 = vpop.f32.mrb[0].mxu0
        %v3338 = vpop.f32.mrb[0].mxu0
        %v3339 = vadd.f32 0.0, %v3338
        %v3340 = vpop.f32.mrb[0].mxu0
        %3341 = vmatprep.mubr.bf16.mxu0 0
        %3342 = vmatmul.mubr.bf16.gmra.mrb[0].mxu0 %v3293
        %v3343 = vpop.f32.mrb[0].mxu0
        %v3344 = vadd.f32 0.0, %v3343
        %v3345 = vpop.f32.mrb[0].mxu0
        %v3346 = vpop.f32.mrb[0].mxu0
        %v3347 = vadd.f32 0.0, %v3346
        %v3348 = vpop.f32.mrb[0].mxu0
        %3349 = vmatprep.mubr.bf16.mxu0 0
        %3350 = vmatmul.mubr.bf16.gmra.mrb[0].mxu0 %v3296
        %v3351 = vpop.f32.mrb[0].mxu0
        %v3352 = vadd.f32 0.0, %v3351
        %v3353 = vpop.f32.mrb[0].mxu0
        %v3354 = vpop.f32.mrb[0].mxu0
        %v3355 = vadd.f32 0.0, %v3354
        %v3356 = vpop.f32.mrb[0].mxu0
        %3357 = vmatprep.mubr.bf16.mxu0 0
        %3358 = vmatmul.mubr.bf16.gmra.mrb[0].mxu0 %v3299
        %v3359 = vpop.f32.mrb[0].mxu0
        %v3360 = vadd.f32 0.0, %v3359
        %v3361 = vpop.f32.mrb[0].mxu0
        %v3362 = vpop.f32.mrb[0].mxu0
        %v3363 = vadd.f32 0.0, %v3362
        %v3364 = vpop.f32.mrb[0].mxu0
        %3365 = vdwg.mxu0
        %v3367 = vlaneseq
        %v3368 = vshrl.u32 %v3367, 7
        %v3369 = vsub.s32 0, %v3368
        %v3370 = vrot.slane %v3139, %v3369
        %v3372 = vmul.f32 %v3336, %v3370
        %v3373 = vmul.f32 %v3339, %v3370
        %v3374 = vmul.f32 %v3344, %v3370
        %v3375 = vmul.f32 %v3347, %v3370
        %v3376 = vmul.f32 %v3352, %v3370
        %v3377 = vmul.f32 %v3355, %v3370
        %v3378 = vmul.f32 %v3360, %v3370
        %v3379 = vmul.f32 %v3363, %v3370
        %v3381 = vlaneseq
        %v3382 = vshrl.u32 %v3381, 7
        %v3383 = vsub.s32 0, %v3382
        %v3384 = vrot.slane %v3140, %v3383
        %v3386 = vadd.f32 %v3372, %v3384
        %v3387 = vadd.f32 %v3373, %v3384
        %v3388 = vadd.f32 %v3374, %v3384
        %v3389 = vadd.f32 %v3375, %v3384
        %v3390 = vadd.f32 %v3376, %v3384
        %v3391 = vadd.f32 %v3377, %v3384
        %v3392 = vadd.f32 %v3378, %v3384
        %v3393 = vadd.f32 %v3379, %v3384
        %v3394 = vmax.f32 %v3386, 0.0
        %v3395 = vmax.f32 %v3387, 0.0
        %v3396 = vmax.f32 %v3388, 0.0
        %v3397 = vmax.f32 %v3389, 0.0
        %v3398 = vmax.f32 %v3390, 0.0
        %v3399 = vmax.f32 %v3391, 0.0
        %v3400 = vmax.f32 %v3392, 0.0
        %v3401 = vmax.f32 %v3393, 0.0
        %3402 = vst.msk [vmem:[#allocation11] sm:$0xff] %vm2026, %v3394
        %3403 = vst.msk [vmem:[#allocation11 + $0x8] sm:$0xff] %vm2026, %v3395
        %3404 = vst.msk [vmem:[#allocation11 + $0x10] sm:$0xff] %vm2026, %v3396
        %3405 = vst.msk [vmem:[#allocation11 + $0x18] sm:$0xff] %vm2026, %v3397
        %3406 = vst.msk [vmem:[#allocation11 + $0x20] sm:$0xff] %vm2026, %v3398
        %3407 = vst.msk [vmem:[#allocation11 + $0x28] sm:$0xff] %vm2026, %v3399
        %3408 = vst.msk [vmem:[#allocation11 + $0x30] sm:$0xff] %vm2026, %v3400
        %3409 = vst.msk [vmem:[#allocation11 + $0x38] sm:$0xff] %vm2026, %v3401
        %v3410 = vld [vmem:[#allocation11] ss:$4 sm:$0xff]
        %s3411 = scalar_lea.vmem [#allocation11], 32
        %v3412 = vld [vmem:[%s3411] ss:$4 sm:$0xff]
        %s3413 = scalar_lea.vmem [#allocation11], 1
        %v3414 = vld [vmem:[%s3413] ss:$4 sm:$0xff]
        %s3415 = scalar_lea.vmem [#allocation11], 33
        %v3416 = vld [vmem:[%s3415] ss:$4 sm:$0xff]
        %v3417 = vmax.f32 %v3410, %v3414
        %v3418 = vmax.f32 %v3412, %v3416
        %s3419 = scalar_lea.vmem [#allocation11], 2
        %v3420 = vld [vmem:[%s3419] ss:$4 sm:$0xff]
        %s3421 = scalar_lea.vmem [#allocation11], 34
        %v3422 = vld [vmem:[%s3421] ss:$4 sm:$0xff]
        %v3423 = vmax.f32 %v3417, %v3420
        %v3424 = vmax.f32 %v3418, %v3422
        %s3425 = scalar_lea.vmem [#allocation11], 3
        %v3426 = vld [vmem:[%s3425] ss:$4 sm:$0xff]
        %s3427 = scalar_lea.vmem [#allocation11], 35
        %v3428 = vld [vmem:[%s3427] ss:$4 sm:$0xff]
        %v3429 = vmax.f32 %v3423, %v3426
        %v3430 = vmax.f32 %v3424, %v3428
        %v3431 = vadd.f32 %v3092, %v3429
        %v3432 = vadd.f32 %v3093, %v3430
        %v3433 = vsel %vm2026, %v3431, 0.0
        %v3434 = vsel %vm2026, %v3432, 0.0
        %v3435 = vadd.f32 %v3433, %v3434
        %v3436 = vrot.slane %v3435, 4
        %v3437 = vadd.f32 %v3435, %v3436
        %v3438 = vrot.slane %v3437, 2
        %v3439 = vadd.f32 %v3437, %v3438
        %v3440 = vrot.slane %v3439, 1
        %v3441 = vadd.f32 %v3439, %v3440
        %v3442 = vrcp.pop 16.0
        %v3443 = vmul.f32 %v3441, %v3442
        %v3445 = vsel %vm2026, %v3443, 0
        %3447 = vmatprep.subr.mxu0 0.0
        %3448 = vmatpush1.msra.mxu0 %v3101
        %3449 = vmatprep.subr.mxu0 0.0
        %3450 = vmatpush1.msra.mxu0 %v3102
        %3451 = vmatprep.subr.mxu0 0.0
        %3452 = vmatpush1.msra.mxu0 %v3103
        %3453 = vmatprep.subr.mxu0 0.0
        %3454 = vmatpush1.msra.mxu0 %v3104
        %3455 = vmatprep.subr.mxu0 0.0
        %3456 = vmatpush1.msra.mxu0 0.0
        %3457 = vmatprep.subr.mxu0 0.0
        %3458 = vmatpush1.msra.mxu0 0.0
        %3459 = vmatprep.subr.mxu0 0.0
        %3460 = vmatpush1.msra.mxu0 0.0
        %3461 = vmatprep.subr.mxu0 0.0
        %3462 = vmatpush1.msra.mxu0 0.0
        %3463 = vmatprep.subr.mxu0 0.0
        %3464 = vmatpush1.msra.mxu0 0.0
        %3465 = vmatprep.subr.mxu0 0.0
        %3466 = vmatpush1.msra.mxu0 0.0
        %3467 = vmatprep.subr.mxu0 0.0
        %3468 = vmatpush1.msra.mxu0 0.0
        %3469 = vmatprep.subr.mxu0 0.0
        %3470 = vmatpush1.msra.mxu0 0.0
        %3471 = vmatprep.subr.mxu0 0.0
        %3472 = vmatpush1.msra.mxu0 0.0
        %3473 = vmatprep.subr.mxu0 0.0
        %3474 = vmatpush1.msra.mxu0 0.0
        %3475 = vmatprep.subr.mxu0 0.0
        %3476 = vmatpush1.msra.mxu0 0.0
        %3477 = vmatprep.subr.mxu0 0.0
        %3478 = vmatpush1.msra.mxu0 0.0
        %3479 = vmatprep.subr.mxu0 0.0
        %3480 = vmatpush1.msra.mxu0 0.0
        %3481 = vmatprep.subr.mxu0 0.0
        %3482 = vmatpush1.msra.mxu0 0.0
        %3483 = vmatprep.subr.mxu0 0.0
        %3484 = vmatpush1.msra.mxu0 0.0
        %3485 = vmatprep.subr.mxu0 0.0
        %3486 = vmatpush1.msra.mxu0 0.0
        %3487 = vmatprep.subr.mxu0 0.0
        %3488 = vmatpush1.msra.mxu0 0.0
        %3489 = vmatprep.subr.mxu0 0.0
        %3490 = vmatpush1.msra.mxu0 0.0
        %3491 = vmatprep.subr.mxu0 0.0
        %3492 = vmatpush1.msra.mxu0 0.0
        %3493 = vmatprep.subr.mxu0 0.0
        %3494 = vmatpush1.msra.mxu0 0.0
        %3495 = vmatprep.subr.mxu0 0.0
        %3496 = vmatpush1.msra.mxu0 0.0
        %3497 = vmatprep.subr.mxu0 0.0
        %3498 = vmatpush1.msra.mxu0 0.0
        %3499 = vmatprep.subr.mxu0 0.0
        %3500 = vmatpush1.msra.mxu0 0.0
        %3501 = vmatprep.subr.mxu0 0.0
        %3502 = vmatpush1.msra.mxu0 0.0
        %3503 = vmatprep.subr.mxu0 0.0
        %3504 = vmatpush1.msra.mxu0 0.0
        %3505 = vmatprep.subr.mxu0 0.0
        %3506 = vmatpush1.msra.mxu0 0.0
        %3507 = vmatprep.subr.mxu0 0.0
        %3508 = vmatpush1.msra.mxu0 0.0
        %3509 = vmatprep.subr.mxu0 0.0
        %3510 = vmatpush1.msra.mxu0 0.0
        %3511 = vmatprep.mubr.f32.mxu0 0.0
        %3512 = vmatmul.mubr.f32.gmra.mrb[0].mxu0 %v3445
        %v3513 = vpop.f32.mrb[0].mxu0
        %v3514 = vadd.f32 0.0, %v3513
        %v3515 = vpop.f32.mrb[0].mxu0
        %3516 = vdwg.mxu0
        %v3517 = vxor.u32 %v3514, 2147483648
        %v3518 = vmul.f32 %v3517, 1.442695
        %v3519 = vpow.pop %v3518
        %v3520 = vadd.f32 %v3519, 1.0
        %v3521 = vrcp.pop %v3520
        %v3522 = vmul.f32 1.0, %v3521
        %v3523 = vlaneseq
        %v3524 = vshrl.u32 %v3523, 7
        %v3525 = vsub.s32 0, %v3524
        %v3526 = vrot.slane %v3522, %v3525
        %v3527 = vmul.f32 %v3431, %v3526
        %v3528 = vmul.f32 %v3432, %v3526
        %v3529 = vadd.f32 %v3527, %v3431
        %v3530 = vadd.f32 %v3528, %v3432
        %v3531 = vpack.c.bf16 %v3530, %v3529
        %v3536 = vunpack.c.l.b16 %v3141
        %v3537 = vunpack.c.l.b16 %v3142
        %v3538 = vunpack.c.l.b16 %v3143
        %v3539 = vunpack.c.l.b16 %v3144
        %v3540 = vpack.c.b16 %v3537, %v3536
        %v3541 = vpack.c.b16 %v3539, %v3538
        %v3545 = vsel %vm2026, %v3531, 0
        %3547 = vmatprep.subr.bf16.mxu0 0
        %3548 = vmatpush1.bf16.msra.mxu0 %v3540
        %3549 = vmatprep.subr.bf16.mxu0 0
        %3550 = vmatpush1.bf16.msra.mxu0 %v3541
        %3551 = vmatprep.subr.bf16.mxu0 0
        %3552 = vmatpush1.bf16.msra.mxu0 0
        %3553 = vmatprep.subr.bf16.mxu0 0
        %3554 = vmatpush1.bf16.msra.mxu0 0
        %3555 = vmatprep.subr.bf16.mxu0 0
        %3556 = vmatpush1.bf16.msra.mxu0 0
        %3557 = vmatprep.subr.bf16.mxu0 0
        %3558 = vmatpush1.bf16.msra.mxu0 0
        %3559 = vmatprep.subr.bf16.mxu0 0
        %3560 = vmatpush1.bf16.msra.mxu0 0
        %3561 = vmatprep.subr.bf16.mxu0 0
        %3562 = vmatpush1.bf16.msra.mxu0 0
        %3563 = vmatprep.subr.bf16.mxu0 0
        %3564 = vmatpush1.bf16.msra.mxu0 0
        %3565 = vmatprep.subr.bf16.mxu0 0
        %3566 = vmatpush1.bf16.msra.mxu0 0
        %3567 = vmatprep.subr.bf16.mxu0 0
        %3568 = vmatpush1.bf16.msra.mxu0 0
        %3569 = vmatprep.subr.bf16.mxu0 0
        %3570 = vmatpush1.bf16.msra.mxu0 0
        %3571 = vmatprep.subr.bf16.mxu0 0
        %3572 = vmatpush1.bf16.msra.mxu0 0
        %3573 = vmatprep.subr.bf16.mxu0 0
        %3574 = vmatpush1.bf16.msra.mxu0 0
        %3575 = vmatprep.subr.bf16.mxu0 0
        %3576 = vmatpush1.bf16.msra.mxu0 0
        %3577 = vmatprep.subr.bf16.mxu0 0
        %3578 = vmatpush1.bf16.msra.mxu0 0
        %3579 = vmatprep.mubr.bf16.mxu0 0
        %3580 = vmatmul.mubr.bf16.gmra.mrb[0].mxu0 %v3545
        %v3581 = vpop.f32.mrb[0].mxu0
        %v3582 = vadd.f32 0.0, %v3581
        %v3583 = vpop.f32.mrb[0].mxu0
        %v3584 = vpop.f32.mrb[0].mxu0
        %v3585 = vadd.f32 0.0, %v3584
        %v3586 = vpop.f32.mrb[0].mxu0
        %3587 = vdwg.mxu0
        %v3589 = vlaneseq
        %v3590 = vshrl.u32 %v3589, 7
        %v3591 = vsub.s32 0, %v3590
        %v3592 = vrot.slane %v3145, %v3591
        %v3594 = vmul.f32 %v3582, %v3592
        %v3595 = vmul.f32 %v3585, %v3592
        %v3597 = vlaneseq
        %v3598 = vshrl.u32 %v3597, 7
        %v3599 = vsub.s32 0, %v3598
        %v3600 = vrot.slane %v3146, %v3599
        %v3602 = vadd.f32 %v3594, %v3600
        %v3603 = vadd.f32 %v3595, %v3600
        %v3604 = vmax.f32 %v3602, 0.0
        %v3605 = vmax.f32 %v3603, 0.0
        %3606 = vst.msk [vmem:[#allocation12] sm:$0xff] %vm2046, %v3604
        %3607 = vst.msk [vmem:[#allocation12 + $0x8] sm:$0xff] %vm2046, %v3605
        %v3608 = vld [vmem:[#allocation12] ss:$4 sm:$0xf]
        %s3609 = scalar_lea.vmem [#allocation12], 1
        %v3610 = vld [vmem:[%s3609] ss:$4 sm:$0xf]
        %v3611 = vmax.f32 %v3608, %v3610
        %s3612 = scalar_lea.vmem [#allocation12], 2
        %v3613 = vld [vmem:[%s3612] ss:$4 sm:$0xf]
        %v3614 = vmax.f32 %v3611, %v3613
        %s3615 = scalar_lea.vmem [#allocation12], 3
        %v3616 = vld [vmem:[%s3615] ss:$4 sm:$0xf]
        %v3617 = vmax.f32 %v3614, %v3616
        %v3618 = vadd.f32 %v3094, %v3617
        %v3619 = vsel %vm2895, %v3618, 0.0
        %v3620 = vrot.slane %v3619, 4
        %v3621 = vadd.f32 %v3619, %v3620
        %v3622 = vrot.slane %v3621, 2
        %v3623 = vadd.f32 %v3621, %v3622
        %v3624 = vrot.slane %v3623, 1
        %v3625 = vadd.f32 %v3623, %v3624
        %v3626 = vrcp.pop 4.0
        %v3627 = vmul.f32 %v3625, %v3626
        %v3629 = vsel %vm2046, %v3627, 0
        %3631 = vmatprep.subr.mxu0 0.0
        %3632 = vmatpush1.msra.mxu0 %v3113
        %3633 = vmatprep.subr.mxu0 0.0
        %3634 = vmatpush1.msra.mxu0 %v3114
        %3635 = vmatprep.subr.mxu0 0.0
        %3636 = vmatpush1.msra.mxu0 %v3115
        %3637 = vmatprep.subr.mxu0 0.0
        %3638 = vmatpush1.msra.mxu0 %v3116
        %3639 = vmatprep.subr.mxu0 0.0
        %3640 = vmatpush1.msra.mxu0 %v3117
        %3641 = vmatprep.subr.mxu0 0.0
        %3642 = vmatpush1.msra.mxu0 %v3118
        %3643 = vmatprep.subr.mxu0 0.0
        %3644 = vmatpush1.msra.mxu0 %v3119
        %3645 = vmatprep.subr.mxu0 0.0
        %3646 = vmatpush1.msra.mxu0 %v3120
        %3647 = vmatprep.subr.mxu0 0.0
        %3648 = vmatpush1.msra.mxu0 0.0
        %3649 = vmatprep.subr.mxu0 0.0
        %3650 = vmatpush1.msra.mxu0 0.0
        %3651 = vmatprep.subr.mxu0 0.0
        %3652 = vmatpush1.msra.mxu0 0.0
        %3653 = vmatprep.subr.mxu0 0.0
        %3654 = vmatpush1.msra.mxu0 0.0
        %3655 = vmatprep.subr.mxu0 0.0
        %3656 = vmatpush1.msra.mxu0 0.0
        %3657 = vmatprep.subr.mxu0 0.0
        %3658 = vmatpush1.msra.mxu0 0.0
        %3659 = vmatprep.subr.mxu0 0.0
        %3660 = vmatpush1.msra.mxu0 0.0
        %3661 = vmatprep.subr.mxu0 0.0
        %3662 = vmatpush1.msra.mxu0 0.0
        %3663 = vmatprep.subr.mxu0 0.0
        %3664 = vmatpush1.msra.mxu0 0.0
        %3665 = vmatprep.subr.mxu0 0.0
        %3666 = vmatpush1.msra.mxu0 0.0
        %3667 = vmatprep.subr.mxu0 0.0
        %3668 = vmatpush1.msra.mxu0 0.0
        %3669 = vmatprep.subr.mxu0 0.0
        %3670 = vmatpush1.msra.mxu0 0.0
        %3671 = vmatprep.subr.mxu0 0.0
        %3672 = vmatpush1.msra.mxu0 0.0
        %3673 = vmatprep.subr.mxu0 0.0
        %3674 = vmatpush1.msra.mxu0 0.0
        %3675 = vmatprep.subr.mxu0 0.0
        %3676 = vmatpush1.msra.mxu0 0.0
        %3677 = vmatprep.subr.mxu0 0.0
        %3678 = vmatpush1.msra.mxu0 0.0
        %3679 = vmatprep.subr.mxu0 0.0
        %3680 = vmatpush1.msra.mxu0 0.0
        %3681 = vmatprep.subr.mxu0 0.0
        %3682 = vmatpush1.msra.mxu0 0.0
        %3683 = vmatprep.subr.mxu0 0.0
        %3684 = vmatpush1.msra.mxu0 0.0
        %3685 = vmatprep.subr.mxu0 0.0
        %3686 = vmatpush1.msra.mxu0 0.0
        %3687 = vmatprep.subr.mxu0 0.0
        %3688 = vmatpush1.msra.mxu0 0.0
        %3689 = vmatprep.subr.mxu0 0.0
        %3690 = vmatpush1.msra.mxu0 0.0
        %3691 = vmatprep.subr.mxu0 0.0
        %3692 = vmatpush1.msra.mxu0 0.0
        %3693 = vmatprep.subr.mxu0 0.0
        %3694 = vmatpush1.msra.mxu0 0.0
        %3695 = vmatprep.mubr.f32.mxu0 0.0
        %3696 = vmatmul.mubr.f32.gmra.mrb[0].mxu0 %v3629
        %v3697 = vpop.f32.mrb[0].mxu0
        %v3698 = vadd.f32 0.0, %v3697
        %v3699 = vpop.f32.mrb[0].mxu0
        %3700 = vdwg.mxu0
        %v3701 = vxor.u32 %v3698, 2147483648
        %v3702 = vmul.f32 %v3701, 1.442695
        %v3703 = vpow.pop %v3702
        %v3704 = vadd.f32 %v3703, 1.0
        %v3705 = vrcp.pop %v3704
        %v3706 = vmul.f32 1.0, %v3705
        %v3707 = vlaneseq
        %v3708 = vshrl.u32 %v3707, 7
        %v3709 = vsub.s32 0, %v3708
        %v3710 = vrot.slane %v3706, %v3709
        %v3711 = vmul.f32 %v3618, %v3710
        %v3712 = vadd.f32 %v3711, %v3618
        %v3713 = vpack.c.bf16 %v3712, %v3712
        %v3722 = vunpack.c.l.b16 %v3147
        %v3723 = vunpack.c.l.b16 %v3148
        %v3724 = vunpack.c.l.b16 %v3149
        %v3725 = vunpack.c.l.b16 %v3150
        %v3726 = vunpack.c.l.b16 %v3151
        %v3727 = vunpack.c.l.b16 %v3152
        %v3728 = vunpack.c.l.b16 %v3153
        %v3729 = vunpack.c.l.b16 %v3154
        %v3730 = vpack.c.b16 %v3723, %v3722
        %v3731 = vpack.c.b16 %v3725, %v3724
        %v3732 = vpack.c.b16 %v3727, %v3726
        %v3733 = vpack.c.b16 %v3729, %v3728
        %v3739 = vsel %vm2046, %v3713, 0
        %3741 = vmatprep.subr.bf16.mxu0 0
        %3742 = vmatpush1.bf16.msra.mxu0 %v3730
        %3743 = vmatprep.subr.bf16.mxu0 0
        %3744 = vmatpush1.bf16.msra.mxu0 %v3731
        %3745 = vmatprep.subr.bf16.mxu0 0
        %3746 = vmatpush1.bf16.msra.mxu0 %v3732
        %3747 = vmatprep.subr.bf16.mxu0 0
        %3748 = vmatpush1.bf16.msra.mxu0 %v3733
        %3749 = vmatprep.subr.bf16.mxu0 0
        %3750 = vmatpush1.bf16.msra.mxu0 0
        %3751 = vmatprep.subr.bf16.mxu0 0
        %3752 = vmatpush1.bf16.msra.mxu0 0
        %3753 = vmatprep.subr.bf16.mxu0 0
        %3754 = vmatpush1.bf16.msra.mxu0 0
        %3755 = vmatprep.subr.bf16.mxu0 0
        %3756 = vmatpush1.bf16.msra.mxu0 0
        %3757 = vmatprep.subr.bf16.mxu0 0
        %3758 = vmatpush1.bf16.msra.mxu0 0
        %3759 = vmatprep.subr.bf16.mxu0 0
        %3760 = vmatpush1.bf16.msra.mxu0 0
        %3761 = vmatprep.subr.bf16.mxu0 0
        %3762 = vmatpush1.bf16.msra.mxu0 0
        %3763 = vmatprep.subr.bf16.mxu0 0
        %3764 = vmatpush1.bf16.msra.mxu0 0
        %3765 = vmatprep.subr.bf16.mxu0 0
        %3766 = vmatpush1.bf16.msra.mxu0 0
        %3767 = vmatprep.subr.bf16.mxu0 0
        %3768 = vmatpush1.bf16.msra.mxu0 0
        %3769 = vmatprep.subr.bf16.mxu0 0
        %3770 = vmatpush1.bf16.msra.mxu0 0
        %3771 = vmatprep.subr.bf16.mxu0 0
        %3772 = vmatpush1.bf16.msra.mxu0 0
        %3773 = vmatprep.mubr.bf16.mxu0 0
        %3774 = vmatmul.mubr.bf16.gmra.mrb[0].mxu0 %v3739
        %v3775 = vpop.f32.mrb[0].mxu0
        %v3776 = vadd.f32 0.0, %v3775
        %v3777 = vpop.f32.mrb[0].mxu0
        %v3778 = vpop.f32.mrb[0].mxu0
        %v3779 = vpop.f32.mrb[0].mxu0
        %3780 = vdwg.mxu0
        %v3782 = vlaneseq
        %v3783 = vshrl.u32 %v3782, 7
        %v3784 = vsub.s32 0, %v3783
        %v3785 = vrot.slane %v3155, %v3784
        %v3787 = vmul.f32 %v3776, %v3785
        %v3789 = vlaneseq
        %v3790 = vshrl.u32 %v3789, 7
        %v3791 = vsub.s32 0, %v3790
        %v3792 = vrot.slane %v3156, %v3791
        %v3794 = vadd.f32 %v3787, %v3792
        %v3795 = vmax.f32 %v3794, 0.0
        %3796 = vst [vmem:[#allocation13] sm:$0xf] %v3795
        %v3797 = vld [vmem:[#allocation13] ss:$2 sm:$0x3]
        %s3798 = scalar_lea.vmem [#allocation13], 1
        %v3799 = vld [vmem:[%s3798] ss:$2 sm:$0x3]
        %v3800 = vmax.f32 %v3797, %v3799
        %v3801 = vsel %vm1644, %v3800, 0.0
        %v3802 = vrot.slane %v3801, 4
        %v3803 = vadd.f32 %v3801, %v3802
        %v3804 = vrot.slane %v3803, 2
        %v3805 = vadd.f32 %v3803, %v3804
        %v3806 = vrot.slane %v3805, 1
        %v3807 = vadd.f32 %v3805, %v3806
        %v3808 = vrcp.pop 2.0
        %v3809 = vmul.f32 %v3807, %v3808
        %v3810 = vpack.c.bf16 %v3809, %v3809
        %v3811 = vld [vmem:[%s63] sm:$0xf]
        %v3812 = vld [vmem:[%s63 + $0x4] sm:$0xf]
        %v3813 = vld [vmem:[%s63 + $0x8] sm:$0xf]
        %v3814 = vld [vmem:[%s63 + $0xc] sm:$0xf]
        %v3815 = vld [vmem:[%s63 + $0x10] sm:$0xf]
        %v3816 = vld [vmem:[%s63 + $0x14] sm:$0xf]
        %v3817 = vld [vmem:[%s63 + $0x18] sm:$0xf]
        %v3818 = vld [vmem:[%s63 + $0x1c] sm:$0xf]
        %v3819 = vld [vmem:[%s63 + $0x20] sm:$0xf]
        %v3820 = vld [vmem:[%s63 + $0x24] sm:$0xf]
        %v3821 = vld [vmem:[%s63 + $0x28] sm:$0xf]
        %v3822 = vld [vmem:[%s63 + $0x2c] sm:$0xf]
        %v3823 = vld [vmem:[%s63 + $0x30] sm:$0xf]
        %v3824 = vld [vmem:[%s63 + $0x34] sm:$0xf]
        %v3825 = vld [vmem:[%s63 + $0x38] sm:$0xf]
        %v3826 = vld [vmem:[%s63 + $0x3c] sm:$0xf]
        %v3827 = vld [vmem:[#allocation37] sm:$0x1]
        %v3844 = vunpack.c.l.b16 %v3811
        %v3845 = vunpack.c.l.b16 %v3812
        %v3846 = vunpack.c.l.b16 %v3813
        %v3847 = vunpack.c.l.b16 %v3814
        %v3848 = vunpack.c.l.b16 %v3815
        %v3849 = vunpack.c.l.b16 %v3816
        %v3850 = vunpack.c.l.b16 %v3817
        %v3851 = vunpack.c.l.b16 %v3818
        %v3852 = vunpack.c.l.b16 %v3819
        %v3853 = vunpack.c.l.b16 %v3820
        %v3854 = vunpack.c.l.b16 %v3821
        %v3855 = vunpack.c.l.b16 %v3822
        %v3856 = vunpack.c.l.b16 %v3823
        %v3857 = vunpack.c.l.b16 %v3824
        %v3858 = vunpack.c.l.b16 %v3825
        %v3859 = vunpack.c.l.b16 %v3826
        %v3860 = vpack.c.b16 %v3845, %v3844
        %v3861 = vpack.c.b16 %v3847, %v3846
        %v3862 = vpack.c.b16 %v3849, %v3848
        %v3863 = vpack.c.b16 %v3851, %v3850
        %v3864 = vpack.c.b16 %v3853, %v3852
        %v3865 = vpack.c.b16 %v3855, %v3854
        %v3866 = vpack.c.b16 %v3857, %v3856
        %v3867 = vpack.c.b16 %v3859, %v3858
        %3876 = vmatprep.subr.bf16.mxu0 0
        %3877 = vmatpush1.bf16.msra.mxu0 %v3860
        %3878 = vmatprep.subr.bf16.mxu0 0
        %3879 = vmatpush1.bf16.msra.mxu0 %v3861
        %3880 = vmatprep.subr.bf16.mxu0 0
        %3881 = vmatpush1.bf16.msra.mxu0 %v3862
        %3882 = vmatprep.subr.bf16.mxu0 0
        %3883 = vmatpush1.bf16.msra.mxu0 %v3863
        %3884 = vmatprep.subr.bf16.mxu0 0
        %3885 = vmatpush1.bf16.msra.mxu0 %v3864
        %3886 = vmatprep.subr.bf16.mxu0 0
        %3887 = vmatpush1.bf16.msra.mxu0 %v3865
        %3888 = vmatprep.subr.bf16.mxu0 0
        %3889 = vmatpush1.bf16.msra.mxu0 %v3866
        %3890 = vmatprep.subr.bf16.mxu0 0
        %3891 = vmatpush1.bf16.msra.mxu0 %v3867
        %3892 = vmatprep.subr.bf16.mxu0 0
        %3893 = vmatpush1.bf16.msra.mxu0 0
        %3894 = vmatprep.subr.bf16.mxu0 0
        %3895 = vmatpush1.bf16.msra.mxu0 0
        %3896 = vmatprep.subr.bf16.mxu0 0
        %3897 = vmatpush1.bf16.msra.mxu0 0
        %3898 = vmatprep.subr.bf16.mxu0 0
        %3899 = vmatpush1.bf16.msra.mxu0 0
        %3900 = vmatprep.subr.bf16.mxu0 0
        %3901 = vmatpush1.bf16.msra.mxu0 0
        %3902 = vmatprep.subr.bf16.mxu0 0
        %3903 = vmatpush1.bf16.msra.mxu0 0
        %3904 = vmatprep.subr.bf16.mxu0 0
        %3905 = vmatpush1.bf16.msra.mxu0 0
        %3906 = vmatprep.subr.bf16.mxu0 0
        %3907 = vmatpush1.bf16.msra.mxu0 0
        %3908 = vmatprep.mubr.bf16.mxu0 0
        %3909 = vmatmul.mubr.bf16.gmra.mrb[0].mxu0 %v3810
        %v3910 = vpop.f32.mrb[0].mxu0
        %v3911 = vadd.f32 %v3827, %v3910
        %v3912 = vpop.f32.mrb[0].mxu0
        %v3913 = vpop.f32.mrb[0].mxu0
        %v3914 = vpop.f32.mrb[0].mxu0
        %3915 = vdwg.mxu0
        %3916 = vmatprep.subr.mxu0 0.0
        %3917 = vmatpush1.msra.mxu0 %v3097
        %3918 = vmatprep.subr.mxu0 0.0
        %3919 = vmatpush1.msra.mxu0 %v3098
        %3920 = vmatprep.subr.mxu0 0.0
        %3921 = vmatpush1.msra.mxu0 0.0
        %3922 = vmatprep.subr.mxu0 0.0
        %3923 = vmatpush1.msra.mxu0 0.0
        %3924 = vmatprep.subr.mxu0 0.0
        %3925 = vmatpush1.msra.mxu0 0.0
        %3926 = vmatprep.subr.mxu0 0.0
        %3927 = vmatpush1.msra.mxu0 0.0
        %3928 = vmatprep.subr.mxu0 0.0
        %3929 = vmatpush1.msra.mxu0 0.0
        %3930 = vmatprep.subr.mxu0 0.0
        %3931 = vmatpush1.msra.mxu0 0.0
        %3932 = vmatprep.subr.mxu0 0.0
        %3933 = vmatpush1.msra.mxu0 0.0
        %3934 = vmatprep.subr.mxu0 0.0
        %3935 = vmatpush1.msra.mxu0 0.0
        %3936 = vmatprep.subr.mxu0 0.0
        %3937 = vmatpush1.msra.mxu0 0.0
        %3938 = vmatprep.subr.mxu0 0.0
        %3939 = vmatpush1.msra.mxu0 0.0
        %3940 = vmatprep.subr.mxu0 0.0
        %3941 = vmatpush1.msra.mxu0 0.0
        %3942 = vmatprep.subr.mxu0 0.0
        %3943 = vmatpush1.msra.mxu0 0.0
        %3944 = vmatprep.subr.mxu0 0.0
        %3945 = vmatpush1.msra.mxu0 0.0
        %3946 = vmatprep.subr.mxu0 0.0
        %3947 = vmatpush1.msra.mxu0 0.0
        %3948 = vmatprep.subr.mxu0 0.0
        %3949 = vmatpush1.msra.mxu0 0.0
        %3950 = vmatprep.subr.mxu0 0.0
        %3951 = vmatpush1.msra.mxu0 0.0
        %3952 = vmatprep.subr.mxu0 0.0
        %3953 = vmatpush1.msra.mxu0 0.0
        %3954 = vmatprep.subr.mxu0 0.0
        %3955 = vmatpush1.msra.mxu0 0.0
        %3956 = vmatprep.subr.mxu0 0.0
        %3957 = vmatpush1.msra.mxu0 0.0
        %3958 = vmatprep.subr.mxu0 0.0
        %3959 = vmatpush1.msra.mxu0 0.0
        %3960 = vmatprep.subr.mxu0 0.0
        %3961 = vmatpush1.msra.mxu0 0.0
        %3962 = vmatprep.subr.mxu0 0.0
        %3963 = vmatpush1.msra.mxu0 0.0
        %3964 = vmatprep.subr.mxu0 0.0
        %3965 = vmatpush1.msra.mxu0 0.0
        %3966 = vmatprep.subr.mxu0 0.0
        %3967 = vmatpush1.msra.mxu0 0.0
        %3968 = vmatprep.subr.mxu0 0.0
        %3969 = vmatpush1.msra.mxu0 0.0
        %3970 = vmatprep.subr.mxu0 0.0
        %3971 = vmatpush1.msra.mxu0 0.0
        %3972 = vmatprep.subr.mxu0 0.0
        %3973 = vmatpush1.msra.mxu0 0.0
        %3974 = vmatprep.subr.mxu0 0.0
        %3975 = vmatpush1.msra.mxu0 0.0
        %3976 = vmatprep.subr.mxu0 0.0
        %3977 = vmatpush1.msra.mxu0 0.0
        %3978 = vmatprep.subr.mxu0 0.0
        %3979 = vmatpush1.msra.mxu0 0.0
        %3980 = vmatprep.mubr.f32.mxu0 0.0
        %3981 = vmatmul.mubr.f32.gmra.mrb[0].mxu0 %v3181
        %v3982 = vpop.f32.mrb[0].mxu0
        %v3983 = vadd.f32 0.0, %v3982
        %v3984 = vpop.f32.mrb[0].mxu0
        %3985 = vdwg.mxu0
        %v3986 = vxor.u32 %v3983, 2147483648
        %v3987 = vmul.f32 %v3986, 1.442695
        %v3988 = vpow.pop %v3987
        %v3989 = vadd.f32 %v3988, 1.0
        %v3990 = vrcp.pop %v3989
        %v3991 = vmul.f32 1.0, %v3990
        %v3992 = vlaneseq
        %v3993 = vshrl.u32 %v3992, 7
        %v3994 = vsub.s32 0, %v3993
        %v3995 = vrot.slane %v3991, %v3994
        %v3996 = vmul.f32 %v3084, %v3995
        %v3997 = vmul.f32 %v3085, %v3995
        %v3998 = vmul.f32 %v3086, %v3995
        %v3999 = vmul.f32 %v3087, %v3995
        %v4000 = vmul.f32 %v3088, %v3995
        %v4001 = vmul.f32 %v3089, %v3995
        %v4002 = vmul.f32 %v3090, %v3995
        %v4003 = vmul.f32 %v3091, %v3995
        %v4004 = vadd.f32 %v3996, %v3084
        %v4005 = vadd.f32 %v3997, %v3085
        %v4006 = vadd.f32 %v3998, %v3086
        %v4007 = vadd.f32 %v3999, %v3087
        %v4008 = vadd.f32 %v4000, %v3088
        %v4009 = vadd.f32 %v4001, %v3089
        %v4010 = vadd.f32 %v4002, %v3090
        %v4011 = vadd.f32 %v4003, %v3091
        %v4012 = vpack.c.bf16 %v4005, %v4004
        %v4013 = vpack.c.bf16 %v4007, %v4006
        %v4014 = vpack.c.bf16 %v4009, %v4008
        %v4015 = vpack.c.bf16 %v4011, %v4010
        %v4017 = vsel %vm1721, %v4012, 0
        %v4020 = vsel %vm1721, %v4013, 0
        %v4023 = vsel %vm1721, %v4014, 0
        %v4026 = vsel %vm1721, %v4015, 0
        %4028 = vmatprep.subr.bf16.mxu0 0
        %4029 = vmatpush1.bf16.msra.mxu0 %v3287
        %4030 = vmatprep.subr.bf16.mxu0 0
        %4031 = vmatpush1.bf16.msra.mxu0 0
        %4032 = vmatprep.subr.bf16.mxu0 0
        %4033 = vmatpush1.bf16.msra.mxu0 0
        %4034 = vmatprep.subr.bf16.mxu0 0
        %4035 = vmatpush1.bf16.msra.mxu0 0
        %4036 = vmatprep.subr.bf16.mxu0 0
        %4037 = vmatpush1.bf16.msra.mxu0 0
        %4038 = vmatprep.subr.bf16.mxu0 0
        %4039 = vmatpush1.bf16.msra.mxu0 0
        %4040 = vmatprep.subr.bf16.mxu0 0
        %4041 = vmatpush1.bf16.msra.mxu0 0
        %4042 = vmatprep.subr.bf16.mxu0 0
        %4043 = vmatpush1.bf16.msra.mxu0 0
        %4044 = vmatprep.subr.bf16.mxu0 0
        %4045 = vmatpush1.bf16.msra.mxu0 0
        %4046 = vmatprep.subr.bf16.mxu0 0
        %4047 = vmatpush1.bf16.msra.mxu0 0
        %4048 = vmatprep.subr.bf16.mxu0 0
        %4049 = vmatpush1.bf16.msra.mxu0 0
        %4050 = vmatprep.subr.bf16.mxu0 0
        %4051 = vmatpush1.bf16.msra.mxu0 0
        %4052 = vmatprep.subr.bf16.mxu0 0
        %4053 = vmatpush1.bf16.msra.mxu0 0
        %4054 = vmatprep.subr.bf16.mxu0 0
        %4055 = vmatpush1.bf16.msra.mxu0 0
        %4056 = vmatprep.subr.bf16.mxu0 0
        %4057 = vmatpush1.bf16.msra.mxu0 0
        %4058 = vmatprep.subr.bf16.mxu0 0
        %4059 = vmatpush1.bf16.msra.mxu0 0
        %4060 = vmatprep.mubr.bf16.mxu0 0
        %4061 = vmatmul.mubr.bf16.gmra.mrb[0].mxu0 %v4017
        %v4062 = vpop.f32.mrb[0].mxu0
        %v4063 = vadd.f32 0.0, %v4062
        %v4064 = vpop.f32.mrb[0].mxu0
        %v4065 = vpop.f32.mrb[0].mxu0
        %v4066 = vadd.f32 0.0, %v4065
        %v4067 = vpop.f32.mrb[0].mxu0
        %4068 = vmatprep.mubr.bf16.mxu0 0
        %4069 = vmatmul.mubr.bf16.gmra.mrb[0].mxu0 %v4020
        %v4070 = vpop.f32.mrb[0].mxu0
        %v4071 = vadd.f32 0.0, %v4070
        %v4072 = vpop.f32.mrb[0].mxu0
        %v4073 = vpop.f32.mrb[0].mxu0
        %v4074 = vadd.f32 0.0, %v4073
        %v4075 = vpop.f32.mrb[0].mxu0
        %4076 = vmatprep.mubr.bf16.mxu0 0
        %4077 = vmatmul.mubr.bf16.gmra.mrb[0].mxu0 %v4023
        %v4078 = vpop.f32.mrb[0].mxu0
        %v4079 = vadd.f32 0.0, %v4078
        %v4080 = vpop.f32.mrb[0].mxu0
        %v4081 = vpop.f32.mrb[0].mxu0
        %v4082 = vadd.f32 0.0, %v4081
        %v4083 = vpop.f32.mrb[0].mxu0
        %4084 = vmatprep.mubr.bf16.mxu0 0
        %4085 = vmatmul.mubr.bf16.gmra.mrb[0].mxu0 %v4026
        %v4086 = vpop.f32.mrb[0].mxu0
        %v4087 = vadd.f32 0.0, %v4086
        %v4088 = vpop.f32.mrb[0].mxu0
        %v4089 = vpop.f32.mrb[0].mxu0
        %v4090 = vadd.f32 0.0, %v4089
        %v4091 = vpop.f32.mrb[0].mxu0
        %4092 = vdwg.mxu0
        %v4093 = vmul.f32 %v4063, %v3370
        %v4094 = vmul.f32 %v4066, %v3370
        %v4095 = vmul.f32 %v4071, %v3370
        %v4096 = vmul.f32 %v4074, %v3370
        %v4097 = vmul.f32 %v4079, %v3370
        %v4098 = vmul.f32 %v4082, %v3370
        %v4099 = vmul.f32 %v4087, %v3370
        %v4100 = vmul.f32 %v4090, %v3370
        %v4101 = vadd.f32 %v4093, %v3384
        %v4102 = vadd.f32 %v4094, %v3384
        %v4103 = vadd.f32 %v4095, %v3384
        %v4104 = vadd.f32 %v4096, %v3384
        %v4105 = vadd.f32 %v4097, %v3384
        %v4106 = vadd.f32 %v4098, %v3384
        %v4107 = vadd.f32 %v4099, %v3384
        %v4108 = vadd.f32 %v4100, %v3384
        %v4109 = vmax.f32 %v4101, 0.0
        %v4110 = vmax.f32 %v4102, 0.0
        %v4111 = vmax.f32 %v4103, 0.0
        %v4112 = vmax.f32 %v4104, 0.0
        %v4113 = vmax.f32 %v4105, 0.0
        %v4114 = vmax.f32 %v4106, 0.0
        %v4115 = vmax.f32 %v4107, 0.0
        %v4116 = vmax.f32 %v4108, 0.0
        %4117 = vst.msk [vmem:[#allocation11] sm:$0xff] %vm2026, %v4109
        %4118 = vst.msk [vmem:[#allocation11 + $0x8] sm:$0xff] %vm2026, %v4110
        %4119 = vst.msk [vmem:[#allocation11 + $0x10] sm:$0xff] %vm2026, %v4111
        %4120 = vst.msk [vmem:[#allocation11 + $0x18] sm:$0xff] %vm2026, %v4112
        %4121 = vst.msk [vmem:[#allocation11 + $0x20] sm:$0xff] %vm2026, %v4113
        %4122 = vst.msk [vmem:[#allocation11 + $0x28] sm:$0xff] %vm2026, %v4114
        %4123 = vst.msk [vmem:[#allocation11 + $0x30] sm:$0xff] %vm2026, %v4115
        %4124 = vst.msk [vmem:[#allocation11 + $0x38] sm:$0xff] %vm2026, %v4116
        %v4125 = vld [vmem:[#allocation11] ss:$4 sm:$0xff]
        %v4126 = vld [vmem:[%s3411] ss:$4 sm:$0xff]
        %v4127 = vld [vmem:[%s3413] ss:$4 sm:$0xff]
        %v4128 = vld [vmem:[%s3415] ss:$4 sm:$0xff]
        %v4129 = vmax.f32 %v4125, %v4127
        %v4130 = vmax.f32 %v4126, %v4128
        %v4131 = vld [vmem:[%s3419] ss:$4 sm:$0xff]
        %v4132 = vld [vmem:[%s3421] ss:$4 sm:$0xff]
        %v4133 = vmax.f32 %v4129, %v4131
        %v4134 = vmax.f32 %v4130, %v4132
        %v4135 = vld [vmem:[%s3425] ss:$4 sm:$0xff]
        %v4136 = vld [vmem:[%s3427] ss:$4 sm:$0xff]
        %v4137 = vmax.f32 %v4133, %v4135
        %v4138 = vmax.f32 %v4134, %v4136
        %v4139 = vadd.f32 %v3092, %v4137
        %v4140 = vadd.f32 %v3093, %v4138
        %v4141 = vsel %vm2026, %v4139, 0.0
        %v4142 = vsel %vm2026, %v4140, 0.0
        %v4143 = vadd.f32 %v4141, %v4142
        %v4144 = vrot.slane %v4143, 4
        %v4145 = vadd.f32 %v4143, %v4144
        %v4146 = vrot.slane %v4145, 2
        %v4147 = vadd.f32 %v4145, %v4146
        %v4148 = vrot.slane %v4147, 1
        %v4149 = vadd.f32 %v4147, %v4148
        %v4150 = vmul.f32 %v4149, %v3442
        %v4152 = vsel %vm2026, %v4150, 0
        %4154 = vmatprep.subr.mxu0 0.0
        %4155 = vmatpush1.msra.mxu0 %v3105
        %4156 = vmatprep.subr.mxu0 0.0
        %4157 = vmatpush1.msra.mxu0 %v3106
        %4158 = vmatprep.subr.mxu0 0.0
        %4159 = vmatpush1.msra.mxu0 %v3107
        %4160 = vmatprep.subr.mxu0 0.0
        %4161 = vmatpush1.msra.mxu0 %v3108
        %4162 = vmatprep.subr.mxu0 0.0
        %4163 = vmatpush1.msra.mxu0 0.0
        %4164 = vmatprep.subr.mxu0 0.0
        %4165 = vmatpush1.msra.mxu0 0.0
        %4166 = vmatprep.subr.mxu0 0.0
        %4167 = vmatpush1.msra.mxu0 0.0
        %4168 = vmatprep.subr.mxu0 0.0
        %4169 = vmatpush1.msra.mxu0 0.0
        %4170 = vmatprep.subr.mxu0 0.0
        %4171 = vmatpush1.msra.mxu0 0.0
        %4172 = vmatprep.subr.mxu0 0.0
        %4173 = vmatpush1.msra.mxu0 0.0
        %4174 = vmatprep.subr.mxu0 0.0
        %4175 = vmatpush1.msra.mxu0 0.0
        %4176 = vmatprep.subr.mxu0 0.0
        %4177 = vmatpush1.msra.mxu0 0.0
        %4178 = vmatprep.subr.mxu0 0.0
        %4179 = vmatpush1.msra.mxu0 0.0
        %4180 = vmatprep.subr.mxu0 0.0
        %4181 = vmatpush1.msra.mxu0 0.0
        %4182 = vmatprep.subr.mxu0 0.0
        %4183 = vmatpush1.msra.mxu0 0.0
        %4184 = vmatprep.subr.mxu0 0.0
        %4185 = vmatpush1.msra.mxu0 0.0
        %4186 = vmatprep.subr.mxu0 0.0
        %4187 = vmatpush1.msra.mxu0 0.0
        %4188 = vmatprep.subr.mxu0 0.0
        %4189 = vmatpush1.msra.mxu0 0.0
        %4190 = vmatprep.subr.mxu0 0.0
        %4191 = vmatpush1.msra.mxu0 0.0
        %4192 = vmatprep.subr.mxu0 0.0
        %4193 = vmatpush1.msra.mxu0 0.0
        %4194 = vmatprep.subr.mxu0 0.0
        %4195 = vmatpush1.msra.mxu0 0.0
        %4196 = vmatprep.subr.mxu0 0.0
        %4197 = vmatpush1.msra.mxu0 0.0
        %4198 = vmatprep.subr.mxu0 0.0
        %4199 = vmatpush1.msra.mxu0 0.0
        %4200 = vmatprep.subr.mxu0 0.0
        %4201 = vmatpush1.msra.mxu0 0.0
        %4202 = vmatprep.subr.mxu0 0.0
        %4203 = vmatpush1.msra.mxu0 0.0
        %4204 = vmatprep.subr.mxu0 0.0
        %4205 = vmatpush1.msra.mxu0 0.0
        %4206 = vmatprep.subr.mxu0 0.0
        %4207 = vmatpush1.msra.mxu0 0.0
        %4208 = vmatprep.subr.mxu0 0.0
        %4209 = vmatpush1.msra.mxu0 0.0
        %4210 = vmatprep.subr.mxu0 0.0
        %4211 = vmatpush1.msra.mxu0 0.0
        %4212 = vmatprep.subr.mxu0 0.0
        %4213 = vmatpush1.msra.mxu0 0.0
        %4214 = vmatprep.subr.mxu0 0.0
        %4215 = vmatpush1.msra.mxu0 0.0
        %4216 = vmatprep.subr.mxu0 0.0
        %4217 = vmatpush1.msra.mxu0 0.0
        %4218 = vmatprep.mubr.f32.mxu0 0.0
        %4219 = vmatmul.mubr.f32.gmra.mrb[0].mxu0 %v4152
        %v4220 = vpop.f32.mrb[0].mxu0
        %v4221 = vadd.f32 0.0, %v4220
        %v4222 = vpop.f32.mrb[0].mxu0
        %4223 = vdwg.mxu0
        %v4224 = vxor.u32 %v4221, 2147483648
        %v4225 = vmul.f32 %v4224, 1.442695
        %v4226 = vpow.pop %v4225
        %v4227 = vadd.f32 %v4226, 1.0
        %v4228 = vrcp.pop %v4227
        %v4229 = vmul.f32 1.0, %v4228
        %v4230 = vlaneseq
        %v4231 = vshrl.u32 %v4230, 7
        %v4232 = vsub.s32 0, %v4231
        %v4233 = vrot.slane %v4229, %v4232
        %v4234 = vmul.f32 %v4139, %v4233
        %v4235 = vmul.f32 %v4140, %v4233
        %v4236 = vadd.f32 %v4234, %v4139
        %v4237 = vadd.f32 %v4235, %v4140
        %v4238 = vpack.c.bf16 %v4237, %v4236
        %v4240 = vsel %vm2026, %v4238, 0
        %4242 = vmatprep.subr.bf16.mxu0 0
        %4243 = vmatpush1.bf16.msra.mxu0 %v3540
        %4244 = vmatprep.subr.bf16.mxu0 0
        %4245 = vmatpush1.bf16.msra.mxu0 %v3541
        %4246 = vmatprep.subr.bf16.mxu0 0
        %4247 = vmatpush1.bf16.msra.mxu0 0
        %4248 = vmatprep.subr.bf16.mxu0 0
        %4249 = vmatpush1.bf16.msra.mxu0 0
        %4250 = vmatprep.subr.bf16.mxu0 0
        %4251 = vmatpush1.bf16.msra.mxu0 0
        %4252 = vmatprep.subr.bf16.mxu0 0
        %4253 = vmatpush1.bf16.msra.mxu0 0
        %4254 = vmatprep.subr.bf16.mxu0 0
        %4255 = vmatpush1.bf16.msra.mxu0 0
        %4256 = vmatprep.subr.bf16.mxu0 0
        %4257 = vmatpush1.bf16.msra.mxu0 0
        %4258 = vmatprep.subr.bf16.mxu0 0
        %4259 = vmatpush1.bf16.msra.mxu0 0
        %4260 = vmatprep.subr.bf16.mxu0 0
        %4261 = vmatpush1.bf16.msra.mxu0 0
        %4262 = vmatprep.subr.bf16.mxu0 0
        %4263 = vmatpush1.bf16.msra.mxu0 0
        %4264 = vmatprep.subr.bf16.mxu0 0
        %4265 = vmatpush1.bf16.msra.mxu0 0
        %4266 = vmatprep.subr.bf16.mxu0 0
        %4267 = vmatpush1.bf16.msra.mxu0 0
        %4268 = vmatprep.subr.bf16.mxu0 0
        %4269 = vmatpush1.bf16.msra.mxu0 0
        %4270 = vmatprep.subr.bf16.mxu0 0
        %4271 = vmatpush1.bf16.msra.mxu0 0
        %4272 = vmatprep.subr.bf16.mxu0 0
        %4273 = vmatpush1.bf16.msra.mxu0 0
        %4274 = vmatprep.mubr.bf16.mxu0 0
        %4275 = vmatmul.mubr.bf16.gmra.mrb[0].mxu0 %v4240
        %v4276 = vpop.f32.mrb[0].mxu0
        %v4277 = vadd.f32 0.0, %v4276
        %v4278 = vpop.f32.mrb[0].mxu0
        %v4279 = vpop.f32.mrb[0].mxu0
        %v4280 = vadd.f32 0.0, %v4279
        %v4281 = vpop.f32.mrb[0].mxu0
        %4282 = vdwg.mxu0
        %v4283 = vmul.f32 %v4277, %v3592
        %v4284 = vmul.f32 %v4280, %v3592
        %v4285 = vadd.f32 %v4283, %v3600
        %v4286 = vadd.f32 %v4284, %v3600
        %v4287 = vmax.f32 %v4285, 0.0
        %v4288 = vmax.f32 %v4286, 0.0
        %4289 = vst.msk [vmem:[#allocation12] sm:$0xff] %vm2046, %v4287
        %4290 = vst.msk [vmem:[#allocation12 + $0x8] sm:$0xff] %vm2046, %v4288
        %v4291 = vld [vmem:[#allocation12] ss:$4 sm:$0xf]
        %v4292 = vld [vmem:[%s3609] ss:$4 sm:$0xf]
        %v4293 = vmax.f32 %v4291, %v4292
        %v4294 = vld [vmem:[%s3612] ss:$4 sm:$0xf]
        %v4295 = vmax.f32 %v4293, %v4294
        %v4296 = vld [vmem:[%s3615] ss:$4 sm:$0xf]
        %v4297 = vmax.f32 %v4295, %v4296
        %v4298 = vadd.f32 %v3094, %v4297
        %v4299 = vsel %vm2895, %v4298, 0.0
        %v4300 = vrot.slane %v4299, 4
        %v4301 = vadd.f32 %v4299, %v4300
        %v4302 = vrot.slane %v4301, 2
        %v4303 = vadd.f32 %v4301, %v4302
        %v4304 = vrot.slane %v4303, 1
        %v4305 = vadd.f32 %v4303, %v4304
        %v4306 = vmul.f32 %v4305, %v3626
        %v4308 = vsel %vm2046, %v4306, 0
        %4310 = vmatprep.subr.mxu0 0.0
        %4311 = vmatpush1.msra.mxu0 %v3121
        %4312 = vmatprep.subr.mxu0 0.0
        %4313 = vmatpush1.msra.mxu0 %v3122
        %4314 = vmatprep.subr.mxu0 0.0
        %4315 = vmatpush1.msra.mxu0 %v3123
        %4316 = vmatprep.subr.mxu0 0.0
        %4317 = vmatpush1.msra.mxu0 %v3124
        %4318 = vmatprep.subr.mxu0 0.0
        %4319 = vmatpush1.msra.mxu0 %v3125
        %4320 = vmatprep.subr.mxu0 0.0
        %4321 = vmatpush1.msra.mxu0 %v3126
        %4322 = vmatprep.subr.mxu0 0.0
        %4323 = vmatpush1.msra.mxu0 %v3127
        %4324 = vmatprep.subr.mxu0 0.0
        %4325 = vmatpush1.msra.mxu0 %v3128
        %4326 = vmatprep.subr.mxu0 0.0
        %4327 = vmatpush1.msra.mxu0 0.0
        %4328 = vmatprep.subr.mxu0 0.0
        %4329 = vmatpush1.msra.mxu0 0.0
        %4330 = vmatprep.subr.mxu0 0.0
        %4331 = vmatpush1.msra.mxu0 0.0
        %4332 = vmatprep.subr.mxu0 0.0
        %4333 = vmatpush1.msra.mxu0 0.0
        %4334 = vmatprep.subr.mxu0 0.0
        %4335 = vmatpush1.msra.mxu0 0.0
        %4336 = vmatprep.subr.mxu0 0.0
        %4337 = vmatpush1.msra.mxu0 0.0
        %4338 = vmatprep.subr.mxu0 0.0
        %4339 = vmatpush1.msra.mxu0 0.0
        %4340 = vmatprep.subr.mxu0 0.0
        %4341 = vmatpush1.msra.mxu0 0.0
        %4342 = vmatprep.subr.mxu0 0.0
        %4343 = vmatpush1.msra.mxu0 0.0
        %4344 = vmatprep.subr.mxu0 0.0
        %4345 = vmatpush1.msra.mxu0 0.0
        %4346 = vmatprep.subr.mxu0 0.0
        %4347 = vmatpush1.msra.mxu0 0.0
        %4348 = vmatprep.subr.mxu0 0.0
        %4349 = vmatpush1.msra.mxu0 0.0
        %4350 = vmatprep.subr.mxu0 0.0
        %4351 = vmatpush1.msra.mxu0 0.0
        %4352 = vmatprep.subr.mxu0 0.0
        %4353 = vmatpush1.msra.mxu0 0.0
        %4354 = vmatprep.subr.mxu0 0.0
        %4355 = vmatpush1.msra.mxu0 0.0
        %4356 = vmatprep.subr.mxu0 0.0
        %4357 = vmatpush1.msra.mxu0 0.0
        %4358 = vmatprep.subr.mxu0 0.0
        %4359 = vmatpush1.msra.mxu0 0.0
        %4360 = vmatprep.subr.mxu0 0.0
        %4361 = vmatpush1.msra.mxu0 0.0
        %4362 = vmatprep.subr.mxu0 0.0
        %4363 = vmatpush1.msra.mxu0 0.0
        %4364 = vmatprep.subr.mxu0 0.0
        %4365 = vmatpush1.msra.mxu0 0.0
        %4366 = vmatprep.subr.mxu0 0.0
        %4367 = vmatpush1.msra.mxu0 0.0
        %4368 = vmatprep.subr.mxu0 0.0
        %4369 = vmatpush1.msra.mxu0 0.0
        %4370 = vmatprep.subr.mxu0 0.0
        %4371 = vmatpush1.msra.mxu0 0.0
        %4372 = vmatprep.subr.mxu0 0.0
        %4373 = vmatpush1.msra.mxu0 0.0
        %4374 = vmatprep.mubr.f32.mxu0 0.0
        %4375 = vmatmul.mubr.f32.gmra.mrb[0].mxu0 %v4308
        %v4376 = vpop.f32.mrb[0].mxu0
        %v4377 = vadd.f32 0.0, %v4376
        %v4378 = vpop.f32.mrb[0].mxu0
        %4379 = vdwg.mxu0
        %v4380 = vxor.u32 %v4377, 2147483648
        %v4381 = vmul.f32 %v4380, 1.442695
        %v4382 = vpow.pop %v4381
        %v4383 = vadd.f32 %v4382, 1.0
        %v4384 = vrcp.pop %v4383
        %v4385 = vmul.f32 1.0, %v4384
        %v4386 = vlaneseq
        %v4387 = vshrl.u32 %v4386, 7
        %v4388 = vsub.s32 0, %v4387
        %v4389 = vrot.slane %v4385, %v4388
        %v4390 = vmul.f32 %v4298, %v4389
        %v4391 = vadd.f32 %v4390, %v4298
        %v4392 = vpack.c.bf16 %v4391, %v4391
        %v4394 = vsel %vm2046, %v4392, 0
        %4396 = vmatprep.subr.bf16.mxu0 0
        %4397 = vmatpush1.bf16.msra.mxu0 %v3730
        %4398 = vmatprep.subr.bf16.mxu0 0
        %4399 = vmatpush1.bf16.msra.mxu0 %v3731
        %4400 = vmatprep.subr.bf16.mxu0 0
        %4401 = vmatpush1.bf16.msra.mxu0 %v3732
        %4402 = vmatprep.subr.bf16.mxu0 0
        %4403 = vmatpush1.bf16.msra.mxu0 %v3733
        %4404 = vmatprep.subr.bf16.mxu0 0
        %4405 = vmatpush1.bf16.msra.mxu0 0
        %4406 = vmatprep.subr.bf16.mxu0 0
        %4407 = vmatpush1.bf16.msra.mxu0 0
        %4408 = vmatprep.subr.bf16.mxu0 0
        %4409 = vmatpush1.bf16.msra.mxu0 0
        %4410 = vmatprep.subr.bf16.mxu0 0
        %4411 = vmatpush1.bf16.msra.mxu0 0
        %4412 = vmatprep.subr.bf16.mxu0 0
        %4413 = vmatpush1.bf16.msra.mxu0 0
        %4414 = vmatprep.subr.bf16.mxu0 0
        %4415 = vmatpush1.bf16.msra.mxu0 0
        %4416 = vmatprep.subr.bf16.mxu0 0
        %4417 = vmatpush1.bf16.msra.mxu0 0
        %4418 = vmatprep.subr.bf16.mxu0 0
        %4419 = vmatpush1.bf16.msra.mxu0 0
        %4420 = vmatprep.subr.bf16.mxu0 0
        %4421 = vmatpush1.bf16.msra.mxu0 0
        %4422 = vmatprep.subr.bf16.mxu0 0
        %4423 = vmatpush1.bf16.msra.mxu0 0
        %4424 = vmatprep.subr.bf16.mxu0 0
        %4425 = vmatpush1.bf16.msra.mxu0 0
        %4426 = vmatprep.subr.bf16.mxu0 0
        %4427 = vmatpush1.bf16.msra.mxu0 0
        %4428 = vmatprep.mubr.bf16.mxu0 0
        %4429 = vmatmul.mubr.bf16.gmra.mrb[0].mxu0 %v4394
        %v4430 = vpop.f32.mrb[0].mxu0
        %v4431 = vadd.f32 0.0, %v4430
        %v4432 = vpop.f32.mrb[0].mxu0
        %v4433 = vpop.f32.mrb[0].mxu0
        %v4434 = vpop.f32.mrb[0].mxu0
        %4435 = vdwg.mxu0
        %v4436 = vmul.f32 %v4431, %v3785
        %v4437 = vadd.f32 %v4436, %v3792
        %v4438 = vmax.f32 %v4437, 0.0
        %4439 = vst [vmem:[#allocation13] sm:$0xf] %v4438
        %v4440 = vld [vmem:[#allocation13] ss:$2 sm:$0x3]
        %v4441 = vld [vmem:[%s3798] ss:$2 sm:$0x3]
        %v4442 = vmax.f32 %v4440, %v4441
        %v4443 = vsel %vm1644, %v4442, 0.0
        %v4444 = vrot.slane %v4443, 4
        %v4445 = vadd.f32 %v4443, %v4444
        %v4446 = vrot.slane %v4445, 2
        %v4447 = vadd.f32 %v4445, %v4446
        %v4448 = vrot.slane %v4447, 1
        %v4449 = vadd.f32 %v4447, %v4448
        %v4450 = vmul.f32 %v4449, %v3808
        %v4451 = vpack.c.bf16 %v4450, %v4450
        %s4452 = scalar_lea.vmem %s63, 64
        %v4453 = vld [vmem:[%s4452] sm:$0xf]
        %v4454 = vld [vmem:[%s4452 + $0x4] sm:$0xf]
        %v4455 = vld [vmem:[%s4452 + $0x8] sm:$0xf]
        %v4456 = vld [vmem:[%s4452 + $0xc] sm:$0xf]
        %v4457 = vld [vmem:[%s4452 + $0x10] sm:$0xf]
        %v4458 = vld [vmem:[%s4452 + $0x14] sm:$0xf]
        %v4459 = vld [vmem:[%s4452 + $0x18] sm:$0xf]
        %v4460 = vld [vmem:[%s4452 + $0x1c] sm:$0xf]
        %v4461 = vld [vmem:[%s4452 + $0x20] sm:$0xf]
        %v4462 = vld [vmem:[%s4452 + $0x24] sm:$0xf]
        %v4463 = vld [vmem:[%s4452 + $0x28] sm:$0xf]
        %v4464 = vld [vmem:[%s4452 + $0x2c] sm:$0xf]
        %v4465 = vld [vmem:[%s4452 + $0x30] sm:$0xf]
        %v4466 = vld [vmem:[%s4452 + $0x34] sm:$0xf]
        %v4467 = vld [vmem:[%s4452 + $0x38] sm:$0xf]
        %v4468 = vld [vmem:[%s4452 + $0x3c] sm:$0xf]
        %s4469 = scalar_lea.vmem [#allocation37], 1
        %v4470 = vld [vmem:[%s4469] sm:$0x1]
        %v4487 = vunpack.c.l.b16 %v4453
        %v4488 = vunpack.c.l.b16 %v4454
        %v4489 = vunpack.c.l.b16 %v4455
        %v4490 = vunpack.c.l.b16 %v4456
        %v4491 = vunpack.c.l.b16 %v4457
        %v4492 = vunpack.c.l.b16 %v4458
        %v4493 = vunpack.c.l.b16 %v4459
        %v4494 = vunpack.c.l.b16 %v4460
        %v4495 = vunpack.c.l.b16 %v4461
        %v4496 = vunpack.c.l.b16 %v4462
        %v4497 = vunpack.c.l.b16 %v4463
        %v4498 = vunpack.c.l.b16 %v4464
        %v4499 = vunpack.c.l.b16 %v4465
        %v4500 = vunpack.c.l.b16 %v4466
        %v4501 = vunpack.c.l.b16 %v4467
        %v4502 = vunpack.c.l.b16 %v4468
        %v4503 = vpack.c.b16 %v4488, %v4487
        %v4504 = vpack.c.b16 %v4490, %v4489
        %v4505 = vpack.c.b16 %v4492, %v4491
        %v4506 = vpack.c.b16 %v4494, %v4493
        %v4507 = vpack.c.b16 %v4496, %v4495
        %v4508 = vpack.c.b16 %v4498, %v4497
        %v4509 = vpack.c.b16 %v4500, %v4499
        %v4510 = vpack.c.b16 %v4502, %v4501
        %4519 = vmatprep.subr.bf16.mxu0 0
        %4520 = vmatpush1.bf16.msra.mxu0 %v4503
        %4521 = vmatprep.subr.bf16.mxu0 0
        %4522 = vmatpush1.bf16.msra.mxu0 %v4504
        %4523 = vmatprep.subr.bf16.mxu0 0
        %4524 = vmatpush1.bf16.msra.mxu0 %v4505
        %4525 = vmatprep.subr.bf16.mxu0 0
        %4526 = vmatpush1.bf16.msra.mxu0 %v4506
        %4527 = vmatprep.subr.bf16.mxu0 0
        %4528 = vmatpush1.bf16.msra.mxu0 %v4507
        %4529 = vmatprep.subr.bf16.mxu0 0
        %4530 = vmatpush1.bf16.msra.mxu0 %v4508
        %4531 = vmatprep.subr.bf16.mxu0 0
        %4532 = vmatpush1.bf16.msra.mxu0 %v4509
        %4533 = vmatprep.subr.bf16.mxu0 0
        %4534 = vmatpush1.bf16.msra.mxu0 %v4510
        %4535 = vmatprep.subr.bf16.mxu0 0
        %4536 = vmatpush1.bf16.msra.mxu0 0
        %4537 = vmatprep.subr.bf16.mxu0 0
        %4538 = vmatpush1.bf16.msra.mxu0 0
        %4539 = vmatprep.subr.bf16.mxu0 0
        %4540 = vmatpush1.bf16.msra.mxu0 0
        %4541 = vmatprep.subr.bf16.mxu0 0
        %4542 = vmatpush1.bf16.msra.mxu0 0
        %4543 = vmatprep.subr.bf16.mxu0 0
        %4544 = vmatpush1.bf16.msra.mxu0 0
        %4545 = vmatprep.subr.bf16.mxu0 0
        %4546 = vmatpush1.bf16.msra.mxu0 0
        %4547 = vmatprep.subr.bf16.mxu0 0
        %4548 = vmatpush1.bf16.msra.mxu0 0
        %4549 = vmatprep.subr.bf16.mxu0 0
        %4550 = vmatpush1.bf16.msra.mxu0 0
        %4551 = vmatprep.mubr.bf16.mxu0 0
        %4552 = vmatmul.mubr.bf16.gmra.mrb[0].mxu0 %v4451
        %v4553 = vpop.f32.mrb[0].mxu0
        %v4554 = vadd.f32 %v4470, %v4553
        %v4555 = vpop.f32.mrb[0].mxu0
        %v4556 = vpop.f32.mrb[0].mxu0
        %v4557 = vpop.f32.mrb[0].mxu0
        %4558 = vdwg.mxu0
        %4559 = vmatprep.subr.mxu0 0.0
        %4560 = vmatpush1.msra.mxu0 %v3099
        %4561 = vmatprep.subr.mxu0 0.0
        %4562 = vmatpush1.msra.mxu0 %v3100
        %4563 = vmatprep.subr.mxu0 0.0
        %4564 = vmatpush1.msra.mxu0 0.0
        %4565 = vmatprep.subr.mxu0 0.0
        %4566 = vmatpush1.msra.mxu0 0.0
        %4567 = vmatprep.subr.mxu0 0.0
        %4568 = vmatpush1.msra.mxu0 0.0
        %4569 = vmatprep.subr.mxu0 0.0
        %4570 = vmatpush1.msra.mxu0 0.0
        %4571 = vmatprep.subr.mxu0 0.0
        %4572 = vmatpush1.msra.mxu0 0.0
        %4573 = vmatprep.subr.mxu0 0.0
        %4574 = vmatpush1.msra.mxu0 0.0
        %4575 = vmatprep.subr.mxu0 0.0
        %4576 = vmatpush1.msra.mxu0 0.0
        %4577 = vmatprep.subr.mxu0 0.0
        %4578 = vmatpush1.msra.mxu0 0.0
        %4579 = vmatprep.subr.mxu0 0.0
        %4580 = vmatpush1.msra.mxu0 0.0
        %4581 = vmatprep.subr.mxu0 0.0
        %4582 = vmatpush1.msra.mxu0 0.0
        %4583 = vmatprep.subr.mxu0 0.0
        %4584 = vmatpush1.msra.mxu0 0.0
        %4585 = vmatprep.subr.mxu0 0.0
        %4586 = vmatpush1.msra.mxu0 0.0
        %4587 = vmatprep.subr.mxu0 0.0
        %4588 = vmatpush1.msra.mxu0 0.0
        %4589 = vmatprep.subr.mxu0 0.0
        %4590 = vmatpush1.msra.mxu0 0.0
        %4591 = vmatprep.subr.mxu0 0.0
        %4592 = vmatpush1.msra.mxu0 0.0
        %4593 = vmatprep.subr.mxu0 0.0
        %4594 = vmatpush1.msra.mxu0 0.0
        %4595 = vmatprep.subr.mxu0 0.0
        %4596 = vmatpush1.msra.mxu0 0.0
        %4597 = vmatprep.subr.mxu0 0.0
        %4598 = vmatpush1.msra.mxu0 0.0
        %4599 = vmatprep.subr.mxu0 0.0
        %4600 = vmatpush1.msra.mxu0 0.0
        %4601 = vmatprep.subr.mxu0 0.0
        %4602 = vmatpush1.msra.mxu0 0.0
        %4603 = vmatprep.subr.mxu0 0.0
        %4604 = vmatpush1.msra.mxu0 0.0
        %4605 = vmatprep.subr.mxu0 0.0
        %4606 = vmatpush1.msra.mxu0 0.0
        %4607 = vmatprep.subr.mxu0 0.0
        %4608 = vmatpush1.msra.mxu0 0.0
        %4609 = vmatprep.subr.mxu0 0.0
        %4610 = vmatpush1.msra.mxu0 0.0
        %4611 = vmatprep.subr.mxu0 0.0
        %4612 = vmatpush1.msra.mxu0 0.0
        %4613 = vmatprep.subr.mxu0 0.0
        %4614 = vmatpush1.msra.mxu0 0.0
        %4615 = vmatprep.subr.mxu0 0.0
        %4616 = vmatpush1.msra.mxu0 0.0
        %4617 = vmatprep.subr.mxu0 0.0
        %4618 = vmatpush1.msra.mxu0 0.0
        %4619 = vmatprep.subr.mxu0 0.0
        %4620 = vmatpush1.msra.mxu0 0.0
        %4621 = vmatprep.subr.mxu0 0.0
        %4622 = vmatpush1.msra.mxu0 0.0
        %4623 = vmatprep.mubr.f32.mxu0 0.0
        %4624 = vmatmul.mubr.f32.gmra.mrb[0].mxu0 %v3181
        %v4625 = vpop.f32.mrb[0].mxu0
        %v4626 = vadd.f32 0.0, %v4625
        %v4627 = vpop.f32.mrb[0].mxu0
        %4628 = vdwg.mxu0
        %v4629 = vxor.u32 %v4626, 2147483648
        %v4630 = vmul.f32 %v4629, 1.442695
        %v4631 = vpow.pop %v4630
        %v4632 = vadd.f32 %v4631, 1.0
        %v4633 = vrcp.pop %v4632
        %v4634 = vmul.f32 1.0, %v4633
        %v4635 = vlaneseq
        %v4636 = vshrl.u32 %v4635, 7
        %v4637 = vsub.s32 0, %v4636
        %v4638 = vrot.slane %v4634, %v4637
        %v4639 = vmul.f32 %v3084, %v4638
        %v4640 = vmul.f32 %v3085, %v4638
        %v4641 = vmul.f32 %v3086, %v4638
        %v4642 = vmul.f32 %v3087, %v4638
        %v4643 = vmul.f32 %v3088, %v4638
        %v4644 = vmul.f32 %v3089, %v4638
        %v4645 = vmul.f32 %v3090, %v4638
        %v4646 = vmul.f32 %v3091, %v4638
        %v4647 = vadd.f32 %v4639, %v3084
        %v4648 = vadd.f32 %v4640, %v3085
        %v4649 = vadd.f32 %v4641, %v3086
        %v4650 = vadd.f32 %v4642, %v3087
        %v4651 = vadd.f32 %v4643, %v3088
        %v4652 = vadd.f32 %v4644, %v3089
        %v4653 = vadd.f32 %v4645, %v3090
        %v4654 = vadd.f32 %v4646, %v3091
        %v4655 = vpack.c.bf16 %v4648, %v4647
        %v4656 = vpack.c.bf16 %v4650, %v4649
        %v4657 = vpack.c.bf16 %v4652, %v4651
        %v4658 = vpack.c.bf16 %v4654, %v4653
        %v4660 = vsel %vm1721, %v4655, 0
        %v4663 = vsel %vm1721, %v4656, 0
        %v4666 = vsel %vm1721, %v4657, 0
        %v4669 = vsel %vm1721, %v4658, 0
        %4671 = vmatprep.subr.bf16.mxu0 0
        %4672 = vmatpush1.bf16.msra.mxu0 %v3287
        %4673 = vmatprep.subr.bf16.mxu0 0
        %4674 = vmatpush1.bf16.msra.mxu0 0
        %4675 = vmatprep.subr.bf16.mxu0 0
        %4676 = vmatpush1.bf16.msra.mxu0 0
        %4677 = vmatprep.subr.bf16.mxu0 0
        %4678 = vmatpush1.bf16.msra.mxu0 0
        %4679 = vmatprep.subr.bf16.mxu0 0
        %4680 = vmatpush1.bf16.msra.mxu0 0
        %4681 = vmatprep.subr.bf16.mxu0 0
        %4682 = vmatpush1.bf16.msra.mxu0 0
        %4683 = vmatprep.subr.bf16.mxu0 0
        %4684 = vmatpush1.bf16.msra.mxu0 0
        %4685 = vmatprep.subr.bf16.mxu0 0
        %4686 = vmatpush1.bf16.msra.mxu0 0
        %4687 = vmatprep.subr.bf16.mxu0 0
        %4688 = vmatpush1.bf16.msra.mxu0 0
        %4689 = vmatprep.subr.bf16.mxu0 0
        %4690 = vmatpush1.bf16.msra.mxu0 0
        %4691 = vmatprep.subr.bf16.mxu0 0
        %4692 = vmatpush1.bf16.msra.mxu0 0
        %4693 = vmatprep.subr.bf16.mxu0 0
        %4694 = vmatpush1.bf16.msra.mxu0 0
        %4695 = vmatprep.subr.bf16.mxu0 0
        %4696 = vmatpush1.bf16.msra.mxu0 0
        %4697 = vmatprep.subr.bf16.mxu0 0
        %4698 = vmatpush1.bf16.msra.mxu0 0
        %4699 = vmatprep.subr.bf16.mxu0 0
        %4700 = vmatpush1.bf16.msra.mxu0 0
        %4701 = vmatprep.subr.bf16.mxu0 0
        %4702 = vmatpush1.bf16.msra.mxu0 0
        %4703 = vmatprep.mubr.bf16.mxu0 0
        %4704 = vmatmul.mubr.bf16.gmra.mrb[0].mxu0 %v4660
        %v4705 = vpop.f32.mrb[0].mxu0
        %v4706 = vadd.f32 0.0, %v4705
        %v4707 = vpop.f32.mrb[0].mxu0
        %v4708 = vpop.f32.mrb[0].mxu0
        %v4709 = vadd.f32 0.0, %v4708
        %v4710 = vpop.f32.mrb[0].mxu0
        %4711 = vmatprep.mubr.bf16.mxu0 0
        %4712 = vmatmul.mubr.bf16.gmra.mrb[0].mxu0 %v4663
        %v4713 = vpop.f32.mrb[0].mxu0
        %v4714 = vadd.f32 0.0, %v4713
        %v4715 = vpop.f32.mrb[0].mxu0
        %v4716 = vpop.f32.mrb[0].mxu0
        %v4717 = vadd.f32 0.0, %v4716
        %v4718 = vpop.f32.mrb[0].mxu0
        %4719 = vmatprep.mubr.bf16.mxu0 0
        %4720 = vmatmul.mubr.bf16.gmra.mrb[0].mxu0 %v4666
        %v4721 = vpop.f32.mrb[0].mxu0
        %v4722 = vadd.f32 0.0, %v4721
        %v4723 = vpop.f32.mrb[0].mxu0
        %v4724 = vpop.f32.mrb[0].mxu0
        %v4725 = vadd.f32 0.0, %v4724
        %v4726 = vpop.f32.mrb[0].mxu0
        %4727 = vmatprep.mubr.bf16.mxu0 0
        %4728 = vmatmul.mubr.bf16.gmra.mrb[0].mxu0 %v4669
        %v4729 = vpop.f32.mrb[0].mxu0
        %v4730 = vadd.f32 0.0, %v4729
        %v4731 = vpop.f32.mrb[0].mxu0
        %v4732 = vpop.f32.mrb[0].mxu0
        %v4733 = vadd.f32 0.0, %v4732
        %v4734 = vpop.f32.mrb[0].mxu0
        %4735 = vdwg.mxu0
        %v4736 = vmul.f32 %v4706, %v3370
        %v4737 = vmul.f32 %v4709, %v3370
        %v4738 = vmul.f32 %v4714, %v3370
        %v4739 = vmul.f32 %v4717, %v3370
        %v4740 = vmul.f32 %v4722, %v3370
        %v4741 = vmul.f32 %v4725, %v3370
        %v4742 = vmul.f32 %v4730, %v3370
        %v4743 = vmul.f32 %v4733, %v3370
        %v4744 = vadd.f32 %v4736, %v3384
        %v4745 = vadd.f32 %v4737, %v3384
        %v4746 = vadd.f32 %v4738, %v3384
        %v4747 = vadd.f32 %v4739, %v3384
        %v4748 = vadd.f32 %v4740, %v3384
        %v4749 = vadd.f32 %v4741, %v3384
        %v4750 = vadd.f32 %v4742, %v3384
        %v4751 = vadd.f32 %v4743, %v3384
        %v4752 = vmax.f32 %v4744, 0.0
        %v4753 = vmax.f32 %v4745, 0.0
        %v4754 = vmax.f32 %v4746, 0.0
        %v4755 = vmax.f32 %v4747, 0.0
        %v4756 = vmax.f32 %v4748, 0.0
        %v4757 = vmax.f32 %v4749, 0.0
        %v4758 = vmax.f32 %v4750, 0.0
        %v4759 = vmax.f32 %v4751, 0.0
        %4760 = vst.msk [vmem:[#allocation11] sm:$0xff] %vm2026, %v4752
        %4761 = vst.msk [vmem:[#allocation11 + $0x8] sm:$0xff] %vm2026, %v4753
        %4762 = vst.msk [vmem:[#allocation11 + $0x10] sm:$0xff] %vm2026, %v4754
        %4763 = vst.msk [vmem:[#allocation11 + $0x18] sm:$0xff] %vm2026, %v4755
        %4764 = vst.msk [vmem:[#allocation11 + $0x20] sm:$0xff] %vm2026, %v4756
        %4765 = vst.msk [vmem:[#allocation11 + $0x28] sm:$0xff] %vm2026, %v4757
        %4766 = vst.msk [vmem:[#allocation11 + $0x30] sm:$0xff] %vm2026, %v4758
        %4767 = vst.msk [vmem:[#allocation11 + $0x38] sm:$0xff] %vm2026, %v4759
        %v4768 = vld [vmem:[#allocation11] ss:$4 sm:$0xff]
        %v4769 = vld [vmem:[%s3411] ss:$4 sm:$0xff]
        %v4770 = vld [vmem:[%s3413] ss:$4 sm:$0xff]
        %v4771 = vld [vmem:[%s3415] ss:$4 sm:$0xff]
        %v4772 = vmax.f32 %v4768, %v4770
        %v4773 = vmax.f32 %v4769, %v4771
        %v4774 = vld [vmem:[%s3419] ss:$4 sm:$0xff]
        %v4775 = vld [vmem:[%s3421] ss:$4 sm:$0xff]
        %v4776 = vmax.f32 %v4772, %v4774
        %v4777 = vmax.f32 %v4773, %v4775
        %v4778 = vld [vmem:[%s3425] ss:$4 sm:$0xff]
        %v4779 = vld [vmem:[%s3427] ss:$4 sm:$0xff]
        %v4780 = vmax.f32 %v4776, %v4778
        %v4781 = vmax.f32 %v4777, %v4779
        %v4782 = vadd.f32 %v3092, %v4780
        %v4783 = vadd.f32 %v3093, %v4781
        %v4784 = vsel %vm2026, %v4782, 0.0
        %v4785 = vsel %vm2026, %v4783, 0.0
        %v4786 = vadd.f32 %v4784, %v4785
        %v4787 = vrot.slane %v4786, 4
        %v4788 = vadd.f32 %v4786, %v4787
        %v4789 = vrot.slane %v4788, 2
        %v4790 = vadd.f32 %v4788, %v4789
        %v4791 = vrot.slane %v4790, 1
        %v4792 = vadd.f32 %v4790, %v4791
        %v4793 = vmul.f32 %v4792, %v3442
        %v4795 = vsel %vm2026, %v4793, 0
        %4797 = vmatprep.subr.mxu0 0.0
        %4798 = vmatpush1.msra.mxu0 %v3109
        %4799 = vmatprep.subr.mxu0 0.0
        %4800 = vmatpush1.msra.mxu0 %v3110
        %4801 = vmatprep.subr.mxu0 0.0
        %4802 = vmatpush1.msra.mxu0 %v3111
        %4803 = vmatprep.subr.mxu0 0.0
        %4804 = vmatpush1.msra.mxu0 %v3112
        %4805 = vmatprep.subr.mxu0 0.0
        %4806 = vmatpush1.msra.mxu0 0.0
        %4807 = vmatprep.subr.mxu0 0.0
        %4808 = vmatpush1.msra.mxu0 0.0
        %4809 = vmatprep.subr.mxu0 0.0
        %4810 = vmatpush1.msra.mxu0 0.0
        %4811 = vmatprep.subr.mxu0 0.0
        %4812 = vmatpush1.msra.mxu0 0.0
        %4813 = vmatprep.subr.mxu0 0.0
        %4814 = vmatpush1.msra.mxu0 0.0
        %4815 = vmatprep.subr.mxu0 0.0
        %4816 = vmatpush1.msra.mxu0 0.0
        %4817 = vmatprep.subr.mxu0 0.0
        %4818 = vmatpush1.msra.mxu0 0.0
        %4819 = vmatprep.subr.mxu0 0.0
        %4820 = vmatpush1.msra.mxu0 0.0
        %4821 = vmatprep.subr.mxu0 0.0
        %4822 = vmatpush1.msra.mxu0 0.0
        %4823 = vmatprep.subr.mxu0 0.0
        %4824 = vmatpush1.msra.mxu0 0.0
        %4825 = vmatprep.subr.mxu0 0.0
        %4826 = vmatpush1.msra.mxu0 0.0
        %4827 = vmatprep.subr.mxu0 0.0
        %4828 = vmatpush1.msra.mxu0 0.0
        %4829 = vmatprep.subr.mxu0 0.0
        %4830 = vmatpush1.msra.mxu0 0.0
        %4831 = vmatprep.subr.mxu0 0.0
        %4832 = vmatpush1.msra.mxu0 0.0
        %4833 = vmatprep.subr.mxu0 0.0
        %4834 = vmatpush1.msra.mxu0 0.0
        %4835 = vmatprep.subr.mxu0 0.0
        %4836 = vmatpush1.msra.mxu0 0.0
        %4837 = vmatprep.subr.mxu0 0.0
        %4838 = vmatpush1.msra.mxu0 0.0
        %4839 = vmatprep.subr.mxu0 0.0
        %4840 = vmatpush1.msra.mxu0 0.0
        %4841 = vmatprep.subr.mxu0 0.0
        %4842 = vmatpush1.msra.mxu0 0.0
        %4843 = vmatprep.subr.mxu0 0.0
        %4844 = vmatpush1.msra.mxu0 0.0
        %4845 = vmatprep.subr.mxu0 0.0
        %4846 = vmatpush1.msra.mxu0 0.0
        %4847 = vmatprep.subr.mxu0 0.0
        %4848 = vmatpush1.msra.mxu0 0.0
        %4849 = vmatprep.subr.mxu0 0.0
        %4850 = vmatpush1.msra.mxu0 0.0
        %4851 = vmatprep.subr.mxu0 0.0
        %4852 = vmatpush1.msra.mxu0 0.0
        %4853 = vmatprep.subr.mxu0 0.0
        %4854 = vmatpush1.msra.mxu0 0.0
        %4855 = vmatprep.subr.mxu0 0.0
        %4856 = vmatpush1.msra.mxu0 0.0
        %4857 = vmatprep.subr.mxu0 0.0
        %4858 = vmatpush1.msra.mxu0 0.0
        %4859 = vmatprep.subr.mxu0 0.0
        %4860 = vmatpush1.msra.mxu0 0.0
        %4861 = vmatprep.mubr.f32.mxu0 0.0
        %4862 = vmatmul.mubr.f32.gmra.mrb[0].mxu0 %v4795
        %v4863 = vpop.f32.mrb[0].mxu0
        %v4864 = vadd.f32 0.0, %v4863
        %v4865 = vpop.f32.mrb[0].mxu0
        %4866 = vdwg.mxu0
        %v4867 = vxor.u32 %v4864, 2147483648
        %v4868 = vmul.f32 %v4867, 1.442695
        %v4869 = vpow.pop %v4868
        %v4870 = vadd.f32 %v4869, 1.0
        %v4871 = vrcp.pop %v4870
        %v4872 = vmul.f32 1.0, %v4871
        %v4873 = vlaneseq
        %v4874 = vshrl.u32 %v4873, 7
        %v4875 = vsub.s32 0, %v4874
        %v4876 = vrot.slane %v4872, %v4875
        %v4877 = vmul.f32 %v4782, %v4876
        %v4878 = vmul.f32 %v4783, %v4876
        %v4879 = vadd.f32 %v4877, %v4782
        %v4880 = vadd.f32 %v4878, %v4783
        %v4881 = vpack.c.bf16 %v4880, %v4879
        %v4883 = vsel %vm2026, %v4881, 0
        %4885 = vmatprep.subr.bf16.mxu0 0
        %4886 = vmatpush1.bf16.msra.mxu0 %v3540
        %4887 = vmatprep.subr.bf16.mxu0 0
        %4888 = vmatpush1.bf16.msra.mxu0 %v3541
        %4889 = vmatprep.subr.bf16.mxu0 0
        %4890 = vmatpush1.bf16.msra.mxu0 0
        %4891 = vmatprep.subr.bf16.mxu0 0
        %4892 = vmatpush1.bf16.msra.mxu0 0
        %4893 = vmatprep.subr.bf16.mxu0 0
        %4894 = vmatpush1.bf16.msra.mxu0 0
        %4895 = vmatprep.subr.bf16.mxu0 0
        %4896 = vmatpush1.bf16.msra.mxu0 0
        %4897 = vmatprep.subr.bf16.mxu0 0
        %4898 = vmatpush1.bf16.msra.mxu0 0
        %4899 = vmatprep.subr.bf16.mxu0 0
        %4900 = vmatpush1.bf16.msra.mxu0 0
        %4901 = vmatprep.subr.bf16.mxu0 0
        %4902 = vmatpush1.bf16.msra.mxu0 0
        %4903 = vmatprep.subr.bf16.mxu0 0
        %4904 = vmatpush1.bf16.msra.mxu0 0
        %4905 = vmatprep.subr.bf16.mxu0 0
        %4906 = vmatpush1.bf16.msra.mxu0 0
        %4907 = vmatprep.subr.bf16.mxu0 0
        %4908 = vmatpush1.bf16.msra.mxu0 0
        %4909 = vmatprep.subr.bf16.mxu0 0
        %4910 = vmatpush1.bf16.msra.mxu0 0
        %4911 = vmatprep.subr.bf16.mxu0 0
        %4912 = vmatpush1.bf16.msra.mxu0 0
        %4913 = vmatprep.subr.bf16.mxu0 0
        %4914 = vmatpush1.bf16.msra.mxu0 0
        %4915 = vmatprep.subr.bf16.mxu0 0
        %4916 = vmatpush1.bf16.msra.mxu0 0
        %4917 = vmatprep.mubr.bf16.mxu0 0
        %4918 = vmatmul.mubr.bf16.gmra.mrb[0].mxu0 %v4883
        %v4919 = vpop.f32.mrb[0].mxu0
        %v4920 = vadd.f32 0.0, %v4919
        %v4921 = vpop.f32.mrb[0].mxu0
        %v4922 = vpop.f32.mrb[0].mxu0
        %v4923 = vadd.f32 0.0, %v4922
        %v4924 = vpop.f32.mrb[0].mxu0
        %4925 = vdwg.mxu0
        %v4926 = vmul.f32 %v4920, %v3592
        %v4927 = vmul.f32 %v4923, %v3592
        %v4928 = vadd.f32 %v4926, %v3600
        %v4929 = vadd.f32 %v4927, %v3600
        %v4930 = vmax.f32 %v4928, 0.0
        %v4931 = vmax.f32 %v4929, 0.0
        %4932 = vst.msk [vmem:[#allocation12] sm:$0xff] %vm2046, %v4930
        %4933 = vst.msk [vmem:[#allocation12 + $0x8] sm:$0xff] %vm2046, %v4931
        %v4934 = vld [vmem:[#allocation12] ss:$4 sm:$0xf]
        %v4935 = vld [vmem:[%s3609] ss:$4 sm:$0xf]
        %v4936 = vmax.f32 %v4934, %v4935
        %v4937 = vld [vmem:[%s3612] ss:$4 sm:$0xf]
        %v4938 = vmax.f32 %v4936, %v4937
        %v4939 = vld [vmem:[%s3615] ss:$4 sm:$0xf]
        %v4940 = vmax.f32 %v4938, %v4939
        %v4941 = vadd.f32 %v3094, %v4940
        %v4942 = vsel %vm2895, %v4941, 0.0
        %v4943 = vrot.slane %v4942, 4
        %v4944 = vadd.f32 %v4942, %v4943
        %v4945 = vrot.slane %v4944, 2
        %v4946 = vadd.f32 %v4944, %v4945
        %v4947 = vrot.slane %v4946, 1
        %v4948 = vadd.f32 %v4946, %v4947
        %v4949 = vmul.f32 %v4948, %v3626
        %v4951 = vsel %vm2046, %v4949, 0
        %4953 = vmatprep.subr.mxu0 0.0
        %4954 = vmatpush1.msra.mxu0 %v3129
        %4955 = vmatprep.subr.mxu0 0.0
        %4956 = vmatpush1.msra.mxu0 %v3130
        %4957 = vmatprep.subr.mxu0 0.0
        %4958 = vmatpush1.msra.mxu0 %v3131
        %4959 = vmatprep.subr.mxu0 0.0
        %4960 = vmatpush1.msra.mxu0 %v3132
        %4961 = vmatprep.subr.mxu0 0.0
        %4962 = vmatpush1.msra.mxu0 %v3133
        %4963 = vmatprep.subr.mxu0 0.0
        %4964 = vmatpush1.msra.mxu0 %v3134
        %4965 = vmatprep.subr.mxu0 0.0
        %4966 = vmatpush1.msra.mxu0 %v3135
        %4967 = vmatprep.subr.mxu0 0.0
        %4968 = vmatpush1.msra.mxu0 %v3136
        %4969 = vmatprep.subr.mxu0 0.0
        %4970 = vmatpush1.msra.mxu0 0.0
        %4971 = vmatprep.subr.mxu0 0.0
        %4972 = vmatpush1.msra.mxu0 0.0
        %4973 = vmatprep.subr.mxu0 0.0
        %4974 = vmatpush1.msra.mxu0 0.0
        %4975 = vmatprep.subr.mxu0 0.0
        %4976 = vmatpush1.msra.mxu0 0.0
        %4977 = vmatprep.subr.mxu0 0.0
        %4978 = vmatpush1.msra.mxu0 0.0
        %4979 = vmatprep.subr.mxu0 0.0
        %4980 = vmatpush1.msra.mxu0 0.0
        %4981 = vmatprep.subr.mxu0 0.0
        %4982 = vmatpush1.msra.mxu0 0.0
        %4983 = vmatprep.subr.mxu0 0.0
        %4984 = vmatpush1.msra.mxu0 0.0
        %4985 = vmatprep.subr.mxu0 0.0
        %4986 = vmatpush1.msra.mxu0 0.0
        %4987 = vmatprep.subr.mxu0 0.0
        %4988 = vmatpush1.msra.mxu0 0.0
        %4989 = vmatprep.subr.mxu0 0.0
        %4990 = vmatpush1.msra.mxu0 0.0
        %4991 = vmatprep.subr.mxu0 0.0
        %4992 = vmatpush1.msra.mxu0 0.0
        %4993 = vmatprep.subr.mxu0 0.0
        %4994 = vmatpush1.msra.mxu0 0.0
        %4995 = vmatprep.subr.mxu0 0.0
        %4996 = vmatpush1.msra.mxu0 0.0
        %4997 = vmatprep.subr.mxu0 0.0
        %4998 = vmatpush1.msra.mxu0 0.0
        %4999 = vmatprep.subr.mxu0 0.0
        %5000 = vmatpush1.msra.mxu0 0.0
        %5001 = vmatprep.subr.mxu0 0.0
        %5002 = vmatpush1.msra.mxu0 0.0
        %5003 = vmatprep.subr.mxu0 0.0
        %5004 = vmatpush1.msra.mxu0 0.0
        %5005 = vmatprep.subr.mxu0 0.0
        %5006 = vmatpush1.msra.mxu0 0.0
        %5007 = vmatprep.subr.mxu0 0.0
        %5008 = vmatpush1.msra.mxu0 0.0
        %5009 = vmatprep.subr.mxu0 0.0
        %5010 = vmatpush1.msra.mxu0 0.0
        %5011 = vmatprep.subr.mxu0 0.0
        %5012 = vmatpush1.msra.mxu0 0.0
        %5013 = vmatprep.subr.mxu0 0.0
        %5014 = vmatpush1.msra.mxu0 0.0
        %5015 = vmatprep.subr.mxu0 0.0
        %5016 = vmatpush1.msra.mxu0 0.0
        %5017 = vmatprep.mubr.f32.mxu0 0.0
        %5018 = vmatmul.mubr.f32.gmra.mrb[0].mxu0 %v4951
        %v5019 = vpop.f32.mrb[0].mxu0
        %v5020 = vadd.f32 0.0, %v5019
        %v5021 = vpop.f32.mrb[0].mxu0
        %5022 = vdwg.mxu0
        %v5023 = vxor.u32 %v5020, 2147483648
        %v5024 = vmul.f32 %v5023, 1.442695
        %v5025 = vpow.pop %v5024
        %v5026 = vadd.f32 %v5025, 1.0
        %v5027 = vrcp.pop %v5026
        %v5028 = vmul.f32 1.0, %v5027
        %v5029 = vlaneseq
        %v5030 = vshrl.u32 %v5029, 7
        %v5031 = vsub.s32 0, %v5030
        %v5032 = vrot.slane %v5028, %v5031
        %v5033 = vmul.f32 %v4941, %v5032
        %v5034 = vadd.f32 %v5033, %v4941
        %v5035 = vpack.c.bf16 %v5034, %v5034
        %v5037 = vsel %vm2046, %v5035, 0
        %5039 = vmatprep.subr.bf16.mxu0 0
        %5040 = vmatpush1.bf16.msra.mxu0 %v3730
        %5041 = vmatprep.subr.bf16.mxu0 0
        %5042 = vmatpush1.bf16.msra.mxu0 %v3731
        %5043 = vmatprep.subr.bf16.mxu0 0
        %5044 = vmatpush1.bf16.msra.mxu0 %v3732
        %5045 = vmatprep.subr.bf16.mxu0 0
        %5046 = vmatpush1.bf16.msra.mxu0 %v3733
        %5047 = vmatprep.subr.bf16.mxu0 0
        %5048 = vmatpush1.bf16.msra.mxu0 0
        %5049 = vmatprep.subr.bf16.mxu0 0
        %5050 = vmatpush1.bf16.msra.mxu0 0
        %5051 = vmatprep.subr.bf16.mxu0 0
        %5052 = vmatpush1.bf16.msra.mxu0 0
        %5053 = vmatprep.subr.bf16.mxu0 0
        %5054 = vmatpush1.bf16.msra.mxu0 0
        %5055 = vmatprep.subr.bf16.mxu0 0
        %5056 = vmatpush1.bf16.msra.mxu0 0
        %5057 = vmatprep.subr.bf16.mxu0 0
        %5058 = vmatpush1.bf16.msra.mxu0 0
        %5059 = vmatprep.subr.bf16.mxu0 0
        %5060 = vmatpush1.bf16.msra.mxu0 0
        %5061 = vmatprep.subr.bf16.mxu0 0
        %5062 = vmatpush1.bf16.msra.mxu0 0
        %5063 = vmatprep.subr.bf16.mxu0 0
        %5064 = vmatpush1.bf16.msra.mxu0 0
        %5065 = vmatprep.subr.bf16.mxu0 0
        %5066 = vmatpush1.bf16.msra.mxu0 0
        %5067 = vmatprep.subr.bf16.mxu0 0
        %5068 = vmatpush1.bf16.msra.mxu0 0
        %5069 = vmatprep.subr.bf16.mxu0 0
        %5070 = vmatpush1.bf16.msra.mxu0 0
        %5071 = vmatprep.mubr.bf16.mxu0 0
        %5072 = vmatmul.mubr.bf16.gmra.mrb[0].mxu0 %v5037
        %v5073 = vpop.f32.mrb[0].mxu0
        %v5074 = vadd.f32 0.0, %v5073
        %v5075 = vpop.f32.mrb[0].mxu0
        %v5076 = vpop.f32.mrb[0].mxu0
        %v5077 = vpop.f32.mrb[0].mxu0
        %5078 = vdwg.mxu0
        %v5079 = vmul.f32 %v5074, %v3785
        %v5080 = vadd.f32 %v5079, %v3792
        %v5081 = vmax.f32 %v5080, 0.0
        %5082 = vst [vmem:[#allocation13] sm:$0xf] %v5081
        %v5083 = vld [vmem:[#allocation13] ss:$2 sm:$0x3]
        %v5084 = vld [vmem:[%s3798] ss:$2 sm:$0x3]
        %v5085 = vmax.f32 %v5083, %v5084
        %v5086 = vsel %vm1644, %v5085, 0.0
        %v5087 = vrot.slane %v5086, 4
        %v5088 = vadd.f32 %v5086, %v5087
        %v5089 = vrot.slane %v5088, 2
        %v5090 = vadd.f32 %v5088, %v5089
        %v5091 = vrot.slane %v5090, 1
        %v5092 = vadd.f32 %v5090, %v5091
        %v5093 = vmul.f32 %v5092, %v3808
        %v5094 = vpack.c.bf16 %v5093, %v5093
        %s5095 = scalar_lea.vmem %s63, 128
        %v5096 = vld [vmem:[%s5095] sm:$0xf]
        %v5097 = vld [vmem:[%s5095 + $0x4] sm:$0xf]
        %v5098 = vld [vmem:[%s5095 + $0x8] sm:$0xf]
        %v5099 = vld [vmem:[%s5095 + $0xc] sm:$0xf]
        %v5100 = vld [vmem:[%s5095 + $0x10] sm:$0xf]
        %v5101 = vld [vmem:[%s5095 + $0x14] sm:$0xf]
        %v5102 = vld [vmem:[%s5095 + $0x18] sm:$0xf]
        %v5103 = vld [vmem:[%s5095 + $0x1c] sm:$0xf]
        %v5104 = vld [vmem:[%s5095 + $0x20] sm:$0xf]
        %v5105 = vld [vmem:[%s5095 + $0x24] sm:$0xf]
        %v5106 = vld [vmem:[%s5095 + $0x28] sm:$0xf]
        %v5107 = vld [vmem:[%s5095 + $0x2c] sm:$0xf]
        %v5108 = vld [vmem:[%s5095 + $0x30] sm:$0xf]
        %v5109 = vld [vmem:[%s5095 + $0x34] sm:$0xf]
        %v5110 = vld [vmem:[%s5095 + $0x38] sm:$0xf]
        %v5111 = vld [vmem:[%s5095 + $0x3c] sm:$0xf]
        %s5112 = scalar_lea.vmem [#allocation37], 2
        %v5113 = vld [vmem:[%s5112] sm:$0x1]
        %v5130 = vunpack.c.l.b16 %v5096
        %v5131 = vunpack.c.l.b16 %v5097
        %v5132 = vunpack.c.l.b16 %v5098
        %v5133 = vunpack.c.l.b16 %v5099
        %v5134 = vunpack.c.l.b16 %v5100
        %v5135 = vunpack.c.l.b16 %v5101
        %v5136 = vunpack.c.l.b16 %v5102
        %v5137 = vunpack.c.l.b16 %v5103
        %v5138 = vunpack.c.l.b16 %v5104
        %v5139 = vunpack.c.l.b16 %v5105
        %v5140 = vunpack.c.l.b16 %v5106
        %v5141 = vunpack.c.l.b16 %v5107
        %v5142 = vunpack.c.l.b16 %v5108
        %v5143 = vunpack.c.l.b16 %v5109
        %v5144 = vunpack.c.l.b16 %v5110
        %v5145 = vunpack.c.l.b16 %v5111
        %v5146 = vpack.c.b16 %v5131, %v5130
        %v5147 = vpack.c.b16 %v5133, %v5132
        %v5148 = vpack.c.b16 %v5135, %v5134
        %v5149 = vpack.c.b16 %v5137, %v5136
        %v5150 = vpack.c.b16 %v5139, %v5138
        %v5151 = vpack.c.b16 %v5141, %v5140
        %v5152 = vpack.c.b16 %v5143, %v5142
        %v5153 = vpack.c.b16 %v5145, %v5144
        %5162 = vmatprep.subr.bf16.mxu0 0
        %5163 = vmatpush1.bf16.msra.mxu0 %v5146
        %5164 = vmatprep.subr.bf16.mxu0 0
        %5165 = vmatpush1.bf16.msra.mxu0 %v5147
        %5166 = vmatprep.subr.bf16.mxu0 0
        %5167 = vmatpush1.bf16.msra.mxu0 %v5148
        %5168 = vmatprep.subr.bf16.mxu0 0
        %5169 = vmatpush1.bf16.msra.mxu0 %v5149
        %5170 = vmatprep.subr.bf16.mxu0 0
        %5171 = vmatpush1.bf16.msra.mxu0 %v5150
        %5172 = vmatprep.subr.bf16.mxu0 0
        %5173 = vmatpush1.bf16.msra.mxu0 %v5151
        %5174 = vmatprep.subr.bf16.mxu0 0
        %5175 = vmatpush1.bf16.msra.mxu0 %v5152
        %5176 = vmatprep.subr.bf16.mxu0 0
        %5177 = vmatpush1.bf16.msra.mxu0 %v5153
        %5178 = vmatprep.subr.bf16.mxu0 0
        %5179 = vmatpush1.bf16.msra.mxu0 0
        %5180 = vmatprep.subr.bf16.mxu0 0
        %5181 = vmatpush1.bf16.msra.mxu0 0
        %5182 = vmatprep.subr.bf16.mxu0 0
        %5183 = vmatpush1.bf16.msra.mxu0 0
        %5184 = vmatprep.subr.bf16.mxu0 0
        %5185 = vmatpush1.bf16.msra.mxu0 0
        %5186 = vmatprep.subr.bf16.mxu0 0
        %5187 = vmatpush1.bf16.msra.mxu0 0
        %5188 = vmatprep.subr.bf16.mxu0 0
        %5189 = vmatpush1.bf16.msra.mxu0 0
        %5190 = vmatprep.subr.bf16.mxu0 0
        %5191 = vmatpush1.bf16.msra.mxu0 0
        %5192 = vmatprep.subr.bf16.mxu0 0
        %5193 = vmatpush1.bf16.msra.mxu0 0
        %5194 = vmatprep.mubr.bf16.mxu0 0
        %5195 = vmatmul.mubr.bf16.gmra.mrb[0].mxu0 %v5094
        %v5196 = vpop.f32.mrb[0].mxu0
        %v5197 = vadd.f32 %v5113, %v5196
        %v5198 = vpop.f32.mrb[0].mxu0
        %v5199 = vpop.f32.mrb[0].mxu0
        %v5200 = vpop.f32.mrb[0].mxu0
        %5201 = vdwg.mxu0
        %v5205 = vcombine.low %v3911, %v4554
        %v5207 = vunpack.c.l.s4 1966171168
        %v5208 = vunpack.c.0.s8 %v5207
        %v5209 = vlaneseq
        %v5210 = vshrl.u32 %v5209, 7
        %v5211 = vsub.s32 %v5208, %v5210
        %v5212 = vrot.slane %v5205, %v5211
        %v5214 = vunpack.c.l.s4 1966171168
        %v5215 = vunpack.c.0.s8 %v5214
        %v5216 = vlaneseq
        %v5217 = vshrl.u32 %v5216, 7
        %v5218 = vsub.s32 %v5215, %v5217
        %v5219 = vrot.slane %v5197, %v5218
        %v5220 = vcombine.low %v5212, %v5219
        %v5222 = vunpack.c.l.s4 1966171168
        %v5223 = vunpack.c.0.s8 %v5222
        %v5224 = vlaneseq
        %v5225 = vshrl.u32 %v5224, 7
        %v5226 = vsub.s32 %v5223, %v5225
        %v5227 = vrot.slane %v5220, %v5226
        %v5229 = vlaneseq
        %vm5230 = vcmp.ge.s32.totalorder %v5229, 0
        %vm5231 = vcmp.lt.s32.totalorder %v5229, 384
        %vm5232 = vmand %vm5230, %vm5231
        %5233 = vst.msk [vmem:[%s1221] sm:$0x7] %vm5232, %v5227
        %p5234 = scmp.lt.s32.totalorder %s87, 1
        %s5235 = scalar_select %p5234, %s87, 1
        %s5236 = smul.addr %s5235, 3
        %s5237 = scalar_lea.vmem %s67, %s5236
        // Predicated region
        $region217: #{mtagnp_forward.1} parent=151 // pred_check
          %p5238 = pneg %p803
        $region218: #{mtagnp_forward.1} parent=151 // pred_check_branch
          %5240 = sbr.rel (%p5238) target = $region220
        $region219: #{mtagnp_forward.1} parent=151 // pred_region
          _
        $region220: #{mtagnp_forward.1} parent=151 // pred_fallthru
          _
      $region152: #{mtagnp_forward.1} parent=5 // pred_fallthru
        _
      %p5241 = scmp.le.s32.totalorder 2, %s82
      // Predicated region
      $region221: #{mtagnp_forward.1} parent=5 // pred_check
        %p5242 = pneg %p5241
      $region222: #{mtagnp_forward.1} parent=5 // pred_check_branch
        %5244 = sbr.rel (%p5242) target = $region224
      $region223: #{mtagnp_forward.1} parent=5 // pred_region
        %s5245 = ssub.s32 %s82, 2
        // Predicated region
        $region225: #{mtagnp_forward.1} parent=223 // pred_check
          %p5246 = pneg %p809
        $region226: #{mtagnp_forward.1} parent=223 // pred_check_branch
          %5248 = sbr.rel (%p5246) target = $region228
        $region227: #{mtagnp_forward.1} parent=223 // pred_region
          %p5249 = scmp.lt.s32.totalorder %s88, 1
          %s5250 = scalar_select %p5249, %s88, 1
          %s5251 = smul.addr %s5250, 3
          %s5252 = scalar_lea.vmem %s67, %s5251
        $region228: #{mtagnp_forward.1} parent=223 // pred_fallthru
          _
      $region224: #{mtagnp_forward.1} parent=5 // pred_fallthru
        _
    $region6: #{mtagnp_forward.1} parent=1 // loop_footer
      %s86 = sadd.s32 1, %s82
    $region7: #{mtagnp_forward.1} parent=1 // loop_footer_branch
      %81 = sbr.rel target = $region3
    $region8: #{mtagnp_forward.1} parent=1 // loop_exit
      _
    %5253 = vsyncpa [#allocation15], 1
    %s5254 = scalar_lea.sflag [#allocation15], 1
    %5255 = vsyncpa %s5254, 1
    %5256 = vsyncpa [#allocation17], 1
    %5257 = vsyncpa [#allocation20], 1
    %5258 = vsyncpa [#allocation23], 1
    %5259 = vsyncpa [#allocation26], 1
    %5260 = vsyncpa [#allocation29], 1
    %5261 = vsyncpa [#allocation32], 1
    %5262 = vsyncpa [#allocation35], 1
    %5263 = vsyncpa [#allocation38], 1

</llo_original>
